<compile_context>
chip_gen: v7x
topology: tpu7x:2x2x1
jax: 0.10.0
libtpu: 0.0.40
codegen_flags: <defaults>
</compile_context>

<pallas_src>
import functools

import jax
import jax.numpy as jnp
from jax.experimental import pallas as pl
from jax.experimental.pallas import tpu as pltpu

LANE = 128
_VMEM_LIMIT = 64 * 1024 * 1024          # usage ~1-2 MiB/step; cap well below physical
_CONCAT_PATCH_MAX_BYTES = 8 * 1024 * 1024  # big-K concat im2col vs tap-accumulate gate


def _round_up(v, m):
    return (v + m - 1) // m * m


def _conv3x3_bf16(xpad, w_ref, Co):
    """3x3 'same' conv of a spatially padded bf16 tile.

    xpad : (H+2, W+2, C) bf16 value (halo already zero).
    w_ref: (9*C, Co) bf16 ref, row order (ky, kx, cin).
    Returns f32 (H*W, Co) accumulated on the MXU.
    """
    Hp, Wp, C = xpad.shape
    H, W = Hp - 2, Wp - 2
    rows = H * W
    if rows * 9 * C * 2 <= _CONCAT_PATCH_MAX_BYTES:
        # single big-K matmul: best MXU cadence when the patch fits VMEM easily
        taps = [xpad[dy:dy + H, dx:dx + W, :].reshape(rows, C)
                for dy in range(3) for dx in range(3)]
        patch = jnp.concatenate(taps, axis=1)                     # (rows, 9*C) bf16
        return jnp.dot(patch, w_ref[...], preferred_element_type=jnp.float32)
    # tap-accumulate form: ~9x lower peak VMEM (large tiles / v7x)
    acc = jnp.zeros((rows, Co), jnp.float32)
    k = 0
    for dy in range(3):
        for dx in range(3):
            tap = xpad[dy:dy + H, dx:dx + W, :].reshape(rows, C)
            acc = acc + jnp.dot(tap, w_ref[k * C:(k + 1) * C, :],
                                preferred_element_type=jnp.float32)
            k += 1
    return acc


# ---------- pass A: conv1 + bias -> y1 (pre-BN, spatially padded, bf16) + partials ----
def _conv1_kernel(xp_ref, w_ref, b_ref, y1p_ref, st_ref, *, H, W):
    Hp, Wp = H + 2, W + 2
    Cpi = xp_ref.shape[-1]
    Cpo = w_ref.shape[-1]

    xpad = xp_ref[...].reshape(Hp, Wp, Cpi)                       # bf16
    acc = _conv3x3_bf16(xpad, w_ref, Cpo) + b_ref[...]            # f32 (H*W, Cpo)

    # single-pass BN partials from the exact f32 accumulator
    s = jnp.sum(acc, axis=0, keepdims=True)
    ss = jnp.sum(acc * acc, axis=0, keepdims=True)
    st_ref[...] = jnp.concatenate([s, ss], axis=0).reshape(1, 2, Cpo)

    # y1 stored already spatially padded: halo zeroed once, interior written once
    zrow = jnp.zeros((1, 1, Wp, Cpo), jnp.bfloat16)
    zcol = jnp.zeros((1, Hp, 1, Cpo), jnp.bfloat16)
    y1p_ref[:, 0:1, :, :] = zrow
    y1p_ref[:, H + 1:H + 2, :, :] = zrow
    y1p_ref[:, :, 0:1, :] = zcol
    y1p_ref[:, :, W + 1:W + 2, :] = zcol
    y1p_ref[:, 1:H + 1, 1:W + 1, :] = acc.reshape(1, H, W, Cpo).astype(jnp.bfloat16)


# ---------- pass B: bn1 (stats folded in-kernel) -> conv2 + bias -> y2 + partials -----
def _bn1_conv2_kernel(y1p_ref, st1_ref, g1_ref, bt1_ref, w_ref, b_ref,
                      y2_ref, st2_ref, *, H, W, count, eps):
    Hp, Wp = H + 2, W + 2
    Cpo = w_ref.shape[-1]

    # fold global BN1 statistics -> per-channel scale/shift (tiny, in-kernel)
    tot = jnp.sum(st1_ref[...], axis=0)                           # (2, Cpo) [sum, sumsq]
    mu = tot[0:1, :] * (1.0 / count)
    var = jnp.maximum(tot[1:2, :] * (1.0 / count) - mu * mu, 0.0)
    scale = g1_ref[...] * jax.lax.rsqrt(var + eps)                # (1, Cpo)
    shift = bt1_ref[...] - mu * scale                             # (1, Cpo)

    # BN1 on the padded tile (f32 VPU math, bf16 loaded tile upcast once).
    # The halo of y1 is zero, so y1*scale is already zero there; mask the shift
    # so the conv2 zero-padding semantics are preserved.
    y1f = y1p_ref[...].reshape(Hp, Wp, Cpo).astype(jnp.float32)
    rr = jax.lax.broadcasted_iota(jnp.int32, (Hp, Wp, Cpo), 0)
    cc = jax.lax.broadcasted_iota(jnp.int32, (Hp, Wp, Cpo), 1)
    interior = (rr >= 1) & (rr <= H) & (cc >= 1) & (cc <= W)
    z = y1f * scale + jnp.where(interior, shift, 0.0)
    zbf = z.astype(jnp.bfloat16)                                  # MXU operand dtype

    acc = _conv3x3_bf16(zbf, w_ref, Cpo) + b_ref[...]             # f32 (H*W, Cpo)

    s = jnp.sum(acc, axis=0, keepdims=True)
    ss = jnp.sum(acc * acc, axis=0, keepdims=True)
    st2_ref[...] = jnp.concatenate([s, ss], axis=0).reshape(1, 2, Cpo)
    y2_ref[...] = acc.reshape(1, H, W, Cpo).astype(y2_ref.dtype)


# ---------- pass C: bn2 (stats folded in-kernel) -> relu -> x ; 2x2 max-pool -> p -----
def _bn2_relu_pool_kernel(y2_ref, st2_ref, g2_ref, bt2_ref, x_ref, p_ref,
                          *, H, W, count, eps):
    Cpo = y2_ref.shape[-1]
    Hh, Wh = H // 2, W // 2

    tot = jnp.sum(st2_ref[...], axis=0)
    mu = tot[0:1, :] * (1.0 / count)
    var = jnp.maximum(tot[1:2, :] * (1.0 / count) - mu * mu, 0.0)
    scale = g2_ref[...] * jax.lax.rsqrt(var + eps)
    shift = bt2_ref[...] - mu * scale

    y = y2_ref[...].astype(jnp.float32).reshape(H * W, Cpo) * scale + shift
    y = jnp.maximum(y, 0.0)
    x_ref[...] = y.reshape(1, H, W, Cpo)

    # 2x2 / stride-2 max pool entirely in registers
    y4 = y.reshape(Hh, 2, Wh, 2, Cpo)
    p = jnp.max(jnp.max(y4, axis=3), axis=1)
    p_ref[...] = p.reshape(1, Hh, Wh, Cpo)


def encoder_block_pallas(x_nchw, w1, b1, g1, bt1, w2, b2, g2, bt2, *, eps=1e-5):
    """x_nchw: (N, Cin, H, W); w*: (3, 3, Cin/Cout, Cout) HWIO; vectors: (C,)."""
    N, Cin, H, W = x_nchw.shape
    Cout = w1.shape[-1]
    assert H % 2 == 0 and W % 2 == 0, "MaxPool2d((2,2)) requires even H, W"
    Hh, Wh = H // 2, W // 2
    Cpi = _round_up(Cin, LANE)   # lane-padded input channels
    Cpo = _round_up(Cout, LANE)  # lane-padded output channels
    f32, bf16 = jnp.float32, jnp.bfloat16
    count = float(N * H * W)

    # NCHW -> NHWC, pad conv halo + channels to lane width, cast MXU operand to bf16.
    x = jnp.transpose(x_nchw, (0, 2, 3, 1)).astype(bf16)
    xp = jnp.pad(x, ((0, 0), (1, 1), (1, 1), (0, Cpi - Cin)))

    def pack_w(w, cin_pad):
        wp = jnp.pad(w.astype(f32),
                     ((0, 0), (0, 0), (0, cin_pad - w.shape[2]), (0, Cpo - w.shape[3])))
        # row order (ky, kx, cin) matches the im2col tap order
        return wp.reshape(9 * cin_pad, Cpo).astype(bf16)

    w1p = pack_w(w1, Cpi)
    w2p = pack_w(w2, Cpo)
    pvec = lambda v: jnp.pad(v.astype(f32), (0, Cpo - Cout)).reshape(1, Cpo)
    b1p, b2p = pvec(b1), pvec(b2)
    g1p, g2p = pvec(g1), pvec(g2)
    bt1p, bt2p = pvec(bt1), pvec(bt2)

    cparams = pltpu.CompilerParams(
        dimension_semantics=("parallel",),     # batch tiles independent -> megacore
        vmem_limit_bytes=_VMEM_LIMIT)

    vec_spec = pl.BlockSpec((1, Cpo), lambda n: (0, 0))
    st_in_spec = pl.BlockSpec((N, 2, Cpo), lambda n: (0, 0, 0))
    st_out_spec = pl.BlockSpec((1, 2, Cpo), lambda n: (n, 0, 0))

    # ---- pass A: conv1 -> padded y1 (bf16) + BN1 partials ----
    y1p, st1 = pl.pallas_call(
        functools.partial(_conv1_kernel, H=H, W=W),
        out_shape=(jax.ShapeDtypeStruct((N, H + 2, W + 2, Cpo), bf16),
                   jax.ShapeDtypeStruct((N, 2, Cpo), f32)),
        grid=(N,),
        in_specs=[pl.BlockSpec((1, H + 2, W + 2, Cpi), lambda n: (n, 0, 0, 0)),
                  pl.BlockSpec((9 * Cpi, Cpo), lambda n: (0, 0)),
                  vec_spec],
        out_specs=(pl.BlockSpec((1, H + 2, W + 2, Cpo), lambda n: (n, 0, 0, 0)),
                   st_out_spec),
        compiler_params=cparams,
    )(xp, w1p, b1p)

    # ---- pass B: bn1 -> conv2 -> y2 (bf16) + BN2 partials ----
    y2, st2 = pl.pallas_call(
        functools.partial(_bn1_conv2_kernel, H=H, W=W, count=count, eps=eps),
        out_shape=(jax.ShapeDtypeStruct((N, H, W, Cpo), bf16),
                   jax.ShapeDtypeStruct((N, 2, Cpo), f32)),
        grid=(N,),
        in_specs=[pl.BlockSpec((1, H + 2, W + 2, Cpo), lambda n: (n, 0, 0, 0)),
                  st_in_spec, vec_spec, vec_spec,
                  pl.BlockSpec((9 * Cpo, Cpo), lambda n: (0, 0)),
                  vec_spec],
        out_specs=(pl.BlockSpec((1, H, W, Cpo), lambda n: (n, 0, 0, 0)),
                   st_out_spec),
        compiler_params=cparams,
    )(y1p, st1, g1p, bt1p, w2p, b2p)

    # ---- pass C: bn2 -> relu -> x ; 2x2 max-pool -> p ----
    x_full, p_full = pl.pallas_call(
        functools.partial(_bn2_relu_pool_kernel, H=H, W=W, count=count, eps=eps),
        out_shape=(jax.ShapeDtypeStruct((N, H, W, Cpo), f32),
                   jax.ShapeDtypeStruct((N, Hh, Wh, Cpo), f32)),
        grid=(N,),
        in_specs=[pl.BlockSpec((1, H, W, Cpo), lambda n: (n, 0, 0, 0)),
                  st_in_spec, vec_spec, vec_spec],
        out_specs=(pl.BlockSpec((1, H, W, Cpo), lambda n: (n, 0, 0, 0)),
                   pl.BlockSpec((1, Hh, Wh, Cpo), lambda n: (n, 0, 0, 0))),
        compiler_params=cparams,
    )(y2, st2, g2p, bt2p)

    # drop channel padding, back to PyTorch NCHW (keep NHWC if the consumer allows)
    x_out = jnp.transpose(x_full[..., :Cout], (0, 3, 1, 2))
    p_out = jnp.transpose(p_full[..., :Cout], (0, 3, 1, 2))
    return x_out, p_out


# ---------------- pure-JAX reference (f32, HIGHEST precision) ----------------
def _bn_train(y, gamma, beta, eps=1e-5):
    mu = jnp.mean(y, axis=(0, 2, 3), keepdims=True)
    var = jnp.mean((y - mu) ** 2, axis=(0, 2, 3), keepdims=True)
    return ((y - mu) * jax.lax.rsqrt(var + eps) * gamma[None, :, None, None]
            + beta[None, :, None, None])


def encoder_block_ref(x, w1, b1, g1, bt1, w2, b2, g2, bt2):
    dn = ('NCHW', 'HWIO', 'NCHW')
    conv = lambda a, w: jax.lax.conv_general_dilated(
        a, w, (1, 1), ((1, 1), (1, 1)), dimension_numbers=dn,
        precision=jax.lax.Precision.HIGHEST)
    y = conv(x, w1) + b1[None, :, None, None]
    y = _bn_train(y, g1, bt1)
    y = conv(y, w2) + b2[None, :, None, None]
    y = _bn_train(y, g2, bt2)
    y = jnp.maximum(y, 0.0)
    p = jax.lax.reduce_window(y, -jnp.inf, jax.lax.max,
                              (1, 1, 2, 2), (1, 1, 2, 2), 'VALID')
    return y, p


if __name__ == "__main__":
    N, Cin, Cout, H, W = 2, 4, 8, 16, 16
    key = jax.random.PRNGKey(0)
    ks = jax.random.split(key, 10)

    x = jax.random.normal(ks[0], (N, Cin, H, W), jnp.float32)
    w1 = 0.25 * jax.random.normal(ks[1], (3, 3, Cin, Cout), jnp.float32)
    b1 = 0.1 * jax.random.normal(ks[2], (Cout,), jnp.float32)
    g1 = 1.0 + 0.1 * jax.random.normal(ks[3], (Cout,), jnp.float32)
    bt1 = 0.1 * jax.random.normal(ks[4], (Cout,), jnp.float32)
    w2 = 0.2 * jax.random.normal(ks[5], (3, 3, Cout, Cout), jnp.float32)
    b2 = 0.1 * jax.random.normal(ks[6], (Cout,), jnp.float32)
    g2 = 1.0 + 0.1 * jax.random.normal(ks[7], (Cout,), jnp.float32)
    bt2 = 0.1 * jax.random.normal(ks[8], (Cout,), jnp.float32)

    params = (w1, b1, g1, bt1, w2, b2, g2, bt2)

    enc = jax.jit(encoder_block_pallas)
    x_k, p_k = enc(x, *params)
    jax.block_until_ready((x_k, p_k))

    x_r, p_r = encoder_block_ref(x, *params)
    err_x = float(jnp.max(jnp.abs(x_k - x_r)))
    err_p = float(jnp.max(jnp.abs(p_k - p_r)))
    # bf16 MXU operands + bf16 inter-pass activations vs. the Precision.HIGHEST
    # f32 reference: expected max-abs deviation is O(1e-2) at these magnitudes.
    assert err_x < 3e-2 and err_p < 3e-2, (err_x, err_p)

    print("KERNEL_OK")
</pallas_src>

<mosaic_0001>
module attributes {stable_mosaic.version = 11 : i64} {
  func.func @_conv1_kernel(%arg0: i32, %arg1: memref<1x18x18x128xbf16, #tpu.memory_space<vmem>>, %arg2: memref<1152x128xbf16, #tpu.memory_space<vmem>>, %arg3: memref<1x128xf32, #tpu.memory_space<vmem>>, %arg4: memref<1x18x18x128xbf16, #tpu.memory_space<vmem>>, %arg5: memref<1x2x128xf32, #tpu.memory_space<vmem>>) attributes {dimension_semantics = [#tpu.dimension_semantics<parallel>], iteration_bounds = array<i64: 2>, scalar_prefetch = 0 : i64, scratch_operands = 0 : i64, tpu.core_type = #tpu.core_type<tc>, window_params = [{transform_indices = @transform_0, window_bounds = array<i64: 1, 18, 18, 128>}, {pipeline_mode = #tpu.pipeline_mode<synchronous>, transform_indices = @transform_1, window_bounds = array<i64: 1152, 128>}, {pipeline_mode = #tpu.pipeline_mode<synchronous>, transform_indices = @transform_2, window_bounds = array<i64: 1, 128>}, {transform_indices = @transform_3, window_bounds = array<i64: 1, 18, 18, 128>}, {transform_indices = @transform_4, window_bounds = array<i64: 1, 2, 128>}]} {
    %c0 = arith.constant 0 : index
    %c0_0 = arith.constant 0 : index
    %c0_1 = arith.constant 0 : index
    %c0_2 = arith.constant 0 : index
    %0 = vector.load %arg1[%c0, %c0_0, %c0_1, %c0_2] : memref<1x18x18x128xbf16, #tpu.memory_space<vmem>>, vector<1x18x18x128xbf16>
    %1 = vector.shape_cast %0 : vector<1x18x18x128xbf16> to vector<18x18x128xbf16>
    %2 = vector.extract_strided_slice %1 {offsets = [0, 0, 0], sizes = [16, 16, 128], strides = [1, 1, 1]} : vector<18x18x128xbf16> to vector<16x16x128xbf16>
    %3 = vector.shape_cast %2 : vector<16x16x128xbf16> to vector<256x128xbf16>
    %4 = vector.extract_strided_slice %1 {offsets = [0, 1, 0], sizes = [16, 16, 128], strides = [1, 1, 1]} : vector<18x18x128xbf16> to vector<16x16x128xbf16>
    %5 = vector.shape_cast %4 : vector<16x16x128xbf16> to vector<256x128xbf16>
    %6 = vector.extract_strided_slice %1 {offsets = [0, 2, 0], sizes = [16, 16, 128], strides = [1, 1, 1]} : vector<18x18x128xbf16> to vector<16x16x128xbf16>
    %7 = vector.shape_cast %6 : vector<16x16x128xbf16> to vector<256x128xbf16>
    %8 = vector.extract_strided_slice %1 {offsets = [1, 0, 0], sizes = [16, 16, 128], strides = [1, 1, 1]} : vector<18x18x128xbf16> to vector<16x16x128xbf16>
    %9 = vector.shape_cast %8 : vector<16x16x128xbf16> to vector<256x128xbf16>
    %10 = vector.extract_strided_slice %1 {offsets = [1, 1, 0], sizes = [16, 16, 128], strides = [1, 1, 1]} : vector<18x18x128xbf16> to vector<16x16x128xbf16>
    %11 = vector.shape_cast %10 : vector<16x16x128xbf16> to vector<256x128xbf16>
    %12 = vector.extract_strided_slice %1 {offsets = [1, 2, 0], sizes = [16, 16, 128], strides = [1, 1, 1]} : vector<18x18x128xbf16> to vector<16x16x128xbf16>
    %13 = vector.shape_cast %12 : vector<16x16x128xbf16> to vector<256x128xbf16>
    %14 = vector.extract_strided_slice %1 {offsets = [2, 0, 0], sizes = [16, 16, 128], strides = [1, 1, 1]} : vector<18x18x128xbf16> to vector<16x16x128xbf16>
    %15 = vector.shape_cast %14 : vector<16x16x128xbf16> to vector<256x128xbf16>
    %16 = vector.extract_strided_slice %1 {offsets = [2, 1, 0], sizes = [16, 16, 128], strides = [1, 1, 1]} : vector<18x18x128xbf16> to vector<16x16x128xbf16>
    %17 = vector.shape_cast %16 : vector<16x16x128xbf16> to vector<256x128xbf16>
    %18 = vector.extract_strided_slice %1 {offsets = [2, 2, 0], sizes = [16, 16, 128], strides = [1, 1, 1]} : vector<18x18x128xbf16> to vector<16x16x128xbf16>
    %19 = vector.shape_cast %18 : vector<16x16x128xbf16> to vector<256x128xbf16>
    %20 = tpu.concatenate %3, %5, %7, %9, %11, %13, %15, %17, %19 in 1 : vector<256x128xbf16>, vector<256x128xbf16>, vector<256x128xbf16>, vector<256x128xbf16>, vector<256x128xbf16>, vector<256x128xbf16>, vector<256x128xbf16>, vector<256x128xbf16>, vector<256x128xbf16> -> vector<256x1152xbf16>
    %c0_3 = arith.constant 0 : index
    %c0_4 = arith.constant 0 : index
    %21 = vector.load %arg2[%c0_3, %c0_4] : memref<1152x128xbf16, #tpu.memory_space<vmem>>, vector<1152x128xbf16>
    %cst = arith.constant dense<0.000000e+00> : vector<256x128xf32>
    %22 = tpu.matmul %20, %21, %cst {dimension_numbers = #tpu.dot_dimension_numbers<[1], [0], [0], [1], [0, 0, 1, 1], [], []>} : vector<256x1152xbf16>, vector<1152x128xbf16>, vector<256x128xf32> -> vector<256x128xf32>
    %c0_5 = arith.constant 0 : index
    %c0_6 = arith.constant 0 : index
    %23 = vector.load %arg3[%c0_5, %c0_6] : memref<1x128xf32, #tpu.memory_space<vmem>>, vector<1x128xf32>
    %24 = vector.broadcast %23 : vector<1x128xf32> to vector<256x128xf32>
    %25 = arith.addf %22, %24 : vector<256x128xf32>
    %cst_7 = arith.constant dense<0.000000e+00> : vector<128xf32>
    %26 = vector.multi_reduction <add>, %25, %cst_7 [0] : vector<256x128xf32> to vector<128xf32>
    %27 = vector.shape_cast %26 : vector<128xf32> to vector<1x128xf32>
    %28 = arith.mulf %25, %25 : vector<256x128xf32>
    %cst_8 = arith.constant dense<0.000000e+00> : vector<128xf32>
    %29 = vector.multi_reduction <add>, %28, %cst_8 [0] : vector<256x128xf32> to vector<128xf32>
    %30 = vector.shape_cast %29 : vector<128xf32> to vector<1x128xf32>
    %31 = tpu.concatenate %27, %30 in 0 : vector<1x128xf32>, vector<1x128xf32> -> vector<2x128xf32>
    %32 = vector.shape_cast %31 : vector<2x128xf32> to vector<1x2x128xf32>
    %c0_9 = arith.constant 0 : index
    %c0_10 = arith.constant 0 : index
    %c0_11 = arith.constant 0 : index
    %33 = vector.load %arg5[%c0_9, %c0_10, %c0_11] : memref<1x2x128xf32, #tpu.memory_space<vmem>>, vector<1x2x128xf32>
    tpu.vector_store %arg5[%c0_9, %c0_10, %c0_11], %32 {strides = array<i32>} : memref<1x2x128xf32, #tpu.memory_space<vmem>>, vector<1x2x128xf32>,
    %cst_12 = arith.constant 0.000000e+00 : bf16
    %34 = vector.broadcast %cst_12 : bf16 to vector<1x1x18x128xbf16>
    %cst_13 = arith.constant 0.000000e+00 : bf16
    %35 = vector.broadcast %cst_13 : bf16 to vector<1x18x1x128xbf16>
    %c0_14 = arith.constant 0 : index
    %c0_15 = arith.constant 0 : index
    %c0_16 = arith.constant 0 : index
    %c0_17 = arith.constant 0 : index
    %36 = vector.load %arg4[%c0_14, %c0_15, %c0_16, %c0_17] : memref<1x18x18x128xbf16, #tpu.memory_space<vmem>>, vector<1x1x18x128xbf16>
    tpu.vector_store %arg4[%c0_14, %c0_15, %c0_16, %c0_17], %34 {strides = array<i32>} : memref<1x18x18x128xbf16, #tpu.memory_space<vmem>>, vector<1x1x18x128xbf16>,
    %c0_18 = arith.constant 0 : index
    %c17 = arith.constant 17 : index
    %c0_19 = arith.constant 0 : index
    %c0_20 = arith.constant 0 : index
    %37 = vector.load %arg4[%c0_18, %c17, %c0_19, %c0_20] : memref<1x18x18x128xbf16, #tpu.memory_space<vmem>>, vector<1x1x18x128xbf16>
    tpu.vector_store %arg4[%c0_18, %c17, %c0_19, %c0_20], %34 {strides = array<i32>} : memref<1x18x18x128xbf16, #tpu.memory_space<vmem>>, vector<1x1x18x128xbf16>,
    %c0_21 = arith.constant 0 : index
    %c0_22 = arith.constant 0 : index
    %c0_23 = arith.constant 0 : index
    %c0_24 = arith.constant 0 : index
    %38 = vector.load %arg4[%c0_21, %c0_22, %c0_23, %c0_24] : memref<1x18x18x128xbf16, #tpu.memory_space<vmem>>, vector<1x18x1x128xbf16>
    tpu.vector_store %arg4[%c0_21, %c0_22, %c0_23, %c0_24], %35 {strides = array<i32>} : memref<1x18x18x128xbf16, #tpu.memory_space<vmem>>, vector<1x18x1x128xbf16>,
    %c0_25 = arith.constant 0 : index
    %c0_26 = arith.constant 0 : index
    %c17_27 = arith.constant 17 : index
    %c0_28 = arith.constant 0 : index
    %39 = vector.load %arg4[%c0_25, %c0_26, %c17_27, %c0_28] : memref<1x18x18x128xbf16, #tpu.memory_space<vmem>>, vector<1x18x1x128xbf16>
    tpu.vector_store %arg4[%c0_25, %c0_26, %c17_27, %c0_28], %35 {strides = array<i32>} : memref<1x18x18x128xbf16, #tpu.memory_space<vmem>>, vector<1x18x1x128xbf16>,
    %40 = vector.shape_cast %25 : vector<256x128xf32> to vector<1x16x16x128xf32>
    %41 = arith.truncf %40 : vector<1x16x16x128xf32> to vector<1x16x16x128xbf16>
    %c0_29 = arith.constant 0 : index
    %c1 = arith.constant 1 : index
    %c1_30 = arith.constant 1 : index
    %c0_31 = arith.constant 0 : index
    %42 = vector.load %arg4[%c0_29, %c1, %c1_30, %c0_31] : memref<1x18x18x128xbf16, #tpu.memory_space<vmem>>, vector<1x16x16x128xbf16>
    tpu.vector_store %arg4[%c0_29, %c1, %c1_30, %c0_31], %41 {strides = array<i32>} : memref<1x18x18x128xbf16, #tpu.memory_space<vmem>>, vector<1x16x16x128xbf16>,
    return
  }
  func.func @transform_0(%arg0: i32) -> (i32, i32, i32, i32) {
    %c0_i32 = arith.constant 0 : i32
    %c0_i32_0 = arith.constant 0 : i32
    %c0_i32_1 = arith.constant 0 : i32
    %c0_i32_2 = arith.constant 0 : i32
    return %arg0, %c0_i32, %c0_i32_0, %c0_i32_1 : i32, i32, i32, i32
  }
  func.func @transform_1(%arg0: i32) -> (i32, i32) {
    %c0_i32 = arith.constant 0 : i32
    %c0_i32_0 = arith.constant 0 : i32
    %c0_i32_1 = arith.constant 0 : i32
    return %c0_i32, %c0_i32_0 : i32, i32
  }
  func.func @transform_2(%arg0: i32) -> (i32, i32) {
    %c0_i32 = arith.constant 0 : i32
    %c0_i32_0 = arith.constant 0 : i32
    %c0_i32_1 = arith.constant 0 : i32
    return %c0_i32, %c0_i32_0 : i32, i32
  }
  func.func @transform_3(%arg0: i32) -> (i32, i32, i32, i32) {
    %c0_i32 = arith.constant 0 : i32
    %c0_i32_0 = arith.constant 0 : i32
    %c0_i32_1 = arith.constant 0 : i32
    %c0_i32_2 = arith.constant 0 : i32
    return %arg0, %c0_i32, %c0_i32_0, %c0_i32_1 : i32, i32, i32, i32
  }
  func.func @transform_4(%arg0: i32) -> (i32, i32, i32) {
    %c0_i32 = arith.constant 0 : i32
    %c0_i32_0 = arith.constant 0 : i32
    %c0_i32_1 = arith.constant 0 : i32
    return %arg0, %c0_i32, %c0_i32_0 : i32, i32, i32
  }
}

module attributes {stable_mosaic.version = 11 : i64} {
  func.func @_bn1_conv2_kernel(%arg0: i32, %arg1: memref<1x18x18x128xbf16, #tpu.memory_space<vmem>>, %arg2: memref<2x2x128xf32, #tpu.memory_space<vmem>>, %arg3: memref<1x128xf32, #tpu.memory_space<vmem>>, %arg4: memref<1x128xf32, #tpu.memory_space<vmem>>, %arg5: memref<1152x128xbf16, #tpu.memory_space<vmem>>, %arg6: memref<1x128xf32, #tpu.memory_space<vmem>>, %arg7: memref<1x16x16x128xbf16, #tpu.memory_space<vmem>>, %arg8: memref<1x2x128xf32, #tpu.memory_space<vmem>>) attributes {dimension_semantics = [#tpu.dimension_semantics<parallel>], iteration_bounds = array<i64: 2>, scalar_prefetch = 0 : i64, scratch_operands = 0 : i64, tpu.core_type = #tpu.core_type<tc>, window_params = [{transform_indices = @transform_0, window_bounds = array<i64: 1, 18, 18, 128>}, {pipeline_mode = #tpu.pipeline_mode<synchronous>, transform_indices = @transform_1, window_bounds = array<i64: 2, 2, 128>}, {pipeline_mode = #tpu.pipeline_mode<synchronous>, transform_indices = @transform_2, window_bounds = array<i64: 1, 128>}, {pipeline_mode = #tpu.pipeline_mode<synchronous>, transform_indices = @transform_3, window_bounds = array<i64: 1, 128>}, {pipeline_mode = #tpu.pipeline_mode<synchronous>, transform_indices = @transform_4, window_bounds = array<i64: 1152, 128>}, {pipeline_mode = #tpu.pipeline_mode<synchronous>, transform_indices = @transform_5, window_bounds = array<i64: 1, 128>}, {transform_indices = @transform_6, window_bounds = array<i64: 1, 16, 16, 128>}, {transform_indices = @transform_7, window_bounds = array<i64: 1, 2, 128>}]} {
    %c0 = arith.constant 0 : index
    %c0_0 = arith.constant 0 : index
    %c0_1 = arith.constant 0 : index
    %0 = vector.load %arg2[%c0, %c0_0, %c0_1] : memref<2x2x128xf32, #tpu.memory_space<vmem>>, vector<2x2x128xf32>
    %cst = arith.constant dense<0.000000e+00> : vector<2x128xf32>
    %1 = vector.multi_reduction <add>, %0, %cst [0] : vector<2x2x128xf32> to vector<2x128xf32>
    %2 = vector.extract_strided_slice %1 {offsets = [0, 0], sizes = [1, 128], strides = [1, 1]} : vector<2x128xf32> to vector<1x128xf32>
    %cst_2 = arith.constant 0.001953125 : f32
    %3 = vector.broadcast %cst_2 : f32 to vector<1x128xf32>
    %4 = arith.mulf %2, %3 : vector<1x128xf32>
    %5 = vector.extract_strided_slice %1 {offsets = [1, 0], sizes = [1, 128], strides = [1, 1]} : vector<2x128xf32> to vector<1x128xf32>
    %cst_3 = arith.constant 0.001953125 : f32
    %6 = vector.broadcast %cst_3 : f32 to vector<1x128xf32>
    %7 = arith.mulf %5, %6 : vector<1x128xf32>
    %8 = arith.mulf %4, %4 : vector<1x128xf32>
    %9 = arith.subf %7, %8 : vector<1x128xf32>
    %cst_4 = arith.constant 0.000000e+00 : f32
    %10 = vector.broadcast %cst_4 : f32 to vector<1x128xf32>
    %11 = arith.maximumf %9, %10 : vector<1x128xf32>
    %c0_5 = arith.constant 0 : index
    %c0_6 = arith.constant 0 : index
    %12 = vector.load %arg3[%c0_5, %c0_6] : memref<1x128xf32, #tpu.memory_space<vmem>>, vector<1x128xf32>
    %cst_7 = arith.constant 9.99999974E-6 : f32
    %13 = vector.broadcast %cst_7 : f32 to vector<1x128xf32>
    %14 = arith.addf %11, %13 : vector<1x128xf32>
    %15 = math.rsqrt %14 : vector<1x128xf32>
    %16 = arith.mulf %12, %15 : vector<1x128xf32>
    %c0_8 = arith.constant 0 : index
    %c0_9 = arith.constant 0 : index
    %17 = vector.load %arg4[%c0_8, %c0_9] : memref<1x128xf32, #tpu.memory_space<vmem>>, vector<1x128xf32>
    %18 = arith.mulf %4, %16 : vector<1x128xf32>
    %19 = arith.subf %17, %18 : vector<1x128xf32>
    %c0_10 = arith.constant 0 : index
    %c0_11 = arith.constant 0 : index
    %c0_12 = arith.constant 0 : index
    %c0_13 = arith.constant 0 : index
    %20 = vector.load %arg1[%c0_10, %c0_11, %c0_12, %c0_13] : memref<1x18x18x128xbf16, #tpu.memory_space<vmem>>, vector<1x18x18x128xbf16>
    %21 = vector.shape_cast %20 : vector<1x18x18x128xbf16> to vector<18x18x128xbf16>
    %22 = arith.extf %21 : vector<18x18x128xbf16> to vector<18x18x128xf32>
    %23 = tpu.iota {dimensions = array<i32: 0>} : vector<18x18x128xi32>
    %24 = tpu.iota {dimensions = array<i32: 1>} : vector<18x18x128xi32>
    %c1_i32 = arith.constant 1 : i32
    %25 = vector.broadcast %c1_i32 : i32 to vector<18x18x128xi32>
    %26 = arith.cmpi sge, %23, %25 : vector<18x18x128xi32>
    %c16_i32 = arith.constant 16 : i32
    %27 = vector.broadcast %c16_i32 : i32 to vector<18x18x128xi32>
    %28 = arith.cmpi sle, %23, %27 : vector<18x18x128xi32>
    %29 = arith.andi %26, %28 : vector<18x18x128xi1>
    %c1_i32_14 = arith.constant 1 : i32
    %30 = vector.broadcast %c1_i32_14 : i32 to vector<18x18x128xi32>
    %31 = arith.cmpi sge, %24, %30 : vector<18x18x128xi32>
    %32 = arith.andi %29, %31 : vector<18x18x128xi1>
    %c16_i32_15 = arith.constant 16 : i32
    %33 = vector.broadcast %c16_i32_15 : i32 to vector<18x18x128xi32>
    %34 = arith.cmpi sle, %24, %33 : vector<18x18x128xi32>
    %35 = arith.andi %32, %34 : vector<18x18x128xi1>
    %36 = vector.shape_cast %16 : vector<1x128xf32> to vector<1x1x128xf32>
    %37 = vector.broadcast %36 : vector<1x1x128xf32> to vector<18x18x128xf32>
    %38 = arith.mulf %22, %37 : vector<18x18x128xf32>
    %cst_16 = arith.constant 0.000000e+00 : f32
    %39 = vector.shape_cast %19 : vector<1x128xf32> to vector<1x1x128xf32>
    %40 = vector.broadcast %39 : vector<1x1x128xf32> to vector<18x18x128xf32>
    %41 = vector.broadcast %cst_16 : f32 to vector<18x18x128xf32>
    %42 = arith.select %35, %40, %41 : vector<18x18x128xi1>, vector<18x18x128xf32>
    %43 = arith.addf %38, %42 : vector<18x18x128xf32>
    %44 = arith.truncf %43 : vector<18x18x128xf32> to vector<18x18x128xbf16>
    %45 = vector.extract_strided_slice %44 {offsets = [0, 0, 0], sizes = [16, 16, 128], strides = [1, 1, 1]} : vector<18x18x128xbf16> to vector<16x16x128xbf16>
    %46 = vector.shape_cast %45 : vector<16x16x128xbf16> to vector<256x128xbf16>
    %47 = vector.extract_strided_slice %44 {offsets = [0, 1, 0], sizes = [16, 16, 128], strides = [1, 1, 1]} : vector<18x18x128xbf16> to vector<16x16x128xbf16>
    %48 = vector.shape_cast %47 : vector<16x16x128xbf16> to vector<256x128xbf16>
    %49 = vector.extract_strided_slice %44 {offsets = [0, 2, 0], sizes = [16, 16, 128], strides = [1, 1, 1]} : vector<18x18x128xbf16> to vector<16x16x128xbf16>
    %50 = vector.shape_cast %49 : vector<16x16x128xbf16> to vector<256x128xbf16>
    %51 = vector.extract_strided_slice %44 {offsets = [1, 0, 0], sizes = [16, 16, 128], strides = [1, 1, 1]} : vector<18x18x128xbf16> to vector<16x16x128xbf16>
    %52 = vector.shape_cast %51 : vector<16x16x128xbf16> to vector<256x128xbf16>
    %53 = vector.extract_strided_slice %44 {offsets = [1, 1, 0], sizes = [16, 16, 128], strides = [1, 1, 1]} : vector<18x18x128xbf16> to vector<16x16x128xbf16>
    %54 = vector.shape_cast %53 : vector<16x16x128xbf16> to vector<256x128xbf16>
    %55 = vector.extract_strided_slice %44 {offsets = [1, 2, 0], sizes = [16, 16, 128], strides = [1, 1, 1]} : vector<18x18x128xbf16> to vector<16x16x128xbf16>
    %56 = vector.shape_cast %55 : vector<16x16x128xbf16> to vector<256x128xbf16>
    %57 = vector.extract_strided_slice %44 {offsets = [2, 0, 0], sizes = [16, 16, 128], strides = [1, 1, 1]} : vector<18x18x128xbf16> to vector<16x16x128xbf16>
    %58 = vector.shape_cast %57 : vector<16x16x128xbf16> to vector<256x128xbf16>
    %59 = vector.extract_strided_slice %44 {offsets = [2, 1, 0], sizes = [16, 16, 128], strides = [1, 1, 1]} : vector<18x18x128xbf16> to vector<16x16x128xbf16>
    %60 = vector.shape_cast %59 : vector<16x16x128xbf16> to vector<256x128xbf16>
    %61 = vector.extract_strided_slice %44 {offsets = [2, 2, 0], sizes = [16, 16, 128], strides = [1, 1, 1]} : vector<18x18x128xbf16> to vector<16x16x128xbf16>
    %62 = vector.shape_cast %61 : vector<16x16x128xbf16> to vector<256x128xbf16>
    %63 = tpu.concatenate %46, %48, %50, %52, %54, %56, %58, %60, %62 in 1 : vector<256x128xbf16>, vector<256x128xbf16>, vector<256x128xbf16>, vector<256x128xbf16>, vector<256x128xbf16>, vector<256x128xbf16>, vector<256x128xbf16>, vector<256x128xbf16>, vector<256x128xbf16> -> vector<256x1152xbf16>
    %c0_17 = arith.constant 0 : index
    %c0_18 = arith.constant 0 : index
    %64 = vector.load %arg5[%c0_17, %c0_18] : memref<1152x128xbf16, #tpu.memory_space<vmem>>, vector<1152x128xbf16>
    %cst_19 = arith.constant dense<0.000000e+00> : vector<256x128xf32>
    %65 = tpu.matmul %63, %64, %cst_19 {dimension_numbers = #tpu.dot_dimension_numbers<[1], [0], [0], [1], [0, 0, 1, 1], [], []>} : vector<256x1152xbf16>, vector<1152x128xbf16>, vector<256x128xf32> -> vector<256x128xf32>
    %c0_20 = arith.constant 0 : index
    %c0_21 = arith.constant 0 : index
    %66 = vector.load %arg6[%c0_20, %c0_21] : memref<1x128xf32, #tpu.memory_space<vmem>>, vector<1x128xf32>
    %67 = vector.broadcast %66 : vector<1x128xf32> to vector<256x128xf32>
    %68 = arith.addf %65, %67 : vector<256x128xf32>
    %cst_22 = arith.constant dense<0.000000e+00> : vector<128xf32>
    %69 = vector.multi_reduction <add>, %68, %cst_22 [0] : vector<256x128xf32> to vector<128xf32>
    %70 = vector.shape_cast %69 : vector<128xf32> to vector<1x128xf32>
    %71 = arith.mulf %68, %68 : vector<256x128xf32>
    %cst_23 = arith.constant dense<0.000000e+00> : vector<128xf32>
    %72 = vector.multi_reduction <add>, %71, %cst_23 [0] : vector<256x128xf32> to vector<128xf32>
    %73 = vector.shape_cast %72 : vector<128xf32> to vector<1x128xf32>
    %74 = tpu.concatenate %70, %73 in 0 : vector<1x128xf32>, vector<1x128xf32> -> vector<2x128xf32>
    %75 = vector.shape_cast %74 : vector<2x128xf32> to vector<1x2x128xf32>
    %c0_24 = arith.constant 0 : index
    %c0_25 = arith.constant 0 : index
    %c0_26 = arith.constant 0 : index
    %76 = vector.load %arg8[%c0_24, %c0_25, %c0_26] : memref<1x2x128xf32, #tpu.memory_space<vmem>>, vector<1x2x128xf32>
    tpu.vector_store %arg8[%c0_24, %c0_25, %c0_26], %75 {strides = array<i32>} : memref<1x2x128xf32, #tpu.memory_space<vmem>>, vector<1x2x128xf32>,
    %77 = vector.shape_cast %68 : vector<256x128xf32> to vector<1x16x16x128xf32>
    %78 = arith.truncf %77 : vector<1x16x16x128xf32> to vector<1x16x16x128xbf16>
    %c0_27 = arith.constant 0 : index
    %c0_28 = arith.constant 0 : index
    %c0_29 = arith.constant 0 : index
    %c0_30 = arith.constant 0 : index
    %79 = vector.load %arg7[%c0_27, %c0_28, %c0_29, %c0_30] : memref<1x16x16x128xbf16, #tpu.memory_space<vmem>>, vector<1x16x16x128xbf16>
    tpu.vector_store %arg7[%c0_27, %c0_28, %c0_29, %c0_30], %78 {strides = array<i32>} : memref<1x16x16x128xbf16, #tpu.memory_space<vmem>>, vector<1x16x16x128xbf16>,
    return
  }
  func.func @transform_0(%arg0: i32) -> (i32, i32, i32, i32) {
    %c0_i32 = arith.constant 0 : i32
    %c0_i32_0 = arith.constant 0 : i32
    %c0_i32_1 = arith.constant 0 : i32
    %c0_i32_2 = arith.constant 0 : i32
    return %arg0, %c0_i32, %c0_i32_0, %c0_i32_1 : i32, i32, i32, i32
  }
  func.func @transform_1(%arg0: i32) -> (i32, i32, i32) {
    %c0_i32 = arith.constant 0 : i32
    %c0_i32_0 = arith.constant 0 : i32
    %c0_i32_1 = arith.constant 0 : i32
    %c0_i32_2 = arith.constant 0 : i32
    return %c0_i32, %c0_i32_0, %c0_i32_1 : i32, i32, i32
  }
  func.func @transform_2(%arg0: i32) -> (i32, i32) {
    %c0_i32 = arith.constant 0 : i32
    %c0_i32_0 = arith.constant 0 : i32
    %c0_i32_1 = arith.constant 0 : i32
    return %c0_i32, %c0_i32_0 : i32, i32
  }
  func.func @transform_3(%arg0: i32) -> (i32, i32) {
    %c0_i32 = arith.constant 0 : i32
    %c0_i32_0 = arith.constant 0 : i32
    %c0_i32_1 = arith.constant 0 : i32
    return %c0_i32, %c0_i32_0 : i32, i32
  }
  func.func @transform_4(%arg0: i32) -> (i32, i32) {
    %c0_i32 = arith.constant 0 : i32
    %c0_i32_0 = arith.constant 0 : i32
    %c0_i32_1 = arith.constant 0 : i32
    return %c0_i32, %c0_i32_0 : i32, i32
  }
  func.func @transform_5(%arg0: i32) -> (i32, i32) {
    %c0_i32 = arith.constant 0 : i32
    %c0_i32_0 = arith.constant 0 : i32
    %c0_i32_1 = arith.constant 0 : i32
    return %c0_i32, %c0_i32_0 : i32, i32
  }
  func.func @transform_6(%arg0: i32) -> (i32, i32, i32, i32) {
    %c0_i32 = arith.constant 0 : i32
    %c0_i32_0 = arith.constant 0 : i32
    %c0_i32_1 = arith.constant 0 : i32
    %c0_i32_2 = arith.constant 0 : i32
    return %arg0, %c0_i32, %c0_i32_0, %c0_i32_1 : i32, i32, i32, i32
  }
  func.func @transform_7(%arg0: i32) -> (i32, i32, i32) {
    %c0_i32 = arith.constant 0 : i32
    %c0_i32_0 = arith.constant 0 : i32
    %c0_i32_1 = arith.constant 0 : i32
    return %arg0, %c0_i32, %c0_i32_0 : i32, i32, i32
  }
}

module attributes {stable_mosaic.version = 11 : i64} {
  func.func @_bn2_relu_pool_kernel(%arg0: i32, %arg1: memref<1x16x16x128xbf16, #tpu.memory_space<vmem>>, %arg2: memref<2x2x128xf32, #tpu.memory_space<vmem>>, %arg3: memref<1x128xf32, #tpu.memory_space<vmem>>, %arg4: memref<1x128xf32, #tpu.memory_space<vmem>>, %arg5: memref<1x16x16x128xf32, #tpu.memory_space<vmem>>, %arg6: memref<1x8x8x128xf32, #tpu.memory_space<vmem>>) attributes {dimension_semantics = [#tpu.dimension_semantics<parallel>], iteration_bounds = array<i64: 2>, scalar_prefetch = 0 : i64, scratch_operands = 0 : i64, tpu.core_type = #tpu.core_type<tc>, window_params = [{transform_indices = @transform_0, window_bounds = array<i64: 1, 16, 16, 128>}, {pipeline_mode = #tpu.pipeline_mode<synchronous>, transform_indices = @transform_1, window_bounds = array<i64: 2, 2, 128>}, {pipeline_mode = #tpu.pipeline_mode<synchronous>, transform_indices = @transform_2, window_bounds = array<i64: 1, 128>}, {pipeline_mode = #tpu.pipeline_mode<synchronous>, transform_indices = @transform_3, window_bounds = array<i64: 1, 128>}, {transform_indices = @transform_4, window_bounds = array<i64: 1, 16, 16, 128>}, {transform_indices = @transform_5, window_bounds = array<i64: 1, 8, 8, 128>}]} {
    %c0 = arith.constant 0 : index
    %c0_0 = arith.constant 0 : index
    %c0_1 = arith.constant 0 : index
    %0 = vector.load %arg2[%c0, %c0_0, %c0_1] : memref<2x2x128xf32, #tpu.memory_space<vmem>>, vector<2x2x128xf32>
    %cst = arith.constant dense<0.000000e+00> : vector<2x128xf32>
    %1 = vector.multi_reduction <add>, %0, %cst [0] : vector<2x2x128xf32> to vector<2x128xf32>
    %2 = vector.extract_strided_slice %1 {offsets = [0, 0], sizes = [1, 128], strides = [1, 1]} : vector<2x128xf32> to vector<1x128xf32>
    %cst_2 = arith.constant 0.001953125 : f32
    %3 = vector.broadcast %cst_2 : f32 to vector<1x128xf32>
    %4 = arith.mulf %2, %3 : vector<1x128xf32>
    %5 = vector.extract_strided_slice %1 {offsets = [1, 0], sizes = [1, 128], strides = [1, 1]} : vector<2x128xf32> to vector<1x128xf32>
    %cst_3 = arith.constant 0.001953125 : f32
    %6 = vector.broadcast %cst_3 : f32 to vector<1x128xf32>
    %7 = arith.mulf %5, %6 : vector<1x128xf32>
    %8 = arith.mulf %4, %4 : vector<1x128xf32>
    %9 = arith.subf %7, %8 : vector<1x128xf32>
    %cst_4 = arith.constant 0.000000e+00 : f32
    %10 = vector.broadcast %cst_4 : f32 to vector<1x128xf32>
    %11 = arith.maximumf %9, %10 : vector<1x128xf32>
    %c0_5 = arith.constant 0 : index
    %c0_6 = arith.constant 0 : index
    %12 = vector.load %arg3[%c0_5, %c0_6] : memref<1x128xf32, #tpu.memory_space<vmem>>, vector<1x128xf32>
    %cst_7 = arith.constant 9.99999974E-6 : f32
    %13 = vector.broadcast %cst_7 : f32 to vector<1x128xf32>
    %14 = arith.addf %11, %13 : vector<1x128xf32>
    %15 = math.rsqrt %14 : vector<1x128xf32>
    %16 = arith.mulf %12, %15 : vector<1x128xf32>
    %c0_8 = arith.constant 0 : index
    %c0_9 = arith.constant 0 : index
    %17 = vector.load %arg4[%c0_8, %c0_9] : memref<1x128xf32, #tpu.memory_space<vmem>>, vector<1x128xf32>
    %18 = arith.mulf %4, %16 : vector<1x128xf32>
    %19 = arith.subf %17, %18 : vector<1x128xf32>
    %c0_10 = arith.constant 0 : index
    %c0_11 = arith.constant 0 : index
    %c0_12 = arith.constant 0 : index
    %c0_13 = arith.constant 0 : index
    %20 = vector.load %arg1[%c0_10, %c0_11, %c0_12, %c0_13] : memref<1x16x16x128xbf16, #tpu.memory_space<vmem>>, vector<1x16x16x128xbf16>
    %21 = arith.extf %20 : vector<1x16x16x128xbf16> to vector<1x16x16x128xf32>
    %22 = vector.shape_cast %21 : vector<1x16x16x128xf32> to vector<256x128xf32>
    %23 = vector.broadcast %16 : vector<1x128xf32> to vector<256x128xf32>
    %24 = arith.mulf %22, %23 : vector<256x128xf32>
    %25 = vector.broadcast %19 : vector<1x128xf32> to vector<256x128xf32>
    %26 = arith.addf %24, %25 : vector<256x128xf32>
    %cst_14 = arith.constant 0.000000e+00 : f32
    %27 = vector.broadcast %cst_14 : f32 to vector<256x128xf32>
    %28 = arith.maximumf %26, %27 : vector<256x128xf32>
    %29 = vector.shape_cast %28 : vector<256x128xf32> to vector<1x16x16x128xf32>
    %c0_15 = arith.constant 0 : index
    %c0_16 = arith.constant 0 : index
    %c0_17 = arith.constant 0 : index
    %c0_18 = arith.constant 0 : index
    %30 = vector.load %arg5[%c0_15, %c0_16, %c0_17, %c0_18] : memref<1x16x16x128xf32, #tpu.memory_space<vmem>>, vector<1x16x16x128xf32>
    tpu.vector_store %arg5[%c0_15, %c0_16, %c0_17, %c0_18], %29 {strides = array<i32>} : memref<1x16x16x128xf32, #tpu.memory_space<vmem>>, vector<1x16x16x128xf32>,
    %31 = vector.shape_cast %28 : vector<256x128xf32> to vector<8x2x8x2x128xf32>
    %cst_19 = arith.constant dense<0xFF800000> : vector<8x2x8x128xf32>
    %32 = vector.multi_reduction <maximumf>, %31, %cst_19 [3] : vector<8x2x8x2x128xf32> to vector<8x2x8x128xf32>
    %cst_20 = arith.constant dense<0xFF800000> : vector<8x8x128xf32>
    %33 = vector.multi_reduction <maximumf>, %32, %cst_20 [1] : vector<8x2x8x128xf32> to vector<8x8x128xf32>
    %34 = vector.shape_cast %33 : vector<8x8x128xf32> to vector<1x8x8x128xf32>
    %c0_21 = arith.constant 0 : index
    %c0_22 = arith.constant 0 : index
    %c0_23 = arith.constant 0 : index
    %c0_24 = arith.constant 0 : index
    %35 = vector.load %arg6[%c0_21, %c0_22, %c0_23, %c0_24] : memref<1x8x8x128xf32, #tpu.memory_space<vmem>>, vector<1x8x8x128xf32>
    tpu.vector_store %arg6[%c0_21, %c0_22, %c0_23, %c0_24], %34 {strides = array<i32>} : memref<1x8x8x128xf32, #tpu.memory_space<vmem>>, vector<1x8x8x128xf32>,
    return
  }
  func.func @transform_0(%arg0: i32) -> (i32, i32, i32, i32) {
    %c0_i32 = arith.constant 0 : i32
    %c0_i32_0 = arith.constant 0 : i32
    %c0_i32_1 = arith.constant 0 : i32
    %c0_i32_2 = arith.constant 0 : i32
    return %arg0, %c0_i32, %c0_i32_0, %c0_i32_1 : i32, i32, i32, i32
  }
  func.func @transform_1(%arg0: i32) -> (i32, i32, i32) {
    %c0_i32 = arith.constant 0 : i32
    %c0_i32_0 = arith.constant 0 : i32
    %c0_i32_1 = arith.constant 0 : i32
    %c0_i32_2 = arith.constant 0 : i32
    return %c0_i32, %c0_i32_0, %c0_i32_1 : i32, i32, i32
  }
  func.func @transform_2(%arg0: i32) -> (i32, i32) {
    %c0_i32 = arith.constant 0 : i32
    %c0_i32_0 = arith.constant 0 : i32
    %c0_i32_1 = arith.constant 0 : i32
    return %c0_i32, %c0_i32_0 : i32, i32
  }
  func.func @transform_3(%arg0: i32) -> (i32, i32) {
    %c0_i32 = arith.constant 0 : i32
    %c0_i32_0 = arith.constant 0 : i32
    %c0_i32_1 = arith.constant 0 : i32
    return %c0_i32, %c0_i32_0 : i32, i32
  }
  func.func @transform_4(%arg0: i32) -> (i32, i32, i32, i32) {
    %c0_i32 = arith.constant 0 : i32
    %c0_i32_0 = arith.constant 0 : i32
    %c0_i32_1 = arith.constant 0 : i32
    %c0_i32_2 = arith.constant 0 : i32
    return %arg0, %c0_i32, %c0_i32_0, %c0_i32_1 : i32, i32, i32, i32
  }
  func.func @transform_5(%arg0: i32) -> (i32, i32, i32, i32) {
    %c0_i32 = arith.constant 0 : i32
    %c0_i32_0 = arith.constant 0 : i32
    %c0_i32_1 = arith.constant 0 : i32
    %c0_i32_2 = arith.constant 0 : i32
    return %arg0, %c0_i32, %c0_i32_0, %c0_i32_1 : i32, i32, i32, i32
  }
}

</mosaic_0001>

<llo_original>
// kernel: encoder_block_pallas.5
$region0: #{encoder_block_pallas.5}
  #allocation0 [shape = 'u32[]', space=smem, size = 0x4, offset = 0x4, fixed_abs, tag = 'smem constant byte address 0x4 - core index']
  #allocation1 [shape = 'u32[144,128]{1,0:T(1,128)}', space=vmem, size = 0x12000, scoped, tag = 'internal scratch']
  %s0 = inlined_call_operand.hbm [shape: bf16[2,16,16,128], index: 0, kind: input, shape index: {}]
  %s1 = inlined_call_operand.hbm [shape: f32[2,2,128], index: 1, kind: input, shape index: {}]
  %s2 = inlined_call_operand.hbm [shape: f32[1,128], index: 2, kind: input, shape index: {}]
  %s3 = inlined_call_operand.hbm [shape: f32[1,128], index: 3, kind: input, shape index: {}]
  %s4 = inlined_call_operand.hbm [shape: f32[2,16,16,128], index: 4, kind: output, shape index: {0}]
  %s5 = inlined_call_operand.hbm [shape: f32[2,8,8,128], index: 5, kind: output, shape index: {1}]
  %6 = xla_tuple %s4, %s5
  %s7 = sld [smem:[#allocation0]]
  $region73: #{encoder_block_pallas.5} parent=0
    _
  %s9 = ssub.s32 1, %s7
  %s10 = scalar_select 0, %s9, %s7
  $region1: #{encoder_block_pallas.5} parent=0
    #allocation2 [shape = 'u8[131072]{0}', space=vmem, size = 0x20000, scoped, tag = 'input window, operand 0']
    #allocation3 [shape = 's32[2]{0}', space=sflag, size = 0x8, scoped, tag = 'scoped memory for encoder_block_pallas.5']
    #allocation4 [shape = 's32[2]{0}', space=sflag, size = 0x8, scoped, tag = 'scoped memory for encoder_block_pallas.5']
    #allocation5 [shape = 'u8[2048]{0}', space=vmem, size = 0x800, scoped, tag = 'input window, operand 1, single buffered']
    #allocation6 [shape = 's32[1]{0}', space=sflag, size = 0x4, scoped, tag = 'scoped memory for encoder_block_pallas.5']
    #allocation7 [shape = 'u8[512]{0}', space=vmem, size = 0x400, scoped, tag = 'input window, operand 2, single buffered']
    #allocation8 [shape = 'u8[512]{0}', space=vmem, size = 0x400, scoped, tag = 'input window, operand 3, single buffered']
    #allocation9 [shape = 's32[1]{0}', space=sflag, size = 0x4, scoped, tag = 'scoped memory for encoder_block_pallas.5']
    #allocation10 [shape = 'u8[262144]{0}', space=vmem, size = 0x40000, scoped, tag = 'output window, operand 0']
    #allocation11 [shape = 'u8[65536]{0}', space=vmem, size = 0x10000, scoped, tag = 'output window, operand 1']
    #allocation12 [shape = 's32[2]{0}', space=sflag, size = 0x8, scoped, tag = 'scoped memory for encoder_block_pallas.5']
    %11 = vsyncpa [#allocation3], 0
    %s12 = scalar_lea.sflag [#allocation3], 1
    %13 = vsyncpa %s12, 0
    %14 = vsyncpa [#allocation6], 0
    %15 = vsyncpa [#allocation9], 0
    %16 = vsyncpa [#allocation4], 0
    %s17 = scalar_lea.sflag [#allocation4], 1
    %18 = vsyncpa %s17, 0
    %19 = vsyncpa [#allocation12], 0
    %s20 = scalar_lea.sflag [#allocation12], 1
    %21 = vsyncpa %s20, 0
    loop: start=0, step=1, limit=4
    $region2: #{encoder_block_pallas.5} parent=1 // loop_pre_header
      _
    $region3: #{encoder_block_pallas.5} parent=1 // loop_header
      %s23 = sphi 0, %s27
      %p24 = scmp.ge.s32.totalorder %s23, 4
      %s33 = sphi 0, %s35
      %s36 = sphi 0, %s33
      %s37 = sphi 0, %s36
      %s53 = sphi 0, %s37
      %s57 = sphi 0, %s57
      %s59 = sphi 0, %s57
      %s60 = sphi 0, %s59
      %s74 = sphi 0, %s60
      %s78 = sphi 0, %s78
      %s80 = sphi 0, %s78
      %s81 = sphi 0, %s80
      %s95 = sphi 0, %s81
      %s99 = sphi 0, %s99
      %s101 = sphi 0, %s99
      %s102 = sphi 0, %s101
      %s116 = sphi 0, %s102
      %s122 = sphi 0, %s124
      %s125 = sphi 0, %s122
      %s126 = sphi 0, %s125
      %s142 = sphi 0, %s126
      %s148 = sphi 0, %s150
      %s151 = sphi 0, %s148
      %s152 = sphi 0, %s151
      %s168 = sphi 0, %s152
    $region4: #{encoder_block_pallas.5} parent=1 // loop_header_branch
      %26 = sbr.rel (%p24) target = $region8
    $region5: #{encoder_block_pallas.5} parent=1 // loop_body
      %s28 = ssub.s32 %s23, 1
      %s29 = ssub.s32 %s23, 2
      %s30 = sadd.s32 %s23, 1
      %s31 = ssub.s32 %s23, %s30
      %p32 = scmp.eq.s32.totalorder %s31, 0
      %s34 = sadd.s32 %s33, 1
      %s35 = scalar_select %p32, %s33, %s34
      %p38 = pneg %p32
      %p39 = scmp.eq.s32.totalorder %s23, 1
      %p40 = por %p38, %p39
      %p41 = scmp.ne.s32.totalorder %s33, %s36
      %p42 = scmp.eq.s32.totalorder %s23, 0
      %p43 = por %p41, %p42
      %p44 = scmp.ne.s32.totalorder %s33, %s36
      %p45 = scmp.eq.s32.totalorder %s28, 1
      %p46 = por %p44, %p45
      %p47 = scmp.ne.s32.totalorder %s36, %s37
      %p48 = scmp.eq.s32.totalorder %s28, 0
      %p49 = por %p47, %p48
      %p50 = scmp.ne.s32.totalorder %s36, %s37
      %p51 = scmp.eq.s32.totalorder %s29, 1
      %p52 = por %p50, %p51
      %p54 = scmp.ne.s32.totalorder %s37, %s53
      %p55 = scmp.eq.s32.totalorder %s29, 0
      %p56 = por %p54, %p55
      %s58 = sadd.s32 %s57, 1
      %p61 = scmp.eq.s32.totalorder %s23, 1
      %p62 = scmp.ne.s32.totalorder %s57, %s59
      %p63 = scmp.eq.s32.totalorder %s23, 0
      %p64 = por %p62, %p63
      %p65 = scmp.ne.s32.totalorder %s57, %s59
      %p66 = scmp.eq.s32.totalorder %s28, 1
      %p67 = por %p65, %p66
      %p68 = scmp.ne.s32.totalorder %s59, %s60
      %p69 = scmp.eq.s32.totalorder %s28, 0
      %p70 = por %p68, %p69
      %p71 = scmp.ne.s32.totalorder %s59, %s60
      %p72 = scmp.eq.s32.totalorder %s29, 1
      %p73 = por %p71, %p72
      %p75 = scmp.ne.s32.totalorder %s60, %s74
      %p76 = scmp.eq.s32.totalorder %s29, 0
      %p77 = por %p75, %p76
      %s79 = sadd.s32 %s78, 1
      %p82 = scmp.eq.s32.totalorder %s23, 1
      %p83 = scmp.ne.s32.totalorder %s78, %s80
      %p84 = scmp.eq.s32.totalorder %s23, 0
      %p85 = por %p83, %p84
      %p86 = scmp.ne.s32.totalorder %s78, %s80
      %p87 = scmp.eq.s32.totalorder %s28, 1
      %p88 = por %p86, %p87
      %p89 = scmp.ne.s32.totalorder %s80, %s81
      %p90 = scmp.eq.s32.totalorder %s28, 0
      %p91 = por %p89, %p90
      %p92 = scmp.ne.s32.totalorder %s80, %s81
      %p93 = scmp.eq.s32.totalorder %s29, 1
      %p94 = por %p92, %p93
      %p96 = scmp.ne.s32.totalorder %s81, %s95
      %p97 = scmp.eq.s32.totalorder %s29, 0
      %p98 = por %p96, %p97
      %s100 = sadd.s32 %s99, 1
      %p103 = scmp.eq.s32.totalorder %s23, 1
      %p104 = scmp.ne.s32.totalorder %s99, %s101
      %p105 = scmp.eq.s32.totalorder %s23, 0
      %p106 = por %p104, %p105
      %p107 = scmp.ne.s32.totalorder %s99, %s101
      %p108 = scmp.eq.s32.totalorder %s28, 1
      %p109 = por %p107, %p108
      %p110 = scmp.ne.s32.totalorder %s101, %s102
      %p111 = scmp.eq.s32.totalorder %s28, 0
      %p112 = por %p110, %p111
      %p113 = scmp.ne.s32.totalorder %s101, %s102
      %p114 = scmp.eq.s32.totalorder %s29, 1
      %p115 = por %p113, %p114
      %p117 = scmp.ne.s32.totalorder %s102, %s116
      %p118 = scmp.eq.s32.totalorder %s29, 0
      %p119 = por %p117, %p118
      %s120 = ssub.s32 %s23, %s30
      %p121 = scmp.eq.s32.totalorder %s120, 0
      %s123 = sadd.s32 %s122, 1
      %s124 = scalar_select %p121, %s122, %s123
      %p127 = pneg %p121
      %p128 = scmp.eq.s32.totalorder %s23, 1
      %p129 = por %p127, %p128
      %p130 = scmp.ne.s32.totalorder %s122, %s125
      %p131 = scmp.eq.s32.totalorder %s23, 0
      %p132 = por %p130, %p131
      %p133 = scmp.ne.s32.totalorder %s122, %s125
      %p134 = scmp.eq.s32.totalorder %s28, 1
      %p135 = por %p133, %p134
      %p136 = scmp.ne.s32.totalorder %s125, %s126
      %p137 = scmp.eq.s32.totalorder %s28, 0
      %p138 = por %p136, %p137
      %p139 = scmp.ne.s32.totalorder %s125, %s126
      %p140 = scmp.eq.s32.totalorder %s29, 1
      %p141 = por %p139, %p140
      %p143 = scmp.ne.s32.totalorder %s126, %s142
      %p144 = scmp.eq.s32.totalorder %s29, 0
      %p145 = por %p143, %p144
      %s146 = ssub.s32 %s23, %s30
      %p147 = scmp.eq.s32.totalorder %s146, 0
      %s149 = sadd.s32 %s148, 1
      %s150 = scalar_select %p147, %s148, %s149
      %p153 = pneg %p147
      %p154 = scmp.eq.s32.totalorder %s23, 1
      %p155 = por %p153, %p154
      %p156 = scmp.ne.s32.totalorder %s148, %s151
      %p157 = scmp.eq.s32.totalorder %s23, 0
      %p158 = por %p156, %p157
      %p159 = scmp.ne.s32.totalorder %s148, %s151
      %p160 = scmp.eq.s32.totalorder %s28, 1
      %p161 = por %p159, %p160
      %p162 = scmp.ne.s32.totalorder %s151, %s152
      %p163 = scmp.eq.s32.totalorder %s28, 0
      %p164 = por %p162, %p163
      %p165 = scmp.ne.s32.totalorder %s151, %s152
      %p166 = scmp.eq.s32.totalorder %s29, 1
      %p167 = por %p165, %p166
      %p169 = scmp.ne.s32.totalorder %s152, %s168
      %p170 = scmp.eq.s32.totalorder %s29, 0
      %p171 = por %p169, %p170
      %p172 = scmp.le.s32.totalorder 1, %s23
      %p173 = scmp.lt.s32.totalorder %s23, 3
      %p174 = pnand %p172, %p173
      %p175 = pneg %p174
      // Predicated region
      $region9: #{encoder_block_pallas.5} parent=5 // pred_check
        _
      $region10: #{encoder_block_pallas.5} parent=5 // pred_check_branch
        %177 = sbr.rel (%p174) target = $region12
      $region11: #{encoder_block_pallas.5} parent=5 // pred_region
        %s178 = ssub.s32 %s23, 1
        // Predicated region
        $region13: #{encoder_block_pallas.5} parent=11 // pred_check
          %p179 = pneg %p70
        $region14: #{encoder_block_pallas.5} parent=11 // pred_check_branch
          %181 = sbr.rel (%p179) target = $region16
        $region15: #{encoder_block_pallas.5} parent=11 // pred_region
          %s183 = ssub.s32 64, 64
          %184 = vsyncadd [#allocation6], %s183
          %s185 = sshll.u32 [#allocation5], 4
          %s186 = int_to_ptr.vmem [resolvable:$true] %s185
          %191 = dma.hbm_to_vmem [thread:$0]  %s1, 64, %s186, [#allocation6], 32, 32, 2
        $region16: #{encoder_block_pallas.5} parent=11 // pred_fallthru
          _
        // Predicated region
        $region17: #{encoder_block_pallas.5} parent=11 // pred_check
          %p192 = pneg %p91
        $region18: #{encoder_block_pallas.5} parent=11 // pred_check_branch
          %194 = sbr.rel (%p192) target = $region20
        $region19: #{encoder_block_pallas.5} parent=11 // pred_region
          %s196 = ssub.s32 16, 16
          %197 = vsyncadd [#allocation6], %s196
          %s199 = sshll.u32 [#allocation7], 4
          %s200 = int_to_ptr.vmem [resolvable:$true] %s199
          %202 = dma.hbm_to_vmem [thread:$0]  %s2, 16, %s200, [#allocation6]
        $region20: #{encoder_block_pallas.5} parent=11 // pred_fallthru
          _
        // Predicated region
        $region21: #{encoder_block_pallas.5} parent=11 // pred_check
          %p203 = pneg %p112
        $region22: #{encoder_block_pallas.5} parent=11 // pred_check_branch
          %205 = sbr.rel (%p203) target = $region24
        $region23: #{encoder_block_pallas.5} parent=11 // pred_region
          %s207 = ssub.s32 16, 16
          %208 = vsyncadd [#allocation9], %s207
          %s210 = sshll.u32 [#allocation8], 4
          %s211 = int_to_ptr.vmem [resolvable:$true] %s210
          %213 = dma.hbm_to_vmem [thread:$0]  %s3, 16, %s211, [#allocation9]
        $region24: #{encoder_block_pallas.5} parent=11 // pred_fallthru
          _
      $region12: #{encoder_block_pallas.5} parent=5 // pred_fallthru
        _
      %p214 = scmp.lt.s32.totalorder %s23, 2
      // Predicated region
      $region25: #{encoder_block_pallas.5} parent=5 // pred_check
        %p215 = pneg %p214
      $region26: #{encoder_block_pallas.5} parent=5 // pred_check_branch
        %217 = sbr.rel (%p215) target = $region28
      $region27: #{encoder_block_pallas.5} parent=5 // pred_region
        // Predicated region
        $region29: #{encoder_block_pallas.5} parent=27 // pred_check
          %p218 = pneg %p43
        $region30: #{encoder_block_pallas.5} parent=27 // pred_check_branch
          %220 = sbr.rel (%p218) target = $region32
        $region31: #{encoder_block_pallas.5} parent=27 // pred_region
          %s221 = sand.u32 %s33, 1
          %s222 = scalar_lea.sflag [#allocation3], %s221
          %s223 = sand.u32 %s33, 1
          %s224 = smul.addr %s223, 128
          %s225 = scalar_lea.vmem [#allocation2], %s224
          %s227 = ssub.s32 2048, 2048
          %228 = vsyncadd %s222, %s227
          %s229 = smul.addr %s23, 32
          %s230 = smul.addr %s229, 64
          %s231 = scalar_lea.hbm %s0, %s230
          %s232 = sshll.u32 %s225, 4
          %s233 = int_to_ptr.vmem [resolvable:$true] %s232
          %238 = dma.hbm_to_vmem [thread:$0]  %s231, 2048, %s233, %s222, 64, 64, 4
        $region32: #{encoder_block_pallas.5} parent=27 // pred_fallthru
          _
      $region28: #{encoder_block_pallas.5} parent=5 // pred_fallthru
        _
      %p239 = scmp.le.s32.totalorder 1, %s23
      %p240 = scmp.lt.s32.totalorder %s23, 3
      %p241 = pnand %p239, %p240
      %p242 = pneg %p241
      // Predicated region
      $region33: #{encoder_block_pallas.5} parent=5 // pred_check
        _
      $region34: #{encoder_block_pallas.5} parent=5 // pred_check_branch
        %244 = sbr.rel (%p241) target = $region36
      $region35: #{encoder_block_pallas.5} parent=5 // pred_region
        %s245 = ssub.s32 %s23, 1
        %s246 = sand.u32 %s36, 1
        %s247 = scalar_lea.sflag [#allocation3], %s246
        %s248 = sand.u32 %s36, 1
        %s249 = smul.addr %s248, 128
        %s250 = scalar_lea.vmem [#allocation2], %s249
        // Predicated region
        $region37: #{encoder_block_pallas.5} parent=35 // pred_check
          %p251 = pneg %p49
        $region38: #{encoder_block_pallas.5} parent=35 // pred_check_branch
          %253 = sbr.rel (%p251) target = $region40
        $region39: #{encoder_block_pallas.5} parent=35 // pred_region
          %254 = dma.done %s247, 2048
        $region40: #{encoder_block_pallas.5} parent=35 // pred_fallthru
          _
        // Predicated region
        $region41: #{encoder_block_pallas.5} parent=35 // pred_check
          %p255 = pneg %p70
        $region42: #{encoder_block_pallas.5} parent=35 // pred_check_branch
          %257 = sbr.rel (%p255) target = $region44
        $region43: #{encoder_block_pallas.5} parent=35 // pred_region
          %258 = dma.done [#allocation6], 64
        $region44: #{encoder_block_pallas.5} parent=35 // pred_fallthru
          _
        // Predicated region
        $region45: #{encoder_block_pallas.5} parent=35 // pred_check
          %p259 = pneg %p91
        $region46: #{encoder_block_pallas.5} parent=35 // pred_check_branch
          %261 = sbr.rel (%p259) target = $region48
        $region47: #{encoder_block_pallas.5} parent=35 // pred_region
          %262 = dma.done [#allocation6], 16
        $region48: #{encoder_block_pallas.5} parent=35 // pred_fallthru
          _
        // Predicated region
        $region49: #{encoder_block_pallas.5} parent=35 // pred_check
          %p263 = pneg %p112
        $region50: #{encoder_block_pallas.5} parent=35 // pred_check_branch
          %265 = sbr.rel (%p263) target = $region52
        $region51: #{encoder_block_pallas.5} parent=35 // pred_region
          %266 = dma.done [#allocation9], 16
        $region52: #{encoder_block_pallas.5} parent=35 // pred_fallthru
          _
        %s267 = sand.u32 %s36, 1
        %s268 = scalar_lea.sflag [#allocation3], %s267
        %s269 = sand.u32 %s36, 1
        %s270 = smul.addr %s269, 128
        %s271 = scalar_lea.vmem [#allocation2], %s270
        %p272 = pneg %p49
        %p273 = pneg %p46
        %p274 = pneg %p70
        %p275 = pneg %p67
        %p276 = pneg %p91
        %p277 = pneg %p88
        %p278 = pneg %p112
        %p279 = pneg %p109
        %p280 = pneg %p138
        %p281 = pneg %p135
        %s282 = sand.u32 %s125, 1
        %s283 = scalar_lea.sflag [#allocation4], %s282
        %s284 = sand.u32 %s125, 1
        %s285 = smul.addr %s284, 256
        %s286 = scalar_lea.vmem [#allocation10], %s285
        %p287 = pneg %p164
        %p288 = pneg %p161
        %s289 = sand.u32 %s151, 1
        %s290 = scalar_lea.sflag [#allocation12], %s289
        %s291 = sand.u32 %s151, 1
        %s292 = smul.addr %s291, 64
        %s293 = scalar_lea.vmem [#allocation11], %s292
        %v294 = vld [vmem:[#allocation5] sm:$0x3]
        %v295 = vld [vmem:[#allocation5 + $0x2] sm:$0x3]
        %vm296 = vcmask 1041408
        %v297 = vsel %vm296, %v294, 0.0
        %v298 = vsel %vm296, %v295, 0.0
        %v299 = vadd.f32 %v297, %v298
        %v300 = vmul.f32 %v299, 0.001953125
        %v301 = vmul.f32 %v300, %v300
        %v303 = vrot.slane %v301, 7
        %v305 = vsub.f32 %v300, %v303
        %v306 = vmax.f32 %v305, 0.0
        %v307 = vld [vmem:[#allocation7] sm:$0x1]
        %v308 = vadd.f32 %v306, 1e-05
        %v309 = vrsqrt.pop %v308
        %v312 = vunpack.c.l.s4 1966171168
        %v313 = vunpack.c.0.s8 %v312
        %v314 = vlaneseq
        %v315 = vshrl.u32 %v314, 7
        %v316 = vsub.s32 %v313, %v315
        %v317 = vrot.slane %v309, %v316
        %v318 = vcombine.high %v317, %v317
        %v320 = vunpack.c.l.s4 1966171168
        %v321 = vunpack.c.0.s8 %v320
        %v322 = vlaneseq
        %v323 = vshrl.u32 %v322, 7
        %v324 = vsub.s32 %v321, %v323
        %v325 = vrot.slane %v318, %v324
        %v327 = vmul.f32 %v307, %v325
        %v328 = vld [vmem:[#allocation8] sm:$0x1]
        %v329 = vmul.f32 %v300, %v327
        %v330 = vsub.f32 %v328, %v329
        %v331 = vld [vmem:[%s250] sm:$0xf]
        %v332 = vld [vmem:[%s250 + $0x4] sm:$0xf]
        %v333 = vld [vmem:[%s250 + $0x8] sm:$0xf]
        %v334 = vld [vmem:[%s250 + $0xc] sm:$0xf]
        %v335 = vld [vmem:[%s250 + $0x10] sm:$0xf]
        %v336 = vld [vmem:[%s250 + $0x14] sm:$0xf]
        %v337 = vld [vmem:[%s250 + $0x18] sm:$0xf]
        %v338 = vld [vmem:[%s250 + $0x1c] sm:$0xf]
        %v339 = vld [vmem:[%s250 + $0x20] sm:$0xf]
        %v340 = vld [vmem:[%s250 + $0x24] sm:$0xf]
        %v341 = vld [vmem:[%s250 + $0x28] sm:$0xf]
        %v342 = vld [vmem:[%s250 + $0x2c] sm:$0xf]
        %v343 = vld [vmem:[%s250 + $0x30] sm:$0xf]
        %v344 = vld [vmem:[%s250 + $0x34] sm:$0xf]
        %v345 = vld [vmem:[%s250 + $0x38] sm:$0xf]
        %v346 = vld [vmem:[%s250 + $0x3c] sm:$0xf]
        %v347 = vld [vmem:[%s250 + $0x40] sm:$0xf]
        %v348 = vld [vmem:[%s250 + $0x44] sm:$0xf]
        %v349 = vld [vmem:[%s250 + $0x48] sm:$0xf]
        %v350 = vld [vmem:[%s250 + $0x4c] sm:$0xf]
        %v351 = vld [vmem:[%s250 + $0x50] sm:$0xf]
        %v352 = vld [vmem:[%s250 + $0x54] sm:$0xf]
        %v353 = vld [vmem:[%s250 + $0x58] sm:$0xf]
        %v354 = vld [vmem:[%s250 + $0x5c] sm:$0xf]
        %v355 = vld [vmem:[%s250 + $0x60] sm:$0xf]
        %v356 = vld [vmem:[%s250 + $0x64] sm:$0xf]
        %v357 = vld [vmem:[%s250 + $0x68] sm:$0xf]
        %v358 = vld [vmem:[%s250 + $0x6c] sm:$0xf]
        %v359 = vld [vmem:[%s250 + $0x70] sm:$0xf]
        %v360 = vld [vmem:[%s250 + $0x74] sm:$0xf]
        %v361 = vld [vmem:[%s250 + $0x78] sm:$0xf]
        %v362 = vld [vmem:[%s250 + $0x7c] sm:$0xf]
        %v363 = vunpack.c.l.bf16 %v331
        %v364 = vunpack.c.l.bf16 %v332
        %v365 = vunpack.c.l.bf16 %v333
        %v366 = vunpack.c.l.bf16 %v334
        %v367 = vunpack.c.l.bf16 %v335
        %v368 = vunpack.c.l.bf16 %v336
        %v369 = vunpack.c.l.bf16 %v337
        %v370 = vunpack.c.l.bf16 %v338
        %v371 = vunpack.c.l.bf16 %v339
        %v372 = vunpack.c.l.bf16 %v340
        %v373 = vunpack.c.l.bf16 %v341
        %v374 = vunpack.c.l.bf16 %v342
        %v375 = vunpack.c.l.bf16 %v343
        %v376 = vunpack.c.l.bf16 %v344
        %v377 = vunpack.c.l.bf16 %v345
        %v378 = vunpack.c.l.bf16 %v346
        %v379 = vunpack.c.l.bf16 %v347
        %v380 = vunpack.c.l.bf16 %v348
        %v381 = vunpack.c.l.bf16 %v349
        %v382 = vunpack.c.l.bf16 %v350
        %v383 = vunpack.c.l.bf16 %v351
        %v384 = vunpack.c.l.bf16 %v352
        %v385 = vunpack.c.l.bf16 %v353
        %v386 = vunpack.c.l.bf16 %v354
        %v387 = vunpack.c.l.bf16 %v355
        %v388 = vunpack.c.l.bf16 %v356
        %v389 = vunpack.c.l.bf16 %v357
        %v390 = vunpack.c.l.bf16 %v358
        %v391 = vunpack.c.l.bf16 %v359
        %v392 = vunpack.c.l.bf16 %v360
        %v393 = vunpack.c.l.bf16 %v361
        %v394 = vunpack.c.l.bf16 %v362
        %v396 = vlaneseq
        %v397 = vshrl.u32 %v396, 7
        %v398 = vsub.s32 0, %v397
        %v399 = vrot.slane %v327, %v398
        %v401 = vmul.f32 %v363, %v399
        %v402 = vmul.f32 %v364, %v399
        %v403 = vmul.f32 %v365, %v399
        %v404 = vmul.f32 %v366, %v399
        %v405 = vmul.f32 %v367, %v399
        %v406 = vmul.f32 %v368, %v399
        %v407 = vmul.f32 %v369, %v399
        %v408 = vmul.f32 %v370, %v399
        %v409 = vmul.f32 %v371, %v399
        %v410 = vmul.f32 %v372, %v399
        %v411 = vmul.f32 %v373, %v399
        %v412 = vmul.f32 %v374, %v399
        %v413 = vmul.f32 %v375, %v399
        %v414 = vmul.f32 %v376, %v399
        %v415 = vmul.f32 %v377, %v399
        %v416 = vmul.f32 %v378, %v399
        %v417 = vmul.f32 %v379, %v399
        %v418 = vmul.f32 %v380, %v399
        %v419 = vmul.f32 %v381, %v399
        %v420 = vmul.f32 %v382, %v399
        %v421 = vmul.f32 %v383, %v399
        %v422 = vmul.f32 %v384, %v399
        %v423 = vmul.f32 %v385, %v399
        %v424 = vmul.f32 %v386, %v399
        %v425 = vmul.f32 %v387, %v399
        %v426 = vmul.f32 %v388, %v399
        %v427 = vmul.f32 %v389, %v399
        %v428 = vmul.f32 %v390, %v399
        %v429 = vmul.f32 %v391, %v399
        %v430 = vmul.f32 %v392, %v399
        %v431 = vmul.f32 %v393, %v399
        %v432 = vmul.f32 %v394, %v399
        %v434 = vlaneseq
        %v435 = vshrl.u32 %v434, 7
        %v436 = vsub.s32 0, %v435
        %v437 = vrot.slane %v330, %v436
        %v439 = vadd.f32 %v401, %v437
        %v440 = vadd.f32 %v402, %v437
        %v441 = vadd.f32 %v403, %v437
        %v442 = vadd.f32 %v404, %v437
        %v443 = vadd.f32 %v405, %v437
        %v444 = vadd.f32 %v406, %v437
        %v445 = vadd.f32 %v407, %v437
        %v446 = vadd.f32 %v408, %v437
        %v447 = vadd.f32 %v409, %v437
        %v448 = vadd.f32 %v410, %v437
        %v449 = vadd.f32 %v411, %v437
        %v450 = vadd.f32 %v412, %v437
        %v451 = vadd.f32 %v413, %v437
        %v452 = vadd.f32 %v414, %v437
        %v453 = vadd.f32 %v415, %v437
        %v454 = vadd.f32 %v416, %v437
        %v455 = vadd.f32 %v417, %v437
        %v456 = vadd.f32 %v418, %v437
        %v457 = vadd.f32 %v419, %v437
        %v458 = vadd.f32 %v420, %v437
        %v459 = vadd.f32 %v421, %v437
        %v460 = vadd.f32 %v422, %v437
        %v461 = vadd.f32 %v423, %v437
        %v462 = vadd.f32 %v424, %v437
        %v463 = vadd.f32 %v425, %v437
        %v464 = vadd.f32 %v426, %v437
        %v465 = vadd.f32 %v427, %v437
        %v466 = vadd.f32 %v428, %v437
        %v467 = vadd.f32 %v429, %v437
        %v468 = vadd.f32 %v430, %v437
        %v469 = vadd.f32 %v431, %v437
        %v470 = vadd.f32 %v432, %v437
        %v471 = vmax.f32 %v439, 0.0
        %v472 = vmax.f32 %v440, 0.0
        %v473 = vmax.f32 %v441, 0.0
        %v474 = vmax.f32 %v442, 0.0
        %v475 = vmax.f32 %v443, 0.0
        %v476 = vmax.f32 %v444, 0.0
        %v477 = vmax.f32 %v445, 0.0
        %v478 = vmax.f32 %v446, 0.0
        %v479 = vmax.f32 %v447, 0.0
        %v480 = vmax.f32 %v448, 0.0
        %v481 = vmax.f32 %v449, 0.0
        %v482 = vmax.f32 %v450, 0.0
        %v483 = vmax.f32 %v451, 0.0
        %v484 = vmax.f32 %v452, 0.0
        %v485 = vmax.f32 %v453, 0.0
        %v486 = vmax.f32 %v454, 0.0
        %v487 = vmax.f32 %v455, 0.0
        %v488 = vmax.f32 %v456, 0.0
        %v489 = vmax.f32 %v457, 0.0
        %v490 = vmax.f32 %v458, 0.0
        %v491 = vmax.f32 %v459, 0.0
        %v492 = vmax.f32 %v460, 0.0
        %v493 = vmax.f32 %v461, 0.0
        %v494 = vmax.f32 %v462, 0.0
        %v495 = vmax.f32 %v463, 0.0
        %v496 = vmax.f32 %v464, 0.0
        %v497 = vmax.f32 %v465, 0.0
        %v498 = vmax.f32 %v466, 0.0
        %v499 = vmax.f32 %v467, 0.0
        %v500 = vmax.f32 %v468, 0.0
        %v501 = vmax.f32 %v469, 0.0
        %v502 = vmax.f32 %v470, 0.0
        %503 = vst [vmem:[%s286] sm:$0xff] %v471
        %504 = vst [vmem:[%s286 + $0x8] sm:$0xff] %v472
        %505 = vst [vmem:[%s286 + $0x10] sm:$0xff] %v473
        %506 = vst [vmem:[%s286 + $0x18] sm:$0xff] %v474
        %507 = vst [vmem:[%s286 + $0x20] sm:$0xff] %v475
        %508 = vst [vmem:[%s286 + $0x28] sm:$0xff] %v476
        %509 = vst [vmem:[%s286 + $0x30] sm:$0xff] %v477
        %510 = vst [vmem:[%s286 + $0x38] sm:$0xff] %v478
        %511 = vst [vmem:[%s286 + $0x40] sm:$0xff] %v479
        %512 = vst [vmem:[%s286 + $0x48] sm:$0xff] %v480
        %513 = vst [vmem:[%s286 + $0x50] sm:$0xff] %v481
        %514 = vst [vmem:[%s286 + $0x58] sm:$0xff] %v482
        %515 = vst [vmem:[%s286 + $0x60] sm:$0xff] %v483
        %516 = vst [vmem:[%s286 + $0x68] sm:$0xff] %v484
        %517 = vst [vmem:[%s286 + $0x70] sm:$0xff] %v485
        %518 = vst [vmem:[%s286 + $0x78] sm:$0xff] %v486
        %519 = vst [vmem:[%s286 + $0x80] sm:$0xff] %v487
        %520 = vst [vmem:[%s286 + $0x88] sm:$0xff] %v488
        %521 = vst [vmem:[%s286 + $0x90] sm:$0xff] %v489
        %522 = vst [vmem:[%s286 + $0x98] sm:$0xff] %v490
        %523 = vst [vmem:[%s286 + $0xa0] sm:$0xff] %v491
        %524 = vst [vmem:[%s286 + $0xa8] sm:$0xff] %v492
        %525 = vst [vmem:[%s286 + $0xb0] sm:$0xff] %v493
        %526 = vst [vmem:[%s286 + $0xb8] sm:$0xff] %v494
        %527 = vst [vmem:[%s286 + $0xc0] sm:$0xff] %v495
        %528 = vst [vmem:[%s286 + $0xc8] sm:$0xff] %v496
        %529 = vst [vmem:[%s286 + $0xd0] sm:$0xff] %v497
        %530 = vst [vmem:[%s286 + $0xd8] sm:$0xff] %v498
        %531 = vst [vmem:[%s286 + $0xe0] sm:$0xff] %v499
        %532 = vst [vmem:[%s286 + $0xe8] sm:$0xff] %v500
        %533 = vst [vmem:[%s286 + $0xf0] sm:$0xff] %v501
        %534 = vst [vmem:[%s286 + $0xf8] sm:$0xff] %v502
        %v567 = vcombine.high %v471, %v471
        %v569 = vunpack.c.l.s4 1983009808
        %v570 = vunpack.c.0.s8 %v569
        %v571 = vlaneseq
        %v572 = vshrl.u32 %v571, 7
        %v573 = vsub.s32 %v570, %v572
        %v574 = vrot.slane %v471, %v573
        %v576 = vunpack.c.l.s4 1983009808
        %v577 = vunpack.c.0.s8 %v576
        %v578 = vlaneseq
        %v579 = vshrl.u32 %v578, 7
        %v580 = vsub.s32 %v577, %v579
        %v581 = vrot.slane %v567, %v580
        %v582 = vcombine.high %v574, %v574
        %v583 = vcombine.high %v581, %v581
        %v584 = vcombine.high %v472, %v472
        %v586 = vunpack.c.l.s4 1983009808
        %v587 = vunpack.c.0.s8 %v586
        %v588 = vlaneseq
        %v589 = vshrl.u32 %v588, 7
        %v590 = vsub.s32 %v587, %v589
        %v591 = vrot.slane %v472, %v590
        %v593 = vunpack.c.l.s4 1983009808
        %v594 = vunpack.c.0.s8 %v593
        %v595 = vlaneseq
        %v596 = vshrl.u32 %v595, 7
        %v597 = vsub.s32 %v594, %v596
        %v598 = vrot.slane %v584, %v597
        %v599 = vcombine.high %v591, %v591
        %v600 = vcombine.high %v598, %v598
        %v601 = vcombine.high %v473, %v473
        %v603 = vunpack.c.l.s4 1983009808
        %v604 = vunpack.c.0.s8 %v603
        %v605 = vlaneseq
        %v606 = vshrl.u32 %v605, 7
        %v607 = vsub.s32 %v604, %v606
        %v608 = vrot.slane %v473, %v607
        %v610 = vunpack.c.l.s4 1983009808
        %v611 = vunpack.c.0.s8 %v610
        %v612 = vlaneseq
        %v613 = vshrl.u32 %v612, 7
        %v614 = vsub.s32 %v611, %v613
        %v615 = vrot.slane %v601, %v614
        %v616 = vcombine.high %v608, %v608
        %v617 = vcombine.high %v615, %v615
        %v618 = vcombine.high %v474, %v474
        %v620 = vunpack.c.l.s4 1983009808
        %v621 = vunpack.c.0.s8 %v620
        %v622 = vlaneseq
        %v623 = vshrl.u32 %v622, 7
        %v624 = vsub.s32 %v621, %v623
        %v625 = vrot.slane %v474, %v624
        %v627 = vunpack.c.l.s4 1983009808
        %v628 = vunpack.c.0.s8 %v627
        %v629 = vlaneseq
        %v630 = vshrl.u32 %v629, 7
        %v631 = vsub.s32 %v628, %v630
        %v632 = vrot.slane %v618, %v631
        %v633 = vcombine.high %v625, %v625
        %v634 = vcombine.high %v632, %v632
        %v635 = vcombine.high %v475, %v475
        %v637 = vunpack.c.l.s4 1983009808
        %v638 = vunpack.c.0.s8 %v637
        %v639 = vlaneseq
        %v640 = vshrl.u32 %v639, 7
        %v641 = vsub.s32 %v638, %v640
        %v642 = vrot.slane %v475, %v641
        %v644 = vunpack.c.l.s4 1983009808
        %v645 = vunpack.c.0.s8 %v644
        %v646 = vlaneseq
        %v647 = vshrl.u32 %v646, 7
        %v648 = vsub.s32 %v645, %v647
        %v649 = vrot.slane %v635, %v648
        %v650 = vcombine.high %v642, %v642
        %v651 = vcombine.high %v649, %v649
        %v652 = vcombine.high %v476, %v476
        %v654 = vunpack.c.l.s4 1983009808
        %v655 = vunpack.c.0.s8 %v654
        %v656 = vlaneseq
        %v657 = vshrl.u32 %v656, 7
        %v658 = vsub.s32 %v655, %v657
        %v659 = vrot.slane %v476, %v658
        %v661 = vunpack.c.l.s4 1983009808
        %v662 = vunpack.c.0.s8 %v661
        %v663 = vlaneseq
        %v664 = vshrl.u32 %v663, 7
        %v665 = vsub.s32 %v662, %v664
        %v666 = vrot.slane %v652, %v665
        %v667 = vcombine.high %v659, %v659
        %v668 = vcombine.high %v666, %v666
        %v669 = vcombine.high %v477, %v477
        %v671 = vunpack.c.l.s4 1983009808
        %v672 = vunpack.c.0.s8 %v671
        %v673 = vlaneseq
        %v674 = vshrl.u32 %v673, 7
        %v675 = vsub.s32 %v672, %v674
        %v676 = vrot.slane %v477, %v675
        %v678 = vunpack.c.l.s4 1983009808
        %v679 = vunpack.c.0.s8 %v678
        %v680 = vlaneseq
        %v681 = vshrl.u32 %v680, 7
        %v682 = vsub.s32 %v679, %v681
        %v683 = vrot.slane %v669, %v682
        %v684 = vcombine.high %v676, %v676
        %v685 = vcombine.high %v683, %v683
        %v686 = vcombine.high %v478, %v478
        %v688 = vunpack.c.l.s4 1983009808
        %v689 = vunpack.c.0.s8 %v688
        %v690 = vlaneseq
        %v691 = vshrl.u32 %v690, 7
        %v692 = vsub.s32 %v689, %v691
        %v693 = vrot.slane %v478, %v692
        %v695 = vunpack.c.l.s4 1983009808
        %v696 = vunpack.c.0.s8 %v695
        %v697 = vlaneseq
        %v698 = vshrl.u32 %v697, 7
        %v699 = vsub.s32 %v696, %v698
        %v700 = vrot.slane %v686, %v699
        %v701 = vcombine.high %v693, %v693
        %v702 = vcombine.high %v700, %v700
        %v703 = vcombine.high %v479, %v479
        %v705 = vunpack.c.l.s4 1983009808
        %v706 = vunpack.c.0.s8 %v705
        %v707 = vlaneseq
        %v708 = vshrl.u32 %v707, 7
        %v709 = vsub.s32 %v706, %v708
        %v710 = vrot.slane %v479, %v709
        %v712 = vunpack.c.l.s4 1983009808
        %v713 = vunpack.c.0.s8 %v712
        %v714 = vlaneseq
        %v715 = vshrl.u32 %v714, 7
        %v716 = vsub.s32 %v713, %v715
        %v717 = vrot.slane %v703, %v716
        %v718 = vcombine.high %v710, %v710
        %v719 = vcombine.high %v717, %v717
        %v720 = vcombine.high %v480, %v480
        %v722 = vunpack.c.l.s4 1983009808
        %v723 = vunpack.c.0.s8 %v722
        %v724 = vlaneseq
        %v725 = vshrl.u32 %v724, 7
        %v726 = vsub.s32 %v723, %v725
        %v727 = vrot.slane %v480, %v726
        %v729 = vunpack.c.l.s4 1983009808
        %v730 = vunpack.c.0.s8 %v729
        %v731 = vlaneseq
        %v732 = vshrl.u32 %v731, 7
        %v733 = vsub.s32 %v730, %v732
        %v734 = vrot.slane %v720, %v733
        %v735 = vcombine.high %v727, %v727
        %v736 = vcombine.high %v734, %v734
        %v737 = vcombine.high %v481, %v481
        %v739 = vunpack.c.l.s4 1983009808
        %v740 = vunpack.c.0.s8 %v739
        %v741 = vlaneseq
        %v742 = vshrl.u32 %v741, 7
        %v743 = vsub.s32 %v740, %v742
        %v744 = vrot.slane %v481, %v743
        %v746 = vunpack.c.l.s4 1983009808
        %v747 = vunpack.c.0.s8 %v746
        %v748 = vlaneseq
        %v749 = vshrl.u32 %v748, 7
        %v750 = vsub.s32 %v747, %v749
        %v751 = vrot.slane %v737, %v750
        %v752 = vcombine.high %v744, %v744
        %v753 = vcombine.high %v751, %v751
        %v754 = vcombine.high %v482, %v482
        %v756 = vunpack.c.l.s4 1983009808
        %v757 = vunpack.c.0.s8 %v756
        %v758 = vlaneseq
        %v759 = vshrl.u32 %v758, 7
        %v760 = vsub.s32 %v757, %v759
        %v761 = vrot.slane %v482, %v760
        %v763 = vunpack.c.l.s4 1983009808
        %v764 = vunpack.c.0.s8 %v763
        %v765 = vlaneseq
        %v766 = vshrl.u32 %v765, 7
        %v767 = vsub.s32 %v764, %v766
        %v768 = vrot.slane %v754, %v767
        %v769 = vcombine.high %v761, %v761
        %v770 = vcombine.high %v768, %v768
        %v771 = vcombine.high %v483, %v483
        %v773 = vunpack.c.l.s4 1983009808
        %v774 = vunpack.c.0.s8 %v773
        %v775 = vlaneseq
        %v776 = vshrl.u32 %v775, 7
        %v777 = vsub.s32 %v774, %v776
        %v778 = vrot.slane %v483, %v777
        %v780 = vunpack.c.l.s4 1983009808
        %v781 = vunpack.c.0.s8 %v780
        %v782 = vlaneseq
        %v783 = vshrl.u32 %v782, 7
        %v784 = vsub.s32 %v781, %v783
        %v785 = vrot.slane %v771, %v784
        %v786 = vcombine.high %v778, %v778
        %v787 = vcombine.high %v785, %v785
        %v788 = vcombine.high %v484, %v484
        %v790 = vunpack.c.l.s4 1983009808
        %v791 = vunpack.c.0.s8 %v790
        %v792 = vlaneseq
        %v793 = vshrl.u32 %v792, 7
        %v794 = vsub.s32 %v791, %v793
        %v795 = vrot.slane %v484, %v794
        %v797 = vunpack.c.l.s4 1983009808
        %v798 = vunpack.c.0.s8 %v797
        %v799 = vlaneseq
        %v800 = vshrl.u32 %v799, 7
        %v801 = vsub.s32 %v798, %v800
        %v802 = vrot.slane %v788, %v801
        %v803 = vcombine.high %v795, %v795
        %v804 = vcombine.high %v802, %v802
        %v805 = vcombine.high %v485, %v485
        %v807 = vunpack.c.l.s4 1983009808
        %v808 = vunpack.c.0.s8 %v807
        %v809 = vlaneseq
        %v810 = vshrl.u32 %v809, 7
        %v811 = vsub.s32 %v808, %v810
        %v812 = vrot.slane %v485, %v811
        %v814 = vunpack.c.l.s4 1983009808
        %v815 = vunpack.c.0.s8 %v814
        %v816 = vlaneseq
        %v817 = vshrl.u32 %v816, 7
        %v818 = vsub.s32 %v815, %v817
        %v819 = vrot.slane %v805, %v818
        %v820 = vcombine.high %v812, %v812
        %v821 = vcombine.high %v819, %v819
        %v822 = vcombine.high %v486, %v486
        %v824 = vunpack.c.l.s4 1983009808
        %v825 = vunpack.c.0.s8 %v824
        %v826 = vlaneseq
        %v827 = vshrl.u32 %v826, 7
        %v828 = vsub.s32 %v825, %v827
        %v829 = vrot.slane %v486, %v828
        %v831 = vunpack.c.l.s4 1983009808
        %v832 = vunpack.c.0.s8 %v831
        %v833 = vlaneseq
        %v834 = vshrl.u32 %v833, 7
        %v835 = vsub.s32 %v832, %v834
        %v836 = vrot.slane %v822, %v835
        %v837 = vcombine.high %v829, %v829
        %v838 = vcombine.high %v836, %v836
        %v839 = vcombine.high %v487, %v487
        %v841 = vunpack.c.l.s4 1983009808
        %v842 = vunpack.c.0.s8 %v841
        %v843 = vlaneseq
        %v844 = vshrl.u32 %v843, 7
        %v845 = vsub.s32 %v842, %v844
        %v846 = vrot.slane %v487, %v845
        %v848 = vunpack.c.l.s4 1983009808
        %v849 = vunpack.c.0.s8 %v848
        %v850 = vlaneseq
        %v851 = vshrl.u32 %v850, 7
        %v852 = vsub.s32 %v849, %v851
        %v853 = vrot.slane %v839, %v852
        %v854 = vcombine.high %v846, %v846
        %v855 = vcombine.high %v853, %v853
        %v856 = vcombine.high %v488, %v488
        %v858 = vunpack.c.l.s4 1983009808
        %v859 = vunpack.c.0.s8 %v858
        %v860 = vlaneseq
        %v861 = vshrl.u32 %v860, 7
        %v862 = vsub.s32 %v859, %v861
        %v863 = vrot.slane %v488, %v862
        %v865 = vunpack.c.l.s4 1983009808
        %v866 = vunpack.c.0.s8 %v865
        %v867 = vlaneseq
        %v868 = vshrl.u32 %v867, 7
        %v869 = vsub.s32 %v866, %v868
        %v870 = vrot.slane %v856, %v869
        %v871 = vcombine.high %v863, %v863
        %v872 = vcombine.high %v870, %v870
        %v873 = vcombine.high %v489, %v489
        %v875 = vunpack.c.l.s4 1983009808
        %v876 = vunpack.c.0.s8 %v875
        %v877 = vlaneseq
        %v878 = vshrl.u32 %v877, 7
        %v879 = vsub.s32 %v876, %v878
        %v880 = vrot.slane %v489, %v879
        %v882 = vunpack.c.l.s4 1983009808
        %v883 = vunpack.c.0.s8 %v882
        %v884 = vlaneseq
        %v885 = vshrl.u32 %v884, 7
        %v886 = vsub.s32 %v883, %v885
        %v887 = vrot.slane %v873, %v886
        %v888 = vcombine.high %v880, %v880
        %v889 = vcombine.high %v887, %v887
        %v890 = vcombine.high %v490, %v490
        %v892 = vunpack.c.l.s4 1983009808
        %v893 = vunpack.c.0.s8 %v892
        %v894 = vlaneseq
        %v895 = vshrl.u32 %v894, 7
        %v896 = vsub.s32 %v893, %v895
        %v897 = vrot.slane %v490, %v896
        %v899 = vunpack.c.l.s4 1983009808
        %v900 = vunpack.c.0.s8 %v899
        %v901 = vlaneseq
        %v902 = vshrl.u32 %v901, 7
        %v903 = vsub.s32 %v900, %v902
        %v904 = vrot.slane %v890, %v903
        %v905 = vcombine.high %v897, %v897
        %v906 = vcombine.high %v904, %v904
        %v907 = vcombine.high %v491, %v491
        %v909 = vunpack.c.l.s4 1983009808
        %v910 = vunpack.c.0.s8 %v909
        %v911 = vlaneseq
        %v912 = vshrl.u32 %v911, 7
        %v913 = vsub.s32 %v910, %v912
        %v914 = vrot.slane %v491, %v913
        %v916 = vunpack.c.l.s4 1983009808
        %v917 = vunpack.c.0.s8 %v916
        %v918 = vlaneseq
        %v919 = vshrl.u32 %v918, 7
        %v920 = vsub.s32 %v917, %v919
        %v921 = vrot.slane %v907, %v920
        %v922 = vcombine.high %v914, %v914
        %v923 = vcombine.high %v921, %v921
        %v924 = vcombine.high %v492, %v492
        %v926 = vunpack.c.l.s4 1983009808
        %v927 = vunpack.c.0.s8 %v926
        %v928 = vlaneseq
        %v929 = vshrl.u32 %v928, 7
        %v930 = vsub.s32 %v927, %v929
        %v931 = vrot.slane %v492, %v930
        %v933 = vunpack.c.l.s4 1983009808
        %v934 = vunpack.c.0.s8 %v933
        %v935 = vlaneseq
        %v936 = vshrl.u32 %v935, 7
        %v937 = vsub.s32 %v934, %v936
        %v938 = vrot.slane %v924, %v937
        %v939 = vcombine.high %v931, %v931
        %v940 = vcombine.high %v938, %v938
        %v941 = vcombine.high %v493, %v493
        %v943 = vunpack.c.l.s4 1983009808
        %v944 = vunpack.c.0.s8 %v943
        %v945 = vlaneseq
        %v946 = vshrl.u32 %v945, 7
        %v947 = vsub.s32 %v944, %v946
        %v948 = vrot.slane %v493, %v947
        %v950 = vunpack.c.l.s4 1983009808
        %v951 = vunpack.c.0.s8 %v950
        %v952 = vlaneseq
        %v953 = vshrl.u32 %v952, 7
        %v954 = vsub.s32 %v951, %v953
        %v955 = vrot.slane %v941, %v954
        %v956 = vcombine.high %v948, %v948
        %v957 = vcombine.high %v955, %v955
        %v958 = vcombine.high %v494, %v494
        %v960 = vunpack.c.l.s4 1983009808
        %v961 = vunpack.c.0.s8 %v960
        %v962 = vlaneseq
        %v963 = vshrl.u32 %v962, 7
        %v964 = vsub.s32 %v961, %v963
        %v965 = vrot.slane %v494, %v964
        %v967 = vunpack.c.l.s4 1983009808
        %v968 = vunpack.c.0.s8 %v967
        %v969 = vlaneseq
        %v970 = vshrl.u32 %v969, 7
        %v971 = vsub.s32 %v968, %v970
        %v972 = vrot.slane %v958, %v971
        %v973 = vcombine.high %v965, %v965
        %v974 = vcombine.high %v972, %v972
        %v975 = vcombine.high %v495, %v495
        %v977 = vunpack.c.l.s4 1983009808
        %v978 = vunpack.c.0.s8 %v977
        %v979 = vlaneseq
        %v980 = vshrl.u32 %v979, 7
        %v981 = vsub.s32 %v978, %v980
        %v982 = vrot.slane %v495, %v981
        %v984 = vunpack.c.l.s4 1983009808
        %v985 = vunpack.c.0.s8 %v984
        %v986 = vlaneseq
        %v987 = vshrl.u32 %v986, 7
        %v988 = vsub.s32 %v985, %v987
        %v989 = vrot.slane %v975, %v988
        %v990 = vcombine.high %v982, %v982
        %v991 = vcombine.high %v989, %v989
        %v992 = vcombine.high %v496, %v496
        %v994 = vunpack.c.l.s4 1983009808
        %v995 = vunpack.c.0.s8 %v994
        %v996 = vlaneseq
        %v997 = vshrl.u32 %v996, 7
        %v998 = vsub.s32 %v995, %v997
        %v999 = vrot.slane %v496, %v998
        %v1001 = vunpack.c.l.s4 1983009808
        %v1002 = vunpack.c.0.s8 %v1001
        %v1003 = vlaneseq
        %v1004 = vshrl.u32 %v1003, 7
        %v1005 = vsub.s32 %v1002, %v1004
        %v1006 = vrot.slane %v992, %v1005
        %v1007 = vcombine.high %v999, %v999
        %v1008 = vcombine.high %v1006, %v1006
        %v1009 = vcombine.high %v497, %v497
        %v1011 = vunpack.c.l.s4 1983009808
        %v1012 = vunpack.c.0.s8 %v1011
        %v1013 = vlaneseq
        %v1014 = vshrl.u32 %v1013, 7
        %v1015 = vsub.s32 %v1012, %v1014
        %v1016 = vrot.slane %v497, %v1015
        %v1018 = vunpack.c.l.s4 1983009808
        %v1019 = vunpack.c.0.s8 %v1018
        %v1020 = vlaneseq
        %v1021 = vshrl.u32 %v1020, 7
        %v1022 = vsub.s32 %v1019, %v1021
        %v1023 = vrot.slane %v1009, %v1022
        %v1024 = vcombine.high %v1016, %v1016
        %v1025 = vcombine.high %v1023, %v1023
        %v1026 = vcombine.high %v498, %v498
        %v1028 = vunpack.c.l.s4 1983009808
        %v1029 = vunpack.c.0.s8 %v1028
        %v1030 = vlaneseq
        %v1031 = vshrl.u32 %v1030, 7
        %v1032 = vsub.s32 %v1029, %v1031
        %v1033 = vrot.slane %v498, %v1032
        %v1035 = vunpack.c.l.s4 1983009808
        %v1036 = vunpack.c.0.s8 %v1035
        %v1037 = vlaneseq
        %v1038 = vshrl.u32 %v1037, 7
        %v1039 = vsub.s32 %v1036, %v1038
        %v1040 = vrot.slane %v1026, %v1039
        %v1041 = vcombine.high %v1033, %v1033
        %v1042 = vcombine.high %v1040, %v1040
        %v1043 = vcombine.high %v499, %v499
        %v1045 = vunpack.c.l.s4 1983009808
        %v1046 = vunpack.c.0.s8 %v1045
        %v1047 = vlaneseq
        %v1048 = vshrl.u32 %v1047, 7
        %v1049 = vsub.s32 %v1046, %v1048
        %v1050 = vrot.slane %v499, %v1049
        %v1052 = vunpack.c.l.s4 1983009808
        %v1053 = vunpack.c.0.s8 %v1052
        %v1054 = vlaneseq
        %v1055 = vshrl.u32 %v1054, 7
        %v1056 = vsub.s32 %v1053, %v1055
        %v1057 = vrot.slane %v1043, %v1056
        %v1058 = vcombine.high %v1050, %v1050
        %v1059 = vcombine.high %v1057, %v1057
        %v1060 = vcombine.high %v500, %v500
        %v1062 = vunpack.c.l.s4 1983009808
        %v1063 = vunpack.c.0.s8 %v1062
        %v1064 = vlaneseq
        %v1065 = vshrl.u32 %v1064, 7
        %v1066 = vsub.s32 %v1063, %v1065
        %v1067 = vrot.slane %v500, %v1066
        %v1069 = vunpack.c.l.s4 1983009808
        %v1070 = vunpack.c.0.s8 %v1069
        %v1071 = vlaneseq
        %v1072 = vshrl.u32 %v1071, 7
        %v1073 = vsub.s32 %v1070, %v1072
        %v1074 = vrot.slane %v1060, %v1073
        %v1075 = vcombine.high %v1067, %v1067
        %v1076 = vcombine.high %v1074, %v1074
        %v1077 = vcombine.high %v501, %v501
        %v1079 = vunpack.c.l.s4 1983009808
        %v1080 = vunpack.c.0.s8 %v1079
        %v1081 = vlaneseq
        %v1082 = vshrl.u32 %v1081, 7
        %v1083 = vsub.s32 %v1080, %v1082
        %v1084 = vrot.slane %v501, %v1083
        %v1086 = vunpack.c.l.s4 1983009808
        %v1087 = vunpack.c.0.s8 %v1086
        %v1088 = vlaneseq
        %v1089 = vshrl.u32 %v1088, 7
        %v1090 = vsub.s32 %v1087, %v1089
        %v1091 = vrot.slane %v1077, %v1090
        %v1092 = vcombine.high %v1084, %v1084
        %v1093 = vcombine.high %v1091, %v1091
        %v1094 = vcombine.high %v502, %v502
        %v1096 = vunpack.c.l.s4 1983009808
        %v1097 = vunpack.c.0.s8 %v1096
        %v1098 = vlaneseq
        %v1099 = vshrl.u32 %v1098, 7
        %v1100 = vsub.s32 %v1097, %v1099
        %v1101 = vrot.slane %v502, %v1100
        %v1103 = vunpack.c.l.s4 1983009808
        %v1104 = vunpack.c.0.s8 %v1103
        %v1105 = vlaneseq
        %v1106 = vshrl.u32 %v1105, 7
        %v1107 = vsub.s32 %v1104, %v1106
        %v1108 = vrot.slane %v1094, %v1107
        %v1109 = vcombine.high %v1101, %v1101
        %v1110 = vcombine.high %v1108, %v1108
        %v1239 = vsel %vm296, %v574, -inf
        %v1240 = vrot.slane %v1239, 4
        %v1241 = vmax.f32 %v1239, %v1240
        %v1242 = vrot.slane %v1241, 2
        %v1243 = vmax.f32 %v1241, %v1242
        %v1244 = vrot.slane %v1243, 1
        %v1245 = vmax.f32 %v1243, %v1244
        %v1246 = vsel %vm296, %v582, -inf
        %v1247 = vrot.slane %v1246, 4
        %v1248 = vmax.f32 %v1246, %v1247
        %v1249 = vrot.slane %v1248, 2
        %v1250 = vmax.f32 %v1248, %v1249
        %v1251 = vrot.slane %v1250, 1
        %v1252 = vmax.f32 %v1250, %v1251
        %v1253 = vsel %vm296, %v581, -inf
        %v1254 = vrot.slane %v1253, 4
        %v1255 = vmax.f32 %v1253, %v1254
        %v1256 = vrot.slane %v1255, 2
        %v1257 = vmax.f32 %v1255, %v1256
        %v1258 = vrot.slane %v1257, 1
        %v1259 = vmax.f32 %v1257, %v1258
        %v1260 = vsel %vm296, %v583, -inf
        %v1261 = vrot.slane %v1260, 4
        %v1262 = vmax.f32 %v1260, %v1261
        %v1263 = vrot.slane %v1262, 2
        %v1264 = vmax.f32 %v1262, %v1263
        %v1265 = vrot.slane %v1264, 1
        %v1266 = vmax.f32 %v1264, %v1265
        %v1267 = vsel %vm296, %v591, -inf
        %v1268 = vrot.slane %v1267, 4
        %v1269 = vmax.f32 %v1267, %v1268
        %v1270 = vrot.slane %v1269, 2
        %v1271 = vmax.f32 %v1269, %v1270
        %v1272 = vrot.slane %v1271, 1
        %v1273 = vmax.f32 %v1271, %v1272
        %v1274 = vsel %vm296, %v599, -inf
        %v1275 = vrot.slane %v1274, 4
        %v1276 = vmax.f32 %v1274, %v1275
        %v1277 = vrot.slane %v1276, 2
        %v1278 = vmax.f32 %v1276, %v1277
        %v1279 = vrot.slane %v1278, 1
        %v1280 = vmax.f32 %v1278, %v1279
        %v1281 = vsel %vm296, %v598, -inf
        %v1282 = vrot.slane %v1281, 4
        %v1283 = vmax.f32 %v1281, %v1282
        %v1284 = vrot.slane %v1283, 2
        %v1285 = vmax.f32 %v1283, %v1284
        %v1286 = vrot.slane %v1285, 1
        %v1287 = vmax.f32 %v1285, %v1286
        %v1288 = vsel %vm296, %v600, -inf
        %v1289 = vrot.slane %v1288, 4
        %v1290 = vmax.f32 %v1288, %v1289
        %v1291 = vrot.slane %v1290, 2
        %v1292 = vmax.f32 %v1290, %v1291
        %v1293 = vrot.slane %v1292, 1
        %v1294 = vmax.f32 %v1292, %v1293
        %v1295 = vsel %vm296, %v608, -inf
        %v1296 = vrot.slane %v1295, 4
        %v1297 = vmax.f32 %v1295, %v1296
        %v1298 = vrot.slane %v1297, 2
        %v1299 = vmax.f32 %v1297, %v1298
        %v1300 = vrot.slane %v1299, 1
        %v1301 = vmax.f32 %v1299, %v1300
        %v1302 = vsel %vm296, %v616, -inf
        %v1303 = vrot.slane %v1302, 4
        %v1304 = vmax.f32 %v1302, %v1303
        %v1305 = vrot.slane %v1304, 2
        %v1306 = vmax.f32 %v1304, %v1305
        %v1307 = vrot.slane %v1306, 1
        %v1308 = vmax.f32 %v1306, %v1307
        %v1309 = vsel %vm296, %v615, -inf
        %v1310 = vrot.slane %v1309, 4
        %v1311 = vmax.f32 %v1309, %v1310
        %v1312 = vrot.slane %v1311, 2
        %v1313 = vmax.f32 %v1311, %v1312
        %v1314 = vrot.slane %v1313, 1
        %v1315 = vmax.f32 %v1313, %v1314
        %v1316 = vsel %vm296, %v617, -inf
        %v1317 = vrot.slane %v1316, 4
        %v1318 = vmax.f32 %v1316, %v1317
        %v1319 = vrot.slane %v1318, 2
        %v1320 = vmax.f32 %v1318, %v1319
        %v1321 = vrot.slane %v1320, 1
        %v1322 = vmax.f32 %v1320, %v1321
        %v1323 = vsel %vm296, %v625, -inf
        %v1324 = vrot.slane %v1323, 4
        %v1325 = vmax.f32 %v1323, %v1324
        %v1326 = vrot.slane %v1325, 2
        %v1327 = vmax.f32 %v1325, %v1326
        %v1328 = vrot.slane %v1327, 1
        %v1329 = vmax.f32 %v1327, %v1328
        %v1330 = vsel %vm296, %v633, -inf
        %v1331 = vrot.slane %v1330, 4
        %v1332 = vmax.f32 %v1330, %v1331
        %v1333 = vrot.slane %v1332, 2
        %v1334 = vmax.f32 %v1332, %v1333
        %v1335 = vrot.slane %v1334, 1
        %v1336 = vmax.f32 %v1334, %v1335
        %v1337 = vsel %vm296, %v632, -inf
        %v1338 = vrot.slane %v1337, 4
        %v1339 = vmax.f32 %v1337, %v1338
        %v1340 = vrot.slane %v1339, 2
        %v1341 = vmax.f32 %v1339, %v1340
        %v1342 = vrot.slane %v1341, 1
        %v1343 = vmax.f32 %v1341, %v1342
        %v1344 = vsel %vm296, %v634, -inf
        %v1345 = vrot.slane %v1344, 4
        %v1346 = vmax.f32 %v1344, %v1345
        %v1347 = vrot.slane %v1346, 2
        %v1348 = vmax.f32 %v1346, %v1347
        %v1349 = vrot.slane %v1348, 1
        %v1350 = vmax.f32 %v1348, %v1349
        %v1351 = vsel %vm296, %v642, -inf
        %v1352 = vrot.slane %v1351, 4
        %v1353 = vmax.f32 %v1351, %v1352
        %v1354 = vrot.slane %v1353, 2
        %v1355 = vmax.f32 %v1353, %v1354
        %v1356 = vrot.slane %v1355, 1
        %v1357 = vmax.f32 %v1355, %v1356
        %v1358 = vsel %vm296, %v650, -inf
        %v1359 = vrot.slane %v1358, 4
        %v1360 = vmax.f32 %v1358, %v1359
        %v1361 = vrot.slane %v1360, 2
        %v1362 = vmax.f32 %v1360, %v1361
        %v1363 = vrot.slane %v1362, 1
        %v1364 = vmax.f32 %v1362, %v1363
        %v1365 = vsel %vm296, %v649, -inf
        %v1366 = vrot.slane %v1365, 4
        %v1367 = vmax.f32 %v1365, %v1366
        %v1368 = vrot.slane %v1367, 2
        %v1369 = vmax.f32 %v1367, %v1368
        %v1370 = vrot.slane %v1369, 1
        %v1371 = vmax.f32 %v1369, %v1370
        %v1372 = vsel %vm296, %v651, -inf
        %v1373 = vrot.slane %v1372, 4
        %v1374 = vmax.f32 %v1372, %v1373
        %v1375 = vrot.slane %v1374, 2
        %v1376 = vmax.f32 %v1374, %v1375
        %v1377 = vrot.slane %v1376, 1
        %v1378 = vmax.f32 %v1376, %v1377
        %v1379 = vsel %vm296, %v659, -inf
        %v1380 = vrot.slane %v1379, 4
        %v1381 = vmax.f32 %v1379, %v1380
        %v1382 = vrot.slane %v1381, 2
        %v1383 = vmax.f32 %v1381, %v1382
        %v1384 = vrot.slane %v1383, 1
        %v1385 = vmax.f32 %v1383, %v1384
        %v1386 = vsel %vm296, %v667, -inf
        %v1387 = vrot.slane %v1386, 4
        %v1388 = vmax.f32 %v1386, %v1387
        %v1389 = vrot.slane %v1388, 2
        %v1390 = vmax.f32 %v1388, %v1389
        %v1391 = vrot.slane %v1390, 1
        %v1392 = vmax.f32 %v1390, %v1391
        %v1393 = vsel %vm296, %v666, -inf
        %v1394 = vrot.slane %v1393, 4
        %v1395 = vmax.f32 %v1393, %v1394
        %v1396 = vrot.slane %v1395, 2
        %v1397 = vmax.f32 %v1395, %v1396
        %v1398 = vrot.slane %v1397, 1
        %v1399 = vmax.f32 %v1397, %v1398
        %v1400 = vsel %vm296, %v668, -inf
        %v1401 = vrot.slane %v1400, 4
        %v1402 = vmax.f32 %v1400, %v1401
        %v1403 = vrot.slane %v1402, 2
        %v1404 = vmax.f32 %v1402, %v1403
        %v1405 = vrot.slane %v1404, 1
        %v1406 = vmax.f32 %v1404, %v1405
        %v1407 = vsel %vm296, %v676, -inf
        %v1408 = vrot.slane %v1407, 4
        %v1409 = vmax.f32 %v1407, %v1408
        %v1410 = vrot.slane %v1409, 2
        %v1411 = vmax.f32 %v1409, %v1410
        %v1412 = vrot.slane %v1411, 1
        %v1413 = vmax.f32 %v1411, %v1412
        %v1414 = vsel %vm296, %v684, -inf
        %v1415 = vrot.slane %v1414, 4
        %v1416 = vmax.f32 %v1414, %v1415
        %v1417 = vrot.slane %v1416, 2
        %v1418 = vmax.f32 %v1416, %v1417
        %v1419 = vrot.slane %v1418, 1
        %v1420 = vmax.f32 %v1418, %v1419
        %v1421 = vsel %vm296, %v683, -inf
        %v1422 = vrot.slane %v1421, 4
        %v1423 = vmax.f32 %v1421, %v1422
        %v1424 = vrot.slane %v1423, 2
        %v1425 = vmax.f32 %v1423, %v1424
        %v1426 = vrot.slane %v1425, 1
        %v1427 = vmax.f32 %v1425, %v1426
        %v1428 = vsel %vm296, %v685, -inf
        %v1429 = vrot.slane %v1428, 4
        %v1430 = vmax.f32 %v1428, %v1429
        %v1431 = vrot.slane %v1430, 2
        %v1432 = vmax.f32 %v1430, %v1431
        %v1433 = vrot.slane %v1432, 1
        %v1434 = vmax.f32 %v1432, %v1433
        %v1435 = vsel %vm296, %v693, -inf
        %v1436 = vrot.slane %v1435, 4
        %v1437 = vmax.f32 %v1435, %v1436
        %v1438 = vrot.slane %v1437, 2
        %v1439 = vmax.f32 %v1437, %v1438
        %v1440 = vrot.slane %v1439, 1
        %v1441 = vmax.f32 %v1439, %v1440
        %v1442 = vsel %vm296, %v701, -inf
        %v1443 = vrot.slane %v1442, 4
        %v1444 = vmax.f32 %v1442, %v1443
        %v1445 = vrot.slane %v1444, 2
        %v1446 = vmax.f32 %v1444, %v1445
        %v1447 = vrot.slane %v1446, 1
        %v1448 = vmax.f32 %v1446, %v1447
        %v1449 = vsel %vm296, %v700, -inf
        %v1450 = vrot.slane %v1449, 4
        %v1451 = vmax.f32 %v1449, %v1450
        %v1452 = vrot.slane %v1451, 2
        %v1453 = vmax.f32 %v1451, %v1452
        %v1454 = vrot.slane %v1453, 1
        %v1455 = vmax.f32 %v1453, %v1454
        %v1456 = vsel %vm296, %v702, -inf
        %v1457 = vrot.slane %v1456, 4
        %v1458 = vmax.f32 %v1456, %v1457
        %v1459 = vrot.slane %v1458, 2
        %v1460 = vmax.f32 %v1458, %v1459
        %v1461 = vrot.slane %v1460, 1
        %v1462 = vmax.f32 %v1460, %v1461
        %v1463 = vsel %vm296, %v710, -inf
        %v1464 = vrot.slane %v1463, 4
        %v1465 = vmax.f32 %v1463, %v1464
        %v1466 = vrot.slane %v1465, 2
        %v1467 = vmax.f32 %v1465, %v1466
        %v1468 = vrot.slane %v1467, 1
        %v1469 = vmax.f32 %v1467, %v1468
        %v1470 = vsel %vm296, %v718, -inf
        %v1471 = vrot.slane %v1470, 4
        %v1472 = vmax.f32 %v1470, %v1471
        %v1473 = vrot.slane %v1472, 2
        %v1474 = vmax.f32 %v1472, %v1473
        %v1475 = vrot.slane %v1474, 1
        %v1476 = vmax.f32 %v1474, %v1475
        %v1477 = vsel %vm296, %v717, -inf
        %v1478 = vrot.slane %v1477, 4
        %v1479 = vmax.f32 %v1477, %v1478
        %v1480 = vrot.slane %v1479, 2
        %v1481 = vmax.f32 %v1479, %v1480
        %v1482 = vrot.slane %v1481, 1
        %v1483 = vmax.f32 %v1481, %v1482
        %v1484 = vsel %vm296, %v719, -inf
        %v1485 = vrot.slane %v1484, 4
        %v1486 = vmax.f32 %v1484, %v1485
        %v1487 = vrot.slane %v1486, 2
        %v1488 = vmax.f32 %v1486, %v1487
        %v1489 = vrot.slane %v1488, 1
        %v1490 = vmax.f32 %v1488, %v1489
        %v1491 = vsel %vm296, %v727, -inf
        %v1492 = vrot.slane %v1491, 4
        %v1493 = vmax.f32 %v1491, %v1492
        %v1494 = vrot.slane %v1493, 2
        %v1495 = vmax.f32 %v1493, %v1494
        %v1496 = vrot.slane %v1495, 1
        %v1497 = vmax.f32 %v1495, %v1496
        %v1498 = vsel %vm296, %v735, -inf
        %v1499 = vrot.slane %v1498, 4
        %v1500 = vmax.f32 %v1498, %v1499
        %v1501 = vrot.slane %v1500, 2
        %v1502 = vmax.f32 %v1500, %v1501
        %v1503 = vrot.slane %v1502, 1
        %v1504 = vmax.f32 %v1502, %v1503
        %v1505 = vsel %vm296, %v734, -inf
        %v1506 = vrot.slane %v1505, 4
        %v1507 = vmax.f32 %v1505, %v1506
        %v1508 = vrot.slane %v1507, 2
        %v1509 = vmax.f32 %v1507, %v1508
        %v1510 = vrot.slane %v1509, 1
        %v1511 = vmax.f32 %v1509, %v1510
        %v1512 = vsel %vm296, %v736, -inf
        %v1513 = vrot.slane %v1512, 4
        %v1514 = vmax.f32 %v1512, %v1513
        %v1515 = vrot.slane %v1514, 2
        %v1516 = vmax.f32 %v1514, %v1515
        %v1517 = vrot.slane %v1516, 1
        %v1518 = vmax.f32 %v1516, %v1517
        %v1519 = vsel %vm296, %v744, -inf
        %v1520 = vrot.slane %v1519, 4
        %v1521 = vmax.f32 %v1519, %v1520
        %v1522 = vrot.slane %v1521, 2
        %v1523 = vmax.f32 %v1521, %v1522
        %v1524 = vrot.slane %v1523, 1
        %v1525 = vmax.f32 %v1523, %v1524
        %v1526 = vsel %vm296, %v752, -inf
        %v1527 = vrot.slane %v1526, 4
        %v1528 = vmax.f32 %v1526, %v1527
        %v1529 = vrot.slane %v1528, 2
        %v1530 = vmax.f32 %v1528, %v1529
        %v1531 = vrot.slane %v1530, 1
        %v1532 = vmax.f32 %v1530, %v1531
        %v1533 = vsel %vm296, %v751, -inf
        %v1534 = vrot.slane %v1533, 4
        %v1535 = vmax.f32 %v1533, %v1534
        %v1536 = vrot.slane %v1535, 2
        %v1537 = vmax.f32 %v1535, %v1536
        %v1538 = vrot.slane %v1537, 1
        %v1539 = vmax.f32 %v1537, %v1538
        %v1540 = vsel %vm296, %v753, -inf
        %v1541 = vrot.slane %v1540, 4
        %v1542 = vmax.f32 %v1540, %v1541
        %v1543 = vrot.slane %v1542, 2
        %v1544 = vmax.f32 %v1542, %v1543
        %v1545 = vrot.slane %v1544, 1
        %v1546 = vmax.f32 %v1544, %v1545
        %v1547 = vsel %vm296, %v761, -inf
        %v1548 = vrot.slane %v1547, 4
        %v1549 = vmax.f32 %v1547, %v1548
        %v1550 = vrot.slane %v1549, 2
        %v1551 = vmax.f32 %v1549, %v1550
        %v1552 = vrot.slane %v1551, 1
        %v1553 = vmax.f32 %v1551, %v1552
        %v1554 = vsel %vm296, %v769, -inf
        %v1555 = vrot.slane %v1554, 4
        %v1556 = vmax.f32 %v1554, %v1555
        %v1557 = vrot.slane %v1556, 2
        %v1558 = vmax.f32 %v1556, %v1557
        %v1559 = vrot.slane %v1558, 1
        %v1560 = vmax.f32 %v1558, %v1559
        %v1561 = vsel %vm296, %v768, -inf
        %v1562 = vrot.slane %v1561, 4
        %v1563 = vmax.f32 %v1561, %v1562
        %v1564 = vrot.slane %v1563, 2
        %v1565 = vmax.f32 %v1563, %v1564
        %v1566 = vrot.slane %v1565, 1
        %v1567 = vmax.f32 %v1565, %v1566
        %v1568 = vsel %vm296, %v770, -inf
        %v1569 = vrot.slane %v1568, 4
        %v1570 = vmax.f32 %v1568, %v1569
        %v1571 = vrot.slane %v1570, 2
        %v1572 = vmax.f32 %v1570, %v1571
        %v1573 = vrot.slane %v1572, 1
        %v1574 = vmax.f32 %v1572, %v1573
        %v1575 = vsel %vm296, %v778, -inf
        %v1576 = vrot.slane %v1575, 4
        %v1577 = vmax.f32 %v1575, %v1576
        %v1578 = vrot.slane %v1577, 2
        %v1579 = vmax.f32 %v1577, %v1578
        %v1580 = vrot.slane %v1579, 1
        %v1581 = vmax.f32 %v1579, %v1580
        %v1582 = vsel %vm296, %v786, -inf
        %v1583 = vrot.slane %v1582, 4
        %v1584 = vmax.f32 %v1582, %v1583
        %v1585 = vrot.slane %v1584, 2
        %v1586 = vmax.f32 %v1584, %v1585
        %v1587 = vrot.slane %v1586, 1
        %v1588 = vmax.f32 %v1586, %v1587
        %v1589 = vsel %vm296, %v785, -inf
        %v1590 = vrot.slane %v1589, 4
        %v1591 = vmax.f32 %v1589, %v1590
        %v1592 = vrot.slane %v1591, 2
        %v1593 = vmax.f32 %v1591, %v1592
        %v1594 = vrot.slane %v1593, 1
        %v1595 = vmax.f32 %v1593, %v1594
        %v1596 = vsel %vm296, %v787, -inf
        %v1597 = vrot.slane %v1596, 4
        %v1598 = vmax.f32 %v1596, %v1597
        %v1599 = vrot.slane %v1598, 2
        %v1600 = vmax.f32 %v1598, %v1599
        %v1601 = vrot.slane %v1600, 1
        %v1602 = vmax.f32 %v1600, %v1601
        %v1603 = vsel %vm296, %v795, -inf
        %v1604 = vrot.slane %v1603, 4
        %v1605 = vmax.f32 %v1603, %v1604
        %v1606 = vrot.slane %v1605, 2
        %v1607 = vmax.f32 %v1605, %v1606
        %v1608 = vrot.slane %v1607, 1
        %v1609 = vmax.f32 %v1607, %v1608
        %v1610 = vsel %vm296, %v803, -inf
        %v1611 = vrot.slane %v1610, 4
        %v1612 = vmax.f32 %v1610, %v1611
        %v1613 = vrot.slane %v1612, 2
        %v1614 = vmax.f32 %v1612, %v1613
        %v1615 = vrot.slane %v1614, 1
        %v1616 = vmax.f32 %v1614, %v1615
        %v1617 = vsel %vm296, %v802, -inf
        %v1618 = vrot.slane %v1617, 4
        %v1619 = vmax.f32 %v1617, %v1618
        %v1620 = vrot.slane %v1619, 2
        %v1621 = vmax.f32 %v1619, %v1620
        %v1622 = vrot.slane %v1621, 1
        %v1623 = vmax.f32 %v1621, %v1622
        %v1624 = vsel %vm296, %v804, -inf
        %v1625 = vrot.slane %v1624, 4
        %v1626 = vmax.f32 %v1624, %v1625
        %v1627 = vrot.slane %v1626, 2
        %v1628 = vmax.f32 %v1626, %v1627
        %v1629 = vrot.slane %v1628, 1
        %v1630 = vmax.f32 %v1628, %v1629
        %v1631 = vsel %vm296, %v812, -inf
        %v1632 = vrot.slane %v1631, 4
        %v1633 = vmax.f32 %v1631, %v1632
        %v1634 = vrot.slane %v1633, 2
        %v1635 = vmax.f32 %v1633, %v1634
        %v1636 = vrot.slane %v1635, 1
        %v1637 = vmax.f32 %v1635, %v1636
        %v1638 = vsel %vm296, %v820, -inf
        %v1639 = vrot.slane %v1638, 4
        %v1640 = vmax.f32 %v1638, %v1639
        %v1641 = vrot.slane %v1640, 2
        %v1642 = vmax.f32 %v1640, %v1641
        %v1643 = vrot.slane %v1642, 1
        %v1644 = vmax.f32 %v1642, %v1643
        %v1645 = vsel %vm296, %v819, -inf
        %v1646 = vrot.slane %v1645, 4
        %v1647 = vmax.f32 %v1645, %v1646
        %v1648 = vrot.slane %v1647, 2
        %v1649 = vmax.f32 %v1647, %v1648
        %v1650 = vrot.slane %v1649, 1
        %v1651 = vmax.f32 %v1649, %v1650
        %v1652 = vsel %vm296, %v821, -inf
        %v1653 = vrot.slane %v1652, 4
        %v1654 = vmax.f32 %v1652, %v1653
        %v1655 = vrot.slane %v1654, 2
        %v1656 = vmax.f32 %v1654, %v1655
        %v1657 = vrot.slane %v1656, 1
        %v1658 = vmax.f32 %v1656, %v1657
        %v1659 = vsel %vm296, %v829, -inf
        %v1660 = vrot.slane %v1659, 4
        %v1661 = vmax.f32 %v1659, %v1660
        %v1662 = vrot.slane %v1661, 2
        %v1663 = vmax.f32 %v1661, %v1662
        %v1664 = vrot.slane %v1663, 1
        %v1665 = vmax.f32 %v1663, %v1664
        %v1666 = vsel %vm296, %v837, -inf
        %v1667 = vrot.slane %v1666, 4
        %v1668 = vmax.f32 %v1666, %v1667
        %v1669 = vrot.slane %v1668, 2
        %v1670 = vmax.f32 %v1668, %v1669
        %v1671 = vrot.slane %v1670, 1
        %v1672 = vmax.f32 %v1670, %v1671
        %v1673 = vsel %vm296, %v836, -inf
        %v1674 = vrot.slane %v1673, 4
        %v1675 = vmax.f32 %v1673, %v1674
        %v1676 = vrot.slane %v1675, 2
        %v1677 = vmax.f32 %v1675, %v1676
        %v1678 = vrot.slane %v1677, 1
        %v1679 = vmax.f32 %v1677, %v1678
        %v1680 = vsel %vm296, %v838, -inf
        %v1681 = vrot.slane %v1680, 4
        %v1682 = vmax.f32 %v1680, %v1681
        %v1683 = vrot.slane %v1682, 2
        %v1684 = vmax.f32 %v1682, %v1683
        %v1685 = vrot.slane %v1684, 1
        %v1686 = vmax.f32 %v1684, %v1685
        %v1687 = vsel %vm296, %v846, -inf
        %v1688 = vrot.slane %v1687, 4
        %v1689 = vmax.f32 %v1687, %v1688
        %v1690 = vrot.slane %v1689, 2
        %v1691 = vmax.f32 %v1689, %v1690
        %v1692 = vrot.slane %v1691, 1
        %v1693 = vmax.f32 %v1691, %v1692
        %v1694 = vsel %vm296, %v854, -inf
        %v1695 = vrot.slane %v1694, 4
        %v1696 = vmax.f32 %v1694, %v1695
        %v1697 = vrot.slane %v1696, 2
        %v1698 = vmax.f32 %v1696, %v1697
        %v1699 = vrot.slane %v1698, 1
        %v1700 = vmax.f32 %v1698, %v1699
        %v1701 = vsel %vm296, %v853, -inf
        %v1702 = vrot.slane %v1701, 4
        %v1703 = vmax.f32 %v1701, %v1702
        %v1704 = vrot.slane %v1703, 2
        %v1705 = vmax.f32 %v1703, %v1704
        %v1706 = vrot.slane %v1705, 1
        %v1707 = vmax.f32 %v1705, %v1706
        %v1708 = vsel %vm296, %v855, -inf
        %v1709 = vrot.slane %v1708, 4
        %v1710 = vmax.f32 %v1708, %v1709
        %v1711 = vrot.slane %v1710, 2
        %v1712 = vmax.f32 %v1710, %v1711
        %v1713 = vrot.slane %v1712, 1
        %v1714 = vmax.f32 %v1712, %v1713
        %v1715 = vsel %vm296, %v863, -inf
        %v1716 = vrot.slane %v1715, 4
        %v1717 = vmax.f32 %v1715, %v1716
        %v1718 = vrot.slane %v1717, 2
        %v1719 = vmax.f32 %v1717, %v1718
        %v1720 = vrot.slane %v1719, 1
        %v1721 = vmax.f32 %v1719, %v1720
        %v1722 = vsel %vm296, %v871, -inf
        %v1723 = vrot.slane %v1722, 4
        %v1724 = vmax.f32 %v1722, %v1723
        %v1725 = vrot.slane %v1724, 2
        %v1726 = vmax.f32 %v1724, %v1725
        %v1727 = vrot.slane %v1726, 1
        %v1728 = vmax.f32 %v1726, %v1727
        %v1729 = vsel %vm296, %v870, -inf
        %v1730 = vrot.slane %v1729, 4
        %v1731 = vmax.f32 %v1729, %v1730
        %v1732 = vrot.slane %v1731, 2
        %v1733 = vmax.f32 %v1731, %v1732
        %v1734 = vrot.slane %v1733, 1
        %v1735 = vmax.f32 %v1733, %v1734
        %v1736 = vsel %vm296, %v872, -inf
        %v1737 = vrot.slane %v1736, 4
        %v1738 = vmax.f32 %v1736, %v1737
        %v1739 = vrot.slane %v1738, 2
        %v1740 = vmax.f32 %v1738, %v1739
        %v1741 = vrot.slane %v1740, 1
        %v1742 = vmax.f32 %v1740, %v1741
        %v1743 = vsel %vm296, %v880, -inf
        %v1744 = vrot.slane %v1743, 4
        %v1745 = vmax.f32 %v1743, %v1744
        %v1746 = vrot.slane %v1745, 2
        %v1747 = vmax.f32 %v1745, %v1746
        %v1748 = vrot.slane %v1747, 1
        %v1749 = vmax.f32 %v1747, %v1748
        %v1750 = vsel %vm296, %v888, -inf
        %v1751 = vrot.slane %v1750, 4
        %v1752 = vmax.f32 %v1750, %v1751
        %v1753 = vrot.slane %v1752, 2
        %v1754 = vmax.f32 %v1752, %v1753
        %v1755 = vrot.slane %v1754, 1
        %v1756 = vmax.f32 %v1754, %v1755
        %v1757 = vsel %vm296, %v887, -inf
        %v1758 = vrot.slane %v1757, 4
        %v1759 = vmax.f32 %v1757, %v1758
        %v1760 = vrot.slane %v1759, 2
        %v1761 = vmax.f32 %v1759, %v1760
        %v1762 = vrot.slane %v1761, 1
        %v1763 = vmax.f32 %v1761, %v1762
        %v1764 = vsel %vm296, %v889, -inf
        %v1765 = vrot.slane %v1764, 4
        %v1766 = vmax.f32 %v1764, %v1765
        %v1767 = vrot.slane %v1766, 2
        %v1768 = vmax.f32 %v1766, %v1767
        %v1769 = vrot.slane %v1768, 1
        %v1770 = vmax.f32 %v1768, %v1769
        %v1771 = vsel %vm296, %v897, -inf
        %v1772 = vrot.slane %v1771, 4
        %v1773 = vmax.f32 %v1771, %v1772
        %v1774 = vrot.slane %v1773, 2
        %v1775 = vmax.f32 %v1773, %v1774
        %v1776 = vrot.slane %v1775, 1
        %v1777 = vmax.f32 %v1775, %v1776
        %v1778 = vsel %vm296, %v905, -inf
        %v1779 = vrot.slane %v1778, 4
        %v1780 = vmax.f32 %v1778, %v1779
        %v1781 = vrot.slane %v1780, 2
        %v1782 = vmax.f32 %v1780, %v1781
        %v1783 = vrot.slane %v1782, 1
        %v1784 = vmax.f32 %v1782, %v1783
        %v1785 = vsel %vm296, %v904, -inf
        %v1786 = vrot.slane %v1785, 4
        %v1787 = vmax.f32 %v1785, %v1786
        %v1788 = vrot.slane %v1787, 2
        %v1789 = vmax.f32 %v1787, %v1788
        %v1790 = vrot.slane %v1789, 1
        %v1791 = vmax.f32 %v1789, %v1790
        %v1792 = vsel %vm296, %v906, -inf
        %v1793 = vrot.slane %v1792, 4
        %v1794 = vmax.f32 %v1792, %v1793
        %v1795 = vrot.slane %v1794, 2
        %v1796 = vmax.f32 %v1794, %v1795
        %v1797 = vrot.slane %v1796, 1
        %v1798 = vmax.f32 %v1796, %v1797
        %v1799 = vsel %vm296, %v914, -inf
        %v1800 = vrot.slane %v1799, 4
        %v1801 = vmax.f32 %v1799, %v1800
        %v1802 = vrot.slane %v1801, 2
        %v1803 = vmax.f32 %v1801, %v1802
        %v1804 = vrot.slane %v1803, 1
        %v1805 = vmax.f32 %v1803, %v1804
        %v1806 = vsel %vm296, %v922, -inf
        %v1807 = vrot.slane %v1806, 4
        %v1808 = vmax.f32 %v1806, %v1807
        %v1809 = vrot.slane %v1808, 2
        %v1810 = vmax.f32 %v1808, %v1809
        %v1811 = vrot.slane %v1810, 1
        %v1812 = vmax.f32 %v1810, %v1811
        %v1813 = vsel %vm296, %v921, -inf
        %v1814 = vrot.slane %v1813, 4
        %v1815 = vmax.f32 %v1813, %v1814
        %v1816 = vrot.slane %v1815, 2
        %v1817 = vmax.f32 %v1815, %v1816
        %v1818 = vrot.slane %v1817, 1
        %v1819 = vmax.f32 %v1817, %v1818
        %v1820 = vsel %vm296, %v923, -inf
        %v1821 = vrot.slane %v1820, 4
        %v1822 = vmax.f32 %v1820, %v1821
        %v1823 = vrot.slane %v1822, 2
        %v1824 = vmax.f32 %v1822, %v1823
        %v1825 = vrot.slane %v1824, 1
        %v1826 = vmax.f32 %v1824, %v1825
        %v1827 = vsel %vm296, %v931, -inf
        %v1828 = vrot.slane %v1827, 4
        %v1829 = vmax.f32 %v1827, %v1828
        %v1830 = vrot.slane %v1829, 2
        %v1831 = vmax.f32 %v1829, %v1830
        %v1832 = vrot.slane %v1831, 1
        %v1833 = vmax.f32 %v1831, %v1832
        %v1834 = vsel %vm296, %v939, -inf
        %v1835 = vrot.slane %v1834, 4
        %v1836 = vmax.f32 %v1834, %v1835
        %v1837 = vrot.slane %v1836, 2
        %v1838 = vmax.f32 %v1836, %v1837
        %v1839 = vrot.slane %v1838, 1
        %v1840 = vmax.f32 %v1838, %v1839
        %v1841 = vsel %vm296, %v938, -inf
        %v1842 = vrot.slane %v1841, 4
        %v1843 = vmax.f32 %v1841, %v1842
        %v1844 = vrot.slane %v1843, 2
        %v1845 = vmax.f32 %v1843, %v1844
        %v1846 = vrot.slane %v1845, 1
        %v1847 = vmax.f32 %v1845, %v1846
        %v1848 = vsel %vm296, %v940, -inf
        %v1849 = vrot.slane %v1848, 4
        %v1850 = vmax.f32 %v1848, %v1849
        %v1851 = vrot.slane %v1850, 2
        %v1852 = vmax.f32 %v1850, %v1851
        %v1853 = vrot.slane %v1852, 1
        %v1854 = vmax.f32 %v1852, %v1853
        %v1855 = vsel %vm296, %v948, -inf
        %v1856 = vrot.slane %v1855, 4
        %v1857 = vmax.f32 %v1855, %v1856
        %v1858 = vrot.slane %v1857, 2
        %v1859 = vmax.f32 %v1857, %v1858
        %v1860 = vrot.slane %v1859, 1
        %v1861 = vmax.f32 %v1859, %v1860
        %v1862 = vsel %vm296, %v956, -inf
        %v1863 = vrot.slane %v1862, 4
        %v1864 = vmax.f32 %v1862, %v1863
        %v1865 = vrot.slane %v1864, 2
        %v1866 = vmax.f32 %v1864, %v1865
        %v1867 = vrot.slane %v1866, 1
        %v1868 = vmax.f32 %v1866, %v1867
        %v1869 = vsel %vm296, %v955, -inf
        %v1870 = vrot.slane %v1869, 4
        %v1871 = vmax.f32 %v1869, %v1870
        %v1872 = vrot.slane %v1871, 2
        %v1873 = vmax.f32 %v1871, %v1872
        %v1874 = vrot.slane %v1873, 1
        %v1875 = vmax.f32 %v1873, %v1874
        %v1876 = vsel %vm296, %v957, -inf
        %v1877 = vrot.slane %v1876, 4
        %v1878 = vmax.f32 %v1876, %v1877
        %v1879 = vrot.slane %v1878, 2
        %v1880 = vmax.f32 %v1878, %v1879
        %v1881 = vrot.slane %v1880, 1
        %v1882 = vmax.f32 %v1880, %v1881
        %v1883 = vsel %vm296, %v965, -inf
        %v1884 = vrot.slane %v1883, 4
        %v1885 = vmax.f32 %v1883, %v1884
        %v1886 = vrot.slane %v1885, 2
        %v1887 = vmax.f32 %v1885, %v1886
        %v1888 = vrot.slane %v1887, 1
        %v1889 = vmax.f32 %v1887, %v1888
        %v1890 = vsel %vm296, %v973, -inf
        %v1891 = vrot.slane %v1890, 4
        %v1892 = vmax.f32 %v1890, %v1891
        %v1893 = vrot.slane %v1892, 2
        %v1894 = vmax.f32 %v1892, %v1893
        %v1895 = vrot.slane %v1894, 1
        %v1896 = vmax.f32 %v1894, %v1895
        %v1897 = vsel %vm296, %v972, -inf
        %v1898 = vrot.slane %v1897, 4
        %v1899 = vmax.f32 %v1897, %v1898
        %v1900 = vrot.slane %v1899, 2
        %v1901 = vmax.f32 %v1899, %v1900
        %v1902 = vrot.slane %v1901, 1
        %v1903 = vmax.f32 %v1901, %v1902
        %v1904 = vsel %vm296, %v974, -inf
        %v1905 = vrot.slane %v1904, 4
        %v1906 = vmax.f32 %v1904, %v1905
        %v1907 = vrot.slane %v1906, 2
        %v1908 = vmax.f32 %v1906, %v1907
        %v1909 = vrot.slane %v1908, 1
        %v1910 = vmax.f32 %v1908, %v1909
        %v1911 = vsel %vm296, %v982, -inf
        %v1912 = vrot.slane %v1911, 4
        %v1913 = vmax.f32 %v1911, %v1912
        %v1914 = vrot.slane %v1913, 2
        %v1915 = vmax.f32 %v1913, %v1914
        %v1916 = vrot.slane %v1915, 1
        %v1917 = vmax.f32 %v1915, %v1916
        %v1918 = vsel %vm296, %v990, -inf
        %v1919 = vrot.slane %v1918, 4
        %v1920 = vmax.f32 %v1918, %v1919
        %v1921 = vrot.slane %v1920, 2
        %v1922 = vmax.f32 %v1920, %v1921
        %v1923 = vrot.slane %v1922, 1
        %v1924 = vmax.f32 %v1922, %v1923
        %v1925 = vsel %vm296, %v989, -inf
        %v1926 = vrot.slane %v1925, 4
        %v1927 = vmax.f32 %v1925, %v1926
        %v1928 = vrot.slane %v1927, 2
        %v1929 = vmax.f32 %v1927, %v1928
        %v1930 = vrot.slane %v1929, 1
        %v1931 = vmax.f32 %v1929, %v1930
        %v1932 = vsel %vm296, %v991, -inf
        %v1933 = vrot.slane %v1932, 4
        %v1934 = vmax.f32 %v1932, %v1933
        %v1935 = vrot.slane %v1934, 2
        %v1936 = vmax.f32 %v1934, %v1935
        %v1937 = vrot.slane %v1936, 1
        %v1938 = vmax.f32 %v1936, %v1937
        %v1939 = vsel %vm296, %v999, -inf
        %v1940 = vrot.slane %v1939, 4
        %v1941 = vmax.f32 %v1939, %v1940
        %v1942 = vrot.slane %v1941, 2
        %v1943 = vmax.f32 %v1941, %v1942
        %v1944 = vrot.slane %v1943, 1
        %v1945 = vmax.f32 %v1943, %v1944
        %v1946 = vsel %vm296, %v1007, -inf
        %v1947 = vrot.slane %v1946, 4
        %v1948 = vmax.f32 %v1946, %v1947
        %v1949 = vrot.slane %v1948, 2
        %v1950 = vmax.f32 %v1948, %v1949
        %v1951 = vrot.slane %v1950, 1
        %v1952 = vmax.f32 %v1950, %v1951
        %v1953 = vsel %vm296, %v1006, -inf
        %v1954 = vrot.slane %v1953, 4
        %v1955 = vmax.f32 %v1953, %v1954
        %v1956 = vrot.slane %v1955, 2
        %v1957 = vmax.f32 %v1955, %v1956
        %v1958 = vrot.slane %v1957, 1
        %v1959 = vmax.f32 %v1957, %v1958
        %v1960 = vsel %vm296, %v1008, -inf
        %v1961 = vrot.slane %v1960, 4
        %v1962 = vmax.f32 %v1960, %v1961
        %v1963 = vrot.slane %v1962, 2
        %v1964 = vmax.f32 %v1962, %v1963
        %v1965 = vrot.slane %v1964, 1
        %v1966 = vmax.f32 %v1964, %v1965
        %v1967 = vsel %vm296, %v1016, -inf
        %v1968 = vrot.slane %v1967, 4
        %v1969 = vmax.f32 %v1967, %v1968
        %v1970 = vrot.slane %v1969, 2
        %v1971 = vmax.f32 %v1969, %v1970
        %v1972 = vrot.slane %v1971, 1
        %v1973 = vmax.f32 %v1971, %v1972
        %v1974 = vsel %vm296, %v1024, -inf
        %v1975 = vrot.slane %v1974, 4
        %v1976 = vmax.f32 %v1974, %v1975
        %v1977 = vrot.slane %v1976, 2
        %v1978 = vmax.f32 %v1976, %v1977
        %v1979 = vrot.slane %v1978, 1
        %v1980 = vmax.f32 %v1978, %v1979
        %v1981 = vsel %vm296, %v1023, -inf
        %v1982 = vrot.slane %v1981, 4
        %v1983 = vmax.f32 %v1981, %v1982
        %v1984 = vrot.slane %v1983, 2
        %v1985 = vmax.f32 %v1983, %v1984
        %v1986 = vrot.slane %v1985, 1
        %v1987 = vmax.f32 %v1985, %v1986
        %v1988 = vsel %vm296, %v1025, -inf
        %v1989 = vrot.slane %v1988, 4
        %v1990 = vmax.f32 %v1988, %v1989
        %v1991 = vrot.slane %v1990, 2
        %v1992 = vmax.f32 %v1990, %v1991
        %v1993 = vrot.slane %v1992, 1
        %v1994 = vmax.f32 %v1992, %v1993
        %v1995 = vsel %vm296, %v1033, -inf
        %v1996 = vrot.slane %v1995, 4
        %v1997 = vmax.f32 %v1995, %v1996
        %v1998 = vrot.slane %v1997, 2
        %v1999 = vmax.f32 %v1997, %v1998
        %v2000 = vrot.slane %v1999, 1
        %v2001 = vmax.f32 %v1999, %v2000
        %v2002 = vsel %vm296, %v1041, -inf
        %v2003 = vrot.slane %v2002, 4
        %v2004 = vmax.f32 %v2002, %v2003
        %v2005 = vrot.slane %v2004, 2
        %v2006 = vmax.f32 %v2004, %v2005
        %v2007 = vrot.slane %v2006, 1
        %v2008 = vmax.f32 %v2006, %v2007
        %v2009 = vsel %vm296, %v1040, -inf
        %v2010 = vrot.slane %v2009, 4
        %v2011 = vmax.f32 %v2009, %v2010
        %v2012 = vrot.slane %v2011, 2
        %v2013 = vmax.f32 %v2011, %v2012
        %v2014 = vrot.slane %v2013, 1
        %v2015 = vmax.f32 %v2013, %v2014
        %v2016 = vsel %vm296, %v1042, -inf
        %v2017 = vrot.slane %v2016, 4
        %v2018 = vmax.f32 %v2016, %v2017
        %v2019 = vrot.slane %v2018, 2
        %v2020 = vmax.f32 %v2018, %v2019
        %v2021 = vrot.slane %v2020, 1
        %v2022 = vmax.f32 %v2020, %v2021
        %v2023 = vsel %vm296, %v1050, -inf
        %v2024 = vrot.slane %v2023, 4
        %v2025 = vmax.f32 %v2023, %v2024
        %v2026 = vrot.slane %v2025, 2
        %v2027 = vmax.f32 %v2025, %v2026
        %v2028 = vrot.slane %v2027, 1
        %v2029 = vmax.f32 %v2027, %v2028
        %v2030 = vsel %vm296, %v1058, -inf
        %v2031 = vrot.slane %v2030, 4
        %v2032 = vmax.f32 %v2030, %v2031
        %v2033 = vrot.slane %v2032, 2
        %v2034 = vmax.f32 %v2032, %v2033
        %v2035 = vrot.slane %v2034, 1
        %v2036 = vmax.f32 %v2034, %v2035
        %v2037 = vsel %vm296, %v1057, -inf
        %v2038 = vrot.slane %v2037, 4
        %v2039 = vmax.f32 %v2037, %v2038
        %v2040 = vrot.slane %v2039, 2
        %v2041 = vmax.f32 %v2039, %v2040
        %v2042 = vrot.slane %v2041, 1
        %v2043 = vmax.f32 %v2041, %v2042
        %v2044 = vsel %vm296, %v1059, -inf
        %v2045 = vrot.slane %v2044, 4
        %v2046 = vmax.f32 %v2044, %v2045
        %v2047 = vrot.slane %v2046, 2
        %v2048 = vmax.f32 %v2046, %v2047
        %v2049 = vrot.slane %v2048, 1
        %v2050 = vmax.f32 %v2048, %v2049
        %v2051 = vsel %vm296, %v1067, -inf
        %v2052 = vrot.slane %v2051, 4
        %v2053 = vmax.f32 %v2051, %v2052
        %v2054 = vrot.slane %v2053, 2
        %v2055 = vmax.f32 %v2053, %v2054
        %v2056 = vrot.slane %v2055, 1
        %v2057 = vmax.f32 %v2055, %v2056
        %v2058 = vsel %vm296, %v1075, -inf
        %v2059 = vrot.slane %v2058, 4
        %v2060 = vmax.f32 %v2058, %v2059
        %v2061 = vrot.slane %v2060, 2
        %v2062 = vmax.f32 %v2060, %v2061
        %v2063 = vrot.slane %v2062, 1
        %v2064 = vmax.f32 %v2062, %v2063
        %v2065 = vsel %vm296, %v1074, -inf
        %v2066 = vrot.slane %v2065, 4
        %v2067 = vmax.f32 %v2065, %v2066
        %v2068 = vrot.slane %v2067, 2
        %v2069 = vmax.f32 %v2067, %v2068
        %v2070 = vrot.slane %v2069, 1
        %v2071 = vmax.f32 %v2069, %v2070
        %v2072 = vsel %vm296, %v1076, -inf
        %v2073 = vrot.slane %v2072, 4
        %v2074 = vmax.f32 %v2072, %v2073
        %v2075 = vrot.slane %v2074, 2
        %v2076 = vmax.f32 %v2074, %v2075
        %v2077 = vrot.slane %v2076, 1
        %v2078 = vmax.f32 %v2076, %v2077
        %v2079 = vsel %vm296, %v1084, -inf
        %v2080 = vrot.slane %v2079, 4
        %v2081 = vmax.f32 %v2079, %v2080
        %v2082 = vrot.slane %v2081, 2
        %v2083 = vmax.f32 %v2081, %v2082
        %v2084 = vrot.slane %v2083, 1
        %v2085 = vmax.f32 %v2083, %v2084
        %v2086 = vsel %vm296, %v1092, -inf
        %v2087 = vrot.slane %v2086, 4
        %v2088 = vmax.f32 %v2086, %v2087
        %v2089 = vrot.slane %v2088, 2
        %v2090 = vmax.f32 %v2088, %v2089
        %v2091 = vrot.slane %v2090, 1
        %v2092 = vmax.f32 %v2090, %v2091
        %v2093 = vsel %vm296, %v1091, -inf
        %v2094 = vrot.slane %v2093, 4
        %v2095 = vmax.f32 %v2093, %v2094
        %v2096 = vrot.slane %v2095, 2
        %v2097 = vmax.f32 %v2095, %v2096
        %v2098 = vrot.slane %v2097, 1
        %v2099 = vmax.f32 %v2097, %v2098
        %v2100 = vsel %vm296, %v1093, -inf
        %v2101 = vrot.slane %v2100, 4
        %v2102 = vmax.f32 %v2100, %v2101
        %v2103 = vrot.slane %v2102, 2
        %v2104 = vmax.f32 %v2102, %v2103
        %v2105 = vrot.slane %v2104, 1
        %v2106 = vmax.f32 %v2104, %v2105
        %v2107 = vsel %vm296, %v1101, -inf
        %v2108 = vrot.slane %v2107, 4
        %v2109 = vmax.f32 %v2107, %v2108
        %v2110 = vrot.slane %v2109, 2
        %v2111 = vmax.f32 %v2109, %v2110
        %v2112 = vrot.slane %v2111, 1
        %v2113 = vmax.f32 %v2111, %v2112
        %v2114 = vsel %vm296, %v1109, -inf
        %v2115 = vrot.slane %v2114, 4
        %v2116 = vmax.f32 %v2114, %v2115
        %v2117 = vrot.slane %v2116, 2
        %v2118 = vmax.f32 %v2116, %v2117
        %v2119 = vrot.slane %v2118, 1
        %v2120 = vmax.f32 %v2118, %v2119
        %v2121 = vsel %vm296, %v1108, -inf
        %v2122 = vrot.slane %v2121, 4
        %v2123 = vmax.f32 %v2121, %v2122
        %v2124 = vrot.slane %v2123, 2
        %v2125 = vmax.f32 %v2123, %v2124
        %v2126 = vrot.slane %v2125, 1
        %v2127 = vmax.f32 %v2125, %v2126
        %v2128 = vsel %vm296, %v1110, -inf
        %v2129 = vrot.slane %v2128, 4
        %v2130 = vmax.f32 %v2128, %v2129
        %v2131 = vrot.slane %v2130, 2
        %v2132 = vmax.f32 %v2130, %v2131
        %v2133 = vrot.slane %v2132, 1
        %v2134 = vmax.f32 %v2132, %v2133
        %v2135 = vmax.f32 %v1245, %v1301
        %v2136 = vmax.f32 %v1252, %v1308
        %v2137 = vmax.f32 %v1259, %v1315
        %v2138 = vmax.f32 %v1266, %v1322
        %v2139 = vmax.f32 %v1273, %v1329
        %v2140 = vmax.f32 %v1280, %v1336
        %v2141 = vmax.f32 %v1287, %v1343
        %v2142 = vmax.f32 %v1294, %v1350
        %v2143 = vmax.f32 %v1357, %v1413
        %v2144 = vmax.f32 %v1364, %v1420
        %v2145 = vmax.f32 %v1371, %v1427
        %v2146 = vmax.f32 %v1378, %v1434
        %v2147 = vmax.f32 %v1385, %v1441
        %v2148 = vmax.f32 %v1392, %v1448
        %v2149 = vmax.f32 %v1399, %v1455
        %v2150 = vmax.f32 %v1406, %v1462
        %v2151 = vmax.f32 %v1469, %v1525
        %v2152 = vmax.f32 %v1476, %v1532
        %v2153 = vmax.f32 %v1483, %v1539
        %v2154 = vmax.f32 %v1490, %v1546
        %v2155 = vmax.f32 %v1497, %v1553
        %v2156 = vmax.f32 %v1504, %v1560
        %v2157 = vmax.f32 %v1511, %v1567
        %v2158 = vmax.f32 %v1518, %v1574
        %v2159 = vmax.f32 %v1581, %v1637
        %v2160 = vmax.f32 %v1588, %v1644
        %v2161 = vmax.f32 %v1595, %v1651
        %v2162 = vmax.f32 %v1602, %v1658
        %v2163 = vmax.f32 %v1609, %v1665
        %v2164 = vmax.f32 %v1616, %v1672
        %v2165 = vmax.f32 %v1623, %v1679
        %v2166 = vmax.f32 %v1630, %v1686
        %v2167 = vmax.f32 %v1693, %v1749
        %v2168 = vmax.f32 %v1700, %v1756
        %v2169 = vmax.f32 %v1707, %v1763
        %v2170 = vmax.f32 %v1714, %v1770
        %v2171 = vmax.f32 %v1721, %v1777
        %v2172 = vmax.f32 %v1728, %v1784
        %v2173 = vmax.f32 %v1735, %v1791
        %v2174 = vmax.f32 %v1742, %v1798
        %v2175 = vmax.f32 %v1805, %v1861
        %v2176 = vmax.f32 %v1812, %v1868
        %v2177 = vmax.f32 %v1819, %v1875
        %v2178 = vmax.f32 %v1826, %v1882
        %v2179 = vmax.f32 %v1833, %v1889
        %v2180 = vmax.f32 %v1840, %v1896
        %v2181 = vmax.f32 %v1847, %v1903
        %v2182 = vmax.f32 %v1854, %v1910
        %v2183 = vmax.f32 %v1917, %v1973
        %v2184 = vmax.f32 %v1924, %v1980
        %v2185 = vmax.f32 %v1931, %v1987
        %v2186 = vmax.f32 %v1938, %v1994
        %v2187 = vmax.f32 %v1945, %v2001
        %v2188 = vmax.f32 %v1952, %v2008
        %v2189 = vmax.f32 %v1959, %v2015
        %v2190 = vmax.f32 %v1966, %v2022
        %v2191 = vmax.f32 %v2029, %v2085
        %v2192 = vmax.f32 %v2036, %v2092
        %v2193 = vmax.f32 %v2043, %v2099
        %v2194 = vmax.f32 %v2050, %v2106
        %v2195 = vmax.f32 %v2057, %v2113
        %v2196 = vmax.f32 %v2064, %v2120
        %v2197 = vmax.f32 %v2071, %v2127
        %v2198 = vmax.f32 %v2078, %v2134
        %vm2263 = vcmask 1041409
        %v2264 = vsel %vm2263, %v2136, %v2135
        %vm2265 = vcmask 1042434
        %v2266 = vsel %vm2265, %v2137, %v2264
        %vm2267 = vcmask 1043459
        %v2268 = vsel %vm2267, %v2138, %v2266
        %vm2269 = vcmask 1044484
        %v2270 = vsel %vm2269, %v2139, %v2268
        %vm2271 = vcmask 1045509
        %v2272 = vsel %vm2271, %v2140, %v2270
        %vm2273 = vcmask 1046534
        %v2274 = vsel %vm2273, %v2141, %v2272
        %vm2275 = vcmask 1047559
        %v2276 = vsel %vm2275, %v2142, %v2274
        %v2277 = vsel %vm2263, %v2144, %v2143
        %v2278 = vsel %vm2265, %v2145, %v2277
        %v2279 = vsel %vm2267, %v2146, %v2278
        %v2280 = vsel %vm2269, %v2147, %v2279
        %v2281 = vsel %vm2271, %v2148, %v2280
        %v2282 = vsel %vm2273, %v2149, %v2281
        %v2283 = vsel %vm2275, %v2150, %v2282
        %v2284 = vsel %vm2263, %v2152, %v2151
        %v2285 = vsel %vm2265, %v2153, %v2284
        %v2286 = vsel %vm2267, %v2154, %v2285
        %v2287 = vsel %vm2269, %v2155, %v2286
        %v2288 = vsel %vm2271, %v2156, %v2287
        %v2289 = vsel %vm2273, %v2157, %v2288
        %v2290 = vsel %vm2275, %v2158, %v2289
        %v2291 = vsel %vm2263, %v2160, %v2159
        %v2292 = vsel %vm2265, %v2161, %v2291
        %v2293 = vsel %vm2267, %v2162, %v2292
        %v2294 = vsel %vm2269, %v2163, %v2293
        %v2295 = vsel %vm2271, %v2164, %v2294
        %v2296 = vsel %vm2273, %v2165, %v2295
        %v2297 = vsel %vm2275, %v2166, %v2296
        %v2298 = vsel %vm2263, %v2168, %v2167
        %v2299 = vsel %vm2265, %v2169, %v2298
        %v2300 = vsel %vm2267, %v2170, %v2299
        %v2301 = vsel %vm2269, %v2171, %v2300
        %v2302 = vsel %vm2271, %v2172, %v2301
        %v2303 = vsel %vm2273, %v2173, %v2302
        %v2304 = vsel %vm2275, %v2174, %v2303
        %v2305 = vsel %vm2263, %v2176, %v2175
        %v2306 = vsel %vm2265, %v2177, %v2305
        %v2307 = vsel %vm2267, %v2178, %v2306
        %v2308 = vsel %vm2269, %v2179, %v2307
        %v2309 = vsel %vm2271, %v2180, %v2308
        %v2310 = vsel %vm2273, %v2181, %v2309
        %v2311 = vsel %vm2275, %v2182, %v2310
        %v2312 = vsel %vm2263, %v2184, %v2183
        %v2313 = vsel %vm2265, %v2185, %v2312
        %v2314 = vsel %vm2267, %v2186, %v2313
        %v2315 = vsel %vm2269, %v2187, %v2314
        %v2316 = vsel %vm2271, %v2188, %v2315
        %v2317 = vsel %vm2273, %v2189, %v2316
        %v2318 = vsel %vm2275, %v2190, %v2317
        %v2319 = vsel %vm2263, %v2192, %v2191
        %v2320 = vsel %vm2265, %v2193, %v2319
        %v2321 = vsel %vm2267, %v2194, %v2320
        %v2322 = vsel %vm2269, %v2195, %v2321
        %v2323 = vsel %vm2271, %v2196, %v2322
        %v2324 = vsel %vm2273, %v2197, %v2323
        %v2325 = vsel %vm2275, %v2198, %v2324
        %2334 = vst [vmem:[%s293] sm:$0xff] %v2276
        %2335 = vst [vmem:[%s293 + $0x8] sm:$0xff] %v2283
        %2336 = vst [vmem:[%s293 + $0x10] sm:$0xff] %v2290
        %2337 = vst [vmem:[%s293 + $0x18] sm:$0xff] %v2297
        %2338 = vst [vmem:[%s293 + $0x20] sm:$0xff] %v2304
        %2339 = vst [vmem:[%s293 + $0x28] sm:$0xff] %v2311
        %2340 = vst [vmem:[%s293 + $0x30] sm:$0xff] %v2318
        %2341 = vst [vmem:[%s293 + $0x38] sm:$0xff] %v2325
        %s2342 = sand.u32 %s125, 1
        %s2343 = scalar_lea.sflag [#allocation4], %s2342
        %s2344 = sand.u32 %s125, 1
        %s2345 = smul.addr %s2344, 256
        %s2346 = scalar_lea.vmem [#allocation10], %s2345
        %s2347 = sand.u32 %s151, 1
        %s2348 = scalar_lea.sflag [#allocation12], %s2347
        %s2349 = sand.u32 %s151, 1
        %s2350 = smul.addr %s2349, 64
        %s2351 = scalar_lea.vmem [#allocation11], %s2350
        // Predicated region
        $region53: #{encoder_block_pallas.5} parent=35 // pred_check
          %p2352 = pneg %p135
        $region54: #{encoder_block_pallas.5} parent=35 // pred_check_branch
          %2354 = sbr.rel (%p2352) target = $region56
        $region55: #{encoder_block_pallas.5} parent=35 // pred_region
          %s2356 = ssub.s32 4096, 4096
          %2357 = vsyncadd %s2343, %s2356
          %s2358 = smul.addr %s28, 32
          %s2359 = smul.addr %s2358, 128
          %s2360 = scalar_lea.hbm %s4, %s2359
          %s2361 = sshll.u32 %s2346, 4
          %s2362 = int_to_ptr.vmem [resolvable:$true] %s2361
          %2367 = dma.vmem_to_hbm [thread:$0]  %s2362, 4096, %s2360, %s2343, 128, 128, 8
        $region56: #{encoder_block_pallas.5} parent=35 // pred_fallthru
          _
        // Predicated region
        $region57: #{encoder_block_pallas.5} parent=35 // pred_check
          %p2368 = pneg %p161
        $region58: #{encoder_block_pallas.5} parent=35 // pred_check_branch
          %2370 = sbr.rel (%p2368) target = $region60
        $region59: #{encoder_block_pallas.5} parent=35 // pred_region
          %s2372 = ssub.s32 1024, 1024
          %2373 = vsyncadd %s2348, %s2372
          %s2374 = smul.addr %s28, 8
          %s2375 = smul.addr %s2374, 128
          %s2376 = scalar_lea.hbm %s5, %s2375
          %s2377 = sshll.u32 %s2351, 4
          %s2378 = int_to_ptr.vmem [resolvable:$true] %s2377
          %2383 = dma.vmem_to_hbm [thread:$0]  %s2378, 1024, %s2376, %s2348, 128, 128, 8
        $region60: #{encoder_block_pallas.5} parent=35 // pred_fallthru
          _
      $region36: #{encoder_block_pallas.5} parent=5 // pred_fallthru
        _
      %p2384 = scmp.le.s32.totalorder 2, %s23
      // Predicated region
      $region61: #{encoder_block_pallas.5} parent=5 // pred_check
        %p2385 = pneg %p2384
      $region62: #{encoder_block_pallas.5} parent=5 // pred_check_branch
        %2387 = sbr.rel (%p2385) target = $region64
      $region63: #{encoder_block_pallas.5} parent=5 // pred_region
        %s2388 = ssub.s32 %s23, 2
        // Predicated region
        $region65: #{encoder_block_pallas.5} parent=63 // pred_check
          %p2389 = pneg %p141
        $region66: #{encoder_block_pallas.5} parent=63 // pred_check_branch
          %2391 = sbr.rel (%p2389) target = $region68
        $region67: #{encoder_block_pallas.5} parent=63 // pred_region
          %s2392 = sand.u32 %s126, 1
          %s2393 = scalar_lea.sflag [#allocation4], %s2392
          %s2394 = sand.u32 %s126, 1
          %s2395 = smul.addr %s2394, 256
          %s2396 = scalar_lea.vmem [#allocation10], %s2395
          %2397 = dma.done %s2393, 4096
        $region68: #{encoder_block_pallas.5} parent=63 // pred_fallthru
          _
        // Predicated region
        $region69: #{encoder_block_pallas.5} parent=63 // pred_check
          %p2398 = pneg %p167
        $region70: #{encoder_block_pallas.5} parent=63 // pred_check_branch
          %2400 = sbr.rel (%p2398) target = $region72
        $region71: #{encoder_block_pallas.5} parent=63 // pred_region
          %s2401 = sand.u32 %s152, 1
          %s2402 = scalar_lea.sflag [#allocation12], %s2401
          %s2403 = sand.u32 %s152, 1
          %s2404 = smul.addr %s2403, 64
          %s2405 = scalar_lea.vmem [#allocation11], %s2404
          %2406 = dma.done %s2402, 1024
        $region72: #{encoder_block_pallas.5} parent=63 // pred_fallthru
          _
      $region64: #{encoder_block_pallas.5} parent=5 // pred_fallthru
        _
    $region6: #{encoder_block_pallas.5} parent=1 // loop_footer
      %s27 = sadd.s32 1, %s23
    $region7: #{encoder_block_pallas.5} parent=1 // loop_footer_branch
      %22 = sbr.rel target = $region3
    $region8: #{encoder_block_pallas.5} parent=1 // loop_exit
      _
    %2407 = vsyncpa [#allocation3], 1
    %s2408 = scalar_lea.sflag [#allocation3], 1
    %2409 = vsyncpa %s2408, 1
    %2410 = vsyncpa [#allocation6], 1
    %2411 = vsyncpa [#allocation9], 1
    %2412 = vsyncpa [#allocation4], 1
    %s2413 = scalar_lea.sflag [#allocation4], 1
    %2414 = vsyncpa %s2413, 1
    %2415 = vsyncpa [#allocation12], 1
    %s2416 = scalar_lea.sflag [#allocation12], 1
    %2417 = vsyncpa %s2416, 1

// kernel: encoder_block_pallas.4
$region0: #{encoder_block_pallas.4}
  #allocation0 [shape = 'u32[]', space=smem, size = 0x4, offset = 0x4, fixed_abs, tag = 'smem constant byte address 0x4 - core index']
  #allocation1 [shape = 'u32[144,128]{1,0:T(1,128)}', space=vmem, size = 0x12000, scoped, tag = 'internal scratch']
  %s0 = inlined_call_operand.hbm [shape: bf16[2,18,18,128], index: 0, kind: input, shape index: {}]
  %s1 = inlined_call_operand.hbm [shape: f32[2,2,128], index: 1, kind: input, shape index: {}]
  %s2 = inlined_call_operand.hbm [shape: f32[1,128], index: 2, kind: input, shape index: {}]
  %s3 = inlined_call_operand.hbm [shape: f32[1,128], index: 3, kind: input, shape index: {}]
  %s4 = inlined_call_operand.hbm [shape: bf16[1152,128], index: 4, kind: input, shape index: {}]
  %s5 = inlined_call_operand.hbm [shape: f32[1,128], index: 5, kind: input, shape index: {}]
  %s6 = inlined_call_operand.hbm [shape: bf16[2,16,16,128], index: 6, kind: output, shape index: {0}]
  %s7 = inlined_call_operand.hbm [shape: f32[2,2,128], index: 7, kind: output, shape index: {1}]
  %8 = xla_tuple %s6, %s7
  %s9 = sld [smem:[#allocation0]]
  $region89: #{encoder_block_pallas.4} parent=0
    _
  %s11 = ssub.s32 1, %s9
  %s12 = scalar_select 0, %s11, %s9
  $region1: #{encoder_block_pallas.4} parent=0
    #allocation2 [shape = 'u8[221184]{0}', space=vmem, size = 0x36000, scoped, tag = 'input window, operand 0']
    #allocation3 [shape = 's32[2]{0}', space=sflag, size = 0x8, scoped, tag = 'scoped memory for encoder_block_pallas.4']
    #allocation4 [shape = 's32[2]{0}', space=sflag, size = 0x8, scoped, tag = 'scoped memory for encoder_block_pallas.4']
    #allocation5 [shape = 'u8[2048]{0}', space=vmem, size = 0x800, scoped, tag = 'input window, operand 1, single buffered']
    #allocation6 [shape = 's32[1]{0}', space=sflag, size = 0x4, scoped, tag = 'scoped memory for encoder_block_pallas.4']
    #allocation7 [shape = 'u8[512]{0}', space=vmem, size = 0x400, scoped, tag = 'input window, operand 2, single buffered']
    #allocation8 [shape = 'u8[512]{0}', space=vmem, size = 0x400, scoped, tag = 'input window, operand 3, single buffered']
    #allocation9 [shape = 's32[1]{0}', space=sflag, size = 0x4, scoped, tag = 'scoped memory for encoder_block_pallas.4']
    #allocation10 [shape = 'u8[294912]{0}', space=vmem, size = 0x48000, scoped, tag = 'input window, operand 4, single buffered']
    #allocation11 [shape = 'u8[512]{0}', space=vmem, size = 0x400, scoped, tag = 'input window, operand 5, single buffered']
    #allocation12 [shape = 's32[1]{0}', space=sflag, size = 0x4, scoped, tag = 'scoped memory for encoder_block_pallas.4']
    #allocation13 [shape = 'u8[131072]{0}', space=vmem, size = 0x20000, scoped, tag = 'output window, operand 0']
    #allocation14 [shape = 'u8[2048]{0}', space=vmem, size = 0x800, scoped, tag = 'output window, operand 1']
    #allocation15 [shape = 's32[2]{0}', space=sflag, size = 0x8, scoped, tag = 'scoped memory for encoder_block_pallas.4']
    %13 = vsyncpa [#allocation3], 0
    %s14 = scalar_lea.sflag [#allocation3], 1
    %15 = vsyncpa %s14, 0
    %16 = vsyncpa [#allocation6], 0
    %17 = vsyncpa [#allocation9], 0
    %18 = vsyncpa [#allocation12], 0
    %19 = vsyncpa [#allocation4], 0
    %s20 = scalar_lea.sflag [#allocation4], 1
    %21 = vsyncpa %s20, 0
    %22 = vsyncpa [#allocation15], 0
    %s23 = scalar_lea.sflag [#allocation15], 1
    %24 = vsyncpa %s23, 0
    loop: start=0, step=1, limit=4
    $region2: #{encoder_block_pallas.4} parent=1 // loop_pre_header
      _
    $region3: #{encoder_block_pallas.4} parent=1 // loop_header
      %s26 = sphi 0, %s30
      %p27 = scmp.ge.s32.totalorder %s26, 4
      %s36 = sphi 0, %s38
      %s39 = sphi 0, %s36
      %s40 = sphi 0, %s39
      %s56 = sphi 0, %s40
      %s60 = sphi 0, %s60
      %s62 = sphi 0, %s60
      %s63 = sphi 0, %s62
      %s77 = sphi 0, %s63
      %s81 = sphi 0, %s81
      %s83 = sphi 0, %s81
      %s84 = sphi 0, %s83
      %s98 = sphi 0, %s84
      %s102 = sphi 0, %s102
      %s104 = sphi 0, %s102
      %s105 = sphi 0, %s104
      %s119 = sphi 0, %s105
      %s123 = sphi 0, %s123
      %s125 = sphi 0, %s123
      %s126 = sphi 0, %s125
      %s140 = sphi 0, %s126
      %s144 = sphi 0, %s144
      %s146 = sphi 0, %s144
      %s147 = sphi 0, %s146
      %s161 = sphi 0, %s147
      %s167 = sphi 0, %s169
      %s170 = sphi 0, %s167
      %s171 = sphi 0, %s170
      %s187 = sphi 0, %s171
      %s193 = sphi 0, %s195
      %s196 = sphi 0, %s193
      %s197 = sphi 0, %s196
      %s213 = sphi 0, %s197
    $region4: #{encoder_block_pallas.4} parent=1 // loop_header_branch
      %29 = sbr.rel (%p27) target = $region8
    $region5: #{encoder_block_pallas.4} parent=1 // loop_body
      %s31 = ssub.s32 %s26, 1
      %s32 = ssub.s32 %s26, 2
      %s33 = sadd.s32 %s26, 1
      %s34 = ssub.s32 %s26, %s33
      %p35 = scmp.eq.s32.totalorder %s34, 0
      %s37 = sadd.s32 %s36, 1
      %s38 = scalar_select %p35, %s36, %s37
      %p41 = pneg %p35
      %p42 = scmp.eq.s32.totalorder %s26, 1
      %p43 = por %p41, %p42
      %p44 = scmp.ne.s32.totalorder %s36, %s39
      %p45 = scmp.eq.s32.totalorder %s26, 0
      %p46 = por %p44, %p45
      %p47 = scmp.ne.s32.totalorder %s36, %s39
      %p48 = scmp.eq.s32.totalorder %s31, 1
      %p49 = por %p47, %p48
      %p50 = scmp.ne.s32.totalorder %s39, %s40
      %p51 = scmp.eq.s32.totalorder %s31, 0
      %p52 = por %p50, %p51
      %p53 = scmp.ne.s32.totalorder %s39, %s40
      %p54 = scmp.eq.s32.totalorder %s32, 1
      %p55 = por %p53, %p54
      %p57 = scmp.ne.s32.totalorder %s40, %s56
      %p58 = scmp.eq.s32.totalorder %s32, 0
      %p59 = por %p57, %p58
      %s61 = sadd.s32 %s60, 1
      %p64 = scmp.eq.s32.totalorder %s26, 1
      %p65 = scmp.ne.s32.totalorder %s60, %s62
      %p66 = scmp.eq.s32.totalorder %s26, 0
      %p67 = por %p65, %p66
      %p68 = scmp.ne.s32.totalorder %s60, %s62
      %p69 = scmp.eq.s32.totalorder %s31, 1
      %p70 = por %p68, %p69
      %p71 = scmp.ne.s32.totalorder %s62, %s63
      %p72 = scmp.eq.s32.totalorder %s31, 0
      %p73 = por %p71, %p72
      %p74 = scmp.ne.s32.totalorder %s62, %s63
      %p75 = scmp.eq.s32.totalorder %s32, 1
      %p76 = por %p74, %p75
      %p78 = scmp.ne.s32.totalorder %s63, %s77
      %p79 = scmp.eq.s32.totalorder %s32, 0
      %p80 = por %p78, %p79
      %s82 = sadd.s32 %s81, 1
      %p85 = scmp.eq.s32.totalorder %s26, 1
      %p86 = scmp.ne.s32.totalorder %s81, %s83
      %p87 = scmp.eq.s32.totalorder %s26, 0
      %p88 = por %p86, %p87
      %p89 = scmp.ne.s32.totalorder %s81, %s83
      %p90 = scmp.eq.s32.totalorder %s31, 1
      %p91 = por %p89, %p90
      %p92 = scmp.ne.s32.totalorder %s83, %s84
      %p93 = scmp.eq.s32.totalorder %s31, 0
      %p94 = por %p92, %p93
      %p95 = scmp.ne.s32.totalorder %s83, %s84
      %p96 = scmp.eq.s32.totalorder %s32, 1
      %p97 = por %p95, %p96
      %p99 = scmp.ne.s32.totalorder %s84, %s98
      %p100 = scmp.eq.s32.totalorder %s32, 0
      %p101 = por %p99, %p100
      %s103 = sadd.s32 %s102, 1
      %p106 = scmp.eq.s32.totalorder %s26, 1
      %p107 = scmp.ne.s32.totalorder %s102, %s104
      %p108 = scmp.eq.s32.totalorder %s26, 0
      %p109 = por %p107, %p108
      %p110 = scmp.ne.s32.totalorder %s102, %s104
      %p111 = scmp.eq.s32.totalorder %s31, 1
      %p112 = por %p110, %p111
      %p113 = scmp.ne.s32.totalorder %s104, %s105
      %p114 = scmp.eq.s32.totalorder %s31, 0
      %p115 = por %p113, %p114
      %p116 = scmp.ne.s32.totalorder %s104, %s105
      %p117 = scmp.eq.s32.totalorder %s32, 1
      %p118 = por %p116, %p117
      %p120 = scmp.ne.s32.totalorder %s105, %s119
      %p121 = scmp.eq.s32.totalorder %s32, 0
      %p122 = por %p120, %p121
      %s124 = sadd.s32 %s123, 1
      %p127 = scmp.eq.s32.totalorder %s26, 1
      %p128 = scmp.ne.s32.totalorder %s123, %s125
      %p129 = scmp.eq.s32.totalorder %s26, 0
      %p130 = por %p128, %p129
      %p131 = scmp.ne.s32.totalorder %s123, %s125
      %p132 = scmp.eq.s32.totalorder %s31, 1
      %p133 = por %p131, %p132
      %p134 = scmp.ne.s32.totalorder %s125, %s126
      %p135 = scmp.eq.s32.totalorder %s31, 0
      %p136 = por %p134, %p135
      %p137 = scmp.ne.s32.totalorder %s125, %s126
      %p138 = scmp.eq.s32.totalorder %s32, 1
      %p139 = por %p137, %p138
      %p141 = scmp.ne.s32.totalorder %s126, %s140
      %p142 = scmp.eq.s32.totalorder %s32, 0
      %p143 = por %p141, %p142
      %s145 = sadd.s32 %s144, 1
      %p148 = scmp.eq.s32.totalorder %s26, 1
      %p149 = scmp.ne.s32.totalorder %s144, %s146
      %p150 = scmp.eq.s32.totalorder %s26, 0
      %p151 = por %p149, %p150
      %p152 = scmp.ne.s32.totalorder %s144, %s146
      %p153 = scmp.eq.s32.totalorder %s31, 1
      %p154 = por %p152, %p153
      %p155 = scmp.ne.s32.totalorder %s146, %s147
      %p156 = scmp.eq.s32.totalorder %s31, 0
      %p157 = por %p155, %p156
      %p158 = scmp.ne.s32.totalorder %s146, %s147
      %p159 = scmp.eq.s32.totalorder %s32, 1
      %p160 = por %p158, %p159
      %p162 = scmp.ne.s32.totalorder %s147, %s161
      %p163 = scmp.eq.s32.totalorder %s32, 0
      %p164 = por %p162, %p163
      %s165 = ssub.s32 %s26, %s33
      %p166 = scmp.eq.s32.totalorder %s165, 0
      %s168 = sadd.s32 %s167, 1
      %s169 = scalar_select %p166, %s167, %s168
      %p172 = pneg %p166
      %p173 = scmp.eq.s32.totalorder %s26, 1
      %p174 = por %p172, %p173
      %p175 = scmp.ne.s32.totalorder %s167, %s170
      %p176 = scmp.eq.s32.totalorder %s26, 0
      %p177 = por %p175, %p176
      %p178 = scmp.ne.s32.totalorder %s167, %s170
      %p179 = scmp.eq.s32.totalorder %s31, 1
      %p180 = por %p178, %p179
      %p181 = scmp.ne.s32.totalorder %s170, %s171
      %p182 = scmp.eq.s32.totalorder %s31, 0
      %p183 = por %p181, %p182
      %p184 = scmp.ne.s32.totalorder %s170, %s171
      %p185 = scmp.eq.s32.totalorder %s32, 1
      %p186 = por %p184, %p185
      %p188 = scmp.ne.s32.totalorder %s171, %s187
      %p189 = scmp.eq.s32.totalorder %s32, 0
      %p190 = por %p188, %p189
      %s191 = ssub.s32 %s26, %s33
      %p192 = scmp.eq.s32.totalorder %s191, 0
      %s194 = sadd.s32 %s193, 1
      %s195 = scalar_select %p192, %s193, %s194
      %p198 = pneg %p192
      %p199 = scmp.eq.s32.totalorder %s26, 1
      %p200 = por %p198, %p199
      %p201 = scmp.ne.s32.totalorder %s193, %s196
      %p202 = scmp.eq.s32.totalorder %s26, 0
      %p203 = por %p201, %p202
      %p204 = scmp.ne.s32.totalorder %s193, %s196
      %p205 = scmp.eq.s32.totalorder %s31, 1
      %p206 = por %p204, %p205
      %p207 = scmp.ne.s32.totalorder %s196, %s197
      %p208 = scmp.eq.s32.totalorder %s31, 0
      %p209 = por %p207, %p208
      %p210 = scmp.ne.s32.totalorder %s196, %s197
      %p211 = scmp.eq.s32.totalorder %s32, 1
      %p212 = por %p210, %p211
      %p214 = scmp.ne.s32.totalorder %s197, %s213
      %p215 = scmp.eq.s32.totalorder %s32, 0
      %p216 = por %p214, %p215
      %p217 = scmp.le.s32.totalorder 1, %s26
      %p218 = scmp.lt.s32.totalorder %s26, 3
      %p219 = pnand %p217, %p218
      %p220 = pneg %p219
      // Predicated region
      $region9: #{encoder_block_pallas.4} parent=5 // pred_check
        _
      $region10: #{encoder_block_pallas.4} parent=5 // pred_check_branch
        %222 = sbr.rel (%p219) target = $region12
      $region11: #{encoder_block_pallas.4} parent=5 // pred_region
        %s223 = ssub.s32 %s26, 1
        // Predicated region
        $region13: #{encoder_block_pallas.4} parent=11 // pred_check
          %p224 = pneg %p73
        $region14: #{encoder_block_pallas.4} parent=11 // pred_check_branch
          %226 = sbr.rel (%p224) target = $region16
        $region15: #{encoder_block_pallas.4} parent=11 // pred_region
          %s228 = ssub.s32 64, 64
          %229 = vsyncadd [#allocation6], %s228
          %s230 = sshll.u32 [#allocation5], 4
          %s231 = int_to_ptr.vmem [resolvable:$true] %s230
          %236 = dma.hbm_to_vmem [thread:$0]  %s1, 64, %s231, [#allocation6], 32, 32, 2
        $region16: #{encoder_block_pallas.4} parent=11 // pred_fallthru
          _
        // Predicated region
        $region17: #{encoder_block_pallas.4} parent=11 // pred_check
          %p237 = pneg %p94
        $region18: #{encoder_block_pallas.4} parent=11 // pred_check_branch
          %239 = sbr.rel (%p237) target = $region20
        $region19: #{encoder_block_pallas.4} parent=11 // pred_region
          %s241 = ssub.s32 16, 16
          %242 = vsyncadd [#allocation6], %s241
          %s244 = sshll.u32 [#allocation7], 4
          %s245 = int_to_ptr.vmem [resolvable:$true] %s244
          %247 = dma.hbm_to_vmem [thread:$0]  %s2, 16, %s245, [#allocation6]
        $region20: #{encoder_block_pallas.4} parent=11 // pred_fallthru
          _
        // Predicated region
        $region21: #{encoder_block_pallas.4} parent=11 // pred_check
          %p248 = pneg %p115
        $region22: #{encoder_block_pallas.4} parent=11 // pred_check_branch
          %250 = sbr.rel (%p248) target = $region24
        $region23: #{encoder_block_pallas.4} parent=11 // pred_region
          %s252 = ssub.s32 16, 16
          %253 = vsyncadd [#allocation9], %s252
          %s255 = sshll.u32 [#allocation8], 4
          %s256 = int_to_ptr.vmem [resolvable:$true] %s255
          %258 = dma.hbm_to_vmem [thread:$0]  %s3, 16, %s256, [#allocation9]
        $region24: #{encoder_block_pallas.4} parent=11 // pred_fallthru
          _
        // Predicated region
        $region25: #{encoder_block_pallas.4} parent=11 // pred_check
          %p259 = pneg %p136
        $region26: #{encoder_block_pallas.4} parent=11 // pred_check_branch
          %261 = sbr.rel (%p259) target = $region28
        $region27: #{encoder_block_pallas.4} parent=11 // pred_region
          %s263 = ssub.s32 9216, 9216
          %264 = vsyncadd [#allocation9], %s263
          %s265 = sshll.u32 [#allocation10], 4
          %s266 = int_to_ptr.vmem [resolvable:$true] %s265
          %271 = dma.hbm_to_vmem [thread:$0]  %s4, 9216, %s266, [#allocation9], 64, 64, 4
        $region28: #{encoder_block_pallas.4} parent=11 // pred_fallthru
          _
        // Predicated region
        $region29: #{encoder_block_pallas.4} parent=11 // pred_check
          %p272 = pneg %p157
        $region30: #{encoder_block_pallas.4} parent=11 // pred_check_branch
          %274 = sbr.rel (%p272) target = $region32
        $region31: #{encoder_block_pallas.4} parent=11 // pred_region
          %s276 = ssub.s32 16, 16
          %277 = vsyncadd [#allocation12], %s276
          %s279 = sshll.u32 [#allocation11], 4
          %s280 = int_to_ptr.vmem [resolvable:$true] %s279
          %282 = dma.hbm_to_vmem [thread:$0]  %s5, 16, %s280, [#allocation12]
        $region32: #{encoder_block_pallas.4} parent=11 // pred_fallthru
          _
      $region12: #{encoder_block_pallas.4} parent=5 // pred_fallthru
        _
      %p283 = scmp.lt.s32.totalorder %s26, 2
      // Predicated region
      $region33: #{encoder_block_pallas.4} parent=5 // pred_check
        %p284 = pneg %p283
      $region34: #{encoder_block_pallas.4} parent=5 // pred_check_branch
        %286 = sbr.rel (%p284) target = $region36
      $region35: #{encoder_block_pallas.4} parent=5 // pred_region
        // Predicated region
        $region37: #{encoder_block_pallas.4} parent=35 // pred_check
          %p287 = pneg %p46
        $region38: #{encoder_block_pallas.4} parent=35 // pred_check_branch
          %289 = sbr.rel (%p287) target = $region40
        $region39: #{encoder_block_pallas.4} parent=35 // pred_region
          %s290 = sand.u32 %s36, 1
          %s291 = scalar_lea.sflag [#allocation3], %s290
          %s292 = sand.u32 %s36, 1
          %s293 = smul.addr %s292, 216
          %s294 = scalar_lea.vmem [#allocation2], %s293
          %s296 = ssub.s32 3456, 3456
          %297 = vsyncadd %s291, %s296
          %s298 = smul.addr %s26, 54
          %s299 = smul.addr %s298, 64
          %s300 = scalar_lea.hbm %s0, %s299
          %s301 = sshll.u32 %s294, 4
          %s302 = int_to_ptr.vmem [resolvable:$true] %s301
          %307 = dma.hbm_to_vmem [thread:$0]  %s300, 3456, %s302, %s291, 64, 64, 4
        $region40: #{encoder_block_pallas.4} parent=35 // pred_fallthru
          _
      $region36: #{encoder_block_pallas.4} parent=5 // pred_fallthru
        _
      %p308 = scmp.le.s32.totalorder 1, %s26
      %p309 = scmp.lt.s32.totalorder %s26, 3
      %p310 = pnand %p308, %p309
      %p311 = pneg %p310
      // Predicated region
      $region41: #{encoder_block_pallas.4} parent=5 // pred_check
        _
      $region42: #{encoder_block_pallas.4} parent=5 // pred_check_branch
        %313 = sbr.rel (%p310) target = $region44
      $region43: #{encoder_block_pallas.4} parent=5 // pred_region
        %s314 = ssub.s32 %s26, 1
        %s315 = sand.u32 %s39, 1
        %s316 = scalar_lea.sflag [#allocation3], %s315
        %s317 = sand.u32 %s39, 1
        %s318 = smul.addr %s317, 216
        %s319 = scalar_lea.vmem [#allocation2], %s318
        // Predicated region
        $region45: #{encoder_block_pallas.4} parent=43 // pred_check
          %p320 = pneg %p52
        $region46: #{encoder_block_pallas.4} parent=43 // pred_check_branch
          %322 = sbr.rel (%p320) target = $region48
        $region47: #{encoder_block_pallas.4} parent=43 // pred_region
          %323 = dma.done %s316, 3456
        $region48: #{encoder_block_pallas.4} parent=43 // pred_fallthru
          _
        // Predicated region
        $region49: #{encoder_block_pallas.4} parent=43 // pred_check
          %p324 = pneg %p73
        $region50: #{encoder_block_pallas.4} parent=43 // pred_check_branch
          %326 = sbr.rel (%p324) target = $region52
        $region51: #{encoder_block_pallas.4} parent=43 // pred_region
          %327 = dma.done [#allocation6], 64
        $region52: #{encoder_block_pallas.4} parent=43 // pred_fallthru
          _
        // Predicated region
        $region53: #{encoder_block_pallas.4} parent=43 // pred_check
          %p328 = pneg %p94
        $region54: #{encoder_block_pallas.4} parent=43 // pred_check_branch
          %330 = sbr.rel (%p328) target = $region56
        $region55: #{encoder_block_pallas.4} parent=43 // pred_region
          %331 = dma.done [#allocation6], 16
        $region56: #{encoder_block_pallas.4} parent=43 // pred_fallthru
          _
        // Predicated region
        $region57: #{encoder_block_pallas.4} parent=43 // pred_check
          %p332 = pneg %p115
        $region58: #{encoder_block_pallas.4} parent=43 // pred_check_branch
          %334 = sbr.rel (%p332) target = $region60
        $region59: #{encoder_block_pallas.4} parent=43 // pred_region
          %335 = dma.done [#allocation9], 16
        $region60: #{encoder_block_pallas.4} parent=43 // pred_fallthru
          _
        // Predicated region
        $region61: #{encoder_block_pallas.4} parent=43 // pred_check
          %p336 = pneg %p136
        $region62: #{encoder_block_pallas.4} parent=43 // pred_check_branch
          %338 = sbr.rel (%p336) target = $region64
        $region63: #{encoder_block_pallas.4} parent=43 // pred_region
          %339 = dma.done [#allocation9], 9216
        $region64: #{encoder_block_pallas.4} parent=43 // pred_fallthru
          _
        // Predicated region
        $region65: #{encoder_block_pallas.4} parent=43 // pred_check
          %p340 = pneg %p157
        $region66: #{encoder_block_pallas.4} parent=43 // pred_check_branch
          %342 = sbr.rel (%p340) target = $region68
        $region67: #{encoder_block_pallas.4} parent=43 // pred_region
          %343 = dma.done [#allocation12], 16
        $region68: #{encoder_block_pallas.4} parent=43 // pred_fallthru
          _
        %s344 = sand.u32 %s39, 1
        %s345 = scalar_lea.sflag [#allocation3], %s344
        %s346 = sand.u32 %s39, 1
        %s347 = smul.addr %s346, 216
        %s348 = scalar_lea.vmem [#allocation2], %s347
        %p349 = pneg %p52
        %p350 = pneg %p49
        %p351 = pneg %p73
        %p352 = pneg %p70
        %p353 = pneg %p94
        %p354 = pneg %p91
        %p355 = pneg %p115
        %p356 = pneg %p112
        %p357 = pneg %p136
        %p358 = pneg %p133
        %p359 = pneg %p157
        %p360 = pneg %p154
        %p361 = pneg %p183
        %p362 = pneg %p180
        %s363 = sand.u32 %s170, 1
        %s364 = scalar_lea.sflag [#allocation4], %s363
        %s365 = sand.u32 %s170, 1
        %s366 = smul.addr %s365, 128
        %s367 = scalar_lea.vmem [#allocation13], %s366
        %p368 = pneg %p209
        %p369 = pneg %p206
        %s370 = sand.u32 %s196, 1
        %s371 = scalar_lea.sflag [#allocation15], %s370
        %s372 = sand.u32 %s196, 1
        %s373 = smul.addr %s372, 2
        %s374 = scalar_lea.vmem [#allocation14], %s373
        %v376 = vld [vmem:[#allocation5] sm:$0x3]
        %v377 = vld [vmem:[#allocation5 + $0x2] sm:$0x3]
        %vm378 = vcmask 1041408
        %v379 = vsel %vm378, %v376, 0.0
        %v380 = vsel %vm378, %v377, 0.0
        %v381 = vadd.f32 %v379, %v380
        %v382 = vmul.f32 %v381, 0.001953125
        %v383 = vmul.f32 %v382, %v382
        %v385 = vrot.slane %v383, 7
        %v387 = vsub.f32 %v382, %v385
        %v388 = vmax.f32 %v387, 0.0
        %v389 = vld [vmem:[#allocation7] sm:$0x1]
        %v390 = vadd.f32 %v388, 1e-05
        %v391 = vrsqrt.pop %v390
        %v394 = vunpack.c.l.s4 1966171168
        %v395 = vunpack.c.0.s8 %v394
        %v396 = vlaneseq
        %v397 = vshrl.u32 %v396, 7
        %v398 = vsub.s32 %v395, %v397
        %v399 = vrot.slane %v391, %v398
        %v400 = vcombine.high %v399, %v399
        %v402 = vunpack.c.l.s4 1966171168
        %v403 = vunpack.c.0.s8 %v402
        %v404 = vlaneseq
        %v405 = vshrl.u32 %v404, 7
        %v406 = vsub.s32 %v403, %v405
        %v407 = vrot.slane %v400, %v406
        %v409 = vmul.f32 %v389, %v407
        %v410 = vld [vmem:[#allocation8] sm:$0x1]
        %v411 = vmul.f32 %v382, %v409
        %v412 = vsub.f32 %v410, %v411
        %v413 = vld [vmem:[%s319] sm:$0xf]
        %v414 = vld [vmem:[%s319 + $0x4] sm:$0xf]
        %v415 = vld [vmem:[%s319 + $0x8] sm:$0x1]
        %v416 = vld [vmem:[%s319 + $0xc] sm:$0xf]
        %v417 = vld [vmem:[%s319 + $0x10] sm:$0xf]
        %v418 = vld [vmem:[%s319 + $0x14] sm:$0x1]
        %v419 = vld [vmem:[%s319 + $0x18] sm:$0xf]
        %v420 = vld [vmem:[%s319 + $0x1c] sm:$0xf]
        %v421 = vld [vmem:[%s319 + $0x20] sm:$0x1]
        %v422 = vld [vmem:[%s319 + $0x24] sm:$0xf]
        %v423 = vld [vmem:[%s319 + $0x28] sm:$0xf]
        %v424 = vld [vmem:[%s319 + $0x2c] sm:$0x1]
        %v425 = vld [vmem:[%s319 + $0x30] sm:$0xf]
        %v426 = vld [vmem:[%s319 + $0x34] sm:$0xf]
        %v427 = vld [vmem:[%s319 + $0x38] sm:$0x1]
        %v428 = vld [vmem:[%s319 + $0x3c] sm:$0xf]
        %v429 = vld [vmem:[%s319 + $0x40] sm:$0xf]
        %v430 = vld [vmem:[%s319 + $0x44] sm:$0x1]
        %v431 = vld [vmem:[%s319 + $0x48] sm:$0xf]
        %v432 = vld [vmem:[%s319 + $0x4c] sm:$0xf]
        %v433 = vld [vmem:[%s319 + $0x50] sm:$0x1]
        %v434 = vld [vmem:[%s319 + $0x54] sm:$0xf]
        %v435 = vld [vmem:[%s319 + $0x58] sm:$0xf]
        %v436 = vld [vmem:[%s319 + $0x5c] sm:$0x1]
        %v437 = vld [vmem:[%s319 + $0x60] sm:$0xf]
        %v438 = vld [vmem:[%s319 + $0x64] sm:$0xf]
        %v439 = vld [vmem:[%s319 + $0x68] sm:$0x1]
        %v440 = vld [vmem:[%s319 + $0x6c] sm:$0xf]
        %v441 = vld [vmem:[%s319 + $0x70] sm:$0xf]
        %v442 = vld [vmem:[%s319 + $0x74] sm:$0x1]
        %v443 = vld [vmem:[%s319 + $0x78] sm:$0xf]
        %v444 = vld [vmem:[%s319 + $0x7c] sm:$0xf]
        %v445 = vld [vmem:[%s319 + $0x80] sm:$0x1]
        %v446 = vld [vmem:[%s319 + $0x84] sm:$0xf]
        %v447 = vld [vmem:[%s319 + $0x88] sm:$0xf]
        %v448 = vld [vmem:[%s319 + $0x8c] sm:$0x1]
        %v449 = vld [vmem:[%s319 + $0x90] sm:$0xf]
        %v450 = vld [vmem:[%s319 + $0x94] sm:$0xf]
        %v451 = vld [vmem:[%s319 + $0x98] sm:$0x1]
        %v452 = vld [vmem:[%s319 + $0x9c] sm:$0xf]
        %v453 = vld [vmem:[%s319 + $0xa0] sm:$0xf]
        %v454 = vld [vmem:[%s319 + $0xa4] sm:$0x1]
        %v455 = vld [vmem:[%s319 + $0xa8] sm:$0xf]
        %v456 = vld [vmem:[%s319 + $0xac] sm:$0xf]
        %v457 = vld [vmem:[%s319 + $0xb0] sm:$0x1]
        %v458 = vld [vmem:[%s319 + $0xb4] sm:$0xf]
        %v459 = vld [vmem:[%s319 + $0xb8] sm:$0xf]
        %v460 = vld [vmem:[%s319 + $0xbc] sm:$0x1]
        %v461 = vld [vmem:[%s319 + $0xc0] sm:$0xf]
        %v462 = vld [vmem:[%s319 + $0xc4] sm:$0xf]
        %v463 = vld [vmem:[%s319 + $0xc8] sm:$0x1]
        %v464 = vld [vmem:[%s319 + $0xcc] sm:$0xf]
        %v465 = vld [vmem:[%s319 + $0xd0] sm:$0xf]
        %v466 = vld [vmem:[%s319 + $0xd4] sm:$0x1]
        %v467 = vunpack.c.l.bf16 %v413
        %v468 = vunpack.c.l.bf16 %v414
        %v469 = vunpack.c.l.bf16 %v415
        %v470 = vunpack.c.l.bf16 %v416
        %v471 = vunpack.c.l.bf16 %v417
        %v472 = vunpack.c.l.bf16 %v418
        %v473 = vunpack.c.l.bf16 %v419
        %v474 = vunpack.c.l.bf16 %v420
        %v475 = vunpack.c.l.bf16 %v421
        %v476 = vunpack.c.l.bf16 %v422
        %v477 = vunpack.c.l.bf16 %v423
        %v478 = vunpack.c.l.bf16 %v424
        %v479 = vunpack.c.l.bf16 %v425
        %v480 = vunpack.c.l.bf16 %v426
        %v481 = vunpack.c.l.bf16 %v427
        %v482 = vunpack.c.l.bf16 %v428
        %v483 = vunpack.c.l.bf16 %v429
        %v484 = vunpack.c.l.bf16 %v430
        %v485 = vunpack.c.l.bf16 %v431
        %v486 = vunpack.c.l.bf16 %v432
        %v487 = vunpack.c.l.bf16 %v433
        %v488 = vunpack.c.l.bf16 %v434
        %v489 = vunpack.c.l.bf16 %v435
        %v490 = vunpack.c.l.bf16 %v436
        %v491 = vunpack.c.l.bf16 %v437
        %v492 = vunpack.c.l.bf16 %v438
        %v493 = vunpack.c.l.bf16 %v439
        %v494 = vunpack.c.l.bf16 %v440
        %v495 = vunpack.c.l.bf16 %v441
        %v496 = vunpack.c.l.bf16 %v442
        %v497 = vunpack.c.l.bf16 %v443
        %v498 = vunpack.c.l.bf16 %v444
        %v499 = vunpack.c.l.bf16 %v445
        %v500 = vunpack.c.l.bf16 %v446
        %v501 = vunpack.c.l.bf16 %v447
        %v502 = vunpack.c.l.bf16 %v448
        %v503 = vunpack.c.l.bf16 %v449
        %v504 = vunpack.c.l.bf16 %v450
        %v505 = vunpack.c.l.bf16 %v451
        %v506 = vunpack.c.l.bf16 %v452
        %v507 = vunpack.c.l.bf16 %v453
        %v508 = vunpack.c.l.bf16 %v454
        %v509 = vunpack.c.l.bf16 %v455
        %v510 = vunpack.c.l.bf16 %v456
        %v511 = vunpack.c.l.bf16 %v457
        %v512 = vunpack.c.l.bf16 %v458
        %v513 = vunpack.c.l.bf16 %v459
        %v514 = vunpack.c.l.bf16 %v460
        %v515 = vunpack.c.l.bf16 %v461
        %v516 = vunpack.c.l.bf16 %v462
        %v517 = vunpack.c.l.bf16 %v463
        %v518 = vunpack.c.l.bf16 %v464
        %v519 = vunpack.c.l.bf16 %v465
        %v520 = vunpack.c.l.bf16 %v466
        %v521 = vlaneseq
        %v522 = vshrl.u32 %v521, 7
        %v523 = vadd.s32 %v522, 8
        %v524 = vadd.s32 %v522, 16
        %vm525 = vcmp.ge.s32.totalorder %v522, 1
        %vm526 = vcmp.ge.s32.totalorder %v523, 1
        %vm527 = vcmp.ge.s32.totalorder %v524, 1
        %vm528 = vmand 0, %vm525
        %vm529 = vmand 0, %vm526
        %vm530 = vmand 0, %vm527
        %vm531 = vmand 1, %vm525
        %vm532 = vmand 1, %vm526
        %vm533 = vmand 1, %vm527
        %vm534 = vcmp.le.s32.totalorder %v522, 16
        %vm535 = vcmp.le.s32.totalorder %v523, 16
        %vm536 = vcmp.le.s32.totalorder %v524, 16
        %vm537 = vmand %vm528, %vm534
        %vm538 = vmand %vm529, %vm535
        %vm539 = vmand %vm530, %vm536
        %vm540 = vmand %vm531, %vm534
        %vm541 = vmand %vm532, %vm535
        %vm542 = vmand %vm533, %vm536
        %v544 = vlaneseq
        %v545 = vshrl.u32 %v544, 7
        %v546 = vsub.s32 0, %v545
        %v547 = vrot.slane %v409, %v546
        %v549 = vmul.f32 %v467, %v547
        %v550 = vmul.f32 %v468, %v547
        %v551 = vmul.f32 %v469, %v547
        %v552 = vmul.f32 %v470, %v547
        %v553 = vmul.f32 %v471, %v547
        %v554 = vmul.f32 %v472, %v547
        %v555 = vmul.f32 %v473, %v547
        %v556 = vmul.f32 %v474, %v547
        %v557 = vmul.f32 %v475, %v547
        %v558 = vmul.f32 %v476, %v547
        %v559 = vmul.f32 %v477, %v547
        %v560 = vmul.f32 %v478, %v547
        %v561 = vmul.f32 %v479, %v547
        %v562 = vmul.f32 %v480, %v547
        %v563 = vmul.f32 %v481, %v547
        %v564 = vmul.f32 %v482, %v547
        %v565 = vmul.f32 %v483, %v547
        %v566 = vmul.f32 %v484, %v547
        %v567 = vmul.f32 %v485, %v547
        %v568 = vmul.f32 %v486, %v547
        %v569 = vmul.f32 %v487, %v547
        %v570 = vmul.f32 %v488, %v547
        %v571 = vmul.f32 %v489, %v547
        %v572 = vmul.f32 %v490, %v547
        %v573 = vmul.f32 %v491, %v547
        %v574 = vmul.f32 %v492, %v547
        %v575 = vmul.f32 %v493, %v547
        %v576 = vmul.f32 %v494, %v547
        %v577 = vmul.f32 %v495, %v547
        %v578 = vmul.f32 %v496, %v547
        %v579 = vmul.f32 %v497, %v547
        %v580 = vmul.f32 %v498, %v547
        %v581 = vmul.f32 %v499, %v547
        %v582 = vmul.f32 %v500, %v547
        %v583 = vmul.f32 %v501, %v547
        %v584 = vmul.f32 %v502, %v547
        %v585 = vmul.f32 %v503, %v547
        %v586 = vmul.f32 %v504, %v547
        %v587 = vmul.f32 %v505, %v547
        %v588 = vmul.f32 %v506, %v547
        %v589 = vmul.f32 %v507, %v547
        %v590 = vmul.f32 %v508, %v547
        %v591 = vmul.f32 %v509, %v547
        %v592 = vmul.f32 %v510, %v547
        %v593 = vmul.f32 %v511, %v547
        %v594 = vmul.f32 %v512, %v547
        %v595 = vmul.f32 %v513, %v547
        %v596 = vmul.f32 %v514, %v547
        %v597 = vmul.f32 %v515, %v547
        %v598 = vmul.f32 %v516, %v547
        %v599 = vmul.f32 %v517, %v547
        %v600 = vmul.f32 %v518, %v547
        %v601 = vmul.f32 %v519, %v547
        %v602 = vmul.f32 %v520, %v547
        %v604 = vlaneseq
        %v605 = vshrl.u32 %v604, 7
        %v606 = vsub.s32 0, %v605
        %v607 = vrot.slane %v412, %v606
        %v609 = vsel %vm537, %v607, 0.0
        %v610 = vsel %vm538, %v607, 0.0
        %v611 = vsel %vm539, %v607, 0.0
        %v612 = vsel %vm540, %v607, 0.0
        %v613 = vsel %vm541, %v607, 0.0
        %v614 = vsel %vm542, %v607, 0.0
        %v615 = vadd.f32 %v549, %v609
        %v616 = vadd.f32 %v550, %v610
        %v617 = vadd.f32 %v551, %v611
        %v618 = vadd.f32 %v552, %v612
        %v619 = vadd.f32 %v553, %v613
        %v620 = vadd.f32 %v554, %v614
        %v621 = vadd.f32 %v555, %v612
        %v622 = vadd.f32 %v556, %v613
        %v623 = vadd.f32 %v557, %v614
        %v624 = vadd.f32 %v558, %v612
        %v625 = vadd.f32 %v559, %v613
        %v626 = vadd.f32 %v560, %v614
        %v627 = vadd.f32 %v561, %v612
        %v628 = vadd.f32 %v562, %v613
        %v629 = vadd.f32 %v563, %v614
        %v630 = vadd.f32 %v564, %v612
        %v631 = vadd.f32 %v565, %v613
        %v632 = vadd.f32 %v566, %v614
        %v633 = vadd.f32 %v567, %v612
        %v634 = vadd.f32 %v568, %v613
        %v635 = vadd.f32 %v569, %v614
        %v636 = vadd.f32 %v570, %v612
        %v637 = vadd.f32 %v571, %v613
        %v638 = vadd.f32 %v572, %v614
        %v639 = vadd.f32 %v573, %v612
        %v640 = vadd.f32 %v574, %v613
        %v641 = vadd.f32 %v575, %v614
        %v642 = vadd.f32 %v576, %v612
        %v643 = vadd.f32 %v577, %v613
        %v644 = vadd.f32 %v578, %v614
        %v645 = vadd.f32 %v579, %v612
        %v646 = vadd.f32 %v580, %v613
        %v647 = vadd.f32 %v581, %v614
        %v648 = vadd.f32 %v582, %v612
        %v649 = vadd.f32 %v583, %v613
        %v650 = vadd.f32 %v584, %v614
        %v651 = vadd.f32 %v585, %v612
        %v652 = vadd.f32 %v586, %v613
        %v653 = vadd.f32 %v587, %v614
        %v654 = vadd.f32 %v588, %v612
        %v655 = vadd.f32 %v589, %v613
        %v656 = vadd.f32 %v590, %v614
        %v657 = vadd.f32 %v591, %v612
        %v658 = vadd.f32 %v592, %v613
        %v659 = vadd.f32 %v593, %v614
        %v660 = vadd.f32 %v594, %v612
        %v661 = vadd.f32 %v595, %v613
        %v662 = vadd.f32 %v596, %v614
        %v663 = vadd.f32 %v597, %v612
        %v664 = vadd.f32 %v598, %v613
        %v665 = vadd.f32 %v599, %v614
        %v666 = vadd.f32 %v600, %v609
        %v667 = vadd.f32 %v601, %v610
        %v668 = vadd.f32 %v602, %v611
        %v669 = vpack.c.bf16 %v616, %v615
        %v670 = vpack.c.bf16 %v617, %v617
        %v671 = vpack.c.bf16 %v619, %v618
        %v672 = vpack.c.bf16 %v620, %v620
        %v673 = vpack.c.bf16 %v622, %v621
        %v674 = vpack.c.bf16 %v623, %v623
        %v675 = vpack.c.bf16 %v625, %v624
        %v676 = vpack.c.bf16 %v626, %v626
        %v677 = vpack.c.bf16 %v628, %v627
        %v678 = vpack.c.bf16 %v629, %v629
        %v679 = vpack.c.bf16 %v631, %v630
        %v680 = vpack.c.bf16 %v632, %v632
        %v681 = vpack.c.bf16 %v634, %v633
        %v682 = vpack.c.bf16 %v635, %v635
        %v683 = vpack.c.bf16 %v637, %v636
        %v684 = vpack.c.bf16 %v638, %v638
        %v685 = vpack.c.bf16 %v640, %v639
        %v686 = vpack.c.bf16 %v641, %v641
        %v687 = vpack.c.bf16 %v643, %v642
        %v688 = vpack.c.bf16 %v644, %v644
        %v689 = vpack.c.bf16 %v646, %v645
        %v690 = vpack.c.bf16 %v647, %v647
        %v691 = vpack.c.bf16 %v649, %v648
        %v692 = vpack.c.bf16 %v650, %v650
        %v693 = vpack.c.bf16 %v652, %v651
        %v694 = vpack.c.bf16 %v653, %v653
        %v695 = vpack.c.bf16 %v655, %v654
        %v696 = vpack.c.bf16 %v656, %v656
        %v697 = vpack.c.bf16 %v658, %v657
        %v698 = vpack.c.bf16 %v659, %v659
        %v699 = vpack.c.bf16 %v661, %v660
        %v700 = vpack.c.bf16 %v662, %v662
        %v701 = vpack.c.bf16 %v664, %v663
        %v702 = vpack.c.bf16 %v665, %v665
        %v703 = vpack.c.bf16 %v667, %v666
        %v704 = vpack.c.bf16 %v668, %v668
        %vm705 = vsmask.f32 7424
        %v707 = vshrl.u32 %v669, 16
        %v709 = vshll.u32 %v669, 16
        %v711 = vrot.slane %v709, 1
        %v712 = vor.u32 %v707, %v711
        %v714 = vshll.u32 %v670, 16
        %v716 = vrot.slane %v714, 1
        %v717 = vsel %vm705, %v712, %v716
        %v719 = vshrl.u32 %v671, 16
        %v721 = vshll.u32 %v671, 16
        %v723 = vrot.slane %v721, 1
        %v724 = vor.u32 %v719, %v723
        %v726 = vshll.u32 %v672, 16
        %v728 = vrot.slane %v726, 1
        %v729 = vsel %vm705, %v724, %v728
        %v731 = vshrl.u32 %v673, 16
        %v733 = vshll.u32 %v673, 16
        %v735 = vrot.slane %v733, 1
        %v736 = vor.u32 %v731, %v735
        %v738 = vshll.u32 %v674, 16
        %v740 = vrot.slane %v738, 1
        %v741 = vsel %vm705, %v736, %v740
        %v743 = vshrl.u32 %v675, 16
        %v745 = vshll.u32 %v675, 16
        %v747 = vrot.slane %v745, 1
        %v748 = vor.u32 %v743, %v747
        %v750 = vshll.u32 %v676, 16
        %v752 = vrot.slane %v750, 1
        %v753 = vsel %vm705, %v748, %v752
        %v755 = vshrl.u32 %v677, 16
        %v757 = vshll.u32 %v677, 16
        %v759 = vrot.slane %v757, 1
        %v760 = vor.u32 %v755, %v759
        %v762 = vshll.u32 %v678, 16
        %v764 = vrot.slane %v762, 1
        %v765 = vsel %vm705, %v760, %v764
        %v767 = vshrl.u32 %v679, 16
        %v769 = vshll.u32 %v679, 16
        %v771 = vrot.slane %v769, 1
        %v772 = vor.u32 %v767, %v771
        %v774 = vshll.u32 %v680, 16
        %v776 = vrot.slane %v774, 1
        %v777 = vsel %vm705, %v772, %v776
        %v779 = vshrl.u32 %v681, 16
        %v781 = vshll.u32 %v681, 16
        %v783 = vrot.slane %v781, 1
        %v784 = vor.u32 %v779, %v783
        %v786 = vshll.u32 %v682, 16
        %v788 = vrot.slane %v786, 1
        %v789 = vsel %vm705, %v784, %v788
        %v791 = vshrl.u32 %v683, 16
        %v793 = vshll.u32 %v683, 16
        %v795 = vrot.slane %v793, 1
        %v796 = vor.u32 %v791, %v795
        %v798 = vshll.u32 %v684, 16
        %v800 = vrot.slane %v798, 1
        %v801 = vsel %vm705, %v796, %v800
        %v803 = vshrl.u32 %v685, 16
        %v805 = vshll.u32 %v685, 16
        %v807 = vrot.slane %v805, 1
        %v808 = vor.u32 %v803, %v807
        %v810 = vshll.u32 %v686, 16
        %v812 = vrot.slane %v810, 1
        %v813 = vsel %vm705, %v808, %v812
        %v815 = vshrl.u32 %v687, 16
        %v817 = vshll.u32 %v687, 16
        %v819 = vrot.slane %v817, 1
        %v820 = vor.u32 %v815, %v819
        %v822 = vshll.u32 %v688, 16
        %v824 = vrot.slane %v822, 1
        %v825 = vsel %vm705, %v820, %v824
        %v827 = vshrl.u32 %v689, 16
        %v829 = vshll.u32 %v689, 16
        %v831 = vrot.slane %v829, 1
        %v832 = vor.u32 %v827, %v831
        %v834 = vshll.u32 %v690, 16
        %v836 = vrot.slane %v834, 1
        %v837 = vsel %vm705, %v832, %v836
        %v839 = vshrl.u32 %v691, 16
        %v841 = vshll.u32 %v691, 16
        %v843 = vrot.slane %v841, 1
        %v844 = vor.u32 %v839, %v843
        %v846 = vshll.u32 %v692, 16
        %v848 = vrot.slane %v846, 1
        %v849 = vsel %vm705, %v844, %v848
        %v851 = vshrl.u32 %v693, 16
        %v853 = vshll.u32 %v693, 16
        %v855 = vrot.slane %v853, 1
        %v856 = vor.u32 %v851, %v855
        %v858 = vshll.u32 %v694, 16
        %v860 = vrot.slane %v858, 1
        %v861 = vsel %vm705, %v856, %v860
        %v863 = vshrl.u32 %v695, 16
        %v865 = vshll.u32 %v695, 16
        %v867 = vrot.slane %v865, 1
        %v868 = vor.u32 %v863, %v867
        %v870 = vshll.u32 %v696, 16
        %v872 = vrot.slane %v870, 1
        %v873 = vsel %vm705, %v868, %v872
        %v875 = vshrl.u32 %v697, 16
        %v877 = vshll.u32 %v697, 16
        %v879 = vrot.slane %v877, 1
        %v880 = vor.u32 %v875, %v879
        %v882 = vshll.u32 %v698, 16
        %v884 = vrot.slane %v882, 1
        %v885 = vsel %vm705, %v880, %v884
        %v887 = vshrl.u32 %v699, 16
        %v889 = vshll.u32 %v699, 16
        %v891 = vrot.slane %v889, 1
        %v892 = vor.u32 %v887, %v891
        %v894 = vshll.u32 %v700, 16
        %v896 = vrot.slane %v894, 1
        %v897 = vsel %vm705, %v892, %v896
        %vm946 = vcmask 1046528
        %v947 = vrot.slane %v669, 1
        %v948 = vrot.slane %v670, 1
        %v949 = vsel %vm946, %v947, %v948
        %v950 = vrot.slane %v671, 1
        %v951 = vrot.slane %v672, 1
        %v952 = vsel %vm946, %v950, %v951
        %v953 = vrot.slane %v673, 1
        %v954 = vrot.slane %v674, 1
        %v955 = vsel %vm946, %v953, %v954
        %v956 = vrot.slane %v675, 1
        %v957 = vrot.slane %v676, 1
        %v958 = vsel %vm946, %v956, %v957
        %v959 = vrot.slane %v677, 1
        %v960 = vrot.slane %v678, 1
        %v961 = vsel %vm946, %v959, %v960
        %v962 = vrot.slane %v679, 1
        %v963 = vrot.slane %v680, 1
        %v964 = vsel %vm946, %v962, %v963
        %v965 = vrot.slane %v681, 1
        %v966 = vrot.slane %v682, 1
        %v967 = vsel %vm946, %v965, %v966
        %v968 = vrot.slane %v683, 1
        %v969 = vrot.slane %v684, 1
        %v970 = vsel %vm946, %v968, %v969
        %v971 = vrot.slane %v685, 1
        %v972 = vrot.slane %v686, 1
        %v973 = vsel %vm946, %v971, %v972
        %v974 = vrot.slane %v687, 1
        %v975 = vrot.slane %v688, 1
        %v976 = vsel %vm946, %v974, %v975
        %v977 = vrot.slane %v689, 1
        %v978 = vrot.slane %v690, 1
        %v979 = vsel %vm946, %v977, %v978
        %v980 = vrot.slane %v691, 1
        %v981 = vrot.slane %v692, 1
        %v982 = vsel %vm946, %v980, %v981
        %v983 = vrot.slane %v693, 1
        %v984 = vrot.slane %v694, 1
        %v985 = vsel %vm946, %v983, %v984
        %v986 = vrot.slane %v695, 1
        %v987 = vrot.slane %v696, 1
        %v988 = vsel %vm946, %v986, %v987
        %v989 = vrot.slane %v697, 1
        %v990 = vrot.slane %v698, 1
        %v991 = vsel %vm946, %v989, %v990
        %v992 = vrot.slane %v699, 1
        %v993 = vrot.slane %v700, 1
        %v994 = vsel %vm946, %v992, %v993
        %v1012 = vshrl.u32 %v701, 16
        %v1014 = vshll.u32 %v701, 16
        %v1016 = vrot.slane %v1014, 1
        %v1017 = vor.u32 %v1012, %v1016
        %v1019 = vshll.u32 %v702, 16
        %v1021 = vrot.slane %v1019, 1
        %v1022 = vsel %vm705, %v1017, %v1021
        %v1026 = vrot.slane %v701, 1
        %v1027 = vrot.slane %v702, 1
        %v1028 = vsel %vm946, %v1026, %v1027
        %v1031 = vshrl.u32 %v703, 16
        %v1033 = vshll.u32 %v703, 16
        %v1035 = vrot.slane %v1033, 1
        %v1036 = vor.u32 %v1031, %v1035
        %v1038 = vshll.u32 %v704, 16
        %v1040 = vrot.slane %v1038, 1
        %v1041 = vsel %vm705, %v1036, %v1040
        %v1045 = vrot.slane %v703, 1
        %v1046 = vrot.slane %v704, 1
        %v1047 = vsel %vm946, %v1045, %v1046
        %v1049 = vld [vmem:[#allocation10] sm:$0xf]
        %v1050 = vld [vmem:[#allocation10 + $0x4] sm:$0xf]
        %v1051 = vld [vmem:[#allocation10 + $0x8] sm:$0xf]
        %v1052 = vld [vmem:[#allocation10 + $0xc] sm:$0xf]
        %v1053 = vld [vmem:[#allocation10 + $0x10] sm:$0xf]
        %v1054 = vld [vmem:[#allocation10 + $0x14] sm:$0xf]
        %v1055 = vld [vmem:[#allocation10 + $0x18] sm:$0xf]
        %v1056 = vld [vmem:[#allocation10 + $0x1c] sm:$0xf]
        %v1057 = vld [vmem:[#allocation10 + $0x20] sm:$0xf]
        %v1058 = vld [vmem:[#allocation10 + $0x24] sm:$0xf]
        %v1059 = vld [vmem:[#allocation10 + $0x28] sm:$0xf]
        %v1060 = vld [vmem:[#allocation10 + $0x2c] sm:$0xf]
        %v1061 = vld [vmem:[#allocation10 + $0x30] sm:$0xf]
        %v1062 = vld [vmem:[#allocation10 + $0x34] sm:$0xf]
        %v1063 = vld [vmem:[#allocation10 + $0x38] sm:$0xf]
        %v1064 = vld [vmem:[#allocation10 + $0x3c] sm:$0xf]
        %v1065 = vld [vmem:[#allocation10 + $0x40] sm:$0xf]
        %v1066 = vld [vmem:[#allocation10 + $0x44] sm:$0xf]
        %v1067 = vld [vmem:[#allocation10 + $0x48] sm:$0xf]
        %v1068 = vld [vmem:[#allocation10 + $0x4c] sm:$0xf]
        %v1069 = vld [vmem:[#allocation10 + $0x50] sm:$0xf]
        %v1070 = vld [vmem:[#allocation10 + $0x54] sm:$0xf]
        %v1071 = vld [vmem:[#allocation10 + $0x58] sm:$0xf]
        %v1072 = vld [vmem:[#allocation10 + $0x5c] sm:$0xf]
        %v1073 = vld [vmem:[#allocation10 + $0x60] sm:$0xf]
        %v1074 = vld [vmem:[#allocation10 + $0x64] sm:$0xf]
        %v1075 = vld [vmem:[#allocation10 + $0x68] sm:$0xf]
        %v1076 = vld [vmem:[#allocation10 + $0x6c] sm:$0xf]
        %v1077 = vld [vmem:[#allocation10 + $0x70] sm:$0xf]
        %v1078 = vld [vmem:[#allocation10 + $0x74] sm:$0xf]
        %v1079 = vld [vmem:[#allocation10 + $0x78] sm:$0xf]
        %v1080 = vld [vmem:[#allocation10 + $0x7c] sm:$0xf]
        %v1081 = vld [vmem:[#allocation10 + $0x80] sm:$0xf]
        %v1082 = vld [vmem:[#allocation10 + $0x84] sm:$0xf]
        %v1083 = vld [vmem:[#allocation10 + $0x88] sm:$0xf]
        %v1084 = vld [vmem:[#allocation10 + $0x8c] sm:$0xf]
        %v1085 = vld [vmem:[#allocation10 + $0x90] sm:$0xf]
        %v1086 = vld [vmem:[#allocation10 + $0x94] sm:$0xf]
        %v1087 = vld [vmem:[#allocation10 + $0x98] sm:$0xf]
        %v1088 = vld [vmem:[#allocation10 + $0x9c] sm:$0xf]
        %v1089 = vld [vmem:[#allocation10 + $0xa0] sm:$0xf]
        %v1090 = vld [vmem:[#allocation10 + $0xa4] sm:$0xf]
        %v1091 = vld [vmem:[#allocation10 + $0xa8] sm:$0xf]
        %v1092 = vld [vmem:[#allocation10 + $0xac] sm:$0xf]
        %v1093 = vld [vmem:[#allocation10 + $0xb0] sm:$0xf]
        %v1094 = vld [vmem:[#allocation10 + $0xb4] sm:$0xf]
        %v1095 = vld [vmem:[#allocation10 + $0xb8] sm:$0xf]
        %v1096 = vld [vmem:[#allocation10 + $0xbc] sm:$0xf]
        %v1097 = vld [vmem:[#allocation10 + $0xc0] sm:$0xf]
        %v1098 = vld [vmem:[#allocation10 + $0xc4] sm:$0xf]
        %v1099 = vld [vmem:[#allocation10 + $0xc8] sm:$0xf]
        %v1100 = vld [vmem:[#allocation10 + $0xcc] sm:$0xf]
        %v1101 = vld [vmem:[#allocation10 + $0xd0] sm:$0xf]
        %v1102 = vld [vmem:[#allocation10 + $0xd4] sm:$0xf]
        %v1103 = vld [vmem:[#allocation10 + $0xd8] sm:$0xf]
        %v1104 = vld [vmem:[#allocation10 + $0xdc] sm:$0xf]
        %v1105 = vld [vmem:[#allocation10 + $0xe0] sm:$0xf]
        %v1106 = vld [vmem:[#allocation10 + $0xe4] sm:$0xf]
        %v1107 = vld [vmem:[#allocation10 + $0xe8] sm:$0xf]
        %v1108 = vld [vmem:[#allocation10 + $0xec] sm:$0xf]
        %v1109 = vld [vmem:[#allocation10 + $0xf0] sm:$0xf]
        %v1110 = vld [vmem:[#allocation10 + $0xf4] sm:$0xf]
        %v1111 = vld [vmem:[#allocation10 + $0xf8] sm:$0xf]
        %v1112 = vld [vmem:[#allocation10 + $0xfc] sm:$0xf]
        %v1113 = vld [vmem:[#allocation10 + $0x100] sm:$0xf]
        %v1114 = vld [vmem:[#allocation10 + $0x104] sm:$0xf]
        %v1115 = vld [vmem:[#allocation10 + $0x108] sm:$0xf]
        %v1116 = vld [vmem:[#allocation10 + $0x10c] sm:$0xf]
        %v1117 = vld [vmem:[#allocation10 + $0x110] sm:$0xf]
        %v1118 = vld [vmem:[#allocation10 + $0x114] sm:$0xf]
        %v1119 = vld [vmem:[#allocation10 + $0x118] sm:$0xf]
        %v1120 = vld [vmem:[#allocation10 + $0x11c] sm:$0xf]
        %v1121 = vld [vmem:[#allocation10 + $0x120] sm:$0xf]
        %v1122 = vld [vmem:[#allocation10 + $0x124] sm:$0xf]
        %v1123 = vld [vmem:[#allocation10 + $0x128] sm:$0xf]
        %v1124 = vld [vmem:[#allocation10 + $0x12c] sm:$0xf]
        %v1125 = vld [vmem:[#allocation10 + $0x130] sm:$0xf]
        %v1126 = vld [vmem:[#allocation10 + $0x134] sm:$0xf]
        %v1127 = vld [vmem:[#allocation10 + $0x138] sm:$0xf]
        %v1128 = vld [vmem:[#allocation10 + $0x13c] sm:$0xf]
        %v1129 = vld [vmem:[#allocation10 + $0x140] sm:$0xf]
        %v1130 = vld [vmem:[#allocation10 + $0x144] sm:$0xf]
        %v1131 = vld [vmem:[#allocation10 + $0x148] sm:$0xf]
        %v1132 = vld [vmem:[#allocation10 + $0x14c] sm:$0xf]
        %v1133 = vld [vmem:[#allocation10 + $0x150] sm:$0xf]
        %v1134 = vld [vmem:[#allocation10 + $0x154] sm:$0xf]
        %v1135 = vld [vmem:[#allocation10 + $0x158] sm:$0xf]
        %v1136 = vld [vmem:[#allocation10 + $0x15c] sm:$0xf]
        %v1137 = vld [vmem:[#allocation10 + $0x160] sm:$0xf]
        %v1138 = vld [vmem:[#allocation10 + $0x164] sm:$0xf]
        %v1139 = vld [vmem:[#allocation10 + $0x168] sm:$0xf]
        %v1140 = vld [vmem:[#allocation10 + $0x16c] sm:$0xf]
        %v1141 = vld [vmem:[#allocation10 + $0x170] sm:$0xf]
        %v1142 = vld [vmem:[#allocation10 + $0x174] sm:$0xf]
        %v1143 = vld [vmem:[#allocation10 + $0x178] sm:$0xf]
        %v1144 = vld [vmem:[#allocation10 + $0x17c] sm:$0xf]
        %v1145 = vld [vmem:[#allocation10 + $0x180] sm:$0xf]
        %v1146 = vld [vmem:[#allocation10 + $0x184] sm:$0xf]
        %v1147 = vld [vmem:[#allocation10 + $0x188] sm:$0xf]
        %v1148 = vld [vmem:[#allocation10 + $0x18c] sm:$0xf]
        %v1149 = vld [vmem:[#allocation10 + $0x190] sm:$0xf]
        %v1150 = vld [vmem:[#allocation10 + $0x194] sm:$0xf]
        %v1151 = vld [vmem:[#allocation10 + $0x198] sm:$0xf]
        %v1152 = vld [vmem:[#allocation10 + $0x19c] sm:$0xf]
        %v1153 = vld [vmem:[#allocation10 + $0x1a0] sm:$0xf]
        %v1154 = vld [vmem:[#allocation10 + $0x1a4] sm:$0xf]
        %v1155 = vld [vmem:[#allocation10 + $0x1a8] sm:$0xf]
        %v1156 = vld [vmem:[#allocation10 + $0x1ac] sm:$0xf]
        %v1157 = vld [vmem:[#allocation10 + $0x1b0] sm:$0xf]
        %v1158 = vld [vmem:[#allocation10 + $0x1b4] sm:$0xf]
        %v1159 = vld [vmem:[#allocation10 + $0x1b8] sm:$0xf]
        %v1160 = vld [vmem:[#allocation10 + $0x1bc] sm:$0xf]
        %v1161 = vld [vmem:[#allocation10 + $0x1c0] sm:$0xf]
        %v1162 = vld [vmem:[#allocation10 + $0x1c4] sm:$0xf]
        %v1163 = vld [vmem:[#allocation10 + $0x1c8] sm:$0xf]
        %v1164 = vld [vmem:[#allocation10 + $0x1cc] sm:$0xf]
        %v1165 = vld [vmem:[#allocation10 + $0x1d0] sm:$0xf]
        %v1166 = vld [vmem:[#allocation10 + $0x1d4] sm:$0xf]
        %v1167 = vld [vmem:[#allocation10 + $0x1d8] sm:$0xf]
        %v1168 = vld [vmem:[#allocation10 + $0x1dc] sm:$0xf]
        %v1169 = vld [vmem:[#allocation10 + $0x1e0] sm:$0xf]
        %v1170 = vld [vmem:[#allocation10 + $0x1e4] sm:$0xf]
        %v1171 = vld [vmem:[#allocation10 + $0x1e8] sm:$0xf]
        %v1172 = vld [vmem:[#allocation10 + $0x1ec] sm:$0xf]
        %v1173 = vld [vmem:[#allocation10 + $0x1f0] sm:$0xf]
        %v1174 = vld [vmem:[#allocation10 + $0x1f4] sm:$0xf]
        %v1175 = vld [vmem:[#allocation10 + $0x1f8] sm:$0xf]
        %v1176 = vld [vmem:[#allocation10 + $0x1fc] sm:$0xf]
        %v1177 = vld [vmem:[#allocation10 + $0x200] sm:$0xf]
        %v1178 = vld [vmem:[#allocation10 + $0x204] sm:$0xf]
        %v1179 = vld [vmem:[#allocation10 + $0x208] sm:$0xf]
        %v1180 = vld [vmem:[#allocation10 + $0x20c] sm:$0xf]
        %v1181 = vld [vmem:[#allocation10 + $0x210] sm:$0xf]
        %v1182 = vld [vmem:[#allocation10 + $0x214] sm:$0xf]
        %v1183 = vld [vmem:[#allocation10 + $0x218] sm:$0xf]
        %v1184 = vld [vmem:[#allocation10 + $0x21c] sm:$0xf]
        %v1185 = vld [vmem:[#allocation10 + $0x220] sm:$0xf]
        %v1186 = vld [vmem:[#allocation10 + $0x224] sm:$0xf]
        %v1187 = vld [vmem:[#allocation10 + $0x228] sm:$0xf]
        %v1188 = vld [vmem:[#allocation10 + $0x22c] sm:$0xf]
        %v1189 = vld [vmem:[#allocation10 + $0x230] sm:$0xf]
        %v1190 = vld [vmem:[#allocation10 + $0x234] sm:$0xf]
        %v1191 = vld [vmem:[#allocation10 + $0x238] sm:$0xf]
        %v1192 = vld [vmem:[#allocation10 + $0x23c] sm:$0xf]
        %v1193 = vld [vmem:[#allocation11] sm:$0x1]
        %v1195 = vlaneseq
        %v1196 = vshrl.u32 %v1195, 7
        %v1197 = vsub.s32 0, %v1196
        %v1198 = vrot.slane %v1193, %v1197
        %v1344 = vunpack.c.l.b16 %v1049
        %v1345 = vunpack.c.l.b16 %v1050
        %v1346 = vunpack.c.l.b16 %v1051
        %v1347 = vunpack.c.l.b16 %v1052
        %v1348 = vunpack.c.l.b16 %v1053
        %v1349 = vunpack.c.l.b16 %v1054
        %v1350 = vunpack.c.l.b16 %v1055
        %v1351 = vunpack.c.l.b16 %v1056
        %v1352 = vunpack.c.l.b16 %v1057
        %v1353 = vunpack.c.l.b16 %v1058
        %v1354 = vunpack.c.l.b16 %v1059
        %v1355 = vunpack.c.l.b16 %v1060
        %v1356 = vunpack.c.l.b16 %v1061
        %v1357 = vunpack.c.l.b16 %v1062
        %v1358 = vunpack.c.l.b16 %v1063
        %v1359 = vunpack.c.l.b16 %v1064
        %v1360 = vunpack.c.l.b16 %v1065
        %v1361 = vunpack.c.l.b16 %v1066
        %v1362 = vunpack.c.l.b16 %v1067
        %v1363 = vunpack.c.l.b16 %v1068
        %v1364 = vunpack.c.l.b16 %v1069
        %v1365 = vunpack.c.l.b16 %v1070
        %v1366 = vunpack.c.l.b16 %v1071
        %v1367 = vunpack.c.l.b16 %v1072
        %v1368 = vunpack.c.l.b16 %v1073
        %v1369 = vunpack.c.l.b16 %v1074
        %v1370 = vunpack.c.l.b16 %v1075
        %v1371 = vunpack.c.l.b16 %v1076
        %v1372 = vunpack.c.l.b16 %v1077
        %v1373 = vunpack.c.l.b16 %v1078
        %v1374 = vunpack.c.l.b16 %v1079
        %v1375 = vunpack.c.l.b16 %v1080
        %v1376 = vunpack.c.l.b16 %v1081
        %v1377 = vunpack.c.l.b16 %v1082
        %v1378 = vunpack.c.l.b16 %v1083
        %v1379 = vunpack.c.l.b16 %v1084
        %v1380 = vunpack.c.l.b16 %v1085
        %v1381 = vunpack.c.l.b16 %v1086
        %v1382 = vunpack.c.l.b16 %v1087
        %v1383 = vunpack.c.l.b16 %v1088
        %v1384 = vunpack.c.l.b16 %v1089
        %v1385 = vunpack.c.l.b16 %v1090
        %v1386 = vunpack.c.l.b16 %v1091
        %v1387 = vunpack.c.l.b16 %v1092
        %v1388 = vunpack.c.l.b16 %v1093
        %v1389 = vunpack.c.l.b16 %v1094
        %v1390 = vunpack.c.l.b16 %v1095
        %v1391 = vunpack.c.l.b16 %v1096
        %v1392 = vunpack.c.l.b16 %v1097
        %v1393 = vunpack.c.l.b16 %v1098
        %v1394 = vunpack.c.l.b16 %v1099
        %v1395 = vunpack.c.l.b16 %v1100
        %v1396 = vunpack.c.l.b16 %v1101
        %v1397 = vunpack.c.l.b16 %v1102
        %v1398 = vunpack.c.l.b16 %v1103
        %v1399 = vunpack.c.l.b16 %v1104
        %v1400 = vunpack.c.l.b16 %v1105
        %v1401 = vunpack.c.l.b16 %v1106
        %v1402 = vunpack.c.l.b16 %v1107
        %v1403 = vunpack.c.l.b16 %v1108
        %v1404 = vunpack.c.l.b16 %v1109
        %v1405 = vunpack.c.l.b16 %v1110
        %v1406 = vunpack.c.l.b16 %v1111
        %v1407 = vunpack.c.l.b16 %v1112
        %v1408 = vunpack.c.l.b16 %v1113
        %v1409 = vunpack.c.l.b16 %v1114
        %v1410 = vunpack.c.l.b16 %v1115
        %v1411 = vunpack.c.l.b16 %v1116
        %v1412 = vunpack.c.l.b16 %v1117
        %v1413 = vunpack.c.l.b16 %v1118
        %v1414 = vunpack.c.l.b16 %v1119
        %v1415 = vunpack.c.l.b16 %v1120
        %v1416 = vunpack.c.l.b16 %v1121
        %v1417 = vunpack.c.l.b16 %v1122
        %v1418 = vunpack.c.l.b16 %v1123
        %v1419 = vunpack.c.l.b16 %v1124
        %v1420 = vunpack.c.l.b16 %v1125
        %v1421 = vunpack.c.l.b16 %v1126
        %v1422 = vunpack.c.l.b16 %v1127
        %v1423 = vunpack.c.l.b16 %v1128
        %v1424 = vunpack.c.l.b16 %v1129
        %v1425 = vunpack.c.l.b16 %v1130
        %v1426 = vunpack.c.l.b16 %v1131
        %v1427 = vunpack.c.l.b16 %v1132
        %v1428 = vunpack.c.l.b16 %v1133
        %v1429 = vunpack.c.l.b16 %v1134
        %v1430 = vunpack.c.l.b16 %v1135
        %v1431 = vunpack.c.l.b16 %v1136
        %v1432 = vunpack.c.l.b16 %v1137
        %v1433 = vunpack.c.l.b16 %v1138
        %v1434 = vunpack.c.l.b16 %v1139
        %v1435 = vunpack.c.l.b16 %v1140
        %v1436 = vunpack.c.l.b16 %v1141
        %v1437 = vunpack.c.l.b16 %v1142
        %v1438 = vunpack.c.l.b16 %v1143
        %v1439 = vunpack.c.l.b16 %v1144
        %v1440 = vunpack.c.l.b16 %v1145
        %v1441 = vunpack.c.l.b16 %v1146
        %v1442 = vunpack.c.l.b16 %v1147
        %v1443 = vunpack.c.l.b16 %v1148
        %v1444 = vunpack.c.l.b16 %v1149
        %v1445 = vunpack.c.l.b16 %v1150
        %v1446 = vunpack.c.l.b16 %v1151
        %v1447 = vunpack.c.l.b16 %v1152
        %v1448 = vunpack.c.l.b16 %v1153
        %v1449 = vunpack.c.l.b16 %v1154
        %v1450 = vunpack.c.l.b16 %v1155
        %v1451 = vunpack.c.l.b16 %v1156
        %v1452 = vunpack.c.l.b16 %v1157
        %v1453 = vunpack.c.l.b16 %v1158
        %v1454 = vunpack.c.l.b16 %v1159
        %v1455 = vunpack.c.l.b16 %v1160
        %v1456 = vunpack.c.l.b16 %v1161
        %v1457 = vunpack.c.l.b16 %v1162
        %v1458 = vunpack.c.l.b16 %v1163
        %v1459 = vunpack.c.l.b16 %v1164
        %v1460 = vunpack.c.l.b16 %v1165
        %v1461 = vunpack.c.l.b16 %v1166
        %v1462 = vunpack.c.l.b16 %v1167
        %v1463 = vunpack.c.l.b16 %v1168
        %v1464 = vunpack.c.l.b16 %v1169
        %v1465 = vunpack.c.l.b16 %v1170
        %v1466 = vunpack.c.l.b16 %v1171
        %v1467 = vunpack.c.l.b16 %v1172
        %v1468 = vunpack.c.l.b16 %v1173
        %v1469 = vunpack.c.l.b16 %v1174
        %v1470 = vunpack.c.l.b16 %v1175
        %v1471 = vunpack.c.l.b16 %v1176
        %v1472 = vunpack.c.l.b16 %v1177
        %v1473 = vunpack.c.l.b16 %v1178
        %v1474 = vunpack.c.l.b16 %v1179
        %v1475 = vunpack.c.l.b16 %v1180
        %v1476 = vunpack.c.l.b16 %v1181
        %v1477 = vunpack.c.l.b16 %v1182
        %v1478 = vunpack.c.l.b16 %v1183
        %v1479 = vunpack.c.l.b16 %v1184
        %v1480 = vunpack.c.l.b16 %v1185
        %v1481 = vunpack.c.l.b16 %v1186
        %v1482 = vunpack.c.l.b16 %v1187
        %v1483 = vunpack.c.l.b16 %v1188
        %v1484 = vunpack.c.l.b16 %v1189
        %v1485 = vunpack.c.l.b16 %v1190
        %v1486 = vunpack.c.l.b16 %v1191
        %v1487 = vunpack.c.l.b16 %v1192
        %v1488 = vpack.c.b16 %v1345, %v1344
        %v1489 = vpack.c.b16 %v1347, %v1346
        %v1490 = vpack.c.b16 %v1349, %v1348
        %v1491 = vpack.c.b16 %v1351, %v1350
        %v1492 = vpack.c.b16 %v1353, %v1352
        %v1493 = vpack.c.b16 %v1355, %v1354
        %v1494 = vpack.c.b16 %v1357, %v1356
        %v1495 = vpack.c.b16 %v1359, %v1358
        %v1496 = vpack.c.b16 %v1361, %v1360
        %v1497 = vpack.c.b16 %v1363, %v1362
        %v1498 = vpack.c.b16 %v1365, %v1364
        %v1499 = vpack.c.b16 %v1367, %v1366
        %v1500 = vpack.c.b16 %v1369, %v1368
        %v1501 = vpack.c.b16 %v1371, %v1370
        %v1502 = vpack.c.b16 %v1373, %v1372
        %v1503 = vpack.c.b16 %v1375, %v1374
        %v1504 = vpack.c.b16 %v1377, %v1376
        %v1505 = vpack.c.b16 %v1379, %v1378
        %v1506 = vpack.c.b16 %v1381, %v1380
        %v1507 = vpack.c.b16 %v1383, %v1382
        %v1508 = vpack.c.b16 %v1385, %v1384
        %v1509 = vpack.c.b16 %v1387, %v1386
        %v1510 = vpack.c.b16 %v1389, %v1388
        %v1511 = vpack.c.b16 %v1391, %v1390
        %v1512 = vpack.c.b16 %v1393, %v1392
        %v1513 = vpack.c.b16 %v1395, %v1394
        %v1514 = vpack.c.b16 %v1397, %v1396
        %v1515 = vpack.c.b16 %v1399, %v1398
        %v1516 = vpack.c.b16 %v1401, %v1400
        %v1517 = vpack.c.b16 %v1403, %v1402
        %v1518 = vpack.c.b16 %v1405, %v1404
        %v1519 = vpack.c.b16 %v1407, %v1406
        %v1520 = vpack.c.b16 %v1409, %v1408
        %v1521 = vpack.c.b16 %v1411, %v1410
        %v1522 = vpack.c.b16 %v1413, %v1412
        %v1523 = vpack.c.b16 %v1415, %v1414
        %v1524 = vpack.c.b16 %v1417, %v1416
        %v1525 = vpack.c.b16 %v1419, %v1418
        %v1526 = vpack.c.b16 %v1421, %v1420
        %v1527 = vpack.c.b16 %v1423, %v1422
        %v1528 = vpack.c.b16 %v1425, %v1424
        %v1529 = vpack.c.b16 %v1427, %v1426
        %v1530 = vpack.c.b16 %v1429, %v1428
        %v1531 = vpack.c.b16 %v1431, %v1430
        %v1532 = vpack.c.b16 %v1433, %v1432
        %v1533 = vpack.c.b16 %v1435, %v1434
        %v1534 = vpack.c.b16 %v1437, %v1436
        %v1535 = vpack.c.b16 %v1439, %v1438
        %v1536 = vpack.c.b16 %v1441, %v1440
        %v1537 = vpack.c.b16 %v1443, %v1442
        %v1538 = vpack.c.b16 %v1445, %v1444
        %v1539 = vpack.c.b16 %v1447, %v1446
        %v1540 = vpack.c.b16 %v1449, %v1448
        %v1541 = vpack.c.b16 %v1451, %v1450
        %v1542 = vpack.c.b16 %v1453, %v1452
        %v1543 = vpack.c.b16 %v1455, %v1454
        %v1544 = vpack.c.b16 %v1457, %v1456
        %v1545 = vpack.c.b16 %v1459, %v1458
        %v1546 = vpack.c.b16 %v1461, %v1460
        %v1547 = vpack.c.b16 %v1463, %v1462
        %v1548 = vpack.c.b16 %v1465, %v1464
        %v1549 = vpack.c.b16 %v1467, %v1466
        %v1550 = vpack.c.b16 %v1469, %v1468
        %v1551 = vpack.c.b16 %v1471, %v1470
        %v1552 = vpack.c.b16 %v1473, %v1472
        %v1553 = vpack.c.b16 %v1475, %v1474
        %v1554 = vpack.c.b16 %v1477, %v1476
        %v1555 = vpack.c.b16 %v1479, %v1478
        %v1556 = vpack.c.b16 %v1481, %v1480
        %v1557 = vpack.c.b16 %v1483, %v1482
        %v1558 = vpack.c.b16 %v1485, %v1484
        %v1559 = vpack.c.b16 %v1487, %v1486
        %1632 = vmatprep.subr.bf16.mxu0 0
        %1633 = vmatpush1.bf16.msra.mxu0 %v1488
        %1634 = vmatprep.subr.bf16.mxu0 0
        %1635 = vmatpush1.bf16.msra.mxu0 %v1489
        %1636 = vmatprep.subr.bf16.mxu0 0
        %1637 = vmatpush1.bf16.msra.mxu0 %v1490
        %1638 = vmatprep.subr.bf16.mxu0 0
        %1639 = vmatpush1.bf16.msra.mxu0 %v1491
        %1640 = vmatprep.subr.bf16.mxu0 0
        %1641 = vmatpush1.bf16.msra.mxu0 %v1492
        %1642 = vmatprep.subr.bf16.mxu0 0
        %1643 = vmatpush1.bf16.msra.mxu0 %v1493
        %1644 = vmatprep.subr.bf16.mxu0 0
        %1645 = vmatpush1.bf16.msra.mxu0 %v1494
        %1646 = vmatprep.subr.bf16.mxu0 0
        %1647 = vmatpush1.bf16.msra.mxu0 %v1495
        %1648 = vmatprep.subr.bf16.mxu0 0
        %1649 = vmatpush1.bf16.msra.mxu0 %v1496
        %1650 = vmatprep.subr.bf16.mxu0 0
        %1651 = vmatpush1.bf16.msra.mxu0 %v1497
        %1652 = vmatprep.subr.bf16.mxu0 0
        %1653 = vmatpush1.bf16.msra.mxu0 %v1498
        %1654 = vmatprep.subr.bf16.mxu0 0
        %1655 = vmatpush1.bf16.msra.mxu0 %v1499
        %1656 = vmatprep.subr.bf16.mxu0 0
        %1657 = vmatpush1.bf16.msra.mxu0 %v1500
        %1658 = vmatprep.subr.bf16.mxu0 0
        %1659 = vmatpush1.bf16.msra.mxu0 %v1501
        %1660 = vmatprep.subr.bf16.mxu0 0
        %1661 = vmatpush1.bf16.msra.mxu0 %v1502
        %1662 = vmatprep.subr.bf16.mxu0 0
        %1663 = vmatpush1.bf16.msra.mxu0 %v1503
        %1664 = vmatprep.mubr.bf16.mxu0 %v717
        %1665 = vmatmul.mubr.bf16.gmra.mrb[0].mxu0 %v669
        %v1666 = vpop.f32.mrb[0].mxu0
        %v1667 = vadd.f32 %v1198, %v1666
        %v1668 = vpop.f32.mrb[0].mxu0
        %v1669 = vpop.f32.mrb[0].mxu0
        %v1670 = vadd.f32 %v1198, %v1669
        %v1671 = vpop.f32.mrb[0].mxu0
        %1672 = vmatprep.mubr.bf16.mxu0 %v729
        %1673 = vmatmul.mubr.bf16.gmra.mrb[0].mxu0 %v671
        %v1674 = vpop.f32.mrb[0].mxu0
        %v1675 = vadd.f32 %v1198, %v1674
        %v1676 = vpop.f32.mrb[0].mxu0
        %v1677 = vpop.f32.mrb[0].mxu0
        %v1678 = vadd.f32 %v1198, %v1677
        %v1679 = vpop.f32.mrb[0].mxu0
        %1680 = vmatprep.mubr.bf16.mxu0 %v741
        %1681 = vmatmul.mubr.bf16.gmra.mrb[0].mxu0 %v673
        %v1682 = vpop.f32.mrb[0].mxu0
        %v1683 = vadd.f32 %v1198, %v1682
        %v1684 = vpop.f32.mrb[0].mxu0
        %v1685 = vpop.f32.mrb[0].mxu0
        %v1686 = vadd.f32 %v1198, %v1685
        %v1687 = vpop.f32.mrb[0].mxu0
        %1688 = vmatprep.mubr.bf16.mxu0 %v753
        %1689 = vmatmul.mubr.bf16.gmra.mrb[0].mxu0 %v675
        %v1690 = vpop.f32.mrb[0].mxu0
        %v1691 = vadd.f32 %v1198, %v1690
        %v1692 = vpop.f32.mrb[0].mxu0
        %v1693 = vpop.f32.mrb[0].mxu0
        %v1694 = vadd.f32 %v1198, %v1693
        %v1695 = vpop.f32.mrb[0].mxu0
        %1696 = vmatprep.mubr.bf16.mxu0 %v765
        %1697 = vmatmul.mubr.bf16.gmra.mrb[0].mxu0 %v677
        %v1698 = vpop.f32.mrb[0].mxu0
        %v1699 = vadd.f32 %v1198, %v1698
        %v1700 = vpop.f32.mrb[0].mxu0
        %v1701 = vpop.f32.mrb[0].mxu0
        %v1702 = vadd.f32 %v1198, %v1701
        %v1703 = vpop.f32.mrb[0].mxu0
        %1704 = vmatprep.mubr.bf16.mxu0 %v777
        %1705 = vmatmul.mubr.bf16.gmra.mrb[0].mxu0 %v679
        %v1706 = vpop.f32.mrb[0].mxu0
        %v1707 = vadd.f32 %v1198, %v1706
        %v1708 = vpop.f32.mrb[0].mxu0
        %v1709 = vpop.f32.mrb[0].mxu0
        %v1710 = vadd.f32 %v1198, %v1709
        %v1711 = vpop.f32.mrb[0].mxu0
        %1712 = vmatprep.mubr.bf16.mxu0 %v789
        %1713 = vmatmul.mubr.bf16.gmra.mrb[0].mxu0 %v681
        %v1714 = vpop.f32.mrb[0].mxu0
        %v1715 = vadd.f32 %v1198, %v1714
        %v1716 = vpop.f32.mrb[0].mxu0
        %v1717 = vpop.f32.mrb[0].mxu0
        %v1718 = vadd.f32 %v1198, %v1717
        %v1719 = vpop.f32.mrb[0].mxu0
        %1720 = vmatprep.mubr.bf16.mxu0 %v801
        %1721 = vmatmul.mubr.bf16.gmra.mrb[0].mxu0 %v683
        %v1722 = vpop.f32.mrb[0].mxu0
        %v1723 = vadd.f32 %v1198, %v1722
        %v1724 = vpop.f32.mrb[0].mxu0
        %v1725 = vpop.f32.mrb[0].mxu0
        %v1726 = vadd.f32 %v1198, %v1725
        %v1727 = vpop.f32.mrb[0].mxu0
        %1728 = vmatprep.mubr.bf16.mxu0 %v813
        %1729 = vmatmul.mubr.bf16.gmra.mrb[0].mxu0 %v685
        %v1730 = vpop.f32.mrb[0].mxu0
        %v1731 = vadd.f32 %v1198, %v1730
        %v1732 = vpop.f32.mrb[0].mxu0
        %v1733 = vpop.f32.mrb[0].mxu0
        %v1734 = vadd.f32 %v1198, %v1733
        %v1735 = vpop.f32.mrb[0].mxu0
        %1736 = vmatprep.mubr.bf16.mxu0 %v825
        %1737 = vmatmul.mubr.bf16.gmra.mrb[0].mxu0 %v687
        %v1738 = vpop.f32.mrb[0].mxu0
        %v1739 = vadd.f32 %v1198, %v1738
        %v1740 = vpop.f32.mrb[0].mxu0
        %v1741 = vpop.f32.mrb[0].mxu0
        %v1742 = vadd.f32 %v1198, %v1741
        %v1743 = vpop.f32.mrb[0].mxu0
        %1744 = vmatprep.mubr.bf16.mxu0 %v837
        %1745 = vmatmul.mubr.bf16.gmra.mrb[0].mxu0 %v689
        %v1746 = vpop.f32.mrb[0].mxu0
        %v1747 = vadd.f32 %v1198, %v1746
        %v1748 = vpop.f32.mrb[0].mxu0
        %v1749 = vpop.f32.mrb[0].mxu0
        %v1750 = vadd.f32 %v1198, %v1749
        %v1751 = vpop.f32.mrb[0].mxu0
        %1752 = vmatprep.mubr.bf16.mxu0 %v849
        %1753 = vmatmul.mubr.bf16.gmra.mrb[0].mxu0 %v691
        %v1754 = vpop.f32.mrb[0].mxu0
        %v1755 = vadd.f32 %v1198, %v1754
        %v1756 = vpop.f32.mrb[0].mxu0
        %v1757 = vpop.f32.mrb[0].mxu0
        %v1758 = vadd.f32 %v1198, %v1757
        %v1759 = vpop.f32.mrb[0].mxu0
        %1760 = vmatprep.mubr.bf16.mxu0 %v861
        %1761 = vmatmul.mubr.bf16.gmra.mrb[0].mxu0 %v693
        %v1762 = vpop.f32.mrb[0].mxu0
        %v1763 = vadd.f32 %v1198, %v1762
        %v1764 = vpop.f32.mrb[0].mxu0
        %v1765 = vpop.f32.mrb[0].mxu0
        %v1766 = vadd.f32 %v1198, %v1765
        %v1767 = vpop.f32.mrb[0].mxu0
        %1768 = vmatprep.mubr.bf16.mxu0 %v873
        %1769 = vmatmul.mubr.bf16.gmra.mrb[0].mxu0 %v695
        %v1770 = vpop.f32.mrb[0].mxu0
        %v1771 = vadd.f32 %v1198, %v1770
        %v1772 = vpop.f32.mrb[0].mxu0
        %v1773 = vpop.f32.mrb[0].mxu0
        %v1774 = vadd.f32 %v1198, %v1773
        %v1775 = vpop.f32.mrb[0].mxu0
        %1776 = vmatprep.mubr.bf16.mxu0 %v885
        %1777 = vmatmul.mubr.bf16.gmra.mrb[0].mxu0 %v697
        %v1778 = vpop.f32.mrb[0].mxu0
        %v1779 = vadd.f32 %v1198, %v1778
        %v1780 = vpop.f32.mrb[0].mxu0
        %v1781 = vpop.f32.mrb[0].mxu0
        %v1782 = vadd.f32 %v1198, %v1781
        %v1783 = vpop.f32.mrb[0].mxu0
        %1784 = vmatprep.mubr.bf16.mxu0 %v897
        %1785 = vmatmul.mubr.bf16.gmra.mrb[0].mxu0 %v699
        %v1786 = vpop.f32.mrb[0].mxu0
        %v1787 = vadd.f32 %v1198, %v1786
        %v1788 = vpop.f32.mrb[0].mxu0
        %v1789 = vpop.f32.mrb[0].mxu0
        %v1790 = vadd.f32 %v1198, %v1789
        %v1791 = vpop.f32.mrb[0].mxu0
        %1792 = vdwg.mxu0
        %1793 = vmatprep.subr.bf16.mxu0 0
        %1794 = vmatpush1.bf16.msra.mxu0 %v1504
        %1795 = vmatprep.subr.bf16.mxu0 0
        %1796 = vmatpush1.bf16.msra.mxu0 %v1505
        %1797 = vmatprep.subr.bf16.mxu0 0
        %1798 = vmatpush1.bf16.msra.mxu0 %v1506
        %1799 = vmatprep.subr.bf16.mxu0 0
        %1800 = vmatpush1.bf16.msra.mxu0 %v1507
        %1801 = vmatprep.subr.bf16.mxu0 0
        %1802 = vmatpush1.bf16.msra.mxu0 %v1508
        %1803 = vmatprep.subr.bf16.mxu0 0
        %1804 = vmatpush1.bf16.msra.mxu0 %v1509
        %1805 = vmatprep.subr.bf16.mxu0 0
        %1806 = vmatpush1.bf16.msra.mxu0 %v1510
        %1807 = vmatprep.subr.bf16.mxu0 0
        %1808 = vmatpush1.bf16.msra.mxu0 %v1511
        %1809 = vmatprep.subr.bf16.mxu0 0
        %1810 = vmatpush1.bf16.msra.mxu0 %v1512
        %1811 = vmatprep.subr.bf16.mxu0 0
        %1812 = vmatpush1.bf16.msra.mxu0 %v1513
        %1813 = vmatprep.subr.bf16.mxu0 0
        %1814 = vmatpush1.bf16.msra.mxu0 %v1514
        %1815 = vmatprep.subr.bf16.mxu0 0
        %1816 = vmatpush1.bf16.msra.mxu0 %v1515
        %1817 = vmatprep.subr.bf16.mxu0 0
        %1818 = vmatpush1.bf16.msra.mxu0 %v1516
        %1819 = vmatprep.subr.bf16.mxu0 0
        %1820 = vmatpush1.bf16.msra.mxu0 %v1517
        %1821 = vmatprep.subr.bf16.mxu0 0
        %1822 = vmatpush1.bf16.msra.mxu0 %v1518
        %1823 = vmatprep.subr.bf16.mxu0 0
        %1824 = vmatpush1.bf16.msra.mxu0 %v1519
        %1825 = vmatprep.mubr.bf16.mxu0 %v671
        %1826 = vmatmul.mubr.bf16.gmra.mrb[0].mxu0 %v949
        %v1827 = vpop.f32.mrb[0].mxu0
        %v1828 = vadd.f32 %v1667, %v1827
        %v1829 = vpop.f32.mrb[0].mxu0
        %v1830 = vpop.f32.mrb[0].mxu0
        %v1831 = vadd.f32 %v1670, %v1830
        %v1832 = vpop.f32.mrb[0].mxu0
        %1833 = vmatprep.mubr.bf16.mxu0 %v673
        %1834 = vmatmul.mubr.bf16.gmra.mrb[0].mxu0 %v952
        %v1835 = vpop.f32.mrb[0].mxu0
        %v1836 = vadd.f32 %v1675, %v1835
        %v1837 = vpop.f32.mrb[0].mxu0
        %v1838 = vpop.f32.mrb[0].mxu0
        %v1839 = vadd.f32 %v1678, %v1838
        %v1840 = vpop.f32.mrb[0].mxu0
        %1841 = vmatprep.mubr.bf16.mxu0 %v675
        %1842 = vmatmul.mubr.bf16.gmra.mrb[0].mxu0 %v955
        %v1843 = vpop.f32.mrb[0].mxu0
        %v1844 = vadd.f32 %v1683, %v1843
        %v1845 = vpop.f32.mrb[0].mxu0
        %v1846 = vpop.f32.mrb[0].mxu0
        %v1847 = vadd.f32 %v1686, %v1846
        %v1848 = vpop.f32.mrb[0].mxu0
        %1849 = vmatprep.mubr.bf16.mxu0 %v677
        %1850 = vmatmul.mubr.bf16.gmra.mrb[0].mxu0 %v958
        %v1851 = vpop.f32.mrb[0].mxu0
        %v1852 = vadd.f32 %v1691, %v1851
        %v1853 = vpop.f32.mrb[0].mxu0
        %v1854 = vpop.f32.mrb[0].mxu0
        %v1855 = vadd.f32 %v1694, %v1854
        %v1856 = vpop.f32.mrb[0].mxu0
        %1857 = vmatprep.mubr.bf16.mxu0 %v679
        %1858 = vmatmul.mubr.bf16.gmra.mrb[0].mxu0 %v961
        %v1859 = vpop.f32.mrb[0].mxu0
        %v1860 = vadd.f32 %v1699, %v1859
        %v1861 = vpop.f32.mrb[0].mxu0
        %v1862 = vpop.f32.mrb[0].mxu0
        %v1863 = vadd.f32 %v1702, %v1862
        %v1864 = vpop.f32.mrb[0].mxu0
        %1865 = vmatprep.mubr.bf16.mxu0 %v681
        %1866 = vmatmul.mubr.bf16.gmra.mrb[0].mxu0 %v964
        %v1867 = vpop.f32.mrb[0].mxu0
        %v1868 = vadd.f32 %v1707, %v1867
        %v1869 = vpop.f32.mrb[0].mxu0
        %v1870 = vpop.f32.mrb[0].mxu0
        %v1871 = vadd.f32 %v1710, %v1870
        %v1872 = vpop.f32.mrb[0].mxu0
        %1873 = vmatprep.mubr.bf16.mxu0 %v683
        %1874 = vmatmul.mubr.bf16.gmra.mrb[0].mxu0 %v967
        %v1875 = vpop.f32.mrb[0].mxu0
        %v1876 = vadd.f32 %v1715, %v1875
        %v1877 = vpop.f32.mrb[0].mxu0
        %v1878 = vpop.f32.mrb[0].mxu0
        %v1879 = vadd.f32 %v1718, %v1878
        %v1880 = vpop.f32.mrb[0].mxu0
        %1881 = vmatprep.mubr.bf16.mxu0 %v685
        %1882 = vmatmul.mubr.bf16.gmra.mrb[0].mxu0 %v970
        %v1883 = vpop.f32.mrb[0].mxu0
        %v1884 = vadd.f32 %v1723, %v1883
        %v1885 = vpop.f32.mrb[0].mxu0
        %v1886 = vpop.f32.mrb[0].mxu0
        %v1887 = vadd.f32 %v1726, %v1886
        %v1888 = vpop.f32.mrb[0].mxu0
        %1889 = vmatprep.mubr.bf16.mxu0 %v687
        %1890 = vmatmul.mubr.bf16.gmra.mrb[0].mxu0 %v973
        %v1891 = vpop.f32.mrb[0].mxu0
        %v1892 = vadd.f32 %v1731, %v1891
        %v1893 = vpop.f32.mrb[0].mxu0
        %v1894 = vpop.f32.mrb[0].mxu0
        %v1895 = vadd.f32 %v1734, %v1894
        %v1896 = vpop.f32.mrb[0].mxu0
        %1897 = vmatprep.mubr.bf16.mxu0 %v689
        %1898 = vmatmul.mubr.bf16.gmra.mrb[0].mxu0 %v976
        %v1899 = vpop.f32.mrb[0].mxu0
        %v1900 = vadd.f32 %v1739, %v1899
        %v1901 = vpop.f32.mrb[0].mxu0
        %v1902 = vpop.f32.mrb[0].mxu0
        %v1903 = vadd.f32 %v1742, %v1902
        %v1904 = vpop.f32.mrb[0].mxu0
        %1905 = vmatprep.mubr.bf16.mxu0 %v691
        %1906 = vmatmul.mubr.bf16.gmra.mrb[0].mxu0 %v979
        %v1907 = vpop.f32.mrb[0].mxu0
        %v1908 = vadd.f32 %v1747, %v1907
        %v1909 = vpop.f32.mrb[0].mxu0
        %v1910 = vpop.f32.mrb[0].mxu0
        %v1911 = vadd.f32 %v1750, %v1910
        %v1912 = vpop.f32.mrb[0].mxu0
        %1913 = vmatprep.mubr.bf16.mxu0 %v693
        %1914 = vmatmul.mubr.bf16.gmra.mrb[0].mxu0 %v982
        %v1915 = vpop.f32.mrb[0].mxu0
        %v1916 = vadd.f32 %v1755, %v1915
        %v1917 = vpop.f32.mrb[0].mxu0
        %v1918 = vpop.f32.mrb[0].mxu0
        %v1919 = vadd.f32 %v1758, %v1918
        %v1920 = vpop.f32.mrb[0].mxu0
        %1921 = vmatprep.mubr.bf16.mxu0 %v695
        %1922 = vmatmul.mubr.bf16.gmra.mrb[0].mxu0 %v985
        %v1923 = vpop.f32.mrb[0].mxu0
        %v1924 = vadd.f32 %v1763, %v1923
        %v1925 = vpop.f32.mrb[0].mxu0
        %v1926 = vpop.f32.mrb[0].mxu0
        %v1927 = vadd.f32 %v1766, %v1926
        %v1928 = vpop.f32.mrb[0].mxu0
        %1929 = vmatprep.mubr.bf16.mxu0 %v697
        %1930 = vmatmul.mubr.bf16.gmra.mrb[0].mxu0 %v988
        %v1931 = vpop.f32.mrb[0].mxu0
        %v1932 = vadd.f32 %v1771, %v1931
        %v1933 = vpop.f32.mrb[0].mxu0
        %v1934 = vpop.f32.mrb[0].mxu0
        %v1935 = vadd.f32 %v1774, %v1934
        %v1936 = vpop.f32.mrb[0].mxu0
        %1937 = vmatprep.mubr.bf16.mxu0 %v699
        %1938 = vmatmul.mubr.bf16.gmra.mrb[0].mxu0 %v991
        %v1939 = vpop.f32.mrb[0].mxu0
        %v1940 = vadd.f32 %v1779, %v1939
        %v1941 = vpop.f32.mrb[0].mxu0
        %v1942 = vpop.f32.mrb[0].mxu0
        %v1943 = vadd.f32 %v1782, %v1942
        %v1944 = vpop.f32.mrb[0].mxu0
        %1945 = vmatprep.mubr.bf16.mxu0 %v701
        %1946 = vmatmul.mubr.bf16.gmra.mrb[0].mxu0 %v994
        %v1947 = vpop.f32.mrb[0].mxu0
        %v1948 = vadd.f32 %v1787, %v1947
        %v1949 = vpop.f32.mrb[0].mxu0
        %v1950 = vpop.f32.mrb[0].mxu0
        %v1951 = vadd.f32 %v1790, %v1950
        %v1952 = vpop.f32.mrb[0].mxu0
        %1953 = vdwg.mxu0
        %1954 = vmatprep.subr.bf16.mxu0 0
        %1955 = vmatpush1.bf16.msra.mxu0 %v1520
        %1956 = vmatprep.subr.bf16.mxu0 0
        %1957 = vmatpush1.bf16.msra.mxu0 %v1521
        %1958 = vmatprep.subr.bf16.mxu0 0
        %1959 = vmatpush1.bf16.msra.mxu0 %v1522
        %1960 = vmatprep.subr.bf16.mxu0 0
        %1961 = vmatpush1.bf16.msra.mxu0 %v1523
        %1962 = vmatprep.subr.bf16.mxu0 0
        %1963 = vmatpush1.bf16.msra.mxu0 %v1524
        %1964 = vmatprep.subr.bf16.mxu0 0
        %1965 = vmatpush1.bf16.msra.mxu0 %v1525
        %1966 = vmatprep.subr.bf16.mxu0 0
        %1967 = vmatpush1.bf16.msra.mxu0 %v1526
        %1968 = vmatprep.subr.bf16.mxu0 0
        %1969 = vmatpush1.bf16.msra.mxu0 %v1527
        %1970 = vmatprep.subr.bf16.mxu0 0
        %1971 = vmatpush1.bf16.msra.mxu0 %v1528
        %1972 = vmatprep.subr.bf16.mxu0 0
        %1973 = vmatpush1.bf16.msra.mxu0 %v1529
        %1974 = vmatprep.subr.bf16.mxu0 0
        %1975 = vmatpush1.bf16.msra.mxu0 %v1530
        %1976 = vmatprep.subr.bf16.mxu0 0
        %1977 = vmatpush1.bf16.msra.mxu0 %v1531
        %1978 = vmatprep.subr.bf16.mxu0 0
        %1979 = vmatpush1.bf16.msra.mxu0 %v1532
        %1980 = vmatprep.subr.bf16.mxu0 0
        %1981 = vmatpush1.bf16.msra.mxu0 %v1533
        %1982 = vmatprep.subr.bf16.mxu0 0
        %1983 = vmatpush1.bf16.msra.mxu0 %v1534
        %1984 = vmatprep.subr.bf16.mxu0 0
        %1985 = vmatpush1.bf16.msra.mxu0 %v1535
        %1986 = vmatprep.mubr.bf16.mxu0 %v952
        %1987 = vmatmul.mubr.bf16.gmra.mrb[0].mxu0 %v729
        %v1988 = vpop.f32.mrb[0].mxu0
        %v1989 = vadd.f32 %v1828, %v1988
        %v1990 = vpop.f32.mrb[0].mxu0
        %v1991 = vpop.f32.mrb[0].mxu0
        %v1992 = vadd.f32 %v1831, %v1991
        %v1993 = vpop.f32.mrb[0].mxu0
        %1994 = vmatprep.mubr.bf16.mxu0 %v955
        %1995 = vmatmul.mubr.bf16.gmra.mrb[0].mxu0 %v741
        %v1996 = vpop.f32.mrb[0].mxu0
        %v1997 = vadd.f32 %v1836, %v1996
        %v1998 = vpop.f32.mrb[0].mxu0
        %v1999 = vpop.f32.mrb[0].mxu0
        %v2000 = vadd.f32 %v1839, %v1999
        %v2001 = vpop.f32.mrb[0].mxu0
        %2002 = vmatprep.mubr.bf16.mxu0 %v958
        %2003 = vmatmul.mubr.bf16.gmra.mrb[0].mxu0 %v753
        %v2004 = vpop.f32.mrb[0].mxu0
        %v2005 = vadd.f32 %v1844, %v2004
        %v2006 = vpop.f32.mrb[0].mxu0
        %v2007 = vpop.f32.mrb[0].mxu0
        %v2008 = vadd.f32 %v1847, %v2007
        %v2009 = vpop.f32.mrb[0].mxu0
        %2010 = vmatprep.mubr.bf16.mxu0 %v961
        %2011 = vmatmul.mubr.bf16.gmra.mrb[0].mxu0 %v765
        %v2012 = vpop.f32.mrb[0].mxu0
        %v2013 = vadd.f32 %v1852, %v2012
        %v2014 = vpop.f32.mrb[0].mxu0
        %v2015 = vpop.f32.mrb[0].mxu0
        %v2016 = vadd.f32 %v1855, %v2015
        %v2017 = vpop.f32.mrb[0].mxu0
        %2018 = vmatprep.mubr.bf16.mxu0 %v964
        %2019 = vmatmul.mubr.bf16.gmra.mrb[0].mxu0 %v777
        %v2020 = vpop.f32.mrb[0].mxu0
        %v2021 = vadd.f32 %v1860, %v2020
        %v2022 = vpop.f32.mrb[0].mxu0
        %v2023 = vpop.f32.mrb[0].mxu0
        %v2024 = vadd.f32 %v1863, %v2023
        %v2025 = vpop.f32.mrb[0].mxu0
        %2026 = vmatprep.mubr.bf16.mxu0 %v967
        %2027 = vmatmul.mubr.bf16.gmra.mrb[0].mxu0 %v789
        %v2028 = vpop.f32.mrb[0].mxu0
        %v2029 = vadd.f32 %v1868, %v2028
        %v2030 = vpop.f32.mrb[0].mxu0
        %v2031 = vpop.f32.mrb[0].mxu0
        %v2032 = vadd.f32 %v1871, %v2031
        %v2033 = vpop.f32.mrb[0].mxu0
        %2034 = vmatprep.mubr.bf16.mxu0 %v970
        %2035 = vmatmul.mubr.bf16.gmra.mrb[0].mxu0 %v801
        %v2036 = vpop.f32.mrb[0].mxu0
        %v2037 = vadd.f32 %v1876, %v2036
        %v2038 = vpop.f32.mrb[0].mxu0
        %v2039 = vpop.f32.mrb[0].mxu0
        %v2040 = vadd.f32 %v1879, %v2039
        %v2041 = vpop.f32.mrb[0].mxu0
        %2042 = vmatprep.mubr.bf16.mxu0 %v973
        %2043 = vmatmul.mubr.bf16.gmra.mrb[0].mxu0 %v813
        %v2044 = vpop.f32.mrb[0].mxu0
        %v2045 = vadd.f32 %v1884, %v2044
        %v2046 = vpop.f32.mrb[0].mxu0
        %v2047 = vpop.f32.mrb[0].mxu0
        %v2048 = vadd.f32 %v1887, %v2047
        %v2049 = vpop.f32.mrb[0].mxu0
        %2050 = vmatprep.mubr.bf16.mxu0 %v976
        %2051 = vmatmul.mubr.bf16.gmra.mrb[0].mxu0 %v825
        %v2052 = vpop.f32.mrb[0].mxu0
        %v2053 = vadd.f32 %v1892, %v2052
        %v2054 = vpop.f32.mrb[0].mxu0
        %v2055 = vpop.f32.mrb[0].mxu0
        %v2056 = vadd.f32 %v1895, %v2055
        %v2057 = vpop.f32.mrb[0].mxu0
        %2058 = vmatprep.mubr.bf16.mxu0 %v979
        %2059 = vmatmul.mubr.bf16.gmra.mrb[0].mxu0 %v837
        %v2060 = vpop.f32.mrb[0].mxu0
        %v2061 = vadd.f32 %v1900, %v2060
        %v2062 = vpop.f32.mrb[0].mxu0
        %v2063 = vpop.f32.mrb[0].mxu0
        %v2064 = vadd.f32 %v1903, %v2063
        %v2065 = vpop.f32.mrb[0].mxu0
        %2066 = vmatprep.mubr.bf16.mxu0 %v982
        %2067 = vmatmul.mubr.bf16.gmra.mrb[0].mxu0 %v849
        %v2068 = vpop.f32.mrb[0].mxu0
        %v2069 = vadd.f32 %v1908, %v2068
        %v2070 = vpop.f32.mrb[0].mxu0
        %v2071 = vpop.f32.mrb[0].mxu0
        %v2072 = vadd.f32 %v1911, %v2071
        %v2073 = vpop.f32.mrb[0].mxu0
        %2074 = vmatprep.mubr.bf16.mxu0 %v985
        %2075 = vmatmul.mubr.bf16.gmra.mrb[0].mxu0 %v861
        %v2076 = vpop.f32.mrb[0].mxu0
        %v2077 = vadd.f32 %v1916, %v2076
        %v2078 = vpop.f32.mrb[0].mxu0
        %v2079 = vpop.f32.mrb[0].mxu0
        %v2080 = vadd.f32 %v1919, %v2079
        %v2081 = vpop.f32.mrb[0].mxu0
        %2082 = vmatprep.mubr.bf16.mxu0 %v988
        %2083 = vmatmul.mubr.bf16.gmra.mrb[0].mxu0 %v873
        %v2084 = vpop.f32.mrb[0].mxu0
        %v2085 = vadd.f32 %v1924, %v2084
        %v2086 = vpop.f32.mrb[0].mxu0
        %v2087 = vpop.f32.mrb[0].mxu0
        %v2088 = vadd.f32 %v1927, %v2087
        %v2089 = vpop.f32.mrb[0].mxu0
        %2090 = vmatprep.mubr.bf16.mxu0 %v991
        %2091 = vmatmul.mubr.bf16.gmra.mrb[0].mxu0 %v885
        %v2092 = vpop.f32.mrb[0].mxu0
        %v2093 = vadd.f32 %v1932, %v2092
        %v2094 = vpop.f32.mrb[0].mxu0
        %v2095 = vpop.f32.mrb[0].mxu0
        %v2096 = vadd.f32 %v1935, %v2095
        %v2097 = vpop.f32.mrb[0].mxu0
        %2098 = vmatprep.mubr.bf16.mxu0 %v994
        %2099 = vmatmul.mubr.bf16.gmra.mrb[0].mxu0 %v897
        %v2100 = vpop.f32.mrb[0].mxu0
        %v2101 = vadd.f32 %v1940, %v2100
        %v2102 = vpop.f32.mrb[0].mxu0
        %v2103 = vpop.f32.mrb[0].mxu0
        %v2104 = vadd.f32 %v1943, %v2103
        %v2105 = vpop.f32.mrb[0].mxu0
        %2106 = vmatprep.mubr.bf16.mxu0 %v1028
        %2107 = vmatmul.mubr.bf16.gmra.mrb[0].mxu0 %v1022
        %v2108 = vpop.f32.mrb[0].mxu0
        %v2109 = vadd.f32 %v1948, %v2108
        %v2110 = vpop.f32.mrb[0].mxu0
        %v2111 = vpop.f32.mrb[0].mxu0
        %v2112 = vadd.f32 %v1951, %v2111
        %v2113 = vpop.f32.mrb[0].mxu0
        %2114 = vdwg.mxu0
        %2115 = vmatprep.subr.bf16.mxu0 0
        %2116 = vmatpush1.bf16.msra.mxu0 %v1536
        %2117 = vmatprep.subr.bf16.mxu0 0
        %2118 = vmatpush1.bf16.msra.mxu0 %v1537
        %2119 = vmatprep.subr.bf16.mxu0 0
        %2120 = vmatpush1.bf16.msra.mxu0 %v1538
        %2121 = vmatprep.subr.bf16.mxu0 0
        %2122 = vmatpush1.bf16.msra.mxu0 %v1539
        %2123 = vmatprep.subr.bf16.mxu0 0
        %2124 = vmatpush1.bf16.msra.mxu0 %v1540
        %2125 = vmatprep.subr.bf16.mxu0 0
        %2126 = vmatpush1.bf16.msra.mxu0 %v1541
        %2127 = vmatprep.subr.bf16.mxu0 0
        %2128 = vmatpush1.bf16.msra.mxu0 %v1542
        %2129 = vmatprep.subr.bf16.mxu0 0
        %2130 = vmatpush1.bf16.msra.mxu0 %v1543
        %2131 = vmatprep.subr.bf16.mxu0 0
        %2132 = vmatpush1.bf16.msra.mxu0 %v1544
        %2133 = vmatprep.subr.bf16.mxu0 0
        %2134 = vmatpush1.bf16.msra.mxu0 %v1545
        %2135 = vmatprep.subr.bf16.mxu0 0
        %2136 = vmatpush1.bf16.msra.mxu0 %v1546
        %2137 = vmatprep.subr.bf16.mxu0 0
        %2138 = vmatpush1.bf16.msra.mxu0 %v1547
        %2139 = vmatprep.subr.bf16.mxu0 0
        %2140 = vmatpush1.bf16.msra.mxu0 %v1548
        %2141 = vmatprep.subr.bf16.mxu0 0
        %2142 = vmatpush1.bf16.msra.mxu0 %v1549
        %2143 = vmatprep.subr.bf16.mxu0 0
        %2144 = vmatpush1.bf16.msra.mxu0 %v1550
        %2145 = vmatprep.subr.bf16.mxu0 0
        %2146 = vmatpush1.bf16.msra.mxu0 %v1551
        %2147 = vmatprep.mubr.bf16.mxu0 %v741
        %2148 = vmatmul.mubr.bf16.gmra.mrb[0].mxu0 %v673
        %v2149 = vpop.f32.mrb[0].mxu0
        %v2150 = vadd.f32 %v1989, %v2149
        %v2151 = vpop.f32.mrb[0].mxu0
        %v2152 = vpop.f32.mrb[0].mxu0
        %v2153 = vadd.f32 %v1992, %v2152
        %v2154 = vpop.f32.mrb[0].mxu0
        %2155 = vmatprep.mubr.bf16.mxu0 %v753
        %2156 = vmatmul.mubr.bf16.gmra.mrb[0].mxu0 %v675
        %v2157 = vpop.f32.mrb[0].mxu0
        %v2158 = vadd.f32 %v1997, %v2157
        %v2159 = vpop.f32.mrb[0].mxu0
        %v2160 = vpop.f32.mrb[0].mxu0
        %v2161 = vadd.f32 %v2000, %v2160
        %v2162 = vpop.f32.mrb[0].mxu0
        %2163 = vmatprep.mubr.bf16.mxu0 %v765
        %2164 = vmatmul.mubr.bf16.gmra.mrb[0].mxu0 %v677
        %v2165 = vpop.f32.mrb[0].mxu0
        %v2166 = vadd.f32 %v2005, %v2165
        %v2167 = vpop.f32.mrb[0].mxu0
        %v2168 = vpop.f32.mrb[0].mxu0
        %v2169 = vadd.f32 %v2008, %v2168
        %v2170 = vpop.f32.mrb[0].mxu0
        %2171 = vmatprep.mubr.bf16.mxu0 %v777
        %2172 = vmatmul.mubr.bf16.gmra.mrb[0].mxu0 %v679
        %v2173 = vpop.f32.mrb[0].mxu0
        %v2174 = vadd.f32 %v2013, %v2173
        %v2175 = vpop.f32.mrb[0].mxu0
        %v2176 = vpop.f32.mrb[0].mxu0
        %v2177 = vadd.f32 %v2016, %v2176
        %v2178 = vpop.f32.mrb[0].mxu0
        %2179 = vmatprep.mubr.bf16.mxu0 %v789
        %2180 = vmatmul.mubr.bf16.gmra.mrb[0].mxu0 %v681
        %v2181 = vpop.f32.mrb[0].mxu0
        %v2182 = vadd.f32 %v2021, %v2181
        %v2183 = vpop.f32.mrb[0].mxu0
        %v2184 = vpop.f32.mrb[0].mxu0
        %v2185 = vadd.f32 %v2024, %v2184
        %v2186 = vpop.f32.mrb[0].mxu0
        %2187 = vmatprep.mubr.bf16.mxu0 %v801
        %2188 = vmatmul.mubr.bf16.gmra.mrb[0].mxu0 %v683
        %v2189 = vpop.f32.mrb[0].mxu0
        %v2190 = vadd.f32 %v2029, %v2189
        %v2191 = vpop.f32.mrb[0].mxu0
        %v2192 = vpop.f32.mrb[0].mxu0
        %v2193 = vadd.f32 %v2032, %v2192
        %v2194 = vpop.f32.mrb[0].mxu0
        %2195 = vmatprep.mubr.bf16.mxu0 %v813
        %2196 = vmatmul.mubr.bf16.gmra.mrb[0].mxu0 %v685
        %v2197 = vpop.f32.mrb[0].mxu0
        %v2198 = vadd.f32 %v2037, %v2197
        %v2199 = vpop.f32.mrb[0].mxu0
        %v2200 = vpop.f32.mrb[0].mxu0
        %v2201 = vadd.f32 %v2040, %v2200
        %v2202 = vpop.f32.mrb[0].mxu0
        %2203 = vmatprep.mubr.bf16.mxu0 %v825
        %2204 = vmatmul.mubr.bf16.gmra.mrb[0].mxu0 %v687
        %v2205 = vpop.f32.mrb[0].mxu0
        %v2206 = vadd.f32 %v2045, %v2205
        %v2207 = vpop.f32.mrb[0].mxu0
        %v2208 = vpop.f32.mrb[0].mxu0
        %v2209 = vadd.f32 %v2048, %v2208
        %v2210 = vpop.f32.mrb[0].mxu0
        %2211 = vmatprep.mubr.bf16.mxu0 %v837
        %2212 = vmatmul.mubr.bf16.gmra.mrb[0].mxu0 %v689
        %v2213 = vpop.f32.mrb[0].mxu0
        %v2214 = vadd.f32 %v2053, %v2213
        %v2215 = vpop.f32.mrb[0].mxu0
        %v2216 = vpop.f32.mrb[0].mxu0
        %v2217 = vadd.f32 %v2056, %v2216
        %v2218 = vpop.f32.mrb[0].mxu0
        %2219 = vmatprep.mubr.bf16.mxu0 %v849
        %2220 = vmatmul.mubr.bf16.gmra.mrb[0].mxu0 %v691
        %v2221 = vpop.f32.mrb[0].mxu0
        %v2222 = vadd.f32 %v2061, %v2221
        %v2223 = vpop.f32.mrb[0].mxu0
        %v2224 = vpop.f32.mrb[0].mxu0
        %v2225 = vadd.f32 %v2064, %v2224
        %v2226 = vpop.f32.mrb[0].mxu0
        %2227 = vmatprep.mubr.bf16.mxu0 %v861
        %2228 = vmatmul.mubr.bf16.gmra.mrb[0].mxu0 %v693
        %v2229 = vpop.f32.mrb[0].mxu0
        %v2230 = vadd.f32 %v2069, %v2229
        %v2231 = vpop.f32.mrb[0].mxu0
        %v2232 = vpop.f32.mrb[0].mxu0
        %v2233 = vadd.f32 %v2072, %v2232
        %v2234 = vpop.f32.mrb[0].mxu0
        %2235 = vmatprep.mubr.bf16.mxu0 %v873
        %2236 = vmatmul.mubr.bf16.gmra.mrb[0].mxu0 %v695
        %v2237 = vpop.f32.mrb[0].mxu0
        %v2238 = vadd.f32 %v2077, %v2237
        %v2239 = vpop.f32.mrb[0].mxu0
        %v2240 = vpop.f32.mrb[0].mxu0
        %v2241 = vadd.f32 %v2080, %v2240
        %v2242 = vpop.f32.mrb[0].mxu0
        %2243 = vmatprep.mubr.bf16.mxu0 %v885
        %2244 = vmatmul.mubr.bf16.gmra.mrb[0].mxu0 %v697
        %v2245 = vpop.f32.mrb[0].mxu0
        %v2246 = vadd.f32 %v2085, %v2245
        %v2247 = vpop.f32.mrb[0].mxu0
        %v2248 = vpop.f32.mrb[0].mxu0
        %v2249 = vadd.f32 %v2088, %v2248
        %v2250 = vpop.f32.mrb[0].mxu0
        %2251 = vmatprep.mubr.bf16.mxu0 %v897
        %2252 = vmatmul.mubr.bf16.gmra.mrb[0].mxu0 %v699
        %v2253 = vpop.f32.mrb[0].mxu0
        %v2254 = vadd.f32 %v2093, %v2253
        %v2255 = vpop.f32.mrb[0].mxu0
        %v2256 = vpop.f32.mrb[0].mxu0
        %v2257 = vadd.f32 %v2096, %v2256
        %v2258 = vpop.f32.mrb[0].mxu0
        %2259 = vmatprep.mubr.bf16.mxu0 %v1022
        %2260 = vmatmul.mubr.bf16.gmra.mrb[0].mxu0 %v701
        %v2261 = vpop.f32.mrb[0].mxu0
        %v2262 = vadd.f32 %v2101, %v2261
        %v2263 = vpop.f32.mrb[0].mxu0
        %v2264 = vpop.f32.mrb[0].mxu0
        %v2265 = vadd.f32 %v2104, %v2264
        %v2266 = vpop.f32.mrb[0].mxu0
        %2267 = vmatprep.mubr.bf16.mxu0 %v1041
        %2268 = vmatmul.mubr.bf16.gmra.mrb[0].mxu0 %v703
        %v2269 = vpop.f32.mrb[0].mxu0
        %v2270 = vadd.f32 %v2109, %v2269
        %v2271 = vpop.f32.mrb[0].mxu0
        %v2272 = vpop.f32.mrb[0].mxu0
        %v2273 = vadd.f32 %v2112, %v2272
        %v2274 = vpop.f32.mrb[0].mxu0
        %2275 = vdwg.mxu0
        %2276 = vmatprep.subr.bf16.mxu0 0
        %2277 = vmatpush1.bf16.msra.mxu0 %v1552
        %2278 = vmatprep.subr.bf16.mxu0 0
        %2279 = vmatpush1.bf16.msra.mxu0 %v1553
        %2280 = vmatprep.subr.bf16.mxu0 0
        %2281 = vmatpush1.bf16.msra.mxu0 %v1554
        %2282 = vmatprep.subr.bf16.mxu0 0
        %2283 = vmatpush1.bf16.msra.mxu0 %v1555
        %2284 = vmatprep.subr.bf16.mxu0 0
        %2285 = vmatpush1.bf16.msra.mxu0 %v1556
        %2286 = vmatprep.subr.bf16.mxu0 0
        %2287 = vmatpush1.bf16.msra.mxu0 %v1557
        %2288 = vmatprep.subr.bf16.mxu0 0
        %2289 = vmatpush1.bf16.msra.mxu0 %v1558
        %2290 = vmatprep.subr.bf16.mxu0 0
        %2291 = vmatpush1.bf16.msra.mxu0 %v1559
        %2292 = vmatprep.subr.bf16.mxu0 0
        %2293 = vmatpush1.bf16.msra.mxu0 0
        %2294 = vmatprep.subr.bf16.mxu0 0
        %2295 = vmatpush1.bf16.msra.mxu0 0
        %2296 = vmatprep.subr.bf16.mxu0 0
        %2297 = vmatpush1.bf16.msra.mxu0 0
        %2298 = vmatprep.subr.bf16.mxu0 0
        %2299 = vmatpush1.bf16.msra.mxu0 0
        %2300 = vmatprep.subr.bf16.mxu0 0
        %2301 = vmatpush1.bf16.msra.mxu0 0
        %2302 = vmatprep.subr.bf16.mxu0 0
        %2303 = vmatpush1.bf16.msra.mxu0 0
        %2304 = vmatprep.subr.bf16.mxu0 0
        %2305 = vmatpush1.bf16.msra.mxu0 0
        %2306 = vmatprep.subr.bf16.mxu0 0
        %2307 = vmatpush1.bf16.msra.mxu0 0
        %2308 = vmatprep.mubr.bf16.mxu0 0
        %2309 = vmatmul.mubr.bf16.gmra.mrb[0].mxu0 %v955
        %v2310 = vpop.f32.mrb[0].mxu0
        %v2311 = vadd.f32 %v2150, %v2310
        %v2312 = vpop.f32.mrb[0].mxu0
        %v2313 = vpop.f32.mrb[0].mxu0
        %v2314 = vadd.f32 %v2153, %v2313
        %v2315 = vpop.f32.mrb[0].mxu0
        %2316 = vmatprep.mubr.bf16.mxu0 0
        %2317 = vmatmul.mubr.bf16.gmra.mrb[0].mxu0 %v958
        %v2318 = vpop.f32.mrb[0].mxu0
        %v2319 = vadd.f32 %v2158, %v2318
        %v2320 = vpop.f32.mrb[0].mxu0
        %v2321 = vpop.f32.mrb[0].mxu0
        %v2322 = vadd.f32 %v2161, %v2321
        %v2323 = vpop.f32.mrb[0].mxu0
        %2324 = vmatprep.mubr.bf16.mxu0 0
        %2325 = vmatmul.mubr.bf16.gmra.mrb[0].mxu0 %v961
        %v2326 = vpop.f32.mrb[0].mxu0
        %v2327 = vadd.f32 %v2166, %v2326
        %v2328 = vpop.f32.mrb[0].mxu0
        %v2329 = vpop.f32.mrb[0].mxu0
        %v2330 = vadd.f32 %v2169, %v2329
        %v2331 = vpop.f32.mrb[0].mxu0
        %2332 = vmatprep.mubr.bf16.mxu0 0
        %2333 = vmatmul.mubr.bf16.gmra.mrb[0].mxu0 %v964
        %v2334 = vpop.f32.mrb[0].mxu0
        %v2335 = vadd.f32 %v2174, %v2334
        %v2336 = vpop.f32.mrb[0].mxu0
        %v2337 = vpop.f32.mrb[0].mxu0
        %v2338 = vadd.f32 %v2177, %v2337
        %v2339 = vpop.f32.mrb[0].mxu0
        %2340 = vmatprep.mubr.bf16.mxu0 0
        %2341 = vmatmul.mubr.bf16.gmra.mrb[0].mxu0 %v967
        %v2342 = vpop.f32.mrb[0].mxu0
        %v2343 = vadd.f32 %v2182, %v2342
        %v2344 = vpop.f32.mrb[0].mxu0
        %v2345 = vpop.f32.mrb[0].mxu0
        %v2346 = vadd.f32 %v2185, %v2345
        %v2347 = vpop.f32.mrb[0].mxu0
        %2348 = vmatprep.mubr.bf16.mxu0 0
        %2349 = vmatmul.mubr.bf16.gmra.mrb[0].mxu0 %v970
        %v2350 = vpop.f32.mrb[0].mxu0
        %v2351 = vadd.f32 %v2190, %v2350
        %v2352 = vpop.f32.mrb[0].mxu0
        %v2353 = vpop.f32.mrb[0].mxu0
        %v2354 = vadd.f32 %v2193, %v2353
        %v2355 = vpop.f32.mrb[0].mxu0
        %2356 = vmatprep.mubr.bf16.mxu0 0
        %2357 = vmatmul.mubr.bf16.gmra.mrb[0].mxu0 %v973
        %v2358 = vpop.f32.mrb[0].mxu0
        %v2359 = vadd.f32 %v2198, %v2358
        %v2360 = vpop.f32.mrb[0].mxu0
        %v2361 = vpop.f32.mrb[0].mxu0
        %v2362 = vadd.f32 %v2201, %v2361
        %v2363 = vpop.f32.mrb[0].mxu0
        %2364 = vmatprep.mubr.bf16.mxu0 0
        %2365 = vmatmul.mubr.bf16.gmra.mrb[0].mxu0 %v976
        %v2366 = vpop.f32.mrb[0].mxu0
        %v2367 = vadd.f32 %v2206, %v2366
        %v2368 = vpop.f32.mrb[0].mxu0
        %v2369 = vpop.f32.mrb[0].mxu0
        %v2370 = vadd.f32 %v2209, %v2369
        %v2371 = vpop.f32.mrb[0].mxu0
        %2372 = vmatprep.mubr.bf16.mxu0 0
        %2373 = vmatmul.mubr.bf16.gmra.mrb[0].mxu0 %v979
        %v2374 = vpop.f32.mrb[0].mxu0
        %v2375 = vadd.f32 %v2214, %v2374
        %v2376 = vpop.f32.mrb[0].mxu0
        %v2377 = vpop.f32.mrb[0].mxu0
        %v2378 = vadd.f32 %v2217, %v2377
        %v2379 = vpop.f32.mrb[0].mxu0
        %2380 = vmatprep.mubr.bf16.mxu0 0
        %2381 = vmatmul.mubr.bf16.gmra.mrb[0].mxu0 %v982
        %v2382 = vpop.f32.mrb[0].mxu0
        %v2383 = vadd.f32 %v2222, %v2382
        %v2384 = vpop.f32.mrb[0].mxu0
        %v2385 = vpop.f32.mrb[0].mxu0
        %v2386 = vadd.f32 %v2225, %v2385
        %v2387 = vpop.f32.mrb[0].mxu0
        %2388 = vmatprep.mubr.bf16.mxu0 0
        %2389 = vmatmul.mubr.bf16.gmra.mrb[0].mxu0 %v985
        %v2390 = vpop.f32.mrb[0].mxu0
        %v2391 = vadd.f32 %v2230, %v2390
        %v2392 = vpop.f32.mrb[0].mxu0
        %v2393 = vpop.f32.mrb[0].mxu0
        %v2394 = vadd.f32 %v2233, %v2393
        %v2395 = vpop.f32.mrb[0].mxu0
        %2396 = vmatprep.mubr.bf16.mxu0 0
        %2397 = vmatmul.mubr.bf16.gmra.mrb[0].mxu0 %v988
        %v2398 = vpop.f32.mrb[0].mxu0
        %v2399 = vadd.f32 %v2238, %v2398
        %v2400 = vpop.f32.mrb[0].mxu0
        %v2401 = vpop.f32.mrb[0].mxu0
        %v2402 = vadd.f32 %v2241, %v2401
        %v2403 = vpop.f32.mrb[0].mxu0
        %2404 = vmatprep.mubr.bf16.mxu0 0
        %2405 = vmatmul.mubr.bf16.gmra.mrb[0].mxu0 %v991
        %v2406 = vpop.f32.mrb[0].mxu0
        %v2407 = vadd.f32 %v2246, %v2406
        %v2408 = vpop.f32.mrb[0].mxu0
        %v2409 = vpop.f32.mrb[0].mxu0
        %v2410 = vadd.f32 %v2249, %v2409
        %v2411 = vpop.f32.mrb[0].mxu0
        %2412 = vmatprep.mubr.bf16.mxu0 0
        %2413 = vmatmul.mubr.bf16.gmra.mrb[0].mxu0 %v994
        %v2414 = vpop.f32.mrb[0].mxu0
        %v2415 = vadd.f32 %v2254, %v2414
        %v2416 = vpop.f32.mrb[0].mxu0
        %v2417 = vpop.f32.mrb[0].mxu0
        %v2418 = vadd.f32 %v2257, %v2417
        %v2419 = vpop.f32.mrb[0].mxu0
        %2420 = vmatprep.mubr.bf16.mxu0 0
        %2421 = vmatmul.mubr.bf16.gmra.mrb[0].mxu0 %v1028
        %v2422 = vpop.f32.mrb[0].mxu0
        %v2423 = vadd.f32 %v2262, %v2422
        %v2424 = vpop.f32.mrb[0].mxu0
        %v2425 = vpop.f32.mrb[0].mxu0
        %v2426 = vadd.f32 %v2265, %v2425
        %v2427 = vpop.f32.mrb[0].mxu0
        %2428 = vmatprep.mubr.bf16.mxu0 0
        %2429 = vmatmul.mubr.bf16.gmra.mrb[0].mxu0 %v1047
        %v2430 = vpop.f32.mrb[0].mxu0
        %v2431 = vadd.f32 %v2270, %v2430
        %v2432 = vpop.f32.mrb[0].mxu0
        %v2433 = vpop.f32.mrb[0].mxu0
        %v2434 = vadd.f32 %v2273, %v2433
        %v2435 = vpop.f32.mrb[0].mxu0
        %2436 = vdwg.mxu0
        %v2437 = vadd.f32 %v2311, %v2314
        %v2438 = vadd.f32 %v2437, %v2319
        %v2439 = vadd.f32 %v2438, %v2322
        %v2440 = vadd.f32 %v2439, %v2327
        %v2441 = vadd.f32 %v2440, %v2330
        %v2442 = vadd.f32 %v2441, %v2335
        %v2443 = vadd.f32 %v2442, %v2338
        %v2444 = vadd.f32 %v2443, %v2343
        %v2445 = vadd.f32 %v2444, %v2346
        %v2446 = vadd.f32 %v2445, %v2351
        %v2447 = vadd.f32 %v2446, %v2354
        %v2448 = vadd.f32 %v2447, %v2359
        %v2449 = vadd.f32 %v2448, %v2362
        %v2450 = vadd.f32 %v2449, %v2367
        %v2451 = vadd.f32 %v2450, %v2370
        %v2452 = vadd.f32 %v2451, %v2375
        %v2453 = vadd.f32 %v2452, %v2378
        %v2454 = vadd.f32 %v2453, %v2383
        %v2455 = vadd.f32 %v2454, %v2386
        %v2456 = vadd.f32 %v2455, %v2391
        %v2457 = vadd.f32 %v2456, %v2394
        %v2458 = vadd.f32 %v2457, %v2399
        %v2459 = vadd.f32 %v2458, %v2402
        %v2460 = vadd.f32 %v2459, %v2407
        %v2461 = vadd.f32 %v2460, %v2410
        %v2462 = vadd.f32 %v2461, %v2415
        %v2463 = vadd.f32 %v2462, %v2418
        %v2464 = vadd.f32 %v2463, %v2423
        %v2465 = vadd.f32 %v2464, %v2426
        %v2466 = vadd.f32 %v2465, %v2431
        %v2467 = vadd.f32 %v2466, %v2434
        %v2468 = vrot.slane %v2467, 4
        %v2469 = vadd.f32 %v2467, %v2468
        %v2470 = vrot.slane %v2469, 2
        %v2471 = vadd.f32 %v2469, %v2470
        %v2472 = vrot.slane %v2471, 1
        %v2473 = vadd.f32 %v2471, %v2472
        %v2474 = vmul.f32 %v2311, %v2311
        %v2475 = vmul.f32 %v2314, %v2314
        %v2476 = vmul.f32 %v2319, %v2319
        %v2477 = vmul.f32 %v2322, %v2322
        %v2478 = vmul.f32 %v2327, %v2327
        %v2479 = vmul.f32 %v2330, %v2330
        %v2480 = vmul.f32 %v2335, %v2335
        %v2481 = vmul.f32 %v2338, %v2338
        %v2482 = vmul.f32 %v2343, %v2343
        %v2483 = vmul.f32 %v2346, %v2346
        %v2484 = vmul.f32 %v2351, %v2351
        %v2485 = vmul.f32 %v2354, %v2354
        %v2486 = vmul.f32 %v2359, %v2359
        %v2487 = vmul.f32 %v2362, %v2362
        %v2488 = vmul.f32 %v2367, %v2367
        %v2489 = vmul.f32 %v2370, %v2370
        %v2490 = vmul.f32 %v2375, %v2375
        %v2491 = vmul.f32 %v2378, %v2378
        %v2492 = vmul.f32 %v2383, %v2383
        %v2493 = vmul.f32 %v2386, %v2386
        %v2494 = vmul.f32 %v2391, %v2391
        %v2495 = vmul.f32 %v2394, %v2394
        %v2496 = vmul.f32 %v2399, %v2399
        %v2497 = vmul.f32 %v2402, %v2402
        %v2498 = vmul.f32 %v2407, %v2407
        %v2499 = vmul.f32 %v2410, %v2410
        %v2500 = vmul.f32 %v2415, %v2415
        %v2501 = vmul.f32 %v2418, %v2418
        %v2502 = vmul.f32 %v2423, %v2423
        %v2503 = vmul.f32 %v2426, %v2426
        %v2504 = vmul.f32 %v2431, %v2431
        %v2505 = vmul.f32 %v2434, %v2434
        %v2506 = vadd.f32 %v2474, %v2475
        %v2507 = vadd.f32 %v2506, %v2476
        %v2508 = vadd.f32 %v2507, %v2477
        %v2509 = vadd.f32 %v2508, %v2478
        %v2510 = vadd.f32 %v2509, %v2479
        %v2511 = vadd.f32 %v2510, %v2480
        %v2512 = vadd.f32 %v2511, %v2481
        %v2513 = vadd.f32 %v2512, %v2482
        %v2514 = vadd.f32 %v2513, %v2483
        %v2515 = vadd.f32 %v2514, %v2484
        %v2516 = vadd.f32 %v2515, %v2485
        %v2517 = vadd.f32 %v2516, %v2486
        %v2518 = vadd.f32 %v2517, %v2487
        %v2519 = vadd.f32 %v2518, %v2488
        %v2520 = vadd.f32 %v2519, %v2489
        %v2521 = vadd.f32 %v2520, %v2490
        %v2522 = vadd.f32 %v2521, %v2491
        %v2523 = vadd.f32 %v2522, %v2492
        %v2524 = vadd.f32 %v2523, %v2493
        %v2525 = vadd.f32 %v2524, %v2494
        %v2526 = vadd.f32 %v2525, %v2495
        %v2527 = vadd.f32 %v2526, %v2496
        %v2528 = vadd.f32 %v2527, %v2497
        %v2529 = vadd.f32 %v2528, %v2498
        %v2530 = vadd.f32 %v2529, %v2499
        %v2531 = vadd.f32 %v2530, %v2500
        %v2532 = vadd.f32 %v2531, %v2501
        %v2533 = vadd.f32 %v2532, %v2502
        %v2534 = vadd.f32 %v2533, %v2503
        %v2535 = vadd.f32 %v2534, %v2504
        %v2536 = vadd.f32 %v2535, %v2505
        %v2537 = vrot.slane %v2536, 4
        %v2538 = vadd.f32 %v2536, %v2537
        %v2539 = vrot.slane %v2538, 2
        %v2540 = vadd.f32 %v2538, %v2539
        %v2541 = vrot.slane %v2540, 1
        %v2542 = vadd.f32 %v2540, %v2541
        %vm2543 = vcmask 1040384
        %v2544 = vsel %vm2543, %v2473, %v2542
        %2545 = vst [vmem:[%s374] sm:$0x3] %v2544
        %v2546 = vpack.c.bf16 %v2314, %v2311
        %v2547 = vpack.c.bf16 %v2322, %v2319
        %v2548 = vpack.c.bf16 %v2330, %v2327
        %v2549 = vpack.c.bf16 %v2338, %v2335
        %v2550 = vpack.c.bf16 %v2346, %v2343
        %v2551 = vpack.c.bf16 %v2354, %v2351
        %v2552 = vpack.c.bf16 %v2362, %v2359
        %v2553 = vpack.c.bf16 %v2370, %v2367
        %v2554 = vpack.c.bf16 %v2378, %v2375
        %v2555 = vpack.c.bf16 %v2386, %v2383
        %v2556 = vpack.c.bf16 %v2394, %v2391
        %v2557 = vpack.c.bf16 %v2402, %v2399
        %v2558 = vpack.c.bf16 %v2410, %v2407
        %v2559 = vpack.c.bf16 %v2418, %v2415
        %v2560 = vpack.c.bf16 %v2426, %v2423
        %v2561 = vpack.c.bf16 %v2434, %v2431
        %v2578 = vunpack.c.l.b16 %v2546
        %v2579 = vunpack.c.h.b16 %v2546
        %v2580 = vunpack.c.l.b16 %v2547
        %v2581 = vunpack.c.h.b16 %v2547
        %v2582 = vunpack.c.l.b16 %v2548
        %v2583 = vunpack.c.h.b16 %v2548
        %v2584 = vunpack.c.l.b16 %v2549
        %v2585 = vunpack.c.h.b16 %v2549
        %v2586 = vunpack.c.l.b16 %v2550
        %v2587 = vunpack.c.h.b16 %v2550
        %v2588 = vunpack.c.l.b16 %v2551
        %v2589 = vunpack.c.h.b16 %v2551
        %v2590 = vunpack.c.l.b16 %v2552
        %v2591 = vunpack.c.h.b16 %v2552
        %v2592 = vunpack.c.l.b16 %v2553
        %v2593 = vunpack.c.h.b16 %v2553
        %v2594 = vunpack.c.l.b16 %v2554
        %v2595 = vunpack.c.h.b16 %v2554
        %v2596 = vunpack.c.l.b16 %v2555
        %v2597 = vunpack.c.h.b16 %v2555
        %v2598 = vunpack.c.l.b16 %v2556
        %v2599 = vunpack.c.h.b16 %v2556
        %v2600 = vunpack.c.l.b16 %v2557
        %v2601 = vunpack.c.h.b16 %v2557
        %v2602 = vunpack.c.l.b16 %v2558
        %v2603 = vunpack.c.h.b16 %v2558
        %v2604 = vunpack.c.l.b16 %v2559
        %v2605 = vunpack.c.h.b16 %v2559
        %v2606 = vunpack.c.l.b16 %v2560
        %v2607 = vunpack.c.h.b16 %v2560
        %v2608 = vunpack.c.l.b16 %v2561
        %v2609 = vunpack.c.h.b16 %v2561
        %v2610 = vpack.c.b16 %v2578, %v2578
        %v2611 = vpack.c.b16 %v2579, %v2579
        %v2612 = vpack.c.b16 %v2580, %v2580
        %v2613 = vpack.c.b16 %v2581, %v2581
        %v2614 = vpack.c.b16 %v2582, %v2582
        %v2615 = vpack.c.b16 %v2583, %v2583
        %v2616 = vpack.c.b16 %v2584, %v2584
        %v2617 = vpack.c.b16 %v2585, %v2585
        %v2618 = vpack.c.b16 %v2586, %v2586
        %v2619 = vpack.c.b16 %v2587, %v2587
        %v2620 = vpack.c.b16 %v2588, %v2588
        %v2621 = vpack.c.b16 %v2589, %v2589
        %v2622 = vpack.c.b16 %v2590, %v2590
        %v2623 = vpack.c.b16 %v2591, %v2591
        %v2624 = vpack.c.b16 %v2592, %v2592
        %v2625 = vpack.c.b16 %v2593, %v2593
        %v2626 = vpack.c.b16 %v2594, %v2594
        %v2627 = vpack.c.b16 %v2595, %v2595
        %v2628 = vpack.c.b16 %v2596, %v2596
        %v2629 = vpack.c.b16 %v2597, %v2597
        %v2630 = vpack.c.b16 %v2598, %v2598
        %v2631 = vpack.c.b16 %v2599, %v2599
        %v2632 = vpack.c.b16 %v2600, %v2600
        %v2633 = vpack.c.b16 %v2601, %v2601
        %v2634 = vpack.c.b16 %v2602, %v2602
        %v2635 = vpack.c.b16 %v2603, %v2603
        %v2636 = vpack.c.b16 %v2604, %v2604
        %v2637 = vpack.c.b16 %v2605, %v2605
        %v2638 = vpack.c.b16 %v2606, %v2606
        %v2639 = vpack.c.b16 %v2607, %v2607
        %v2640 = vpack.c.b16 %v2608, %v2608
        %v2641 = vpack.c.b16 %v2609, %v2609
        %2674 = vst [vmem:[%s367] sm:$0xf] %v2610
        %2675 = vst [vmem:[%s367 + $0x4] sm:$0xf] %v2611
        %2676 = vst [vmem:[%s367 + $0x8] sm:$0xf] %v2612
        %2677 = vst [vmem:[%s367 + $0xc] sm:$0xf] %v2613
        %2678 = vst [vmem:[%s367 + $0x10] sm:$0xf] %v2614
        %2679 = vst [vmem:[%s367 + $0x14] sm:$0xf] %v2615
        %2680 = vst [vmem:[%s367 + $0x18] sm:$0xf] %v2616
        %2681 = vst [vmem:[%s367 + $0x1c] sm:$0xf] %v2617
        %2682 = vst [vmem:[%s367 + $0x20] sm:$0xf] %v2618
        %2683 = vst [vmem:[%s367 + $0x24] sm:$0xf] %v2619
        %2684 = vst [vmem:[%s367 + $0x28] sm:$0xf] %v2620
        %2685 = vst [vmem:[%s367 + $0x2c] sm:$0xf] %v2621
        %2686 = vst [vmem:[%s367 + $0x30] sm:$0xf] %v2622
        %2687 = vst [vmem:[%s367 + $0x34] sm:$0xf] %v2623
        %2688 = vst [vmem:[%s367 + $0x38] sm:$0xf] %v2624
        %2689 = vst [vmem:[%s367 + $0x3c] sm:$0xf] %v2625
        %2690 = vst [vmem:[%s367 + $0x40] sm:$0xf] %v2626
        %2691 = vst [vmem:[%s367 + $0x44] sm:$0xf] %v2627
        %2692 = vst [vmem:[%s367 + $0x48] sm:$0xf] %v2628
        %2693 = vst [vmem:[%s367 + $0x4c] sm:$0xf] %v2629
        %2694 = vst [vmem:[%s367 + $0x50] sm:$0xf] %v2630
        %2695 = vst [vmem:[%s367 + $0x54] sm:$0xf] %v2631
        %2696 = vst [vmem:[%s367 + $0x58] sm:$0xf] %v2632
        %2697 = vst [vmem:[%s367 + $0x5c] sm:$0xf] %v2633
        %2698 = vst [vmem:[%s367 + $0x60] sm:$0xf] %v2634
        %2699 = vst [vmem:[%s367 + $0x64] sm:$0xf] %v2635
        %2700 = vst [vmem:[%s367 + $0x68] sm:$0xf] %v2636
        %2701 = vst [vmem:[%s367 + $0x6c] sm:$0xf] %v2637
        %2702 = vst [vmem:[%s367 + $0x70] sm:$0xf] %v2638
        %2703 = vst [vmem:[%s367 + $0x74] sm:$0xf] %v2639
        %2704 = vst [vmem:[%s367 + $0x78] sm:$0xf] %v2640
        %2705 = vst [vmem:[%s367 + $0x7c] sm:$0xf] %v2641
        %s2706 = sand.u32 %s170, 1
        %s2707 = scalar_lea.sflag [#allocation4], %s2706
        %s2708 = sand.u32 %s170, 1
        %s2709 = smul.addr %s2708, 128
        %s2710 = scalar_lea.vmem [#allocation13], %s2709
        %s2711 = sand.u32 %s196, 1
        %s2712 = scalar_lea.sflag [#allocation15], %s2711
        %s2713 = sand.u32 %s196, 1
        %s2714 = smul.addr %s2713, 2
        %s2715 = scalar_lea.vmem [#allocation14], %s2714
        // Predicated region
        $region69: #{encoder_block_pallas.4} parent=43 // pred_check
          %p2716 = pneg %p180
        $region70: #{encoder_block_pallas.4} parent=43 // pred_check_branch
          %2718 = sbr.rel (%p2716) target = $region72
        $region71: #{encoder_block_pallas.4} parent=43 // pred_region
          %s2720 = ssub.s32 2048, 2048
          %2721 = vsyncadd %s2707, %s2720
          %s2722 = smul.addr %s31, 32
          %s2723 = smul.addr %s2722, 64
          %s2724 = scalar_lea.hbm %s6, %s2723
          %s2725 = sshll.u32 %s2710, 4
          %s2726 = int_to_ptr.vmem [resolvable:$true] %s2725
          %2731 = dma.vmem_to_hbm [thread:$0]  %s2726, 2048, %s2724, %s2707, 64, 64, 4
        $region72: #{encoder_block_pallas.4} parent=43 // pred_fallthru
          _
        // Predicated region
        $region73: #{encoder_block_pallas.4} parent=43 // pred_check
          %p2732 = pneg %p206
        $region74: #{encoder_block_pallas.4} parent=43 // pred_check_branch
          %2734 = sbr.rel (%p2732) target = $region76
        $region75: #{encoder_block_pallas.4} parent=43 // pred_region
          %s2736 = ssub.s32 32, 32
          %2737 = vsyncadd %s2712, %s2736
          %s2738 = smul.addr %s31, 32
          %s2739 = scalar_lea.hbm %s7, %s2738
          %s2741 = sshll.u32 %s2715, 4
          %s2742 = int_to_ptr.vmem [resolvable:$true] %s2741
          %2744 = dma.vmem_to_hbm [thread:$0]  %s2742, 32, %s2739, %s2712
        $region76: #{encoder_block_pallas.4} parent=43 // pred_fallthru
          _
      $region44: #{encoder_block_pallas.4} parent=5 // pred_fallthru
        _
      %p2745 = scmp.le.s32.totalorder 2, %s26
      // Predicated region
      $region77: #{encoder_block_pallas.4} parent=5 // pred_check
        %p2746 = pneg %p2745
      $region78: #{encoder_block_pallas.4} parent=5 // pred_check_branch
        %2748 = sbr.rel (%p2746) target = $region80
      $region79: #{encoder_block_pallas.4} parent=5 // pred_region
        %s2749 = ssub.s32 %s26, 2
        // Predicated region
        $region81: #{encoder_block_pallas.4} parent=79 // pred_check
          %p2750 = pneg %p186
        $region82: #{encoder_block_pallas.4} parent=79 // pred_check_branch
          %2752 = sbr.rel (%p2750) target = $region84
        $region83: #{encoder_block_pallas.4} parent=79 // pred_region
          %s2753 = sand.u32 %s171, 1
          %s2754 = scalar_lea.sflag [#allocation4], %s2753
          %s2755 = sand.u32 %s171, 1
          %s2756 = smul.addr %s2755, 128
          %s2757 = scalar_lea.vmem [#allocation13], %s2756
          %2758 = dma.done %s2754, 2048
        $region84: #{encoder_block_pallas.4} parent=79 // pred_fallthru
          _
        // Predicated region
        $region85: #{encoder_block_pallas.4} parent=79 // pred_check
          %p2759 = pneg %p212
        $region86: #{encoder_block_pallas.4} parent=79 // pred_check_branch
          %2761 = sbr.rel (%p2759) target = $region88
        $region87: #{encoder_block_pallas.4} parent=79 // pred_region
          %s2762 = sand.u32 %s197, 1
          %s2763 = scalar_lea.sflag [#allocation15], %s2762
          %s2764 = sand.u32 %s197, 1
          %s2765 = smul.addr %s2764, 2
          %s2766 = scalar_lea.vmem [#allocation14], %s2765
          %2767 = dma.done %s2763, 32
        $region88: #{encoder_block_pallas.4} parent=79 // pred_fallthru
          _
      $region80: #{encoder_block_pallas.4} parent=5 // pred_fallthru
        _
    $region6: #{encoder_block_pallas.4} parent=1 // loop_footer
      %s30 = sadd.s32 1, %s26
    $region7: #{encoder_block_pallas.4} parent=1 // loop_footer_branch
      %25 = sbr.rel target = $region3
    $region8: #{encoder_block_pallas.4} parent=1 // loop_exit
      _
    %2768 = vsyncpa [#allocation3], 1
    %s2769 = scalar_lea.sflag [#allocation3], 1
    %2770 = vsyncpa %s2769, 1
    %2771 = vsyncpa [#allocation6], 1
    %2772 = vsyncpa [#allocation9], 1
    %2773 = vsyncpa [#allocation12], 1
    %2774 = vsyncpa [#allocation4], 1
    %s2775 = scalar_lea.sflag [#allocation4], 1
    %2776 = vsyncpa %s2775, 1
    %2777 = vsyncpa [#allocation15], 1
    %s2778 = scalar_lea.sflag [#allocation15], 1
    %2779 = vsyncpa %s2778, 1

// kernel: encoder_block_pallas.3
$region0: #{encoder_block_pallas.3}
  #allocation0 [shape = 'u32[]', space=smem, size = 0x4, offset = 0x4, fixed_abs, tag = 'smem constant byte address 0x4 - core index']
  #allocation1 [shape = 'u32[144,128]{1,0:T(1,128)}', space=vmem, size = 0x12000, scoped, tag = 'internal scratch']
  %s0 = inlined_call_operand.hbm [shape: bf16[2,18,18,128], index: 0, kind: input, shape index: {}]
  %s1 = inlined_call_operand.hbm [shape: bf16[1152,128], index: 1, kind: input, shape index: {}]
  %s2 = inlined_call_operand.hbm [shape: f32[1,128], index: 2, kind: input, shape index: {}]
  %s3 = inlined_call_operand.hbm [shape: bf16[2,18,18,128], index: 3, kind: output, shape index: {0}]
  %s4 = inlined_call_operand.hbm [shape: f32[2,2,128], index: 4, kind: output, shape index: {1}]
  %5 = xla_tuple %s3, %s4
  %s6 = sld [smem:[#allocation0]]
  $region65: #{encoder_block_pallas.3} parent=0
    _
  %s8 = ssub.s32 1, %s6
  %s9 = scalar_select 0, %s8, %s6
  $region1: #{encoder_block_pallas.3} parent=0
    #allocation2 [shape = 'u8[221184]{0}', space=vmem, size = 0x36000, scoped, tag = 'input window, operand 0']
    #allocation3 [shape = 's32[2]{0}', space=sflag, size = 0x8, scoped, tag = 'scoped memory for encoder_block_pallas.3']
    #allocation4 [shape = 's32[2]{0}', space=sflag, size = 0x8, scoped, tag = 'scoped memory for encoder_block_pallas.3']
    #allocation5 [shape = 'u8[294912]{0}', space=vmem, size = 0x48000, scoped, tag = 'input window, operand 1, single buffered']
    #allocation6 [shape = 's32[1]{0}', space=sflag, size = 0x4, scoped, tag = 'scoped memory for encoder_block_pallas.3']
    #allocation7 [shape = 'u8[512]{0}', space=vmem, size = 0x400, scoped, tag = 'input window, operand 2, single buffered']
    #allocation8 [shape = 'u8[221184]{0}', space=vmem, size = 0x36000, scoped, tag = 'output window, operand 0']
    #allocation9 [shape = 'u8[2048]{0}', space=vmem, size = 0x800, scoped, tag = 'output window, operand 1']
    #allocation10 [shape = 's32[2]{0}', space=sflag, size = 0x8, scoped, tag = 'scoped memory for encoder_block_pallas.3']
    %10 = vsyncpa [#allocation3], 0
    %s11 = scalar_lea.sflag [#allocation3], 1
    %12 = vsyncpa %s11, 0
    %13 = vsyncpa [#allocation6], 0
    %14 = vsyncpa [#allocation4], 0
    %s15 = scalar_lea.sflag [#allocation4], 1
    %16 = vsyncpa %s15, 0
    %17 = vsyncpa [#allocation10], 0
    %s18 = scalar_lea.sflag [#allocation10], 1
    %19 = vsyncpa %s18, 0
    loop: start=0, step=1, limit=4
    $region2: #{encoder_block_pallas.3} parent=1 // loop_pre_header
      _
    $region3: #{encoder_block_pallas.3} parent=1 // loop_header
      %s21 = sphi 0, %s25
      %p22 = scmp.ge.s32.totalorder %s21, 4
      %s31 = sphi 0, %s33
      %s34 = sphi 0, %s31
      %s35 = sphi 0, %s34
      %s51 = sphi 0, %s35
      %s55 = sphi 0, %s55
      %s57 = sphi 0, %s55
      %s58 = sphi 0, %s57
      %s72 = sphi 0, %s58
      %s76 = sphi 0, %s76
      %s78 = sphi 0, %s76
      %s79 = sphi 0, %s78
      %s93 = sphi 0, %s79
      %s99 = sphi 0, %s101
      %s102 = sphi 0, %s99
      %s103 = sphi 0, %s102
      %s119 = sphi 0, %s103
      %s125 = sphi 0, %s127
      %s128 = sphi 0, %s125
      %s129 = sphi 0, %s128
      %s145 = sphi 0, %s129
    $region4: #{encoder_block_pallas.3} parent=1 // loop_header_branch
      %24 = sbr.rel (%p22) target = $region8
    $region5: #{encoder_block_pallas.3} parent=1 // loop_body
      %s26 = ssub.s32 %s21, 1
      %s27 = ssub.s32 %s21, 2
      %s28 = sadd.s32 %s21, 1
      %s29 = ssub.s32 %s21, %s28
      %p30 = scmp.eq.s32.totalorder %s29, 0
      %s32 = sadd.s32 %s31, 1
      %s33 = scalar_select %p30, %s31, %s32
      %p36 = pneg %p30
      %p37 = scmp.eq.s32.totalorder %s21, 1
      %p38 = por %p36, %p37
      %p39 = scmp.ne.s32.totalorder %s31, %s34
      %p40 = scmp.eq.s32.totalorder %s21, 0
      %p41 = por %p39, %p40
      %p42 = scmp.ne.s32.totalorder %s31, %s34
      %p43 = scmp.eq.s32.totalorder %s26, 1
      %p44 = por %p42, %p43
      %p45 = scmp.ne.s32.totalorder %s34, %s35
      %p46 = scmp.eq.s32.totalorder %s26, 0
      %p47 = por %p45, %p46
      %p48 = scmp.ne.s32.totalorder %s34, %s35
      %p49 = scmp.eq.s32.totalorder %s27, 1
      %p50 = por %p48, %p49
      %p52 = scmp.ne.s32.totalorder %s35, %s51
      %p53 = scmp.eq.s32.totalorder %s27, 0
      %p54 = por %p52, %p53
      %s56 = sadd.s32 %s55, 1
      %p59 = scmp.eq.s32.totalorder %s21, 1
      %p60 = scmp.ne.s32.totalorder %s55, %s57
      %p61 = scmp.eq.s32.totalorder %s21, 0
      %p62 = por %p60, %p61
      %p63 = scmp.ne.s32.totalorder %s55, %s57
      %p64 = scmp.eq.s32.totalorder %s26, 1
      %p65 = por %p63, %p64
      %p66 = scmp.ne.s32.totalorder %s57, %s58
      %p67 = scmp.eq.s32.totalorder %s26, 0
      %p68 = por %p66, %p67
      %p69 = scmp.ne.s32.totalorder %s57, %s58
      %p70 = scmp.eq.s32.totalorder %s27, 1
      %p71 = por %p69, %p70
      %p73 = scmp.ne.s32.totalorder %s58, %s72
      %p74 = scmp.eq.s32.totalorder %s27, 0
      %p75 = por %p73, %p74
      %s77 = sadd.s32 %s76, 1
      %p80 = scmp.eq.s32.totalorder %s21, 1
      %p81 = scmp.ne.s32.totalorder %s76, %s78
      %p82 = scmp.eq.s32.totalorder %s21, 0
      %p83 = por %p81, %p82
      %p84 = scmp.ne.s32.totalorder %s76, %s78
      %p85 = scmp.eq.s32.totalorder %s26, 1
      %p86 = por %p84, %p85
      %p87 = scmp.ne.s32.totalorder %s78, %s79
      %p88 = scmp.eq.s32.totalorder %s26, 0
      %p89 = por %p87, %p88
      %p90 = scmp.ne.s32.totalorder %s78, %s79
      %p91 = scmp.eq.s32.totalorder %s27, 1
      %p92 = por %p90, %p91
      %p94 = scmp.ne.s32.totalorder %s79, %s93
      %p95 = scmp.eq.s32.totalorder %s27, 0
      %p96 = por %p94, %p95
      %s97 = ssub.s32 %s21, %s28
      %p98 = scmp.eq.s32.totalorder %s97, 0
      %s100 = sadd.s32 %s99, 1
      %s101 = scalar_select %p98, %s99, %s100
      %p104 = pneg %p98
      %p105 = scmp.eq.s32.totalorder %s21, 1
      %p106 = por %p104, %p105
      %p107 = scmp.ne.s32.totalorder %s99, %s102
      %p108 = scmp.eq.s32.totalorder %s21, 0
      %p109 = por %p107, %p108
      %p110 = scmp.ne.s32.totalorder %s99, %s102
      %p111 = scmp.eq.s32.totalorder %s26, 1
      %p112 = por %p110, %p111
      %p113 = scmp.ne.s32.totalorder %s102, %s103
      %p114 = scmp.eq.s32.totalorder %s26, 0
      %p115 = por %p113, %p114
      %p116 = scmp.ne.s32.totalorder %s102, %s103
      %p117 = scmp.eq.s32.totalorder %s27, 1
      %p118 = por %p116, %p117
      %p120 = scmp.ne.s32.totalorder %s103, %s119
      %p121 = scmp.eq.s32.totalorder %s27, 0
      %p122 = por %p120, %p121
      %s123 = ssub.s32 %s21, %s28
      %p124 = scmp.eq.s32.totalorder %s123, 0
      %s126 = sadd.s32 %s125, 1
      %s127 = scalar_select %p124, %s125, %s126
      %p130 = pneg %p124
      %p131 = scmp.eq.s32.totalorder %s21, 1
      %p132 = por %p130, %p131
      %p133 = scmp.ne.s32.totalorder %s125, %s128
      %p134 = scmp.eq.s32.totalorder %s21, 0
      %p135 = por %p133, %p134
      %p136 = scmp.ne.s32.totalorder %s125, %s128
      %p137 = scmp.eq.s32.totalorder %s26, 1
      %p138 = por %p136, %p137
      %p139 = scmp.ne.s32.totalorder %s128, %s129
      %p140 = scmp.eq.s32.totalorder %s26, 0
      %p141 = por %p139, %p140
      %p142 = scmp.ne.s32.totalorder %s128, %s129
      %p143 = scmp.eq.s32.totalorder %s27, 1
      %p144 = por %p142, %p143
      %p146 = scmp.ne.s32.totalorder %s129, %s145
      %p147 = scmp.eq.s32.totalorder %s27, 0
      %p148 = por %p146, %p147
      %p149 = scmp.le.s32.totalorder 1, %s21
      %p150 = scmp.lt.s32.totalorder %s21, 3
      %p151 = pnand %p149, %p150
      %p152 = pneg %p151
      // Predicated region
      $region9: #{encoder_block_pallas.3} parent=5 // pred_check
        _
      $region10: #{encoder_block_pallas.3} parent=5 // pred_check_branch
        %154 = sbr.rel (%p151) target = $region12
      $region11: #{encoder_block_pallas.3} parent=5 // pred_region
        %s155 = ssub.s32 %s21, 1
        // Predicated region
        $region13: #{encoder_block_pallas.3} parent=11 // pred_check
          %p156 = pneg %p68
        $region14: #{encoder_block_pallas.3} parent=11 // pred_check_branch
          %158 = sbr.rel (%p156) target = $region16
        $region15: #{encoder_block_pallas.3} parent=11 // pred_region
          %s160 = ssub.s32 9216, 9216
          %161 = vsyncadd [#allocation6], %s160
          %s162 = sshll.u32 [#allocation5], 4
          %s163 = int_to_ptr.vmem [resolvable:$true] %s162
          %168 = dma.hbm_to_vmem [thread:$0]  %s1, 9216, %s163, [#allocation6], 64, 64, 4
        $region16: #{encoder_block_pallas.3} parent=11 // pred_fallthru
          _
        // Predicated region
        $region17: #{encoder_block_pallas.3} parent=11 // pred_check
          %p169 = pneg %p89
        $region18: #{encoder_block_pallas.3} parent=11 // pred_check_branch
          %171 = sbr.rel (%p169) target = $region20
        $region19: #{encoder_block_pallas.3} parent=11 // pred_region
          %s173 = ssub.s32 16, 16
          %174 = vsyncadd [#allocation6], %s173
          %s176 = sshll.u32 [#allocation7], 4
          %s177 = int_to_ptr.vmem [resolvable:$true] %s176
          %179 = dma.hbm_to_vmem [thread:$0]  %s2, 16, %s177, [#allocation6]
        $region20: #{encoder_block_pallas.3} parent=11 // pred_fallthru
          _
      $region12: #{encoder_block_pallas.3} parent=5 // pred_fallthru
        _
      %p180 = scmp.lt.s32.totalorder %s21, 2
      // Predicated region
      $region21: #{encoder_block_pallas.3} parent=5 // pred_check
        %p181 = pneg %p180
      $region22: #{encoder_block_pallas.3} parent=5 // pred_check_branch
        %183 = sbr.rel (%p181) target = $region24
      $region23: #{encoder_block_pallas.3} parent=5 // pred_region
        // Predicated region
        $region25: #{encoder_block_pallas.3} parent=23 // pred_check
          %p184 = pneg %p41
        $region26: #{encoder_block_pallas.3} parent=23 // pred_check_branch
          %186 = sbr.rel (%p184) target = $region28
        $region27: #{encoder_block_pallas.3} parent=23 // pred_region
          %s187 = sand.u32 %s31, 1
          %s188 = scalar_lea.sflag [#allocation3], %s187
          %s189 = sand.u32 %s31, 1
          %s190 = smul.addr %s189, 216
          %s191 = scalar_lea.vmem [#allocation2], %s190
          %s193 = ssub.s32 3456, 3456
          %194 = vsyncadd %s188, %s193
          %s195 = smul.addr %s21, 54
          %s196 = smul.addr %s195, 64
          %s197 = scalar_lea.hbm %s0, %s196
          %s198 = sshll.u32 %s191, 4
          %s199 = int_to_ptr.vmem [resolvable:$true] %s198
          %204 = dma.hbm_to_vmem [thread:$0]  %s197, 3456, %s199, %s188, 64, 64, 4
        $region28: #{encoder_block_pallas.3} parent=23 // pred_fallthru
          _
      $region24: #{encoder_block_pallas.3} parent=5 // pred_fallthru
        _
      %p205 = scmp.le.s32.totalorder 1, %s21
      %p206 = scmp.lt.s32.totalorder %s21, 3
      %p207 = pnand %p205, %p206
      %p208 = pneg %p207
      // Predicated region
      $region29: #{encoder_block_pallas.3} parent=5 // pred_check
        _
      $region30: #{encoder_block_pallas.3} parent=5 // pred_check_branch
        %210 = sbr.rel (%p207) target = $region32
      $region31: #{encoder_block_pallas.3} parent=5 // pred_region
        %s211 = ssub.s32 %s21, 1
        %s212 = sand.u32 %s34, 1
        %s213 = scalar_lea.sflag [#allocation3], %s212
        %s214 = sand.u32 %s34, 1
        %s215 = smul.addr %s214, 216
        %s216 = scalar_lea.vmem [#allocation2], %s215
        // Predicated region
        $region33: #{encoder_block_pallas.3} parent=31 // pred_check
          %p217 = pneg %p47
        $region34: #{encoder_block_pallas.3} parent=31 // pred_check_branch
          %219 = sbr.rel (%p217) target = $region36
        $region35: #{encoder_block_pallas.3} parent=31 // pred_region
          %220 = dma.done %s213, 3456
        $region36: #{encoder_block_pallas.3} parent=31 // pred_fallthru
          _
        // Predicated region
        $region37: #{encoder_block_pallas.3} parent=31 // pred_check
          %p221 = pneg %p68
        $region38: #{encoder_block_pallas.3} parent=31 // pred_check_branch
          %223 = sbr.rel (%p221) target = $region40
        $region39: #{encoder_block_pallas.3} parent=31 // pred_region
          %224 = dma.done [#allocation6], 9216
        $region40: #{encoder_block_pallas.3} parent=31 // pred_fallthru
          _
        // Predicated region
        $region41: #{encoder_block_pallas.3} parent=31 // pred_check
          %p225 = pneg %p89
        $region42: #{encoder_block_pallas.3} parent=31 // pred_check_branch
          %227 = sbr.rel (%p225) target = $region44
        $region43: #{encoder_block_pallas.3} parent=31 // pred_region
          %228 = dma.done [#allocation6], 16
        $region44: #{encoder_block_pallas.3} parent=31 // pred_fallthru
          _
        %s229 = sand.u32 %s34, 1
        %s230 = scalar_lea.sflag [#allocation3], %s229
        %s231 = sand.u32 %s34, 1
        %s232 = smul.addr %s231, 216
        %s233 = scalar_lea.vmem [#allocation2], %s232
        %p234 = pneg %p47
        %p235 = pneg %p44
        %p236 = pneg %p68
        %p237 = pneg %p65
        %p238 = pneg %p89
        %p239 = pneg %p86
        %p240 = pneg %p115
        %p241 = pneg %p112
        %s242 = sand.u32 %s102, 1
        %s243 = scalar_lea.sflag [#allocation4], %s242
        %s244 = sand.u32 %s102, 1
        %s245 = smul.addr %s244, 216
        %s246 = scalar_lea.vmem [#allocation8], %s245
        %p247 = pneg %p141
        %p248 = pneg %p138
        %s249 = sand.u32 %s128, 1
        %s250 = scalar_lea.sflag [#allocation10], %s249
        %s251 = sand.u32 %s128, 1
        %s252 = smul.addr %s251, 2
        %s253 = scalar_lea.vmem [#allocation9], %s252
        %v255 = vld [vmem:[%s216] sm:$0xf]
        %v256 = vld [vmem:[%s216 + $0x4] sm:$0xf]
        %v257 = vld [vmem:[%s216 + $0x8] sm:$0x1]
        %v258 = vld [vmem:[%s216 + $0xc] sm:$0xf]
        %v259 = vld [vmem:[%s216 + $0x10] sm:$0xf]
        %v260 = vld [vmem:[%s216 + $0x14] sm:$0x1]
        %v261 = vld [vmem:[%s216 + $0x18] sm:$0xf]
        %v262 = vld [vmem:[%s216 + $0x1c] sm:$0xf]
        %v263 = vld [vmem:[%s216 + $0x20] sm:$0x1]
        %v264 = vld [vmem:[%s216 + $0x24] sm:$0xf]
        %v265 = vld [vmem:[%s216 + $0x28] sm:$0xf]
        %v266 = vld [vmem:[%s216 + $0x2c] sm:$0x1]
        %v267 = vld [vmem:[%s216 + $0x30] sm:$0xf]
        %v268 = vld [vmem:[%s216 + $0x34] sm:$0xf]
        %v269 = vld [vmem:[%s216 + $0x38] sm:$0x1]
        %v270 = vld [vmem:[%s216 + $0x3c] sm:$0xf]
        %v271 = vld [vmem:[%s216 + $0x40] sm:$0xf]
        %v272 = vld [vmem:[%s216 + $0x44] sm:$0x1]
        %v273 = vld [vmem:[%s216 + $0x48] sm:$0xf]
        %v274 = vld [vmem:[%s216 + $0x4c] sm:$0xf]
        %v275 = vld [vmem:[%s216 + $0x50] sm:$0x1]
        %v276 = vld [vmem:[%s216 + $0x54] sm:$0xf]
        %v277 = vld [vmem:[%s216 + $0x58] sm:$0xf]
        %v278 = vld [vmem:[%s216 + $0x5c] sm:$0x1]
        %v279 = vld [vmem:[%s216 + $0x60] sm:$0xf]
        %v280 = vld [vmem:[%s216 + $0x64] sm:$0xf]
        %v281 = vld [vmem:[%s216 + $0x68] sm:$0x1]
        %v282 = vld [vmem:[%s216 + $0x6c] sm:$0xf]
        %v283 = vld [vmem:[%s216 + $0x70] sm:$0xf]
        %v284 = vld [vmem:[%s216 + $0x74] sm:$0x1]
        %v285 = vld [vmem:[%s216 + $0x78] sm:$0xf]
        %v286 = vld [vmem:[%s216 + $0x7c] sm:$0xf]
        %v287 = vld [vmem:[%s216 + $0x80] sm:$0x1]
        %v288 = vld [vmem:[%s216 + $0x84] sm:$0xf]
        %v289 = vld [vmem:[%s216 + $0x88] sm:$0xf]
        %v290 = vld [vmem:[%s216 + $0x8c] sm:$0x1]
        %v291 = vld [vmem:[%s216 + $0x90] sm:$0xf]
        %v292 = vld [vmem:[%s216 + $0x94] sm:$0xf]
        %v293 = vld [vmem:[%s216 + $0x98] sm:$0x1]
        %v294 = vld [vmem:[%s216 + $0x9c] sm:$0xf]
        %v295 = vld [vmem:[%s216 + $0xa0] sm:$0xf]
        %v296 = vld [vmem:[%s216 + $0xa4] sm:$0x1]
        %v297 = vld [vmem:[%s216 + $0xa8] sm:$0xf]
        %v298 = vld [vmem:[%s216 + $0xac] sm:$0xf]
        %v299 = vld [vmem:[%s216 + $0xb0] sm:$0x1]
        %v300 = vld [vmem:[%s216 + $0xb4] sm:$0xf]
        %v301 = vld [vmem:[%s216 + $0xb8] sm:$0xf]
        %v302 = vld [vmem:[%s216 + $0xbc] sm:$0x1]
        %v303 = vld [vmem:[%s216 + $0xc0] sm:$0xf]
        %v304 = vld [vmem:[%s216 + $0xc4] sm:$0xf]
        %v305 = vld [vmem:[%s216 + $0xc8] sm:$0x1]
        %v306 = vld [vmem:[%s216 + $0xcc] sm:$0xf]
        %v307 = vld [vmem:[%s216 + $0xd0] sm:$0xf]
        %v308 = vld [vmem:[%s216 + $0xd4] sm:$0x1]
        %vm309 = vsmask.f32 3328
        %vm310 = vsmask.f32 7440
        %vm311 = vmor %vm309, %vm310
        %v313 = vshrl.u32 %v255, 16
        %v315 = vrot.slane %v313, 4
        %v316 = vshll.u32 %v255, 16
        %v318 = vrot.slane %v316, 5
        %v319 = vor.u32 %v315, %v318
        %v320 = vrot.slane %v319, 4
        %v322 = vshll.u32 %v256, 16
        %v324 = vrot.slane %v322, 5
        %v325 = vsel %vm311, %v320, %v324
        %v326 = vshrl.u32 %v256, 16
        %v328 = vrot.slane %v326, 4
        %v329 = vor.u32 %v328, %v324
        %v330 = vrot.slane %v329, 4
        %v332 = vshll.u32 %v257, 16
        %v334 = vrot.slane %v332, 5
        %v335 = vsel %vm311, %v330, %v334
        %v337 = vshrl.u32 %v258, 16
        %v339 = vrot.slane %v337, 4
        %v340 = vshll.u32 %v258, 16
        %v342 = vrot.slane %v340, 5
        %v343 = vor.u32 %v339, %v342
        %v344 = vrot.slane %v343, 4
        %v346 = vshll.u32 %v259, 16
        %v348 = vrot.slane %v346, 5
        %v349 = vsel %vm311, %v344, %v348
        %v350 = vshrl.u32 %v259, 16
        %v352 = vrot.slane %v350, 4
        %v353 = vor.u32 %v352, %v348
        %v354 = vrot.slane %v353, 4
        %v356 = vshll.u32 %v260, 16
        %v358 = vrot.slane %v356, 5
        %v359 = vsel %vm311, %v354, %v358
        %v361 = vshrl.u32 %v261, 16
        %v363 = vrot.slane %v361, 4
        %v364 = vshll.u32 %v261, 16
        %v366 = vrot.slane %v364, 5
        %v367 = vor.u32 %v363, %v366
        %v368 = vrot.slane %v367, 4
        %v370 = vshll.u32 %v262, 16
        %v372 = vrot.slane %v370, 5
        %v373 = vsel %vm311, %v368, %v372
        %v374 = vshrl.u32 %v262, 16
        %v376 = vrot.slane %v374, 4
        %v377 = vor.u32 %v376, %v372
        %v378 = vrot.slane %v377, 4
        %v380 = vshll.u32 %v263, 16
        %v382 = vrot.slane %v380, 5
        %v383 = vsel %vm311, %v378, %v382
        %v385 = vshrl.u32 %v264, 16
        %v387 = vrot.slane %v385, 4
        %v388 = vshll.u32 %v264, 16
        %v390 = vrot.slane %v388, 5
        %v391 = vor.u32 %v387, %v390
        %v392 = vrot.slane %v391, 4
        %v394 = vshll.u32 %v265, 16
        %v396 = vrot.slane %v394, 5
        %v397 = vsel %vm311, %v392, %v396
        %v398 = vshrl.u32 %v265, 16
        %v400 = vrot.slane %v398, 4
        %v401 = vor.u32 %v400, %v396
        %v402 = vrot.slane %v401, 4
        %v404 = vshll.u32 %v266, 16
        %v406 = vrot.slane %v404, 5
        %v407 = vsel %vm311, %v402, %v406
        %v409 = vshrl.u32 %v267, 16
        %v411 = vrot.slane %v409, 4
        %v412 = vshll.u32 %v267, 16
        %v414 = vrot.slane %v412, 5
        %v415 = vor.u32 %v411, %v414
        %v416 = vrot.slane %v415, 4
        %v418 = vshll.u32 %v268, 16
        %v420 = vrot.slane %v418, 5
        %v421 = vsel %vm311, %v416, %v420
        %v422 = vshrl.u32 %v268, 16
        %v424 = vrot.slane %v422, 4
        %v425 = vor.u32 %v424, %v420
        %v426 = vrot.slane %v425, 4
        %v428 = vshll.u32 %v269, 16
        %v430 = vrot.slane %v428, 5
        %v431 = vsel %vm311, %v426, %v430
        %v433 = vshrl.u32 %v270, 16
        %v435 = vrot.slane %v433, 4
        %v436 = vshll.u32 %v270, 16
        %v438 = vrot.slane %v436, 5
        %v439 = vor.u32 %v435, %v438
        %v440 = vrot.slane %v439, 4
        %v442 = vshll.u32 %v271, 16
        %v444 = vrot.slane %v442, 5
        %v445 = vsel %vm311, %v440, %v444
        %v446 = vshrl.u32 %v271, 16
        %v448 = vrot.slane %v446, 4
        %v449 = vor.u32 %v448, %v444
        %v450 = vrot.slane %v449, 4
        %v452 = vshll.u32 %v272, 16
        %v454 = vrot.slane %v452, 5
        %v455 = vsel %vm311, %v450, %v454
        %v457 = vshrl.u32 %v273, 16
        %v459 = vrot.slane %v457, 4
        %v460 = vshll.u32 %v273, 16
        %v462 = vrot.slane %v460, 5
        %v463 = vor.u32 %v459, %v462
        %v464 = vrot.slane %v463, 4
        %v466 = vshll.u32 %v274, 16
        %v468 = vrot.slane %v466, 5
        %v469 = vsel %vm311, %v464, %v468
        %v470 = vshrl.u32 %v274, 16
        %v472 = vrot.slane %v470, 4
        %v473 = vor.u32 %v472, %v468
        %v474 = vrot.slane %v473, 4
        %v476 = vshll.u32 %v275, 16
        %v478 = vrot.slane %v476, 5
        %v479 = vsel %vm311, %v474, %v478
        %v481 = vshrl.u32 %v276, 16
        %v483 = vrot.slane %v481, 4
        %v484 = vshll.u32 %v276, 16
        %v486 = vrot.slane %v484, 5
        %v487 = vor.u32 %v483, %v486
        %v488 = vrot.slane %v487, 4
        %v490 = vshll.u32 %v277, 16
        %v492 = vrot.slane %v490, 5
        %v493 = vsel %vm311, %v488, %v492
        %v494 = vshrl.u32 %v277, 16
        %v496 = vrot.slane %v494, 4
        %v497 = vor.u32 %v496, %v492
        %v498 = vrot.slane %v497, 4
        %v500 = vshll.u32 %v278, 16
        %v502 = vrot.slane %v500, 5
        %v503 = vsel %vm311, %v498, %v502
        %v505 = vshrl.u32 %v279, 16
        %v507 = vrot.slane %v505, 4
        %v508 = vshll.u32 %v279, 16
        %v510 = vrot.slane %v508, 5
        %v511 = vor.u32 %v507, %v510
        %v512 = vrot.slane %v511, 4
        %v514 = vshll.u32 %v280, 16
        %v516 = vrot.slane %v514, 5
        %v517 = vsel %vm311, %v512, %v516
        %v518 = vshrl.u32 %v280, 16
        %v520 = vrot.slane %v518, 4
        %v521 = vor.u32 %v520, %v516
        %v522 = vrot.slane %v521, 4
        %v524 = vshll.u32 %v281, 16
        %v526 = vrot.slane %v524, 5
        %v527 = vsel %vm311, %v522, %v526
        %v529 = vshrl.u32 %v282, 16
        %v531 = vrot.slane %v529, 4
        %v532 = vshll.u32 %v282, 16
        %v534 = vrot.slane %v532, 5
        %v535 = vor.u32 %v531, %v534
        %v536 = vrot.slane %v535, 4
        %v538 = vshll.u32 %v283, 16
        %v540 = vrot.slane %v538, 5
        %v541 = vsel %vm311, %v536, %v540
        %v542 = vshrl.u32 %v283, 16
        %v544 = vrot.slane %v542, 4
        %v545 = vor.u32 %v544, %v540
        %v546 = vrot.slane %v545, 4
        %v548 = vshll.u32 %v284, 16
        %v550 = vrot.slane %v548, 5
        %v551 = vsel %vm311, %v546, %v550
        %v553 = vshrl.u32 %v285, 16
        %v555 = vrot.slane %v553, 4
        %v556 = vshll.u32 %v285, 16
        %v558 = vrot.slane %v556, 5
        %v559 = vor.u32 %v555, %v558
        %v560 = vrot.slane %v559, 4
        %v562 = vshll.u32 %v286, 16
        %v564 = vrot.slane %v562, 5
        %v565 = vsel %vm311, %v560, %v564
        %v566 = vshrl.u32 %v286, 16
        %v568 = vrot.slane %v566, 4
        %v569 = vor.u32 %v568, %v564
        %v570 = vrot.slane %v569, 4
        %v572 = vshll.u32 %v287, 16
        %v574 = vrot.slane %v572, 5
        %v575 = vsel %vm311, %v570, %v574
        %v577 = vshrl.u32 %v288, 16
        %v579 = vrot.slane %v577, 4
        %v580 = vshll.u32 %v288, 16
        %v582 = vrot.slane %v580, 5
        %v583 = vor.u32 %v579, %v582
        %v584 = vrot.slane %v583, 4
        %v586 = vshll.u32 %v289, 16
        %v588 = vrot.slane %v586, 5
        %v589 = vsel %vm311, %v584, %v588
        %v590 = vshrl.u32 %v289, 16
        %v592 = vrot.slane %v590, 4
        %v593 = vor.u32 %v592, %v588
        %v594 = vrot.slane %v593, 4
        %v596 = vshll.u32 %v290, 16
        %v598 = vrot.slane %v596, 5
        %v599 = vsel %vm311, %v594, %v598
        %v601 = vshrl.u32 %v291, 16
        %v603 = vrot.slane %v601, 4
        %v604 = vshll.u32 %v291, 16
        %v606 = vrot.slane %v604, 5
        %v607 = vor.u32 %v603, %v606
        %v608 = vrot.slane %v607, 4
        %v610 = vshll.u32 %v292, 16
        %v612 = vrot.slane %v610, 5
        %v613 = vsel %vm311, %v608, %v612
        %v614 = vshrl.u32 %v292, 16
        %v616 = vrot.slane %v614, 4
        %v617 = vor.u32 %v616, %v612
        %v618 = vrot.slane %v617, 4
        %v620 = vshll.u32 %v293, 16
        %v622 = vrot.slane %v620, 5
        %v623 = vsel %vm311, %v618, %v622
        %v625 = vshrl.u32 %v294, 16
        %v627 = vrot.slane %v625, 4
        %v628 = vshll.u32 %v294, 16
        %v630 = vrot.slane %v628, 5
        %v631 = vor.u32 %v627, %v630
        %v632 = vrot.slane %v631, 4
        %v634 = vshll.u32 %v295, 16
        %v636 = vrot.slane %v634, 5
        %v637 = vsel %vm311, %v632, %v636
        %v638 = vshrl.u32 %v295, 16
        %v640 = vrot.slane %v638, 4
        %v641 = vor.u32 %v640, %v636
        %v642 = vrot.slane %v641, 4
        %v644 = vshll.u32 %v296, 16
        %v646 = vrot.slane %v644, 5
        %v647 = vsel %vm311, %v642, %v646
        %v649 = vshrl.u32 %v297, 16
        %v651 = vrot.slane %v649, 4
        %v652 = vshll.u32 %v297, 16
        %v654 = vrot.slane %v652, 5
        %v655 = vor.u32 %v651, %v654
        %v656 = vrot.slane %v655, 4
        %v658 = vshll.u32 %v298, 16
        %v660 = vrot.slane %v658, 5
        %v661 = vsel %vm311, %v656, %v660
        %v662 = vshrl.u32 %v298, 16
        %v664 = vrot.slane %v662, 4
        %v665 = vor.u32 %v664, %v660
        %v666 = vrot.slane %v665, 4
        %v668 = vshll.u32 %v299, 16
        %v670 = vrot.slane %v668, 5
        %v671 = vsel %vm311, %v666, %v670
        %v673 = vshrl.u32 %v300, 16
        %v675 = vrot.slane %v673, 4
        %v676 = vshll.u32 %v300, 16
        %v678 = vrot.slane %v676, 5
        %v679 = vor.u32 %v675, %v678
        %v680 = vrot.slane %v679, 4
        %v682 = vshll.u32 %v301, 16
        %v684 = vrot.slane %v682, 5
        %v685 = vsel %vm311, %v680, %v684
        %v686 = vshrl.u32 %v301, 16
        %v688 = vrot.slane %v686, 4
        %v689 = vor.u32 %v688, %v684
        %v690 = vrot.slane %v689, 4
        %v692 = vshll.u32 %v302, 16
        %v694 = vrot.slane %v692, 5
        %v695 = vsel %vm311, %v690, %v694
        %vm744 = vcmask 1042432
        %vm745 = vcmask 1046532
        %vm746 = vmor %vm744, %vm745
        %v747 = vrot.slane %v255, 5
        %v748 = vrot.slane %v747, 4
        %v749 = vrot.slane %v256, 5
        %v750 = vsel %vm746, %v748, %v749
        %v751 = vrot.slane %v749, 4
        %v752 = vrot.slane %v257, 5
        %v753 = vsel %vm746, %v751, %v752
        %v754 = vrot.slane %v258, 5
        %v755 = vrot.slane %v754, 4
        %v756 = vrot.slane %v259, 5
        %v757 = vsel %vm746, %v755, %v756
        %v758 = vrot.slane %v756, 4
        %v759 = vrot.slane %v260, 5
        %v760 = vsel %vm746, %v758, %v759
        %v761 = vrot.slane %v261, 5
        %v762 = vrot.slane %v761, 4
        %v763 = vrot.slane %v262, 5
        %v764 = vsel %vm746, %v762, %v763
        %v765 = vrot.slane %v763, 4
        %v766 = vrot.slane %v263, 5
        %v767 = vsel %vm746, %v765, %v766
        %v768 = vrot.slane %v264, 5
        %v769 = vrot.slane %v768, 4
        %v770 = vrot.slane %v265, 5
        %v771 = vsel %vm746, %v769, %v770
        %v772 = vrot.slane %v770, 4
        %v773 = vrot.slane %v266, 5
        %v774 = vsel %vm746, %v772, %v773
        %v775 = vrot.slane %v267, 5
        %v776 = vrot.slane %v775, 4
        %v777 = vrot.slane %v268, 5
        %v778 = vsel %vm746, %v776, %v777
        %v779 = vrot.slane %v777, 4
        %v780 = vrot.slane %v269, 5
        %v781 = vsel %vm746, %v779, %v780
        %v782 = vrot.slane %v270, 5
        %v783 = vrot.slane %v782, 4
        %v784 = vrot.slane %v271, 5
        %v785 = vsel %vm746, %v783, %v784
        %v786 = vrot.slane %v784, 4
        %v787 = vrot.slane %v272, 5
        %v788 = vsel %vm746, %v786, %v787
        %v789 = vrot.slane %v273, 5
        %v790 = vrot.slane %v789, 4
        %v791 = vrot.slane %v274, 5
        %v792 = vsel %vm746, %v790, %v791
        %v793 = vrot.slane %v791, 4
        %v794 = vrot.slane %v275, 5
        %v795 = vsel %vm746, %v793, %v794
        %v796 = vrot.slane %v276, 5
        %v797 = vrot.slane %v796, 4
        %v798 = vrot.slane %v277, 5
        %v799 = vsel %vm746, %v797, %v798
        %v800 = vrot.slane %v798, 4
        %v801 = vrot.slane %v278, 5
        %v802 = vsel %vm746, %v800, %v801
        %v803 = vrot.slane %v279, 5
        %v804 = vrot.slane %v803, 4
        %v805 = vrot.slane %v280, 5
        %v806 = vsel %vm746, %v804, %v805
        %v807 = vrot.slane %v805, 4
        %v808 = vrot.slane %v281, 5
        %v809 = vsel %vm746, %v807, %v808
        %v810 = vrot.slane %v282, 5
        %v811 = vrot.slane %v810, 4
        %v812 = vrot.slane %v283, 5
        %v813 = vsel %vm746, %v811, %v812
        %v814 = vrot.slane %v812, 4
        %v815 = vrot.slane %v284, 5
        %v816 = vsel %vm746, %v814, %v815
        %v817 = vrot.slane %v285, 5
        %v818 = vrot.slane %v817, 4
        %v819 = vrot.slane %v286, 5
        %v820 = vsel %vm746, %v818, %v819
        %v821 = vrot.slane %v819, 4
        %v822 = vrot.slane %v287, 5
        %v823 = vsel %vm746, %v821, %v822
        %v824 = vrot.slane %v288, 5
        %v825 = vrot.slane %v824, 4
        %v826 = vrot.slane %v289, 5
        %v827 = vsel %vm746, %v825, %v826
        %v828 = vrot.slane %v826, 4
        %v829 = vrot.slane %v290, 5
        %v830 = vsel %vm746, %v828, %v829
        %v831 = vrot.slane %v291, 5
        %v832 = vrot.slane %v831, 4
        %v833 = vrot.slane %v292, 5
        %v834 = vsel %vm746, %v832, %v833
        %v835 = vrot.slane %v833, 4
        %v836 = vrot.slane %v293, 5
        %v837 = vsel %vm746, %v835, %v836
        %v838 = vrot.slane %v294, 5
        %v839 = vrot.slane %v838, 4
        %v840 = vrot.slane %v295, 5
        %v841 = vsel %vm746, %v839, %v840
        %v842 = vrot.slane %v840, 4
        %v843 = vrot.slane %v296, 5
        %v844 = vsel %vm746, %v842, %v843
        %v845 = vrot.slane %v297, 5
        %v846 = vrot.slane %v845, 4
        %v847 = vrot.slane %v298, 5
        %v848 = vsel %vm746, %v846, %v847
        %v849 = vrot.slane %v847, 4
        %v850 = vrot.slane %v299, 5
        %v851 = vsel %vm746, %v849, %v850
        %v852 = vrot.slane %v300, 5
        %v853 = vrot.slane %v852, 4
        %v854 = vrot.slane %v301, 5
        %v855 = vsel %vm746, %v853, %v854
        %v856 = vrot.slane %v854, 4
        %v857 = vrot.slane %v302, 5
        %v858 = vsel %vm746, %v856, %v857
        %v860 = vshrl.u32 %v303, 16
        %v862 = vrot.slane %v860, 4
        %v863 = vshll.u32 %v303, 16
        %v865 = vrot.slane %v863, 5
        %v866 = vor.u32 %v862, %v865
        %v867 = vrot.slane %v866, 4
        %v869 = vshll.u32 %v304, 16
        %v871 = vrot.slane %v869, 5
        %v872 = vsel %vm311, %v867, %v871
        %v873 = vshrl.u32 %v304, 16
        %v875 = vrot.slane %v873, 4
        %v876 = vor.u32 %v875, %v871
        %v877 = vrot.slane %v876, 4
        %v879 = vshll.u32 %v305, 16
        %v881 = vrot.slane %v879, 5
        %v882 = vsel %vm311, %v877, %v881
        %v886 = vrot.slane %v303, 5
        %v887 = vrot.slane %v886, 4
        %v888 = vrot.slane %v304, 5
        %v889 = vsel %vm746, %v887, %v888
        %v890 = vrot.slane %v888, 4
        %v891 = vrot.slane %v305, 5
        %v892 = vsel %vm746, %v890, %v891
        %v894 = vshrl.u32 %v306, 16
        %v896 = vrot.slane %v894, 4
        %v897 = vshll.u32 %v306, 16
        %v899 = vrot.slane %v897, 5
        %v900 = vor.u32 %v896, %v899
        %v901 = vrot.slane %v900, 4
        %v903 = vshll.u32 %v307, 16
        %v905 = vrot.slane %v903, 5
        %v906 = vsel %vm311, %v901, %v905
        %v907 = vshrl.u32 %v307, 16
        %v909 = vrot.slane %v907, 4
        %v910 = vor.u32 %v909, %v905
        %v911 = vrot.slane %v910, 4
        %v913 = vshll.u32 %v308, 16
        %v915 = vrot.slane %v913, 5
        %v916 = vsel %vm311, %v911, %v915
        %v920 = vrot.slane %v306, 5
        %v921 = vrot.slane %v920, 4
        %v922 = vrot.slane %v307, 5
        %v923 = vsel %vm746, %v921, %v922
        %v924 = vrot.slane %v922, 4
        %v925 = vrot.slane %v308, 5
        %v926 = vsel %vm746, %v924, %v925
        %v927 = vunpack.c.l.b16 %v255
        %v928 = vunpack.c.l.b16 %v256
        %v929 = vunpack.c.l.b16 %v258
        %v930 = vunpack.c.l.b16 %v259
        %v931 = vunpack.c.l.b16 %v261
        %v932 = vunpack.c.l.b16 %v262
        %v933 = vunpack.c.l.b16 %v264
        %v934 = vunpack.c.l.b16 %v265
        %v935 = vunpack.c.l.b16 %v267
        %v936 = vunpack.c.l.b16 %v268
        %v937 = vunpack.c.l.b16 %v270
        %v938 = vunpack.c.l.b16 %v271
        %v939 = vunpack.c.l.b16 %v273
        %v940 = vunpack.c.l.b16 %v274
        %v941 = vunpack.c.l.b16 %v276
        %v942 = vunpack.c.l.b16 %v277
        %v943 = vunpack.c.l.b16 %v279
        %v944 = vunpack.c.l.b16 %v280
        %v945 = vunpack.c.l.b16 %v282
        %v946 = vunpack.c.l.b16 %v283
        %v947 = vunpack.c.l.b16 %v285
        %v948 = vunpack.c.l.b16 %v286
        %v949 = vunpack.c.l.b16 %v288
        %v950 = vunpack.c.l.b16 %v289
        %v951 = vunpack.c.l.b16 %v291
        %v952 = vunpack.c.l.b16 %v292
        %v953 = vunpack.c.l.b16 %v294
        %v954 = vunpack.c.l.b16 %v295
        %v955 = vunpack.c.l.b16 %v297
        %v956 = vunpack.c.l.b16 %v298
        %v957 = vunpack.c.l.b16 %v300
        %v958 = vunpack.c.l.b16 %v301
        %v959 = vpack.c.b16 %v928, %v927
        %v960 = vpack.c.b16 %v930, %v929
        %v961 = vpack.c.b16 %v932, %v931
        %v962 = vpack.c.b16 %v934, %v933
        %v963 = vpack.c.b16 %v936, %v935
        %v964 = vpack.c.b16 %v938, %v937
        %v965 = vpack.c.b16 %v940, %v939
        %v966 = vpack.c.b16 %v942, %v941
        %v967 = vpack.c.b16 %v944, %v943
        %v968 = vpack.c.b16 %v946, %v945
        %v969 = vpack.c.b16 %v948, %v947
        %v970 = vpack.c.b16 %v950, %v949
        %v971 = vpack.c.b16 %v952, %v951
        %v972 = vpack.c.b16 %v954, %v953
        %v973 = vpack.c.b16 %v956, %v955
        %v974 = vpack.c.b16 %v958, %v957
        %v991 = vunpack.c.l.b16 %v325
        %v992 = vunpack.c.l.b16 %v335
        %v993 = vunpack.c.l.b16 %v349
        %v994 = vunpack.c.l.b16 %v359
        %v995 = vunpack.c.l.b16 %v373
        %v996 = vunpack.c.l.b16 %v383
        %v997 = vunpack.c.l.b16 %v397
        %v998 = vunpack.c.l.b16 %v407
        %v999 = vunpack.c.l.b16 %v421
        %v1000 = vunpack.c.l.b16 %v431
        %v1001 = vunpack.c.l.b16 %v445
        %v1002 = vunpack.c.l.b16 %v455
        %v1003 = vunpack.c.l.b16 %v469
        %v1004 = vunpack.c.l.b16 %v479
        %v1005 = vunpack.c.l.b16 %v493
        %v1006 = vunpack.c.l.b16 %v503
        %v1007 = vunpack.c.l.b16 %v517
        %v1008 = vunpack.c.l.b16 %v527
        %v1009 = vunpack.c.l.b16 %v541
        %v1010 = vunpack.c.l.b16 %v551
        %v1011 = vunpack.c.l.b16 %v565
        %v1012 = vunpack.c.l.b16 %v575
        %v1013 = vunpack.c.l.b16 %v589
        %v1014 = vunpack.c.l.b16 %v599
        %v1015 = vunpack.c.l.b16 %v613
        %v1016 = vunpack.c.l.b16 %v623
        %v1017 = vunpack.c.l.b16 %v637
        %v1018 = vunpack.c.l.b16 %v647
        %v1019 = vunpack.c.l.b16 %v661
        %v1020 = vunpack.c.l.b16 %v671
        %v1021 = vunpack.c.l.b16 %v685
        %v1022 = vunpack.c.l.b16 %v695
        %v1023 = vpack.c.b16 %v992, %v991
        %v1024 = vpack.c.b16 %v994, %v993
        %v1025 = vpack.c.b16 %v996, %v995
        %v1026 = vpack.c.b16 %v998, %v997
        %v1027 = vpack.c.b16 %v1000, %v999
        %v1028 = vpack.c.b16 %v1002, %v1001
        %v1029 = vpack.c.b16 %v1004, %v1003
        %v1030 = vpack.c.b16 %v1006, %v1005
        %v1031 = vpack.c.b16 %v1008, %v1007
        %v1032 = vpack.c.b16 %v1010, %v1009
        %v1033 = vpack.c.b16 %v1012, %v1011
        %v1034 = vpack.c.b16 %v1014, %v1013
        %v1035 = vpack.c.b16 %v1016, %v1015
        %v1036 = vpack.c.b16 %v1018, %v1017
        %v1037 = vpack.c.b16 %v1020, %v1019
        %v1038 = vpack.c.b16 %v1022, %v1021
        %v1055 = vunpack.c.l.b16 %v750
        %v1056 = vunpack.c.l.b16 %v753
        %v1057 = vunpack.c.l.b16 %v757
        %v1058 = vunpack.c.l.b16 %v760
        %v1059 = vunpack.c.l.b16 %v764
        %v1060 = vunpack.c.l.b16 %v767
        %v1061 = vunpack.c.l.b16 %v771
        %v1062 = vunpack.c.l.b16 %v774
        %v1063 = vunpack.c.l.b16 %v778
        %v1064 = vunpack.c.l.b16 %v781
        %v1065 = vunpack.c.l.b16 %v785
        %v1066 = vunpack.c.l.b16 %v788
        %v1067 = vunpack.c.l.b16 %v792
        %v1068 = vunpack.c.l.b16 %v795
        %v1069 = vunpack.c.l.b16 %v799
        %v1070 = vunpack.c.l.b16 %v802
        %v1071 = vunpack.c.l.b16 %v806
        %v1072 = vunpack.c.l.b16 %v809
        %v1073 = vunpack.c.l.b16 %v813
        %v1074 = vunpack.c.l.b16 %v816
        %v1075 = vunpack.c.l.b16 %v820
        %v1076 = vunpack.c.l.b16 %v823
        %v1077 = vunpack.c.l.b16 %v827
        %v1078 = vunpack.c.l.b16 %v830
        %v1079 = vunpack.c.l.b16 %v834
        %v1080 = vunpack.c.l.b16 %v837
        %v1081 = vunpack.c.l.b16 %v841
        %v1082 = vunpack.c.l.b16 %v844
        %v1083 = vunpack.c.l.b16 %v848
        %v1084 = vunpack.c.l.b16 %v851
        %v1085 = vunpack.c.l.b16 %v855
        %v1086 = vunpack.c.l.b16 %v858
        %v1087 = vpack.c.b16 %v1056, %v1055
        %v1088 = vpack.c.b16 %v1058, %v1057
        %v1089 = vpack.c.b16 %v1060, %v1059
        %v1090 = vpack.c.b16 %v1062, %v1061
        %v1091 = vpack.c.b16 %v1064, %v1063
        %v1092 = vpack.c.b16 %v1066, %v1065
        %v1093 = vpack.c.b16 %v1068, %v1067
        %v1094 = vpack.c.b16 %v1070, %v1069
        %v1095 = vpack.c.b16 %v1072, %v1071
        %v1096 = vpack.c.b16 %v1074, %v1073
        %v1097 = vpack.c.b16 %v1076, %v1075
        %v1098 = vpack.c.b16 %v1078, %v1077
        %v1099 = vpack.c.b16 %v1080, %v1079
        %v1100 = vpack.c.b16 %v1082, %v1081
        %v1101 = vpack.c.b16 %v1084, %v1083
        %v1102 = vpack.c.b16 %v1086, %v1085
        %v1119 = vunpack.c.l.b16 %v303
        %v1120 = vunpack.c.l.b16 %v304
        %v1121 = vpack.c.b16 %v1120, %v1119
        %v1123 = vunpack.c.l.b16 %v872
        %v1124 = vunpack.c.l.b16 %v882
        %v1125 = vpack.c.b16 %v1124, %v1123
        %v1127 = vunpack.c.l.b16 %v889
        %v1128 = vunpack.c.l.b16 %v892
        %v1129 = vpack.c.b16 %v1128, %v1127
        %v1131 = vunpack.c.l.b16 %v306
        %v1132 = vunpack.c.l.b16 %v307
        %v1133 = vpack.c.b16 %v1132, %v1131
        %v1135 = vunpack.c.l.b16 %v906
        %v1136 = vunpack.c.l.b16 %v916
        %v1137 = vpack.c.b16 %v1136, %v1135
        %v1139 = vunpack.c.l.b16 %v923
        %v1140 = vunpack.c.l.b16 %v926
        %v1141 = vpack.c.b16 %v1140, %v1139
        %v1143 = vld [vmem:[#allocation5] sm:$0xf]
        %v1144 = vld [vmem:[#allocation5 + $0x4] sm:$0xf]
        %v1145 = vld [vmem:[#allocation5 + $0x8] sm:$0xf]
        %v1146 = vld [vmem:[#allocation5 + $0xc] sm:$0xf]
        %v1147 = vld [vmem:[#allocation5 + $0x10] sm:$0xf]
        %v1148 = vld [vmem:[#allocation5 + $0x14] sm:$0xf]
        %v1149 = vld [vmem:[#allocation5 + $0x18] sm:$0xf]
        %v1150 = vld [vmem:[#allocation5 + $0x1c] sm:$0xf]
        %v1151 = vld [vmem:[#allocation5 + $0x20] sm:$0xf]
        %v1152 = vld [vmem:[#allocation5 + $0x24] sm:$0xf]
        %v1153 = vld [vmem:[#allocation5 + $0x28] sm:$0xf]
        %v1154 = vld [vmem:[#allocation5 + $0x2c] sm:$0xf]
        %v1155 = vld [vmem:[#allocation5 + $0x30] sm:$0xf]
        %v1156 = vld [vmem:[#allocation5 + $0x34] sm:$0xf]
        %v1157 = vld [vmem:[#allocation5 + $0x38] sm:$0xf]
        %v1158 = vld [vmem:[#allocation5 + $0x3c] sm:$0xf]
        %v1159 = vld [vmem:[#allocation5 + $0x40] sm:$0xf]
        %v1160 = vld [vmem:[#allocation5 + $0x44] sm:$0xf]
        %v1161 = vld [vmem:[#allocation5 + $0x48] sm:$0xf]
        %v1162 = vld [vmem:[#allocation5 + $0x4c] sm:$0xf]
        %v1163 = vld [vmem:[#allocation5 + $0x50] sm:$0xf]
        %v1164 = vld [vmem:[#allocation5 + $0x54] sm:$0xf]
        %v1165 = vld [vmem:[#allocation5 + $0x58] sm:$0xf]
        %v1166 = vld [vmem:[#allocation5 + $0x5c] sm:$0xf]
        %v1167 = vld [vmem:[#allocation5 + $0x60] sm:$0xf]
        %v1168 = vld [vmem:[#allocation5 + $0x64] sm:$0xf]
        %v1169 = vld [vmem:[#allocation5 + $0x68] sm:$0xf]
        %v1170 = vld [vmem:[#allocation5 + $0x6c] sm:$0xf]
        %v1171 = vld [vmem:[#allocation5 + $0x70] sm:$0xf]
        %v1172 = vld [vmem:[#allocation5 + $0x74] sm:$0xf]
        %v1173 = vld [vmem:[#allocation5 + $0x78] sm:$0xf]
        %v1174 = vld [vmem:[#allocation5 + $0x7c] sm:$0xf]
        %v1175 = vld [vmem:[#allocation5 + $0x80] sm:$0xf]
        %v1176 = vld [vmem:[#allocation5 + $0x84] sm:$0xf]
        %v1177 = vld [vmem:[#allocation5 + $0x88] sm:$0xf]
        %v1178 = vld [vmem:[#allocation5 + $0x8c] sm:$0xf]
        %v1179 = vld [vmem:[#allocation5 + $0x90] sm:$0xf]
        %v1180 = vld [vmem:[#allocation5 + $0x94] sm:$0xf]
        %v1181 = vld [vmem:[#allocation5 + $0x98] sm:$0xf]
        %v1182 = vld [vmem:[#allocation5 + $0x9c] sm:$0xf]
        %v1183 = vld [vmem:[#allocation5 + $0xa0] sm:$0xf]
        %v1184 = vld [vmem:[#allocation5 + $0xa4] sm:$0xf]
        %v1185 = vld [vmem:[#allocation5 + $0xa8] sm:$0xf]
        %v1186 = vld [vmem:[#allocation5 + $0xac] sm:$0xf]
        %v1187 = vld [vmem:[#allocation5 + $0xb0] sm:$0xf]
        %v1188 = vld [vmem:[#allocation5 + $0xb4] sm:$0xf]
        %v1189 = vld [vmem:[#allocation5 + $0xb8] sm:$0xf]
        %v1190 = vld [vmem:[#allocation5 + $0xbc] sm:$0xf]
        %v1191 = vld [vmem:[#allocation5 + $0xc0] sm:$0xf]
        %v1192 = vld [vmem:[#allocation5 + $0xc4] sm:$0xf]
        %v1193 = vld [vmem:[#allocation5 + $0xc8] sm:$0xf]
        %v1194 = vld [vmem:[#allocation5 + $0xcc] sm:$0xf]
        %v1195 = vld [vmem:[#allocation5 + $0xd0] sm:$0xf]
        %v1196 = vld [vmem:[#allocation5 + $0xd4] sm:$0xf]
        %v1197 = vld [vmem:[#allocation5 + $0xd8] sm:$0xf]
        %v1198 = vld [vmem:[#allocation5 + $0xdc] sm:$0xf]
        %v1199 = vld [vmem:[#allocation5 + $0xe0] sm:$0xf]
        %v1200 = vld [vmem:[#allocation5 + $0xe4] sm:$0xf]
        %v1201 = vld [vmem:[#allocation5 + $0xe8] sm:$0xf]
        %v1202 = vld [vmem:[#allocation5 + $0xec] sm:$0xf]
        %v1203 = vld [vmem:[#allocation5 + $0xf0] sm:$0xf]
        %v1204 = vld [vmem:[#allocation5 + $0xf4] sm:$0xf]
        %v1205 = vld [vmem:[#allocation5 + $0xf8] sm:$0xf]
        %v1206 = vld [vmem:[#allocation5 + $0xfc] sm:$0xf]
        %v1207 = vld [vmem:[#allocation5 + $0x100] sm:$0xf]
        %v1208 = vld [vmem:[#allocation5 + $0x104] sm:$0xf]
        %v1209 = vld [vmem:[#allocation5 + $0x108] sm:$0xf]
        %v1210 = vld [vmem:[#allocation5 + $0x10c] sm:$0xf]
        %v1211 = vld [vmem:[#allocation5 + $0x110] sm:$0xf]
        %v1212 = vld [vmem:[#allocation5 + $0x114] sm:$0xf]
        %v1213 = vld [vmem:[#allocation5 + $0x118] sm:$0xf]
        %v1214 = vld [vmem:[#allocation5 + $0x11c] sm:$0xf]
        %v1215 = vld [vmem:[#allocation5 + $0x120] sm:$0xf]
        %v1216 = vld [vmem:[#allocation5 + $0x124] sm:$0xf]
        %v1217 = vld [vmem:[#allocation5 + $0x128] sm:$0xf]
        %v1218 = vld [vmem:[#allocation5 + $0x12c] sm:$0xf]
        %v1219 = vld [vmem:[#allocation5 + $0x130] sm:$0xf]
        %v1220 = vld [vmem:[#allocation5 + $0x134] sm:$0xf]
        %v1221 = vld [vmem:[#allocation5 + $0x138] sm:$0xf]
        %v1222 = vld [vmem:[#allocation5 + $0x13c] sm:$0xf]
        %v1223 = vld [vmem:[#allocation5 + $0x140] sm:$0xf]
        %v1224 = vld [vmem:[#allocation5 + $0x144] sm:$0xf]
        %v1225 = vld [vmem:[#allocation5 + $0x148] sm:$0xf]
        %v1226 = vld [vmem:[#allocation5 + $0x14c] sm:$0xf]
        %v1227 = vld [vmem:[#allocation5 + $0x150] sm:$0xf]
        %v1228 = vld [vmem:[#allocation5 + $0x154] sm:$0xf]
        %v1229 = vld [vmem:[#allocation5 + $0x158] sm:$0xf]
        %v1230 = vld [vmem:[#allocation5 + $0x15c] sm:$0xf]
        %v1231 = vld [vmem:[#allocation5 + $0x160] sm:$0xf]
        %v1232 = vld [vmem:[#allocation5 + $0x164] sm:$0xf]
        %v1233 = vld [vmem:[#allocation5 + $0x168] sm:$0xf]
        %v1234 = vld [vmem:[#allocation5 + $0x16c] sm:$0xf]
        %v1235 = vld [vmem:[#allocation5 + $0x170] sm:$0xf]
        %v1236 = vld [vmem:[#allocation5 + $0x174] sm:$0xf]
        %v1237 = vld [vmem:[#allocation5 + $0x178] sm:$0xf]
        %v1238 = vld [vmem:[#allocation5 + $0x17c] sm:$0xf]
        %v1239 = vld [vmem:[#allocation5 + $0x180] sm:$0xf]
        %v1240 = vld [vmem:[#allocation5 + $0x184] sm:$0xf]
        %v1241 = vld [vmem:[#allocation5 + $0x188] sm:$0xf]
        %v1242 = vld [vmem:[#allocation5 + $0x18c] sm:$0xf]
        %v1243 = vld [vmem:[#allocation5 + $0x190] sm:$0xf]
        %v1244 = vld [vmem:[#allocation5 + $0x194] sm:$0xf]
        %v1245 = vld [vmem:[#allocation5 + $0x198] sm:$0xf]
        %v1246 = vld [vmem:[#allocation5 + $0x19c] sm:$0xf]
        %v1247 = vld [vmem:[#allocation5 + $0x1a0] sm:$0xf]
        %v1248 = vld [vmem:[#allocation5 + $0x1a4] sm:$0xf]
        %v1249 = vld [vmem:[#allocation5 + $0x1a8] sm:$0xf]
        %v1250 = vld [vmem:[#allocation5 + $0x1ac] sm:$0xf]
        %v1251 = vld [vmem:[#allocation5 + $0x1b0] sm:$0xf]
        %v1252 = vld [vmem:[#allocation5 + $0x1b4] sm:$0xf]
        %v1253 = vld [vmem:[#allocation5 + $0x1b8] sm:$0xf]
        %v1254 = vld [vmem:[#allocation5 + $0x1bc] sm:$0xf]
        %v1255 = vld [vmem:[#allocation5 + $0x1c0] sm:$0xf]
        %v1256 = vld [vmem:[#allocation5 + $0x1c4] sm:$0xf]
        %v1257 = vld [vmem:[#allocation5 + $0x1c8] sm:$0xf]
        %v1258 = vld [vmem:[#allocation5 + $0x1cc] sm:$0xf]
        %v1259 = vld [vmem:[#allocation5 + $0x1d0] sm:$0xf]
        %v1260 = vld [vmem:[#allocation5 + $0x1d4] sm:$0xf]
        %v1261 = vld [vmem:[#allocation5 + $0x1d8] sm:$0xf]
        %v1262 = vld [vmem:[#allocation5 + $0x1dc] sm:$0xf]
        %v1263 = vld [vmem:[#allocation5 + $0x1e0] sm:$0xf]
        %v1264 = vld [vmem:[#allocation5 + $0x1e4] sm:$0xf]
        %v1265 = vld [vmem:[#allocation5 + $0x1e8] sm:$0xf]
        %v1266 = vld [vmem:[#allocation5 + $0x1ec] sm:$0xf]
        %v1267 = vld [vmem:[#allocation5 + $0x1f0] sm:$0xf]
        %v1268 = vld [vmem:[#allocation5 + $0x1f4] sm:$0xf]
        %v1269 = vld [vmem:[#allocation5 + $0x1f8] sm:$0xf]
        %v1270 = vld [vmem:[#allocation5 + $0x1fc] sm:$0xf]
        %v1271 = vld [vmem:[#allocation5 + $0x200] sm:$0xf]
        %v1272 = vld [vmem:[#allocation5 + $0x204] sm:$0xf]
        %v1273 = vld [vmem:[#allocation5 + $0x208] sm:$0xf]
        %v1274 = vld [vmem:[#allocation5 + $0x20c] sm:$0xf]
        %v1275 = vld [vmem:[#allocation5 + $0x210] sm:$0xf]
        %v1276 = vld [vmem:[#allocation5 + $0x214] sm:$0xf]
        %v1277 = vld [vmem:[#allocation5 + $0x218] sm:$0xf]
        %v1278 = vld [vmem:[#allocation5 + $0x21c] sm:$0xf]
        %v1279 = vld [vmem:[#allocation5 + $0x220] sm:$0xf]
        %v1280 = vld [vmem:[#allocation5 + $0x224] sm:$0xf]
        %v1281 = vld [vmem:[#allocation5 + $0x228] sm:$0xf]
        %v1282 = vld [vmem:[#allocation5 + $0x22c] sm:$0xf]
        %v1283 = vld [vmem:[#allocation5 + $0x230] sm:$0xf]
        %v1284 = vld [vmem:[#allocation5 + $0x234] sm:$0xf]
        %v1285 = vld [vmem:[#allocation5 + $0x238] sm:$0xf]
        %v1286 = vld [vmem:[#allocation5 + $0x23c] sm:$0xf]
        %v1287 = vld [vmem:[#allocation7] sm:$0x1]
        %v1289 = vlaneseq
        %v1290 = vshrl.u32 %v1289, 7
        %v1291 = vsub.s32 0, %v1290
        %v1292 = vrot.slane %v1287, %v1291
        %v1438 = vunpack.c.l.b16 %v1143
        %v1439 = vunpack.c.l.b16 %v1144
        %v1440 = vunpack.c.l.b16 %v1145
        %v1441 = vunpack.c.l.b16 %v1146
        %v1442 = vunpack.c.l.b16 %v1147
        %v1443 = vunpack.c.l.b16 %v1148
        %v1444 = vunpack.c.l.b16 %v1149
        %v1445 = vunpack.c.l.b16 %v1150
        %v1446 = vunpack.c.l.b16 %v1151
        %v1447 = vunpack.c.l.b16 %v1152
        %v1448 = vunpack.c.l.b16 %v1153
        %v1449 = vunpack.c.l.b16 %v1154
        %v1450 = vunpack.c.l.b16 %v1155
        %v1451 = vunpack.c.l.b16 %v1156
        %v1452 = vunpack.c.l.b16 %v1157
        %v1453 = vunpack.c.l.b16 %v1158
        %v1454 = vunpack.c.l.b16 %v1159
        %v1455 = vunpack.c.l.b16 %v1160
        %v1456 = vunpack.c.l.b16 %v1161
        %v1457 = vunpack.c.l.b16 %v1162
        %v1458 = vunpack.c.l.b16 %v1163
        %v1459 = vunpack.c.l.b16 %v1164
        %v1460 = vunpack.c.l.b16 %v1165
        %v1461 = vunpack.c.l.b16 %v1166
        %v1462 = vunpack.c.l.b16 %v1167
        %v1463 = vunpack.c.l.b16 %v1168
        %v1464 = vunpack.c.l.b16 %v1169
        %v1465 = vunpack.c.l.b16 %v1170
        %v1466 = vunpack.c.l.b16 %v1171
        %v1467 = vunpack.c.l.b16 %v1172
        %v1468 = vunpack.c.l.b16 %v1173
        %v1469 = vunpack.c.l.b16 %v1174
        %v1470 = vunpack.c.l.b16 %v1175
        %v1471 = vunpack.c.l.b16 %v1176
        %v1472 = vunpack.c.l.b16 %v1177
        %v1473 = vunpack.c.l.b16 %v1178
        %v1474 = vunpack.c.l.b16 %v1179
        %v1475 = vunpack.c.l.b16 %v1180
        %v1476 = vunpack.c.l.b16 %v1181
        %v1477 = vunpack.c.l.b16 %v1182
        %v1478 = vunpack.c.l.b16 %v1183
        %v1479 = vunpack.c.l.b16 %v1184
        %v1480 = vunpack.c.l.b16 %v1185
        %v1481 = vunpack.c.l.b16 %v1186
        %v1482 = vunpack.c.l.b16 %v1187
        %v1483 = vunpack.c.l.b16 %v1188
        %v1484 = vunpack.c.l.b16 %v1189
        %v1485 = vunpack.c.l.b16 %v1190
        %v1486 = vunpack.c.l.b16 %v1191
        %v1487 = vunpack.c.l.b16 %v1192
        %v1488 = vunpack.c.l.b16 %v1193
        %v1489 = vunpack.c.l.b16 %v1194
        %v1490 = vunpack.c.l.b16 %v1195
        %v1491 = vunpack.c.l.b16 %v1196
        %v1492 = vunpack.c.l.b16 %v1197
        %v1493 = vunpack.c.l.b16 %v1198
        %v1494 = vunpack.c.l.b16 %v1199
        %v1495 = vunpack.c.l.b16 %v1200
        %v1496 = vunpack.c.l.b16 %v1201
        %v1497 = vunpack.c.l.b16 %v1202
        %v1498 = vunpack.c.l.b16 %v1203
        %v1499 = vunpack.c.l.b16 %v1204
        %v1500 = vunpack.c.l.b16 %v1205
        %v1501 = vunpack.c.l.b16 %v1206
        %v1502 = vunpack.c.l.b16 %v1207
        %v1503 = vunpack.c.l.b16 %v1208
        %v1504 = vunpack.c.l.b16 %v1209
        %v1505 = vunpack.c.l.b16 %v1210
        %v1506 = vunpack.c.l.b16 %v1211
        %v1507 = vunpack.c.l.b16 %v1212
        %v1508 = vunpack.c.l.b16 %v1213
        %v1509 = vunpack.c.l.b16 %v1214
        %v1510 = vunpack.c.l.b16 %v1215
        %v1511 = vunpack.c.l.b16 %v1216
        %v1512 = vunpack.c.l.b16 %v1217
        %v1513 = vunpack.c.l.b16 %v1218
        %v1514 = vunpack.c.l.b16 %v1219
        %v1515 = vunpack.c.l.b16 %v1220
        %v1516 = vunpack.c.l.b16 %v1221
        %v1517 = vunpack.c.l.b16 %v1222
        %v1518 = vunpack.c.l.b16 %v1223
        %v1519 = vunpack.c.l.b16 %v1224
        %v1520 = vunpack.c.l.b16 %v1225
        %v1521 = vunpack.c.l.b16 %v1226
        %v1522 = vunpack.c.l.b16 %v1227
        %v1523 = vunpack.c.l.b16 %v1228
        %v1524 = vunpack.c.l.b16 %v1229
        %v1525 = vunpack.c.l.b16 %v1230
        %v1526 = vunpack.c.l.b16 %v1231
        %v1527 = vunpack.c.l.b16 %v1232
        %v1528 = vunpack.c.l.b16 %v1233
        %v1529 = vunpack.c.l.b16 %v1234
        %v1530 = vunpack.c.l.b16 %v1235
        %v1531 = vunpack.c.l.b16 %v1236
        %v1532 = vunpack.c.l.b16 %v1237
        %v1533 = vunpack.c.l.b16 %v1238
        %v1534 = vunpack.c.l.b16 %v1239
        %v1535 = vunpack.c.l.b16 %v1240
        %v1536 = vunpack.c.l.b16 %v1241
        %v1537 = vunpack.c.l.b16 %v1242
        %v1538 = vunpack.c.l.b16 %v1243
        %v1539 = vunpack.c.l.b16 %v1244
        %v1540 = vunpack.c.l.b16 %v1245
        %v1541 = vunpack.c.l.b16 %v1246
        %v1542 = vunpack.c.l.b16 %v1247
        %v1543 = vunpack.c.l.b16 %v1248
        %v1544 = vunpack.c.l.b16 %v1249
        %v1545 = vunpack.c.l.b16 %v1250
        %v1546 = vunpack.c.l.b16 %v1251
        %v1547 = vunpack.c.l.b16 %v1252
        %v1548 = vunpack.c.l.b16 %v1253
        %v1549 = vunpack.c.l.b16 %v1254
        %v1550 = vunpack.c.l.b16 %v1255
        %v1551 = vunpack.c.l.b16 %v1256
        %v1552 = vunpack.c.l.b16 %v1257
        %v1553 = vunpack.c.l.b16 %v1258
        %v1554 = vunpack.c.l.b16 %v1259
        %v1555 = vunpack.c.l.b16 %v1260
        %v1556 = vunpack.c.l.b16 %v1261
        %v1557 = vunpack.c.l.b16 %v1262
        %v1558 = vunpack.c.l.b16 %v1263
        %v1559 = vunpack.c.l.b16 %v1264
        %v1560 = vunpack.c.l.b16 %v1265
        %v1561 = vunpack.c.l.b16 %v1266
        %v1562 = vunpack.c.l.b16 %v1267
        %v1563 = vunpack.c.l.b16 %v1268
        %v1564 = vunpack.c.l.b16 %v1269
        %v1565 = vunpack.c.l.b16 %v1270
        %v1566 = vunpack.c.l.b16 %v1271
        %v1567 = vunpack.c.l.b16 %v1272
        %v1568 = vunpack.c.l.b16 %v1273
        %v1569 = vunpack.c.l.b16 %v1274
        %v1570 = vunpack.c.l.b16 %v1275
        %v1571 = vunpack.c.l.b16 %v1276
        %v1572 = vunpack.c.l.b16 %v1277
        %v1573 = vunpack.c.l.b16 %v1278
        %v1574 = vunpack.c.l.b16 %v1279
        %v1575 = vunpack.c.l.b16 %v1280
        %v1576 = vunpack.c.l.b16 %v1281
        %v1577 = vunpack.c.l.b16 %v1282
        %v1578 = vunpack.c.l.b16 %v1283
        %v1579 = vunpack.c.l.b16 %v1284
        %v1580 = vunpack.c.l.b16 %v1285
        %v1581 = vunpack.c.l.b16 %v1286
        %v1582 = vpack.c.b16 %v1439, %v1438
        %v1583 = vpack.c.b16 %v1441, %v1440
        %v1584 = vpack.c.b16 %v1443, %v1442
        %v1585 = vpack.c.b16 %v1445, %v1444
        %v1586 = vpack.c.b16 %v1447, %v1446
        %v1587 = vpack.c.b16 %v1449, %v1448
        %v1588 = vpack.c.b16 %v1451, %v1450
        %v1589 = vpack.c.b16 %v1453, %v1452
        %v1590 = vpack.c.b16 %v1455, %v1454
        %v1591 = vpack.c.b16 %v1457, %v1456
        %v1592 = vpack.c.b16 %v1459, %v1458
        %v1593 = vpack.c.b16 %v1461, %v1460
        %v1594 = vpack.c.b16 %v1463, %v1462
        %v1595 = vpack.c.b16 %v1465, %v1464
        %v1596 = vpack.c.b16 %v1467, %v1466
        %v1597 = vpack.c.b16 %v1469, %v1468
        %v1598 = vpack.c.b16 %v1471, %v1470
        %v1599 = vpack.c.b16 %v1473, %v1472
        %v1600 = vpack.c.b16 %v1475, %v1474
        %v1601 = vpack.c.b16 %v1477, %v1476
        %v1602 = vpack.c.b16 %v1479, %v1478
        %v1603 = vpack.c.b16 %v1481, %v1480
        %v1604 = vpack.c.b16 %v1483, %v1482
        %v1605 = vpack.c.b16 %v1485, %v1484
        %v1606 = vpack.c.b16 %v1487, %v1486
        %v1607 = vpack.c.b16 %v1489, %v1488
        %v1608 = vpack.c.b16 %v1491, %v1490
        %v1609 = vpack.c.b16 %v1493, %v1492
        %v1610 = vpack.c.b16 %v1495, %v1494
        %v1611 = vpack.c.b16 %v1497, %v1496
        %v1612 = vpack.c.b16 %v1499, %v1498
        %v1613 = vpack.c.b16 %v1501, %v1500
        %v1614 = vpack.c.b16 %v1503, %v1502
        %v1615 = vpack.c.b16 %v1505, %v1504
        %v1616 = vpack.c.b16 %v1507, %v1506
        %v1617 = vpack.c.b16 %v1509, %v1508
        %v1618 = vpack.c.b16 %v1511, %v1510
        %v1619 = vpack.c.b16 %v1513, %v1512
        %v1620 = vpack.c.b16 %v1515, %v1514
        %v1621 = vpack.c.b16 %v1517, %v1516
        %v1622 = vpack.c.b16 %v1519, %v1518
        %v1623 = vpack.c.b16 %v1521, %v1520
        %v1624 = vpack.c.b16 %v1523, %v1522
        %v1625 = vpack.c.b16 %v1525, %v1524
        %v1626 = vpack.c.b16 %v1527, %v1526
        %v1627 = vpack.c.b16 %v1529, %v1528
        %v1628 = vpack.c.b16 %v1531, %v1530
        %v1629 = vpack.c.b16 %v1533, %v1532
        %v1630 = vpack.c.b16 %v1535, %v1534
        %v1631 = vpack.c.b16 %v1537, %v1536
        %v1632 = vpack.c.b16 %v1539, %v1538
        %v1633 = vpack.c.b16 %v1541, %v1540
        %v1634 = vpack.c.b16 %v1543, %v1542
        %v1635 = vpack.c.b16 %v1545, %v1544
        %v1636 = vpack.c.b16 %v1547, %v1546
        %v1637 = vpack.c.b16 %v1549, %v1548
        %v1638 = vpack.c.b16 %v1551, %v1550
        %v1639 = vpack.c.b16 %v1553, %v1552
        %v1640 = vpack.c.b16 %v1555, %v1554
        %v1641 = vpack.c.b16 %v1557, %v1556
        %v1642 = vpack.c.b16 %v1559, %v1558
        %v1643 = vpack.c.b16 %v1561, %v1560
        %v1644 = vpack.c.b16 %v1563, %v1562
        %v1645 = vpack.c.b16 %v1565, %v1564
        %v1646 = vpack.c.b16 %v1567, %v1566
        %v1647 = vpack.c.b16 %v1569, %v1568
        %v1648 = vpack.c.b16 %v1571, %v1570
        %v1649 = vpack.c.b16 %v1573, %v1572
        %v1650 = vpack.c.b16 %v1575, %v1574
        %v1651 = vpack.c.b16 %v1577, %v1576
        %v1652 = vpack.c.b16 %v1579, %v1578
        %v1653 = vpack.c.b16 %v1581, %v1580
        %1726 = vmatprep.subr.bf16.mxu0 0
        %1727 = vmatpush1.bf16.msra.mxu0 %v1582
        %1728 = vmatprep.subr.bf16.mxu0 0
        %1729 = vmatpush1.bf16.msra.mxu0 %v1583
        %1730 = vmatprep.subr.bf16.mxu0 0
        %1731 = vmatpush1.bf16.msra.mxu0 %v1584
        %1732 = vmatprep.subr.bf16.mxu0 0
        %1733 = vmatpush1.bf16.msra.mxu0 %v1585
        %1734 = vmatprep.subr.bf16.mxu0 0
        %1735 = vmatpush1.bf16.msra.mxu0 %v1586
        %1736 = vmatprep.subr.bf16.mxu0 0
        %1737 = vmatpush1.bf16.msra.mxu0 %v1587
        %1738 = vmatprep.subr.bf16.mxu0 0
        %1739 = vmatpush1.bf16.msra.mxu0 %v1588
        %1740 = vmatprep.subr.bf16.mxu0 0
        %1741 = vmatpush1.bf16.msra.mxu0 %v1589
        %1742 = vmatprep.subr.bf16.mxu0 0
        %1743 = vmatpush1.bf16.msra.mxu0 %v1590
        %1744 = vmatprep.subr.bf16.mxu0 0
        %1745 = vmatpush1.bf16.msra.mxu0 %v1591
        %1746 = vmatprep.subr.bf16.mxu0 0
        %1747 = vmatpush1.bf16.msra.mxu0 %v1592
        %1748 = vmatprep.subr.bf16.mxu0 0
        %1749 = vmatpush1.bf16.msra.mxu0 %v1593
        %1750 = vmatprep.subr.bf16.mxu0 0
        %1751 = vmatpush1.bf16.msra.mxu0 %v1594
        %1752 = vmatprep.subr.bf16.mxu0 0
        %1753 = vmatpush1.bf16.msra.mxu0 %v1595
        %1754 = vmatprep.subr.bf16.mxu0 0
        %1755 = vmatpush1.bf16.msra.mxu0 %v1596
        %1756 = vmatprep.subr.bf16.mxu0 0
        %1757 = vmatpush1.bf16.msra.mxu0 %v1597
        %1758 = vmatprep.mubr.bf16.mxu0 %v1023
        %1759 = vmatmul.mubr.bf16.gmra.mrb[0].mxu0 %v959
        %v1760 = vpop.f32.mrb[0].mxu0
        %v1761 = vadd.f32 %v1292, %v1760
        %v1762 = vpop.f32.mrb[0].mxu0
        %v1763 = vpop.f32.mrb[0].mxu0
        %v1764 = vadd.f32 %v1292, %v1763
        %v1765 = vpop.f32.mrb[0].mxu0
        %1766 = vmatprep.mubr.bf16.mxu0 %v1024
        %1767 = vmatmul.mubr.bf16.gmra.mrb[0].mxu0 %v960
        %v1768 = vpop.f32.mrb[0].mxu0
        %v1769 = vadd.f32 %v1292, %v1768
        %v1770 = vpop.f32.mrb[0].mxu0
        %v1771 = vpop.f32.mrb[0].mxu0
        %v1772 = vadd.f32 %v1292, %v1771
        %v1773 = vpop.f32.mrb[0].mxu0
        %1774 = vmatprep.mubr.bf16.mxu0 %v1025
        %1775 = vmatmul.mubr.bf16.gmra.mrb[0].mxu0 %v961
        %v1776 = vpop.f32.mrb[0].mxu0
        %v1777 = vadd.f32 %v1292, %v1776
        %v1778 = vpop.f32.mrb[0].mxu0
        %v1779 = vpop.f32.mrb[0].mxu0
        %v1780 = vadd.f32 %v1292, %v1779
        %v1781 = vpop.f32.mrb[0].mxu0
        %1782 = vmatprep.mubr.bf16.mxu0 %v1026
        %1783 = vmatmul.mubr.bf16.gmra.mrb[0].mxu0 %v962
        %v1784 = vpop.f32.mrb[0].mxu0
        %v1785 = vadd.f32 %v1292, %v1784
        %v1786 = vpop.f32.mrb[0].mxu0
        %v1787 = vpop.f32.mrb[0].mxu0
        %v1788 = vadd.f32 %v1292, %v1787
        %v1789 = vpop.f32.mrb[0].mxu0
        %1790 = vmatprep.mubr.bf16.mxu0 %v1027
        %1791 = vmatmul.mubr.bf16.gmra.mrb[0].mxu0 %v963
        %v1792 = vpop.f32.mrb[0].mxu0
        %v1793 = vadd.f32 %v1292, %v1792
        %v1794 = vpop.f32.mrb[0].mxu0
        %v1795 = vpop.f32.mrb[0].mxu0
        %v1796 = vadd.f32 %v1292, %v1795
        %v1797 = vpop.f32.mrb[0].mxu0
        %1798 = vmatprep.mubr.bf16.mxu0 %v1028
        %1799 = vmatmul.mubr.bf16.gmra.mrb[0].mxu0 %v964
        %v1800 = vpop.f32.mrb[0].mxu0
        %v1801 = vadd.f32 %v1292, %v1800
        %v1802 = vpop.f32.mrb[0].mxu0
        %v1803 = vpop.f32.mrb[0].mxu0
        %v1804 = vadd.f32 %v1292, %v1803
        %v1805 = vpop.f32.mrb[0].mxu0
        %1806 = vmatprep.mubr.bf16.mxu0 %v1029
        %1807 = vmatmul.mubr.bf16.gmra.mrb[0].mxu0 %v965
        %v1808 = vpop.f32.mrb[0].mxu0
        %v1809 = vadd.f32 %v1292, %v1808
        %v1810 = vpop.f32.mrb[0].mxu0
        %v1811 = vpop.f32.mrb[0].mxu0
        %v1812 = vadd.f32 %v1292, %v1811
        %v1813 = vpop.f32.mrb[0].mxu0
        %1814 = vmatprep.mubr.bf16.mxu0 %v1030
        %1815 = vmatmul.mubr.bf16.gmra.mrb[0].mxu0 %v966
        %v1816 = vpop.f32.mrb[0].mxu0
        %v1817 = vadd.f32 %v1292, %v1816
        %v1818 = vpop.f32.mrb[0].mxu0
        %v1819 = vpop.f32.mrb[0].mxu0
        %v1820 = vadd.f32 %v1292, %v1819
        %v1821 = vpop.f32.mrb[0].mxu0
        %1822 = vmatprep.mubr.bf16.mxu0 %v1031
        %1823 = vmatmul.mubr.bf16.gmra.mrb[0].mxu0 %v967
        %v1824 = vpop.f32.mrb[0].mxu0
        %v1825 = vadd.f32 %v1292, %v1824
        %v1826 = vpop.f32.mrb[0].mxu0
        %v1827 = vpop.f32.mrb[0].mxu0
        %v1828 = vadd.f32 %v1292, %v1827
        %v1829 = vpop.f32.mrb[0].mxu0
        %1830 = vmatprep.mubr.bf16.mxu0 %v1032
        %1831 = vmatmul.mubr.bf16.gmra.mrb[0].mxu0 %v968
        %v1832 = vpop.f32.mrb[0].mxu0
        %v1833 = vadd.f32 %v1292, %v1832
        %v1834 = vpop.f32.mrb[0].mxu0
        %v1835 = vpop.f32.mrb[0].mxu0
        %v1836 = vadd.f32 %v1292, %v1835
        %v1837 = vpop.f32.mrb[0].mxu0
        %1838 = vmatprep.mubr.bf16.mxu0 %v1033
        %1839 = vmatmul.mubr.bf16.gmra.mrb[0].mxu0 %v969
        %v1840 = vpop.f32.mrb[0].mxu0
        %v1841 = vadd.f32 %v1292, %v1840
        %v1842 = vpop.f32.mrb[0].mxu0
        %v1843 = vpop.f32.mrb[0].mxu0
        %v1844 = vadd.f32 %v1292, %v1843
        %v1845 = vpop.f32.mrb[0].mxu0
        %1846 = vmatprep.mubr.bf16.mxu0 %v1034
        %1847 = vmatmul.mubr.bf16.gmra.mrb[0].mxu0 %v970
        %v1848 = vpop.f32.mrb[0].mxu0
        %v1849 = vadd.f32 %v1292, %v1848
        %v1850 = vpop.f32.mrb[0].mxu0
        %v1851 = vpop.f32.mrb[0].mxu0
        %v1852 = vadd.f32 %v1292, %v1851
        %v1853 = vpop.f32.mrb[0].mxu0
        %1854 = vmatprep.mubr.bf16.mxu0 %v1035
        %1855 = vmatmul.mubr.bf16.gmra.mrb[0].mxu0 %v971
        %v1856 = vpop.f32.mrb[0].mxu0
        %v1857 = vadd.f32 %v1292, %v1856
        %v1858 = vpop.f32.mrb[0].mxu0
        %v1859 = vpop.f32.mrb[0].mxu0
        %v1860 = vadd.f32 %v1292, %v1859
        %v1861 = vpop.f32.mrb[0].mxu0
        %1862 = vmatprep.mubr.bf16.mxu0 %v1036
        %1863 = vmatmul.mubr.bf16.gmra.mrb[0].mxu0 %v972
        %v1864 = vpop.f32.mrb[0].mxu0
        %v1865 = vadd.f32 %v1292, %v1864
        %v1866 = vpop.f32.mrb[0].mxu0
        %v1867 = vpop.f32.mrb[0].mxu0
        %v1868 = vadd.f32 %v1292, %v1867
        %v1869 = vpop.f32.mrb[0].mxu0
        %1870 = vmatprep.mubr.bf16.mxu0 %v1037
        %1871 = vmatmul.mubr.bf16.gmra.mrb[0].mxu0 %v973
        %v1872 = vpop.f32.mrb[0].mxu0
        %v1873 = vadd.f32 %v1292, %v1872
        %v1874 = vpop.f32.mrb[0].mxu0
        %v1875 = vpop.f32.mrb[0].mxu0
        %v1876 = vadd.f32 %v1292, %v1875
        %v1877 = vpop.f32.mrb[0].mxu0
        %1878 = vmatprep.mubr.bf16.mxu0 %v1038
        %1879 = vmatmul.mubr.bf16.gmra.mrb[0].mxu0 %v974
        %v1880 = vpop.f32.mrb[0].mxu0
        %v1881 = vadd.f32 %v1292, %v1880
        %v1882 = vpop.f32.mrb[0].mxu0
        %v1883 = vpop.f32.mrb[0].mxu0
        %v1884 = vadd.f32 %v1292, %v1883
        %v1885 = vpop.f32.mrb[0].mxu0
        %1886 = vdwg.mxu0
        %1887 = vmatprep.subr.bf16.mxu0 0
        %1888 = vmatpush1.bf16.msra.mxu0 %v1598
        %1889 = vmatprep.subr.bf16.mxu0 0
        %1890 = vmatpush1.bf16.msra.mxu0 %v1599
        %1891 = vmatprep.subr.bf16.mxu0 0
        %1892 = vmatpush1.bf16.msra.mxu0 %v1600
        %1893 = vmatprep.subr.bf16.mxu0 0
        %1894 = vmatpush1.bf16.msra.mxu0 %v1601
        %1895 = vmatprep.subr.bf16.mxu0 0
        %1896 = vmatpush1.bf16.msra.mxu0 %v1602
        %1897 = vmatprep.subr.bf16.mxu0 0
        %1898 = vmatpush1.bf16.msra.mxu0 %v1603
        %1899 = vmatprep.subr.bf16.mxu0 0
        %1900 = vmatpush1.bf16.msra.mxu0 %v1604
        %1901 = vmatprep.subr.bf16.mxu0 0
        %1902 = vmatpush1.bf16.msra.mxu0 %v1605
        %1903 = vmatprep.subr.bf16.mxu0 0
        %1904 = vmatpush1.bf16.msra.mxu0 %v1606
        %1905 = vmatprep.subr.bf16.mxu0 0
        %1906 = vmatpush1.bf16.msra.mxu0 %v1607
        %1907 = vmatprep.subr.bf16.mxu0 0
        %1908 = vmatpush1.bf16.msra.mxu0 %v1608
        %1909 = vmatprep.subr.bf16.mxu0 0
        %1910 = vmatpush1.bf16.msra.mxu0 %v1609
        %1911 = vmatprep.subr.bf16.mxu0 0
        %1912 = vmatpush1.bf16.msra.mxu0 %v1610
        %1913 = vmatprep.subr.bf16.mxu0 0
        %1914 = vmatpush1.bf16.msra.mxu0 %v1611
        %1915 = vmatprep.subr.bf16.mxu0 0
        %1916 = vmatpush1.bf16.msra.mxu0 %v1612
        %1917 = vmatprep.subr.bf16.mxu0 0
        %1918 = vmatpush1.bf16.msra.mxu0 %v1613
        %1919 = vmatprep.mubr.bf16.mxu0 %v960
        %1920 = vmatmul.mubr.bf16.gmra.mrb[0].mxu0 %v1087
        %v1921 = vpop.f32.mrb[0].mxu0
        %v1922 = vadd.f32 %v1761, %v1921
        %v1923 = vpop.f32.mrb[0].mxu0
        %v1924 = vpop.f32.mrb[0].mxu0
        %v1925 = vadd.f32 %v1764, %v1924
        %v1926 = vpop.f32.mrb[0].mxu0
        %1927 = vmatprep.mubr.bf16.mxu0 %v961
        %1928 = vmatmul.mubr.bf16.gmra.mrb[0].mxu0 %v1088
        %v1929 = vpop.f32.mrb[0].mxu0
        %v1930 = vadd.f32 %v1769, %v1929
        %v1931 = vpop.f32.mrb[0].mxu0
        %v1932 = vpop.f32.mrb[0].mxu0
        %v1933 = vadd.f32 %v1772, %v1932
        %v1934 = vpop.f32.mrb[0].mxu0
        %1935 = vmatprep.mubr.bf16.mxu0 %v962
        %1936 = vmatmul.mubr.bf16.gmra.mrb[0].mxu0 %v1089
        %v1937 = vpop.f32.mrb[0].mxu0
        %v1938 = vadd.f32 %v1777, %v1937
        %v1939 = vpop.f32.mrb[0].mxu0
        %v1940 = vpop.f32.mrb[0].mxu0
        %v1941 = vadd.f32 %v1780, %v1940
        %v1942 = vpop.f32.mrb[0].mxu0
        %1943 = vmatprep.mubr.bf16.mxu0 %v963
        %1944 = vmatmul.mubr.bf16.gmra.mrb[0].mxu0 %v1090
        %v1945 = vpop.f32.mrb[0].mxu0
        %v1946 = vadd.f32 %v1785, %v1945
        %v1947 = vpop.f32.mrb[0].mxu0
        %v1948 = vpop.f32.mrb[0].mxu0
        %v1949 = vadd.f32 %v1788, %v1948
        %v1950 = vpop.f32.mrb[0].mxu0
        %1951 = vmatprep.mubr.bf16.mxu0 %v964
        %1952 = vmatmul.mubr.bf16.gmra.mrb[0].mxu0 %v1091
        %v1953 = vpop.f32.mrb[0].mxu0
        %v1954 = vadd.f32 %v1793, %v1953
        %v1955 = vpop.f32.mrb[0].mxu0
        %v1956 = vpop.f32.mrb[0].mxu0
        %v1957 = vadd.f32 %v1796, %v1956
        %v1958 = vpop.f32.mrb[0].mxu0
        %1959 = vmatprep.mubr.bf16.mxu0 %v965
        %1960 = vmatmul.mubr.bf16.gmra.mrb[0].mxu0 %v1092
        %v1961 = vpop.f32.mrb[0].mxu0
        %v1962 = vadd.f32 %v1801, %v1961
        %v1963 = vpop.f32.mrb[0].mxu0
        %v1964 = vpop.f32.mrb[0].mxu0
        %v1965 = vadd.f32 %v1804, %v1964
        %v1966 = vpop.f32.mrb[0].mxu0
        %1967 = vmatprep.mubr.bf16.mxu0 %v966
        %1968 = vmatmul.mubr.bf16.gmra.mrb[0].mxu0 %v1093
        %v1969 = vpop.f32.mrb[0].mxu0
        %v1970 = vadd.f32 %v1809, %v1969
        %v1971 = vpop.f32.mrb[0].mxu0
        %v1972 = vpop.f32.mrb[0].mxu0
        %v1973 = vadd.f32 %v1812, %v1972
        %v1974 = vpop.f32.mrb[0].mxu0
        %1975 = vmatprep.mubr.bf16.mxu0 %v967
        %1976 = vmatmul.mubr.bf16.gmra.mrb[0].mxu0 %v1094
        %v1977 = vpop.f32.mrb[0].mxu0
        %v1978 = vadd.f32 %v1817, %v1977
        %v1979 = vpop.f32.mrb[0].mxu0
        %v1980 = vpop.f32.mrb[0].mxu0
        %v1981 = vadd.f32 %v1820, %v1980
        %v1982 = vpop.f32.mrb[0].mxu0
        %1983 = vmatprep.mubr.bf16.mxu0 %v968
        %1984 = vmatmul.mubr.bf16.gmra.mrb[0].mxu0 %v1095
        %v1985 = vpop.f32.mrb[0].mxu0
        %v1986 = vadd.f32 %v1825, %v1985
        %v1987 = vpop.f32.mrb[0].mxu0
        %v1988 = vpop.f32.mrb[0].mxu0
        %v1989 = vadd.f32 %v1828, %v1988
        %v1990 = vpop.f32.mrb[0].mxu0
        %1991 = vmatprep.mubr.bf16.mxu0 %v969
        %1992 = vmatmul.mubr.bf16.gmra.mrb[0].mxu0 %v1096
        %v1993 = vpop.f32.mrb[0].mxu0
        %v1994 = vadd.f32 %v1833, %v1993
        %v1995 = vpop.f32.mrb[0].mxu0
        %v1996 = vpop.f32.mrb[0].mxu0
        %v1997 = vadd.f32 %v1836, %v1996
        %v1998 = vpop.f32.mrb[0].mxu0
        %1999 = vmatprep.mubr.bf16.mxu0 %v970
        %2000 = vmatmul.mubr.bf16.gmra.mrb[0].mxu0 %v1097
        %v2001 = vpop.f32.mrb[0].mxu0
        %v2002 = vadd.f32 %v1841, %v2001
        %v2003 = vpop.f32.mrb[0].mxu0
        %v2004 = vpop.f32.mrb[0].mxu0
        %v2005 = vadd.f32 %v1844, %v2004
        %v2006 = vpop.f32.mrb[0].mxu0
        %2007 = vmatprep.mubr.bf16.mxu0 %v971
        %2008 = vmatmul.mubr.bf16.gmra.mrb[0].mxu0 %v1098
        %v2009 = vpop.f32.mrb[0].mxu0
        %v2010 = vadd.f32 %v1849, %v2009
        %v2011 = vpop.f32.mrb[0].mxu0
        %v2012 = vpop.f32.mrb[0].mxu0
        %v2013 = vadd.f32 %v1852, %v2012
        %v2014 = vpop.f32.mrb[0].mxu0
        %2015 = vmatprep.mubr.bf16.mxu0 %v972
        %2016 = vmatmul.mubr.bf16.gmra.mrb[0].mxu0 %v1099
        %v2017 = vpop.f32.mrb[0].mxu0
        %v2018 = vadd.f32 %v1857, %v2017
        %v2019 = vpop.f32.mrb[0].mxu0
        %v2020 = vpop.f32.mrb[0].mxu0
        %v2021 = vadd.f32 %v1860, %v2020
        %v2022 = vpop.f32.mrb[0].mxu0
        %2023 = vmatprep.mubr.bf16.mxu0 %v973
        %2024 = vmatmul.mubr.bf16.gmra.mrb[0].mxu0 %v1100
        %v2025 = vpop.f32.mrb[0].mxu0
        %v2026 = vadd.f32 %v1865, %v2025
        %v2027 = vpop.f32.mrb[0].mxu0
        %v2028 = vpop.f32.mrb[0].mxu0
        %v2029 = vadd.f32 %v1868, %v2028
        %v2030 = vpop.f32.mrb[0].mxu0
        %2031 = vmatprep.mubr.bf16.mxu0 %v974
        %2032 = vmatmul.mubr.bf16.gmra.mrb[0].mxu0 %v1101
        %v2033 = vpop.f32.mrb[0].mxu0
        %v2034 = vadd.f32 %v1873, %v2033
        %v2035 = vpop.f32.mrb[0].mxu0
        %v2036 = vpop.f32.mrb[0].mxu0
        %v2037 = vadd.f32 %v1876, %v2036
        %v2038 = vpop.f32.mrb[0].mxu0
        %2039 = vmatprep.mubr.bf16.mxu0 %v1121
        %2040 = vmatmul.mubr.bf16.gmra.mrb[0].mxu0 %v1102
        %v2041 = vpop.f32.mrb[0].mxu0
        %v2042 = vadd.f32 %v1881, %v2041
        %v2043 = vpop.f32.mrb[0].mxu0
        %v2044 = vpop.f32.mrb[0].mxu0
        %v2045 = vadd.f32 %v1884, %v2044
        %v2046 = vpop.f32.mrb[0].mxu0
        %2047 = vdwg.mxu0
        %2048 = vmatprep.subr.bf16.mxu0 0
        %2049 = vmatpush1.bf16.msra.mxu0 %v1614
        %2050 = vmatprep.subr.bf16.mxu0 0
        %2051 = vmatpush1.bf16.msra.mxu0 %v1615
        %2052 = vmatprep.subr.bf16.mxu0 0
        %2053 = vmatpush1.bf16.msra.mxu0 %v1616
        %2054 = vmatprep.subr.bf16.mxu0 0
        %2055 = vmatpush1.bf16.msra.mxu0 %v1617
        %2056 = vmatprep.subr.bf16.mxu0 0
        %2057 = vmatpush1.bf16.msra.mxu0 %v1618
        %2058 = vmatprep.subr.bf16.mxu0 0
        %2059 = vmatpush1.bf16.msra.mxu0 %v1619
        %2060 = vmatprep.subr.bf16.mxu0 0
        %2061 = vmatpush1.bf16.msra.mxu0 %v1620
        %2062 = vmatprep.subr.bf16.mxu0 0
        %2063 = vmatpush1.bf16.msra.mxu0 %v1621
        %2064 = vmatprep.subr.bf16.mxu0 0
        %2065 = vmatpush1.bf16.msra.mxu0 %v1622
        %2066 = vmatprep.subr.bf16.mxu0 0
        %2067 = vmatpush1.bf16.msra.mxu0 %v1623
        %2068 = vmatprep.subr.bf16.mxu0 0
        %2069 = vmatpush1.bf16.msra.mxu0 %v1624
        %2070 = vmatprep.subr.bf16.mxu0 0
        %2071 = vmatpush1.bf16.msra.mxu0 %v1625
        %2072 = vmatprep.subr.bf16.mxu0 0
        %2073 = vmatpush1.bf16.msra.mxu0 %v1626
        %2074 = vmatprep.subr.bf16.mxu0 0
        %2075 = vmatpush1.bf16.msra.mxu0 %v1627
        %2076 = vmatprep.subr.bf16.mxu0 0
        %2077 = vmatpush1.bf16.msra.mxu0 %v1628
        %2078 = vmatprep.subr.bf16.mxu0 0
        %2079 = vmatpush1.bf16.msra.mxu0 %v1629
        %2080 = vmatprep.mubr.bf16.mxu0 %v1088
        %2081 = vmatmul.mubr.bf16.gmra.mrb[0].mxu0 %v1024
        %v2082 = vpop.f32.mrb[0].mxu0
        %v2083 = vadd.f32 %v1922, %v2082
        %v2084 = vpop.f32.mrb[0].mxu0
        %v2085 = vpop.f32.mrb[0].mxu0
        %v2086 = vadd.f32 %v1925, %v2085
        %v2087 = vpop.f32.mrb[0].mxu0
        %2088 = vmatprep.mubr.bf16.mxu0 %v1089
        %2089 = vmatmul.mubr.bf16.gmra.mrb[0].mxu0 %v1025
        %v2090 = vpop.f32.mrb[0].mxu0
        %v2091 = vadd.f32 %v1930, %v2090
        %v2092 = vpop.f32.mrb[0].mxu0
        %v2093 = vpop.f32.mrb[0].mxu0
        %v2094 = vadd.f32 %v1933, %v2093
        %v2095 = vpop.f32.mrb[0].mxu0
        %2096 = vmatprep.mubr.bf16.mxu0 %v1090
        %2097 = vmatmul.mubr.bf16.gmra.mrb[0].mxu0 %v1026
        %v2098 = vpop.f32.mrb[0].mxu0
        %v2099 = vadd.f32 %v1938, %v2098
        %v2100 = vpop.f32.mrb[0].mxu0
        %v2101 = vpop.f32.mrb[0].mxu0
        %v2102 = vadd.f32 %v1941, %v2101
        %v2103 = vpop.f32.mrb[0].mxu0
        %2104 = vmatprep.mubr.bf16.mxu0 %v1091
        %2105 = vmatmul.mubr.bf16.gmra.mrb[0].mxu0 %v1027
        %v2106 = vpop.f32.mrb[0].mxu0
        %v2107 = vadd.f32 %v1946, %v2106
        %v2108 = vpop.f32.mrb[0].mxu0
        %v2109 = vpop.f32.mrb[0].mxu0
        %v2110 = vadd.f32 %v1949, %v2109
        %v2111 = vpop.f32.mrb[0].mxu0
        %2112 = vmatprep.mubr.bf16.mxu0 %v1092
        %2113 = vmatmul.mubr.bf16.gmra.mrb[0].mxu0 %v1028
        %v2114 = vpop.f32.mrb[0].mxu0
        %v2115 = vadd.f32 %v1954, %v2114
        %v2116 = vpop.f32.mrb[0].mxu0
        %v2117 = vpop.f32.mrb[0].mxu0
        %v2118 = vadd.f32 %v1957, %v2117
        %v2119 = vpop.f32.mrb[0].mxu0
        %2120 = vmatprep.mubr.bf16.mxu0 %v1093
        %2121 = vmatmul.mubr.bf16.gmra.mrb[0].mxu0 %v1029
        %v2122 = vpop.f32.mrb[0].mxu0
        %v2123 = vadd.f32 %v1962, %v2122
        %v2124 = vpop.f32.mrb[0].mxu0
        %v2125 = vpop.f32.mrb[0].mxu0
        %v2126 = vadd.f32 %v1965, %v2125
        %v2127 = vpop.f32.mrb[0].mxu0
        %2128 = vmatprep.mubr.bf16.mxu0 %v1094
        %2129 = vmatmul.mubr.bf16.gmra.mrb[0].mxu0 %v1030
        %v2130 = vpop.f32.mrb[0].mxu0
        %v2131 = vadd.f32 %v1970, %v2130
        %v2132 = vpop.f32.mrb[0].mxu0
        %v2133 = vpop.f32.mrb[0].mxu0
        %v2134 = vadd.f32 %v1973, %v2133
        %v2135 = vpop.f32.mrb[0].mxu0
        %2136 = vmatprep.mubr.bf16.mxu0 %v1095
        %2137 = vmatmul.mubr.bf16.gmra.mrb[0].mxu0 %v1031
        %v2138 = vpop.f32.mrb[0].mxu0
        %v2139 = vadd.f32 %v1978, %v2138
        %v2140 = vpop.f32.mrb[0].mxu0
        %v2141 = vpop.f32.mrb[0].mxu0
        %v2142 = vadd.f32 %v1981, %v2141
        %v2143 = vpop.f32.mrb[0].mxu0
        %2144 = vmatprep.mubr.bf16.mxu0 %v1096
        %2145 = vmatmul.mubr.bf16.gmra.mrb[0].mxu0 %v1032
        %v2146 = vpop.f32.mrb[0].mxu0
        %v2147 = vadd.f32 %v1986, %v2146
        %v2148 = vpop.f32.mrb[0].mxu0
        %v2149 = vpop.f32.mrb[0].mxu0
        %v2150 = vadd.f32 %v1989, %v2149
        %v2151 = vpop.f32.mrb[0].mxu0
        %2152 = vmatprep.mubr.bf16.mxu0 %v1097
        %2153 = vmatmul.mubr.bf16.gmra.mrb[0].mxu0 %v1033
        %v2154 = vpop.f32.mrb[0].mxu0
        %v2155 = vadd.f32 %v1994, %v2154
        %v2156 = vpop.f32.mrb[0].mxu0
        %v2157 = vpop.f32.mrb[0].mxu0
        %v2158 = vadd.f32 %v1997, %v2157
        %v2159 = vpop.f32.mrb[0].mxu0
        %2160 = vmatprep.mubr.bf16.mxu0 %v1098
        %2161 = vmatmul.mubr.bf16.gmra.mrb[0].mxu0 %v1034
        %v2162 = vpop.f32.mrb[0].mxu0
        %v2163 = vadd.f32 %v2002, %v2162
        %v2164 = vpop.f32.mrb[0].mxu0
        %v2165 = vpop.f32.mrb[0].mxu0
        %v2166 = vadd.f32 %v2005, %v2165
        %v2167 = vpop.f32.mrb[0].mxu0
        %2168 = vmatprep.mubr.bf16.mxu0 %v1099
        %2169 = vmatmul.mubr.bf16.gmra.mrb[0].mxu0 %v1035
        %v2170 = vpop.f32.mrb[0].mxu0
        %v2171 = vadd.f32 %v2010, %v2170
        %v2172 = vpop.f32.mrb[0].mxu0
        %v2173 = vpop.f32.mrb[0].mxu0
        %v2174 = vadd.f32 %v2013, %v2173
        %v2175 = vpop.f32.mrb[0].mxu0
        %2176 = vmatprep.mubr.bf16.mxu0 %v1100
        %2177 = vmatmul.mubr.bf16.gmra.mrb[0].mxu0 %v1036
        %v2178 = vpop.f32.mrb[0].mxu0
        %v2179 = vadd.f32 %v2018, %v2178
        %v2180 = vpop.f32.mrb[0].mxu0
        %v2181 = vpop.f32.mrb[0].mxu0
        %v2182 = vadd.f32 %v2021, %v2181
        %v2183 = vpop.f32.mrb[0].mxu0
        %2184 = vmatprep.mubr.bf16.mxu0 %v1101
        %2185 = vmatmul.mubr.bf16.gmra.mrb[0].mxu0 %v1037
        %v2186 = vpop.f32.mrb[0].mxu0
        %v2187 = vadd.f32 %v2026, %v2186
        %v2188 = vpop.f32.mrb[0].mxu0
        %v2189 = vpop.f32.mrb[0].mxu0
        %v2190 = vadd.f32 %v2029, %v2189
        %v2191 = vpop.f32.mrb[0].mxu0
        %2192 = vmatprep.mubr.bf16.mxu0 %v1102
        %2193 = vmatmul.mubr.bf16.gmra.mrb[0].mxu0 %v1038
        %v2194 = vpop.f32.mrb[0].mxu0
        %v2195 = vadd.f32 %v2034, %v2194
        %v2196 = vpop.f32.mrb[0].mxu0
        %v2197 = vpop.f32.mrb[0].mxu0
        %v2198 = vadd.f32 %v2037, %v2197
        %v2199 = vpop.f32.mrb[0].mxu0
        %2200 = vmatprep.mubr.bf16.mxu0 %v1129
        %2201 = vmatmul.mubr.bf16.gmra.mrb[0].mxu0 %v1125
        %v2202 = vpop.f32.mrb[0].mxu0
        %v2203 = vadd.f32 %v2042, %v2202
        %v2204 = vpop.f32.mrb[0].mxu0
        %v2205 = vpop.f32.mrb[0].mxu0
        %v2206 = vadd.f32 %v2045, %v2205
        %v2207 = vpop.f32.mrb[0].mxu0
        %2208 = vdwg.mxu0
        %2209 = vmatprep.subr.bf16.mxu0 0
        %2210 = vmatpush1.bf16.msra.mxu0 %v1630
        %2211 = vmatprep.subr.bf16.mxu0 0
        %2212 = vmatpush1.bf16.msra.mxu0 %v1631
        %2213 = vmatprep.subr.bf16.mxu0 0
        %2214 = vmatpush1.bf16.msra.mxu0 %v1632
        %2215 = vmatprep.subr.bf16.mxu0 0
        %2216 = vmatpush1.bf16.msra.mxu0 %v1633
        %2217 = vmatprep.subr.bf16.mxu0 0
        %2218 = vmatpush1.bf16.msra.mxu0 %v1634
        %2219 = vmatprep.subr.bf16.mxu0 0
        %2220 = vmatpush1.bf16.msra.mxu0 %v1635
        %2221 = vmatprep.subr.bf16.mxu0 0
        %2222 = vmatpush1.bf16.msra.mxu0 %v1636
        %2223 = vmatprep.subr.bf16.mxu0 0
        %2224 = vmatpush1.bf16.msra.mxu0 %v1637
        %2225 = vmatprep.subr.bf16.mxu0 0
        %2226 = vmatpush1.bf16.msra.mxu0 %v1638
        %2227 = vmatprep.subr.bf16.mxu0 0
        %2228 = vmatpush1.bf16.msra.mxu0 %v1639
        %2229 = vmatprep.subr.bf16.mxu0 0
        %2230 = vmatpush1.bf16.msra.mxu0 %v1640
        %2231 = vmatprep.subr.bf16.mxu0 0
        %2232 = vmatpush1.bf16.msra.mxu0 %v1641
        %2233 = vmatprep.subr.bf16.mxu0 0
        %2234 = vmatpush1.bf16.msra.mxu0 %v1642
        %2235 = vmatprep.subr.bf16.mxu0 0
        %2236 = vmatpush1.bf16.msra.mxu0 %v1643
        %2237 = vmatprep.subr.bf16.mxu0 0
        %2238 = vmatpush1.bf16.msra.mxu0 %v1644
        %2239 = vmatprep.subr.bf16.mxu0 0
        %2240 = vmatpush1.bf16.msra.mxu0 %v1645
        %2241 = vmatprep.mubr.bf16.mxu0 %v1025
        %2242 = vmatmul.mubr.bf16.gmra.mrb[0].mxu0 %v961
        %v2243 = vpop.f32.mrb[0].mxu0
        %v2244 = vadd.f32 %v2083, %v2243
        %v2245 = vpop.f32.mrb[0].mxu0
        %v2246 = vpop.f32.mrb[0].mxu0
        %v2247 = vadd.f32 %v2086, %v2246
        %v2248 = vpop.f32.mrb[0].mxu0
        %2249 = vmatprep.mubr.bf16.mxu0 %v1026
        %2250 = vmatmul.mubr.bf16.gmra.mrb[0].mxu0 %v962
        %v2251 = vpop.f32.mrb[0].mxu0
        %v2252 = vadd.f32 %v2091, %v2251
        %v2253 = vpop.f32.mrb[0].mxu0
        %v2254 = vpop.f32.mrb[0].mxu0
        %v2255 = vadd.f32 %v2094, %v2254
        %v2256 = vpop.f32.mrb[0].mxu0
        %2257 = vmatprep.mubr.bf16.mxu0 %v1027
        %2258 = vmatmul.mubr.bf16.gmra.mrb[0].mxu0 %v963
        %v2259 = vpop.f32.mrb[0].mxu0
        %v2260 = vadd.f32 %v2099, %v2259
        %v2261 = vpop.f32.mrb[0].mxu0
        %v2262 = vpop.f32.mrb[0].mxu0
        %v2263 = vadd.f32 %v2102, %v2262
        %v2264 = vpop.f32.mrb[0].mxu0
        %2265 = vmatprep.mubr.bf16.mxu0 %v1028
        %2266 = vmatmul.mubr.bf16.gmra.mrb[0].mxu0 %v964
        %v2267 = vpop.f32.mrb[0].mxu0
        %v2268 = vadd.f32 %v2107, %v2267
        %v2269 = vpop.f32.mrb[0].mxu0
        %v2270 = vpop.f32.mrb[0].mxu0
        %v2271 = vadd.f32 %v2110, %v2270
        %v2272 = vpop.f32.mrb[0].mxu0
        %2273 = vmatprep.mubr.bf16.mxu0 %v1029
        %2274 = vmatmul.mubr.bf16.gmra.mrb[0].mxu0 %v965
        %v2275 = vpop.f32.mrb[0].mxu0
        %v2276 = vadd.f32 %v2115, %v2275
        %v2277 = vpop.f32.mrb[0].mxu0
        %v2278 = vpop.f32.mrb[0].mxu0
        %v2279 = vadd.f32 %v2118, %v2278
        %v2280 = vpop.f32.mrb[0].mxu0
        %2281 = vmatprep.mubr.bf16.mxu0 %v1030
        %2282 = vmatmul.mubr.bf16.gmra.mrb[0].mxu0 %v966
        %v2283 = vpop.f32.mrb[0].mxu0
        %v2284 = vadd.f32 %v2123, %v2283
        %v2285 = vpop.f32.mrb[0].mxu0
        %v2286 = vpop.f32.mrb[0].mxu0
        %v2287 = vadd.f32 %v2126, %v2286
        %v2288 = vpop.f32.mrb[0].mxu0
        %2289 = vmatprep.mubr.bf16.mxu0 %v1031
        %2290 = vmatmul.mubr.bf16.gmra.mrb[0].mxu0 %v967
        %v2291 = vpop.f32.mrb[0].mxu0
        %v2292 = vadd.f32 %v2131, %v2291
        %v2293 = vpop.f32.mrb[0].mxu0
        %v2294 = vpop.f32.mrb[0].mxu0
        %v2295 = vadd.f32 %v2134, %v2294
        %v2296 = vpop.f32.mrb[0].mxu0
        %2297 = vmatprep.mubr.bf16.mxu0 %v1032
        %2298 = vmatmul.mubr.bf16.gmra.mrb[0].mxu0 %v968
        %v2299 = vpop.f32.mrb[0].mxu0
        %v2300 = vadd.f32 %v2139, %v2299
        %v2301 = vpop.f32.mrb[0].mxu0
        %v2302 = vpop.f32.mrb[0].mxu0
        %v2303 = vadd.f32 %v2142, %v2302
        %v2304 = vpop.f32.mrb[0].mxu0
        %2305 = vmatprep.mubr.bf16.mxu0 %v1033
        %2306 = vmatmul.mubr.bf16.gmra.mrb[0].mxu0 %v969
        %v2307 = vpop.f32.mrb[0].mxu0
        %v2308 = vadd.f32 %v2147, %v2307
        %v2309 = vpop.f32.mrb[0].mxu0
        %v2310 = vpop.f32.mrb[0].mxu0
        %v2311 = vadd.f32 %v2150, %v2310
        %v2312 = vpop.f32.mrb[0].mxu0
        %2313 = vmatprep.mubr.bf16.mxu0 %v1034
        %2314 = vmatmul.mubr.bf16.gmra.mrb[0].mxu0 %v970
        %v2315 = vpop.f32.mrb[0].mxu0
        %v2316 = vadd.f32 %v2155, %v2315
        %v2317 = vpop.f32.mrb[0].mxu0
        %v2318 = vpop.f32.mrb[0].mxu0
        %v2319 = vadd.f32 %v2158, %v2318
        %v2320 = vpop.f32.mrb[0].mxu0
        %2321 = vmatprep.mubr.bf16.mxu0 %v1035
        %2322 = vmatmul.mubr.bf16.gmra.mrb[0].mxu0 %v971
        %v2323 = vpop.f32.mrb[0].mxu0
        %v2324 = vadd.f32 %v2163, %v2323
        %v2325 = vpop.f32.mrb[0].mxu0
        %v2326 = vpop.f32.mrb[0].mxu0
        %v2327 = vadd.f32 %v2166, %v2326
        %v2328 = vpop.f32.mrb[0].mxu0
        %2329 = vmatprep.mubr.bf16.mxu0 %v1036
        %2330 = vmatmul.mubr.bf16.gmra.mrb[0].mxu0 %v972
        %v2331 = vpop.f32.mrb[0].mxu0
        %v2332 = vadd.f32 %v2171, %v2331
        %v2333 = vpop.f32.mrb[0].mxu0
        %v2334 = vpop.f32.mrb[0].mxu0
        %v2335 = vadd.f32 %v2174, %v2334
        %v2336 = vpop.f32.mrb[0].mxu0
        %2337 = vmatprep.mubr.bf16.mxu0 %v1037
        %2338 = vmatmul.mubr.bf16.gmra.mrb[0].mxu0 %v973
        %v2339 = vpop.f32.mrb[0].mxu0
        %v2340 = vadd.f32 %v2179, %v2339
        %v2341 = vpop.f32.mrb[0].mxu0
        %v2342 = vpop.f32.mrb[0].mxu0
        %v2343 = vadd.f32 %v2182, %v2342
        %v2344 = vpop.f32.mrb[0].mxu0
        %2345 = vmatprep.mubr.bf16.mxu0 %v1038
        %2346 = vmatmul.mubr.bf16.gmra.mrb[0].mxu0 %v974
        %v2347 = vpop.f32.mrb[0].mxu0
        %v2348 = vadd.f32 %v2187, %v2347
        %v2349 = vpop.f32.mrb[0].mxu0
        %v2350 = vpop.f32.mrb[0].mxu0
        %v2351 = vadd.f32 %v2190, %v2350
        %v2352 = vpop.f32.mrb[0].mxu0
        %2353 = vmatprep.mubr.bf16.mxu0 %v1125
        %2354 = vmatmul.mubr.bf16.gmra.mrb[0].mxu0 %v1121
        %v2355 = vpop.f32.mrb[0].mxu0
        %v2356 = vadd.f32 %v2195, %v2355
        %v2357 = vpop.f32.mrb[0].mxu0
        %v2358 = vpop.f32.mrb[0].mxu0
        %v2359 = vadd.f32 %v2198, %v2358
        %v2360 = vpop.f32.mrb[0].mxu0
        %2361 = vmatprep.mubr.bf16.mxu0 %v1137
        %2362 = vmatmul.mubr.bf16.gmra.mrb[0].mxu0 %v1133
        %v2363 = vpop.f32.mrb[0].mxu0
        %v2364 = vadd.f32 %v2203, %v2363
        %v2365 = vpop.f32.mrb[0].mxu0
        %v2366 = vpop.f32.mrb[0].mxu0
        %v2367 = vadd.f32 %v2206, %v2366
        %v2368 = vpop.f32.mrb[0].mxu0
        %2369 = vdwg.mxu0
        %2370 = vmatprep.subr.bf16.mxu0 0
        %2371 = vmatpush1.bf16.msra.mxu0 %v1646
        %2372 = vmatprep.subr.bf16.mxu0 0
        %2373 = vmatpush1.bf16.msra.mxu0 %v1647
        %2374 = vmatprep.subr.bf16.mxu0 0
        %2375 = vmatpush1.bf16.msra.mxu0 %v1648
        %2376 = vmatprep.subr.bf16.mxu0 0
        %2377 = vmatpush1.bf16.msra.mxu0 %v1649
        %2378 = vmatprep.subr.bf16.mxu0 0
        %2379 = vmatpush1.bf16.msra.mxu0 %v1650
        %2380 = vmatprep.subr.bf16.mxu0 0
        %2381 = vmatpush1.bf16.msra.mxu0 %v1651
        %2382 = vmatprep.subr.bf16.mxu0 0
        %2383 = vmatpush1.bf16.msra.mxu0 %v1652
        %2384 = vmatprep.subr.bf16.mxu0 0
        %2385 = vmatpush1.bf16.msra.mxu0 %v1653
        %2386 = vmatprep.subr.bf16.mxu0 0
        %2387 = vmatpush1.bf16.msra.mxu0 0
        %2388 = vmatprep.subr.bf16.mxu0 0
        %2389 = vmatpush1.bf16.msra.mxu0 0
        %2390 = vmatprep.subr.bf16.mxu0 0
        %2391 = vmatpush1.bf16.msra.mxu0 0
        %2392 = vmatprep.subr.bf16.mxu0 0
        %2393 = vmatpush1.bf16.msra.mxu0 0
        %2394 = vmatprep.subr.bf16.mxu0 0
        %2395 = vmatpush1.bf16.msra.mxu0 0
        %2396 = vmatprep.subr.bf16.mxu0 0
        %2397 = vmatpush1.bf16.msra.mxu0 0
        %2398 = vmatprep.subr.bf16.mxu0 0
        %2399 = vmatpush1.bf16.msra.mxu0 0
        %2400 = vmatprep.subr.bf16.mxu0 0
        %2401 = vmatpush1.bf16.msra.mxu0 0
        %2402 = vmatprep.mubr.bf16.mxu0 0
        %2403 = vmatmul.mubr.bf16.gmra.mrb[0].mxu0 %v1089
        %v2404 = vpop.f32.mrb[0].mxu0
        %v2405 = vadd.f32 %v2244, %v2404
        %v2406 = vpop.f32.mrb[0].mxu0
        %v2407 = vpop.f32.mrb[0].mxu0
        %v2408 = vadd.f32 %v2247, %v2407
        %v2409 = vpop.f32.mrb[0].mxu0
        %2410 = vmatprep.mubr.bf16.mxu0 0
        %2411 = vmatmul.mubr.bf16.gmra.mrb[0].mxu0 %v1090
        %v2412 = vpop.f32.mrb[0].mxu0
        %v2413 = vadd.f32 %v2252, %v2412
        %v2414 = vpop.f32.mrb[0].mxu0
        %v2415 = vpop.f32.mrb[0].mxu0
        %v2416 = vadd.f32 %v2255, %v2415
        %v2417 = vpop.f32.mrb[0].mxu0
        %2418 = vmatprep.mubr.bf16.mxu0 0
        %2419 = vmatmul.mubr.bf16.gmra.mrb[0].mxu0 %v1091
        %v2420 = vpop.f32.mrb[0].mxu0
        %v2421 = vadd.f32 %v2260, %v2420
        %v2422 = vpop.f32.mrb[0].mxu0
        %v2423 = vpop.f32.mrb[0].mxu0
        %v2424 = vadd.f32 %v2263, %v2423
        %v2425 = vpop.f32.mrb[0].mxu0
        %2426 = vmatprep.mubr.bf16.mxu0 0
        %2427 = vmatmul.mubr.bf16.gmra.mrb[0].mxu0 %v1092
        %v2428 = vpop.f32.mrb[0].mxu0
        %v2429 = vadd.f32 %v2268, %v2428
        %v2430 = vpop.f32.mrb[0].mxu0
        %v2431 = vpop.f32.mrb[0].mxu0
        %v2432 = vadd.f32 %v2271, %v2431
        %v2433 = vpop.f32.mrb[0].mxu0
        %2434 = vmatprep.mubr.bf16.mxu0 0
        %2435 = vmatmul.mubr.bf16.gmra.mrb[0].mxu0 %v1093
        %v2436 = vpop.f32.mrb[0].mxu0
        %v2437 = vadd.f32 %v2276, %v2436
        %v2438 = vpop.f32.mrb[0].mxu0
        %v2439 = vpop.f32.mrb[0].mxu0
        %v2440 = vadd.f32 %v2279, %v2439
        %v2441 = vpop.f32.mrb[0].mxu0
        %2442 = vmatprep.mubr.bf16.mxu0 0
        %2443 = vmatmul.mubr.bf16.gmra.mrb[0].mxu0 %v1094
        %v2444 = vpop.f32.mrb[0].mxu0
        %v2445 = vadd.f32 %v2284, %v2444
        %v2446 = vpop.f32.mrb[0].mxu0
        %v2447 = vpop.f32.mrb[0].mxu0
        %v2448 = vadd.f32 %v2287, %v2447
        %v2449 = vpop.f32.mrb[0].mxu0
        %2450 = vmatprep.mubr.bf16.mxu0 0
        %2451 = vmatmul.mubr.bf16.gmra.mrb[0].mxu0 %v1095
        %v2452 = vpop.f32.mrb[0].mxu0
        %v2453 = vadd.f32 %v2292, %v2452
        %v2454 = vpop.f32.mrb[0].mxu0
        %v2455 = vpop.f32.mrb[0].mxu0
        %v2456 = vadd.f32 %v2295, %v2455
        %v2457 = vpop.f32.mrb[0].mxu0
        %2458 = vmatprep.mubr.bf16.mxu0 0
        %2459 = vmatmul.mubr.bf16.gmra.mrb[0].mxu0 %v1096
        %v2460 = vpop.f32.mrb[0].mxu0
        %v2461 = vadd.f32 %v2300, %v2460
        %v2462 = vpop.f32.mrb[0].mxu0
        %v2463 = vpop.f32.mrb[0].mxu0
        %v2464 = vadd.f32 %v2303, %v2463
        %v2465 = vpop.f32.mrb[0].mxu0
        %2466 = vmatprep.mubr.bf16.mxu0 0
        %2467 = vmatmul.mubr.bf16.gmra.mrb[0].mxu0 %v1097
        %v2468 = vpop.f32.mrb[0].mxu0
        %v2469 = vadd.f32 %v2308, %v2468
        %v2470 = vpop.f32.mrb[0].mxu0
        %v2471 = vpop.f32.mrb[0].mxu0
        %v2472 = vadd.f32 %v2311, %v2471
        %v2473 = vpop.f32.mrb[0].mxu0
        %2474 = vmatprep.mubr.bf16.mxu0 0
        %2475 = vmatmul.mubr.bf16.gmra.mrb[0].mxu0 %v1098
        %v2476 = vpop.f32.mrb[0].mxu0
        %v2477 = vadd.f32 %v2316, %v2476
        %v2478 = vpop.f32.mrb[0].mxu0
        %v2479 = vpop.f32.mrb[0].mxu0
        %v2480 = vadd.f32 %v2319, %v2479
        %v2481 = vpop.f32.mrb[0].mxu0
        %2482 = vmatprep.mubr.bf16.mxu0 0
        %2483 = vmatmul.mubr.bf16.gmra.mrb[0].mxu0 %v1099
        %v2484 = vpop.f32.mrb[0].mxu0
        %v2485 = vadd.f32 %v2324, %v2484
        %v2486 = vpop.f32.mrb[0].mxu0
        %v2487 = vpop.f32.mrb[0].mxu0
        %v2488 = vadd.f32 %v2327, %v2487
        %v2489 = vpop.f32.mrb[0].mxu0
        %2490 = vmatprep.mubr.bf16.mxu0 0
        %2491 = vmatmul.mubr.bf16.gmra.mrb[0].mxu0 %v1100
        %v2492 = vpop.f32.mrb[0].mxu0
        %v2493 = vadd.f32 %v2332, %v2492
        %v2494 = vpop.f32.mrb[0].mxu0
        %v2495 = vpop.f32.mrb[0].mxu0
        %v2496 = vadd.f32 %v2335, %v2495
        %v2497 = vpop.f32.mrb[0].mxu0
        %2498 = vmatprep.mubr.bf16.mxu0 0
        %2499 = vmatmul.mubr.bf16.gmra.mrb[0].mxu0 %v1101
        %v2500 = vpop.f32.mrb[0].mxu0
        %v2501 = vadd.f32 %v2340, %v2500
        %v2502 = vpop.f32.mrb[0].mxu0
        %v2503 = vpop.f32.mrb[0].mxu0
        %v2504 = vadd.f32 %v2343, %v2503
        %v2505 = vpop.f32.mrb[0].mxu0
        %2506 = vmatprep.mubr.bf16.mxu0 0
        %2507 = vmatmul.mubr.bf16.gmra.mrb[0].mxu0 %v1102
        %v2508 = vpop.f32.mrb[0].mxu0
        %v2509 = vadd.f32 %v2348, %v2508
        %v2510 = vpop.f32.mrb[0].mxu0
        %v2511 = vpop.f32.mrb[0].mxu0
        %v2512 = vadd.f32 %v2351, %v2511
        %v2513 = vpop.f32.mrb[0].mxu0
        %2514 = vmatprep.mubr.bf16.mxu0 0
        %2515 = vmatmul.mubr.bf16.gmra.mrb[0].mxu0 %v1129
        %v2516 = vpop.f32.mrb[0].mxu0
        %v2517 = vadd.f32 %v2356, %v2516
        %v2518 = vpop.f32.mrb[0].mxu0
        %v2519 = vpop.f32.mrb[0].mxu0
        %v2520 = vadd.f32 %v2359, %v2519
        %v2521 = vpop.f32.mrb[0].mxu0
        %2522 = vmatprep.mubr.bf16.mxu0 0
        %2523 = vmatmul.mubr.bf16.gmra.mrb[0].mxu0 %v1141
        %v2524 = vpop.f32.mrb[0].mxu0
        %v2525 = vadd.f32 %v2364, %v2524
        %v2526 = vpop.f32.mrb[0].mxu0
        %v2527 = vpop.f32.mrb[0].mxu0
        %v2528 = vadd.f32 %v2367, %v2527
        %v2529 = vpop.f32.mrb[0].mxu0
        %2530 = vdwg.mxu0
        %v2531 = vadd.f32 %v2405, %v2408
        %v2532 = vadd.f32 %v2531, %v2413
        %v2533 = vadd.f32 %v2532, %v2416
        %v2534 = vadd.f32 %v2533, %v2421
        %v2535 = vadd.f32 %v2534, %v2424
        %v2536 = vadd.f32 %v2535, %v2429
        %v2537 = vadd.f32 %v2536, %v2432
        %v2538 = vadd.f32 %v2537, %v2437
        %v2539 = vadd.f32 %v2538, %v2440
        %v2540 = vadd.f32 %v2539, %v2445
        %v2541 = vadd.f32 %v2540, %v2448
        %v2542 = vadd.f32 %v2541, %v2453
        %v2543 = vadd.f32 %v2542, %v2456
        %v2544 = vadd.f32 %v2543, %v2461
        %v2545 = vadd.f32 %v2544, %v2464
        %v2546 = vadd.f32 %v2545, %v2469
        %v2547 = vadd.f32 %v2546, %v2472
        %v2548 = vadd.f32 %v2547, %v2477
        %v2549 = vadd.f32 %v2548, %v2480
        %v2550 = vadd.f32 %v2549, %v2485
        %v2551 = vadd.f32 %v2550, %v2488
        %v2552 = vadd.f32 %v2551, %v2493
        %v2553 = vadd.f32 %v2552, %v2496
        %v2554 = vadd.f32 %v2553, %v2501
        %v2555 = vadd.f32 %v2554, %v2504
        %v2556 = vadd.f32 %v2555, %v2509
        %v2557 = vadd.f32 %v2556, %v2512
        %v2558 = vadd.f32 %v2557, %v2517
        %v2559 = vadd.f32 %v2558, %v2520
        %v2560 = vadd.f32 %v2559, %v2525
        %v2561 = vadd.f32 %v2560, %v2528
        %v2562 = vrot.slane %v2561, 4
        %v2563 = vadd.f32 %v2561, %v2562
        %v2564 = vrot.slane %v2563, 2
        %v2565 = vadd.f32 %v2563, %v2564
        %v2566 = vrot.slane %v2565, 1
        %v2567 = vadd.f32 %v2565, %v2566
        %v2568 = vmul.f32 %v2405, %v2405
        %v2569 = vmul.f32 %v2408, %v2408
        %v2570 = vmul.f32 %v2413, %v2413
        %v2571 = vmul.f32 %v2416, %v2416
        %v2572 = vmul.f32 %v2421, %v2421
        %v2573 = vmul.f32 %v2424, %v2424
        %v2574 = vmul.f32 %v2429, %v2429
        %v2575 = vmul.f32 %v2432, %v2432
        %v2576 = vmul.f32 %v2437, %v2437
        %v2577 = vmul.f32 %v2440, %v2440
        %v2578 = vmul.f32 %v2445, %v2445
        %v2579 = vmul.f32 %v2448, %v2448
        %v2580 = vmul.f32 %v2453, %v2453
        %v2581 = vmul.f32 %v2456, %v2456
        %v2582 = vmul.f32 %v2461, %v2461
        %v2583 = vmul.f32 %v2464, %v2464
        %v2584 = vmul.f32 %v2469, %v2469
        %v2585 = vmul.f32 %v2472, %v2472
        %v2586 = vmul.f32 %v2477, %v2477
        %v2587 = vmul.f32 %v2480, %v2480
        %v2588 = vmul.f32 %v2485, %v2485
        %v2589 = vmul.f32 %v2488, %v2488
        %v2590 = vmul.f32 %v2493, %v2493
        %v2591 = vmul.f32 %v2496, %v2496
        %v2592 = vmul.f32 %v2501, %v2501
        %v2593 = vmul.f32 %v2504, %v2504
        %v2594 = vmul.f32 %v2509, %v2509
        %v2595 = vmul.f32 %v2512, %v2512
        %v2596 = vmul.f32 %v2517, %v2517
        %v2597 = vmul.f32 %v2520, %v2520
        %v2598 = vmul.f32 %v2525, %v2525
        %v2599 = vmul.f32 %v2528, %v2528
        %v2600 = vadd.f32 %v2568, %v2569
        %v2601 = vadd.f32 %v2600, %v2570
        %v2602 = vadd.f32 %v2601, %v2571
        %v2603 = vadd.f32 %v2602, %v2572
        %v2604 = vadd.f32 %v2603, %v2573
        %v2605 = vadd.f32 %v2604, %v2574
        %v2606 = vadd.f32 %v2605, %v2575
        %v2607 = vadd.f32 %v2606, %v2576
        %v2608 = vadd.f32 %v2607, %v2577
        %v2609 = vadd.f32 %v2608, %v2578
        %v2610 = vadd.f32 %v2609, %v2579
        %v2611 = vadd.f32 %v2610, %v2580
        %v2612 = vadd.f32 %v2611, %v2581
        %v2613 = vadd.f32 %v2612, %v2582
        %v2614 = vadd.f32 %v2613, %v2583
        %v2615 = vadd.f32 %v2614, %v2584
        %v2616 = vadd.f32 %v2615, %v2585
        %v2617 = vadd.f32 %v2616, %v2586
        %v2618 = vadd.f32 %v2617, %v2587
        %v2619 = vadd.f32 %v2618, %v2588
        %v2620 = vadd.f32 %v2619, %v2589
        %v2621 = vadd.f32 %v2620, %v2590
        %v2622 = vadd.f32 %v2621, %v2591
        %v2623 = vadd.f32 %v2622, %v2592
        %v2624 = vadd.f32 %v2623, %v2593
        %v2625 = vadd.f32 %v2624, %v2594
        %v2626 = vadd.f32 %v2625, %v2595
        %v2627 = vadd.f32 %v2626, %v2596
        %v2628 = vadd.f32 %v2627, %v2597
        %v2629 = vadd.f32 %v2628, %v2598
        %v2630 = vadd.f32 %v2629, %v2599
        %v2631 = vrot.slane %v2630, 4
        %v2632 = vadd.f32 %v2630, %v2631
        %v2633 = vrot.slane %v2632, 2
        %v2634 = vadd.f32 %v2632, %v2633
        %v2635 = vrot.slane %v2634, 1
        %v2636 = vadd.f32 %v2634, %v2635
        %vm2637 = vcmask 1040384
        %v2638 = vsel %vm2637, %v2567, %v2636
        %2639 = vst [vmem:[%s253] sm:$0x3] %v2638
        %2640 = vst [vmem:[%s246] sm:$0xf] 0
        %2641 = vst [vmem:[%s246 + $0x4] sm:$0xf] 0
        %2642 = vst [vmem:[%s246 + $0x8] sm:$0x1] 0
        %s2643 = scalar_lea.vmem %s246, 204 [#allocation8]
        %2644 = vst [vmem:[%s2643] sm:$0xf] 0
        %2645 = vst [vmem:[%s2643 + $0x4] sm:$0xf] 0
        %2646 = vst [vmem:[%s2643 + $0x8] sm:$0x1] 0
        %vm2647 = vcmask 1040384
        %vm2648 = vsmask.f32 256
        %vm2649 = vmand %vm2647, %vm2648
        %v2650 = vld [vmem:[%s246] sm:$0x1]
        %v2651 = vsel %vm2649, 0, %v2650
        %2652 = vst [vmem:[%s246] sm:$0x1] %v2651
        %v2653 = vld [vmem:[%s246 + $0xc] sm:$0x1]
        %v2654 = vsel %vm2649, 0, %v2653
        %2655 = vst [vmem:[%s246 + $0xc] sm:$0x1] %v2654
        %v2656 = vld [vmem:[%s246 + $0x18] sm:$0x1]
        %v2657 = vsel %vm2649, 0, %v2656
        %2658 = vst [vmem:[%s246 + $0x18] sm:$0x1] %v2657
        %v2659 = vld [vmem:[%s246 + $0x24] sm:$0x1]
        %v2660 = vsel %vm2649, 0, %v2659
        %2661 = vst [vmem:[%s246 + $0x24] sm:$0x1] %v2660
        %v2662 = vld [vmem:[%s246 + $0x30] sm:$0x1]
        %v2663 = vsel %vm2649, 0, %v2662
        %2664 = vst [vmem:[%s246 + $0x30] sm:$0x1] %v2663
        %v2665 = vld [vmem:[%s246 + $0x3c] sm:$0x1]
        %v2666 = vsel %vm2649, 0, %v2665
        %2667 = vst [vmem:[%s246 + $0x3c] sm:$0x1] %v2666
        %v2668 = vld [vmem:[%s246 + $0x48] sm:$0x1]
        %v2669 = vsel %vm2649, 0, %v2668
        %2670 = vst [vmem:[%s246 + $0x48] sm:$0x1] %v2669
        %v2671 = vld [vmem:[%s246 + $0x54] sm:$0x1]
        %v2672 = vsel %vm2649, 0, %v2671
        %2673 = vst [vmem:[%s246 + $0x54] sm:$0x1] %v2672
        %v2674 = vld [vmem:[%s246 + $0x60] sm:$0x1]
        %v2675 = vsel %vm2649, 0, %v2674
        %2676 = vst [vmem:[%s246 + $0x60] sm:$0x1] %v2675
        %v2677 = vld [vmem:[%s246 + $0x6c] sm:$0x1]
        %v2678 = vsel %vm2649, 0, %v2677
        %2679 = vst [vmem:[%s246 + $0x6c] sm:$0x1] %v2678
        %v2680 = vld [vmem:[%s246 + $0x78] sm:$0x1]
        %v2681 = vsel %vm2649, 0, %v2680
        %2682 = vst [vmem:[%s246 + $0x78] sm:$0x1] %v2681
        %v2683 = vld [vmem:[%s246 + $0x84] sm:$0x1]
        %v2684 = vsel %vm2649, 0, %v2683
        %2685 = vst [vmem:[%s246 + $0x84] sm:$0x1] %v2684
        %v2686 = vld [vmem:[%s246 + $0x90] sm:$0x1]
        %v2687 = vsel %vm2649, 0, %v2686
        %2688 = vst [vmem:[%s246 + $0x90] sm:$0x1] %v2687
        %v2689 = vld [vmem:[%s246 + $0x9c] sm:$0x1]
        %v2690 = vsel %vm2649, 0, %v2689
        %2691 = vst [vmem:[%s246 + $0x9c] sm:$0x1] %v2690
        %v2692 = vld [vmem:[%s246 + $0xa8] sm:$0x1]
        %v2693 = vsel %vm2649, 0, %v2692
        %2694 = vst [vmem:[%s246 + $0xa8] sm:$0x1] %v2693
        %v2695 = vld [vmem:[%s246 + $0xb4] sm:$0x1]
        %v2696 = vsel %vm2649, 0, %v2695
        %2697 = vst [vmem:[%s246 + $0xb4] sm:$0x1] %v2696
        %v2698 = vld [vmem:[%s246 + $0xc0] sm:$0x1]
        %v2699 = vsel %vm2649, 0, %v2698
        %2700 = vst [vmem:[%s246 + $0xc0] sm:$0x1] %v2699
        %v2701 = vld [vmem:[%s246 + $0xcc] sm:$0x1]
        %v2702 = vsel %vm2649, 0, %v2701
        %2703 = vst [vmem:[%s246 + $0xcc] sm:$0x1] %v2702
        %vm2704 = vsmask.f32 7938
        %vm2705 = vmand %vm2647, %vm2704
        %v2706 = vld [vmem:[%s246 + $0x8] sm:$0x1]
        %v2707 = vsel %vm2705, 0, %v2706
        %2708 = vst [vmem:[%s246 + $0x8] sm:$0x1] %v2707
        %v2709 = vld [vmem:[%s246 + $0x14] sm:$0x1]
        %v2710 = vsel %vm2705, 0, %v2709
        %2711 = vst [vmem:[%s246 + $0x14] sm:$0x1] %v2710
        %v2712 = vld [vmem:[%s246 + $0x20] sm:$0x1]
        %v2713 = vsel %vm2705, 0, %v2712
        %2714 = vst [vmem:[%s246 + $0x20] sm:$0x1] %v2713
        %v2715 = vld [vmem:[%s246 + $0x2c] sm:$0x1]
        %v2716 = vsel %vm2705, 0, %v2715
        %2717 = vst [vmem:[%s246 + $0x2c] sm:$0x1] %v2716
        %v2718 = vld [vmem:[%s246 + $0x38] sm:$0x1]
        %v2719 = vsel %vm2705, 0, %v2718
        %2720 = vst [vmem:[%s246 + $0x38] sm:$0x1] %v2719
        %v2721 = vld [vmem:[%s246 + $0x44] sm:$0x1]
        %v2722 = vsel %vm2705, 0, %v2721
        %2723 = vst [vmem:[%s246 + $0x44] sm:$0x1] %v2722
        %v2724 = vld [vmem:[%s246 + $0x50] sm:$0x1]
        %v2725 = vsel %vm2705, 0, %v2724
        %2726 = vst [vmem:[%s246 + $0x50] sm:$0x1] %v2725
        %v2727 = vld [vmem:[%s246 + $0x5c] sm:$0x1]
        %v2728 = vsel %vm2705, 0, %v2727
        %2729 = vst [vmem:[%s246 + $0x5c] sm:$0x1] %v2728
        %v2730 = vld [vmem:[%s246 + $0x68] sm:$0x1]
        %v2731 = vsel %vm2705, 0, %v2730
        %2732 = vst [vmem:[%s246 + $0x68] sm:$0x1] %v2731
        %v2733 = vld [vmem:[%s246 + $0x74] sm:$0x1]
        %v2734 = vsel %vm2705, 0, %v2733
        %2735 = vst [vmem:[%s246 + $0x74] sm:$0x1] %v2734
        %v2736 = vld [vmem:[%s246 + $0x80] sm:$0x1]
        %v2737 = vsel %vm2705, 0, %v2736
        %2738 = vst [vmem:[%s246 + $0x80] sm:$0x1] %v2737
        %v2739 = vld [vmem:[%s246 + $0x8c] sm:$0x1]
        %v2740 = vsel %vm2705, 0, %v2739
        %2741 = vst [vmem:[%s246 + $0x8c] sm:$0x1] %v2740
        %v2742 = vld [vmem:[%s246 + $0x98] sm:$0x1]
        %v2743 = vsel %vm2705, 0, %v2742
        %2744 = vst [vmem:[%s246 + $0x98] sm:$0x1] %v2743
        %v2745 = vld [vmem:[%s246 + $0xa4] sm:$0x1]
        %v2746 = vsel %vm2705, 0, %v2745
        %2747 = vst [vmem:[%s246 + $0xa4] sm:$0x1] %v2746
        %v2748 = vld [vmem:[%s246 + $0xb0] sm:$0x1]
        %v2749 = vsel %vm2705, 0, %v2748
        %2750 = vst [vmem:[%s246 + $0xb0] sm:$0x1] %v2749
        %v2751 = vld [vmem:[%s246 + $0xbc] sm:$0x1]
        %v2752 = vsel %vm2705, 0, %v2751
        %2753 = vst [vmem:[%s246 + $0xbc] sm:$0x1] %v2752
        %v2754 = vld [vmem:[%s246 + $0xc8] sm:$0x1]
        %v2755 = vsel %vm2705, 0, %v2754
        %2756 = vst [vmem:[%s246 + $0xc8] sm:$0x1] %v2755
        %v2757 = vld [vmem:[%s246 + $0xd4] sm:$0x1]
        %v2758 = vsel %vm2705, 0, %v2757
        %2759 = vst [vmem:[%s246 + $0xd4] sm:$0x1] %v2758
        %v2760 = vpack.c.bf16 %v2408, %v2405
        %v2761 = vpack.c.bf16 %v2416, %v2413
        %v2762 = vpack.c.bf16 %v2424, %v2421
        %v2763 = vpack.c.bf16 %v2432, %v2429
        %v2764 = vpack.c.bf16 %v2440, %v2437
        %v2765 = vpack.c.bf16 %v2448, %v2445
        %v2766 = vpack.c.bf16 %v2456, %v2453
        %v2767 = vpack.c.bf16 %v2464, %v2461
        %v2768 = vpack.c.bf16 %v2472, %v2469
        %v2769 = vpack.c.bf16 %v2480, %v2477
        %v2770 = vpack.c.bf16 %v2488, %v2485
        %v2771 = vpack.c.bf16 %v2496, %v2493
        %v2772 = vpack.c.bf16 %v2504, %v2501
        %v2773 = vpack.c.bf16 %v2512, %v2509
        %v2774 = vpack.c.bf16 %v2520, %v2517
        %v2775 = vpack.c.bf16 %v2528, %v2525
        %v2792 = vunpack.c.l.b16 %v2760
        %v2793 = vunpack.c.h.b16 %v2760
        %v2794 = vunpack.c.l.b16 %v2761
        %v2795 = vunpack.c.h.b16 %v2761
        %v2796 = vunpack.c.l.b16 %v2762
        %v2797 = vunpack.c.h.b16 %v2762
        %v2798 = vunpack.c.l.b16 %v2763
        %v2799 = vunpack.c.h.b16 %v2763
        %v2800 = vunpack.c.l.b16 %v2764
        %v2801 = vunpack.c.h.b16 %v2764
        %v2802 = vunpack.c.l.b16 %v2765
        %v2803 = vunpack.c.h.b16 %v2765
        %v2804 = vunpack.c.l.b16 %v2766
        %v2805 = vunpack.c.h.b16 %v2766
        %v2806 = vunpack.c.l.b16 %v2767
        %v2807 = vunpack.c.h.b16 %v2767
        %v2808 = vunpack.c.l.b16 %v2768
        %v2809 = vunpack.c.h.b16 %v2768
        %v2810 = vunpack.c.l.b16 %v2769
        %v2811 = vunpack.c.h.b16 %v2769
        %v2812 = vunpack.c.l.b16 %v2770
        %v2813 = vunpack.c.h.b16 %v2770
        %v2814 = vunpack.c.l.b16 %v2771
        %v2815 = vunpack.c.h.b16 %v2771
        %v2816 = vunpack.c.l.b16 %v2772
        %v2817 = vunpack.c.h.b16 %v2772
        %v2818 = vunpack.c.l.b16 %v2773
        %v2819 = vunpack.c.h.b16 %v2773
        %v2820 = vunpack.c.l.b16 %v2774
        %v2821 = vunpack.c.h.b16 %v2774
        %v2822 = vunpack.c.l.b16 %v2775
        %v2823 = vunpack.c.h.b16 %v2775
        %v2824 = vpack.c.b16 %v2792, %v2792
        %v2825 = vpack.c.b16 %v2793, %v2793
        %v2826 = vpack.c.b16 %v2794, %v2794
        %v2827 = vpack.c.b16 %v2795, %v2795
        %v2828 = vpack.c.b16 %v2796, %v2796
        %v2829 = vpack.c.b16 %v2797, %v2797
        %v2830 = vpack.c.b16 %v2798, %v2798
        %v2831 = vpack.c.b16 %v2799, %v2799
        %v2832 = vpack.c.b16 %v2800, %v2800
        %v2833 = vpack.c.b16 %v2801, %v2801
        %v2834 = vpack.c.b16 %v2802, %v2802
        %v2835 = vpack.c.b16 %v2803, %v2803
        %v2836 = vpack.c.b16 %v2804, %v2804
        %v2837 = vpack.c.b16 %v2805, %v2805
        %v2838 = vpack.c.b16 %v2806, %v2806
        %v2839 = vpack.c.b16 %v2807, %v2807
        %v2840 = vpack.c.b16 %v2808, %v2808
        %v2841 = vpack.c.b16 %v2809, %v2809
        %v2842 = vpack.c.b16 %v2810, %v2810
        %v2843 = vpack.c.b16 %v2811, %v2811
        %v2844 = vpack.c.b16 %v2812, %v2812
        %v2845 = vpack.c.b16 %v2813, %v2813
        %v2846 = vpack.c.b16 %v2814, %v2814
        %v2847 = vpack.c.b16 %v2815, %v2815
        %v2848 = vpack.c.b16 %v2816, %v2816
        %v2849 = vpack.c.b16 %v2817, %v2817
        %v2850 = vpack.c.b16 %v2818, %v2818
        %v2851 = vpack.c.b16 %v2819, %v2819
        %v2852 = vpack.c.b16 %v2820, %v2820
        %v2853 = vpack.c.b16 %v2821, %v2821
        %v2854 = vpack.c.b16 %v2822, %v2822
        %v2855 = vpack.c.b16 %v2823, %v2823
        %vm2856 = vsmask.f32 4368
        %vm2857 = vmor %vm2648, %vm2856
        %v2859 = vshrl.u32 %v2824, 16
        %v2861 = vrot.slane %v2859, 7
        %v2862 = vshll.u32 %v2824, 16
        %v2864 = vor.u32 %v2861, %v2862
        %v2865 = vrot.slane %v2861, 4
        %v2867 = vshrl.u32 %v2825, 16
        %v2869 = vrot.slane %v2867, 7
        %v2870 = vshll.u32 %v2825, 16
        %v2872 = vor.u32 %v2869, %v2870
        %v2873 = vsel %vm2857, %v2865, %v2872
        %v2874 = vrot.slane %v2869, 4
        %v2876 = vshrl.u32 %v2826, 16
        %v2878 = vrot.slane %v2876, 7
        %v2879 = vshll.u32 %v2826, 16
        %v2881 = vor.u32 %v2878, %v2879
        %v2882 = vrot.slane %v2878, 4
        %v2884 = vshrl.u32 %v2827, 16
        %v2886 = vrot.slane %v2884, 7
        %v2887 = vshll.u32 %v2827, 16
        %v2889 = vor.u32 %v2886, %v2887
        %v2890 = vsel %vm2857, %v2882, %v2889
        %v2891 = vrot.slane %v2886, 4
        %v2893 = vshrl.u32 %v2828, 16
        %v2895 = vrot.slane %v2893, 7
        %v2896 = vshll.u32 %v2828, 16
        %v2898 = vor.u32 %v2895, %v2896
        %v2899 = vrot.slane %v2895, 4
        %v2901 = vshrl.u32 %v2829, 16
        %v2903 = vrot.slane %v2901, 7
        %v2904 = vshll.u32 %v2829, 16
        %v2906 = vor.u32 %v2903, %v2904
        %v2907 = vsel %vm2857, %v2899, %v2906
        %v2908 = vrot.slane %v2903, 4
        %v2910 = vshrl.u32 %v2830, 16
        %v2912 = vrot.slane %v2910, 7
        %v2913 = vshll.u32 %v2830, 16
        %v2915 = vor.u32 %v2912, %v2913
        %v2916 = vrot.slane %v2912, 4
        %v2918 = vshrl.u32 %v2831, 16
        %v2920 = vrot.slane %v2918, 7
        %v2921 = vshll.u32 %v2831, 16
        %v2923 = vor.u32 %v2920, %v2921
        %v2924 = vsel %vm2857, %v2916, %v2923
        %v2925 = vrot.slane %v2920, 4
        %v2927 = vshrl.u32 %v2832, 16
        %v2929 = vrot.slane %v2927, 7
        %v2930 = vshll.u32 %v2832, 16
        %v2932 = vor.u32 %v2929, %v2930
        %v2933 = vrot.slane %v2929, 4
        %v2935 = vshrl.u32 %v2833, 16
        %v2937 = vrot.slane %v2935, 7
        %v2938 = vshll.u32 %v2833, 16
        %v2940 = vor.u32 %v2937, %v2938
        %v2941 = vsel %vm2857, %v2933, %v2940
        %v2942 = vrot.slane %v2937, 4
        %v2944 = vshrl.u32 %v2834, 16
        %v2946 = vrot.slane %v2944, 7
        %v2947 = vshll.u32 %v2834, 16
        %v2949 = vor.u32 %v2946, %v2947
        %v2950 = vrot.slane %v2946, 4
        %v2952 = vshrl.u32 %v2835, 16
        %v2954 = vrot.slane %v2952, 7
        %v2955 = vshll.u32 %v2835, 16
        %v2957 = vor.u32 %v2954, %v2955
        %v2958 = vsel %vm2857, %v2950, %v2957
        %v2959 = vrot.slane %v2954, 4
        %v2961 = vshrl.u32 %v2836, 16
        %v2963 = vrot.slane %v2961, 7
        %v2964 = vshll.u32 %v2836, 16
        %v2966 = vor.u32 %v2963, %v2964
        %v2967 = vrot.slane %v2963, 4
        %v2969 = vshrl.u32 %v2837, 16
        %v2971 = vrot.slane %v2969, 7
        %v2972 = vshll.u32 %v2837, 16
        %v2974 = vor.u32 %v2971, %v2972
        %v2975 = vsel %vm2857, %v2967, %v2974
        %v2976 = vrot.slane %v2971, 4
        %v2978 = vshrl.u32 %v2838, 16
        %v2980 = vrot.slane %v2978, 7
        %v2981 = vshll.u32 %v2838, 16
        %v2983 = vor.u32 %v2980, %v2981
        %v2984 = vrot.slane %v2980, 4
        %v2986 = vshrl.u32 %v2839, 16
        %v2988 = vrot.slane %v2986, 7
        %v2989 = vshll.u32 %v2839, 16
        %v2991 = vor.u32 %v2988, %v2989
        %v2992 = vsel %vm2857, %v2984, %v2991
        %v2993 = vrot.slane %v2988, 4
        %v2995 = vshrl.u32 %v2840, 16
        %v2997 = vrot.slane %v2995, 7
        %v2998 = vshll.u32 %v2840, 16
        %v3000 = vor.u32 %v2997, %v2998
        %v3001 = vrot.slane %v2997, 4
        %v3003 = vshrl.u32 %v2841, 16
        %v3005 = vrot.slane %v3003, 7
        %v3006 = vshll.u32 %v2841, 16
        %v3008 = vor.u32 %v3005, %v3006
        %v3009 = vsel %vm2857, %v3001, %v3008
        %v3010 = vrot.slane %v3005, 4
        %v3012 = vshrl.u32 %v2842, 16
        %v3014 = vrot.slane %v3012, 7
        %v3015 = vshll.u32 %v2842, 16
        %v3017 = vor.u32 %v3014, %v3015
        %v3018 = vrot.slane %v3014, 4
        %v3020 = vshrl.u32 %v2843, 16
        %v3022 = vrot.slane %v3020, 7
        %v3023 = vshll.u32 %v2843, 16
        %v3025 = vor.u32 %v3022, %v3023
        %v3026 = vsel %vm2857, %v3018, %v3025
        %v3027 = vrot.slane %v3022, 4
        %v3029 = vshrl.u32 %v2844, 16
        %v3031 = vrot.slane %v3029, 7
        %v3032 = vshll.u32 %v2844, 16
        %v3034 = vor.u32 %v3031, %v3032
        %v3035 = vrot.slane %v3031, 4
        %v3037 = vshrl.u32 %v2845, 16
        %v3039 = vrot.slane %v3037, 7
        %v3040 = vshll.u32 %v2845, 16
        %v3042 = vor.u32 %v3039, %v3040
        %v3043 = vsel %vm2857, %v3035, %v3042
        %v3044 = vrot.slane %v3039, 4
        %v3046 = vshrl.u32 %v2846, 16
        %v3048 = vrot.slane %v3046, 7
        %v3049 = vshll.u32 %v2846, 16
        %v3051 = vor.u32 %v3048, %v3049
        %v3052 = vrot.slane %v3048, 4
        %v3054 = vshrl.u32 %v2847, 16
        %v3056 = vrot.slane %v3054, 7
        %v3057 = vshll.u32 %v2847, 16
        %v3059 = vor.u32 %v3056, %v3057
        %v3060 = vsel %vm2857, %v3052, %v3059
        %v3061 = vrot.slane %v3056, 4
        %v3063 = vshrl.u32 %v2848, 16
        %v3065 = vrot.slane %v3063, 7
        %v3066 = vshll.u32 %v2848, 16
        %v3068 = vor.u32 %v3065, %v3066
        %v3069 = vrot.slane %v3065, 4
        %v3071 = vshrl.u32 %v2849, 16
        %v3073 = vrot.slane %v3071, 7
        %v3074 = vshll.u32 %v2849, 16
        %v3076 = vor.u32 %v3073, %v3074
        %v3077 = vsel %vm2857, %v3069, %v3076
        %v3078 = vrot.slane %v3073, 4
        %v3080 = vshrl.u32 %v2850, 16
        %v3082 = vrot.slane %v3080, 7
        %v3083 = vshll.u32 %v2850, 16
        %v3085 = vor.u32 %v3082, %v3083
        %v3086 = vrot.slane %v3082, 4
        %v3088 = vshrl.u32 %v2851, 16
        %v3090 = vrot.slane %v3088, 7
        %v3091 = vshll.u32 %v2851, 16
        %v3093 = vor.u32 %v3090, %v3091
        %v3094 = vsel %vm2857, %v3086, %v3093
        %v3095 = vrot.slane %v3090, 4
        %v3097 = vshrl.u32 %v2852, 16
        %v3099 = vrot.slane %v3097, 7
        %v3100 = vshll.u32 %v2852, 16
        %v3102 = vor.u32 %v3099, %v3100
        %v3103 = vrot.slane %v3099, 4
        %v3105 = vshrl.u32 %v2853, 16
        %v3107 = vrot.slane %v3105, 7
        %v3108 = vshll.u32 %v2853, 16
        %v3110 = vor.u32 %v3107, %v3108
        %v3111 = vsel %vm2857, %v3103, %v3110
        %v3112 = vrot.slane %v3107, 4
        %v3114 = vshrl.u32 %v2854, 16
        %v3116 = vrot.slane %v3114, 7
        %v3117 = vshll.u32 %v2854, 16
        %v3119 = vor.u32 %v3116, %v3117
        %v3120 = vrot.slane %v3116, 4
        %v3122 = vshrl.u32 %v2855, 16
        %v3124 = vrot.slane %v3122, 7
        %v3125 = vshll.u32 %v2855, 16
        %v3127 = vor.u32 %v3124, %v3125
        %v3128 = vsel %vm2857, %v3120, %v3127
        %v3129 = vrot.slane %v3124, 4
        %s3178 = scalar_lea.vmem %s246, 12 [#allocation8]
        %vm3179 = vcmask 1043456
        %vm3180 = vmand %vm3179, %vm2704
        %v3181 = vld [vmem:[%s3178] sm:$0xf]
        %v3182 = vsel %vm3180, %v2864, %v3181
        %3183 = vst [vmem:[%s3178] sm:$0xf] %v3182
        %3184 = vst [vmem:[%s3178 + $0x4] sm:$0xf] %v2873
        %v3185 = vld [vmem:[%s3178 + $0x8] sm:$0x1]
        %v3186 = vsel %vm2649, %v2874, %v3185
        %3187 = vst [vmem:[%s3178 + $0x8] sm:$0x1] %v3186
        %v3188 = vld [vmem:[%s3178 + $0xc] sm:$0xf]
        %v3189 = vsel %vm3180, %v2881, %v3188
        %3190 = vst [vmem:[%s3178 + $0xc] sm:$0xf] %v3189
        %3191 = vst [vmem:[%s3178 + $0x10] sm:$0xf] %v2890
        %v3192 = vld [vmem:[%s3178 + $0x14] sm:$0x1]
        %v3193 = vsel %vm2649, %v2891, %v3192
        %3194 = vst [vmem:[%s3178 + $0x14] sm:$0x1] %v3193
        %v3195 = vld [vmem:[%s3178 + $0x18] sm:$0xf]
        %v3196 = vsel %vm3180, %v2898, %v3195
        %3197 = vst [vmem:[%s3178 + $0x18] sm:$0xf] %v3196
        %3198 = vst [vmem:[%s3178 + $0x1c] sm:$0xf] %v2907
        %v3199 = vld [vmem:[%s3178 + $0x20] sm:$0x1]
        %v3200 = vsel %vm2649, %v2908, %v3199
        %3201 = vst [vmem:[%s3178 + $0x20] sm:$0x1] %v3200
        %v3202 = vld [vmem:[%s3178 + $0x24] sm:$0xf]
        %v3203 = vsel %vm3180, %v2915, %v3202
        %3204 = vst [vmem:[%s3178 + $0x24] sm:$0xf] %v3203
        %3205 = vst [vmem:[%s3178 + $0x28] sm:$0xf] %v2924
        %v3206 = vld [vmem:[%s3178 + $0x2c] sm:$0x1]
        %v3207 = vsel %vm2649, %v2925, %v3206
        %3208 = vst [vmem:[%s3178 + $0x2c] sm:$0x1] %v3207
        %v3209 = vld [vmem:[%s3178 + $0x30] sm:$0xf]
        %v3210 = vsel %vm3180, %v2932, %v3209
        %3211 = vst [vmem:[%s3178 + $0x30] sm:$0xf] %v3210
        %3212 = vst [vmem:[%s3178 + $0x34] sm:$0xf] %v2941
        %v3213 = vld [vmem:[%s3178 + $0x38] sm:$0x1]
        %v3214 = vsel %vm2649, %v2942, %v3213
        %3215 = vst [vmem:[%s3178 + $0x38] sm:$0x1] %v3214
        %v3216 = vld [vmem:[%s3178 + $0x3c] sm:$0xf]
        %v3217 = vsel %vm3180, %v2949, %v3216
        %3218 = vst [vmem:[%s3178 + $0x3c] sm:$0xf] %v3217
        %3219 = vst [vmem:[%s3178 + $0x40] sm:$0xf] %v2958
        %v3220 = vld [vmem:[%s3178 + $0x44] sm:$0x1]
        %v3221 = vsel %vm2649, %v2959, %v3220
        %3222 = vst [vmem:[%s3178 + $0x44] sm:$0x1] %v3221
        %v3223 = vld [vmem:[%s3178 + $0x48] sm:$0xf]
        %v3224 = vsel %vm3180, %v2966, %v3223
        %3225 = vst [vmem:[%s3178 + $0x48] sm:$0xf] %v3224
        %3226 = vst [vmem:[%s3178 + $0x4c] sm:$0xf] %v2975
        %v3227 = vld [vmem:[%s3178 + $0x50] sm:$0x1]
        %v3228 = vsel %vm2649, %v2976, %v3227
        %3229 = vst [vmem:[%s3178 + $0x50] sm:$0x1] %v3228
        %v3230 = vld [vmem:[%s3178 + $0x54] sm:$0xf]
        %v3231 = vsel %vm3180, %v2983, %v3230
        %3232 = vst [vmem:[%s3178 + $0x54] sm:$0xf] %v3231
        %3233 = vst [vmem:[%s3178 + $0x58] sm:$0xf] %v2992
        %v3234 = vld [vmem:[%s3178 + $0x5c] sm:$0x1]
        %v3235 = vsel %vm2649, %v2993, %v3234
        %3236 = vst [vmem:[%s3178 + $0x5c] sm:$0x1] %v3235
        %v3237 = vld [vmem:[%s3178 + $0x60] sm:$0xf]
        %v3238 = vsel %vm3180, %v3000, %v3237
        %3239 = vst [vmem:[%s3178 + $0x60] sm:$0xf] %v3238
        %3240 = vst [vmem:[%s3178 + $0x64] sm:$0xf] %v3009
        %v3241 = vld [vmem:[%s3178 + $0x68] sm:$0x1]
        %v3242 = vsel %vm2649, %v3010, %v3241
        %3243 = vst [vmem:[%s3178 + $0x68] sm:$0x1] %v3242
        %v3244 = vld [vmem:[%s3178 + $0x6c] sm:$0xf]
        %v3245 = vsel %vm3180, %v3017, %v3244
        %3246 = vst [vmem:[%s3178 + $0x6c] sm:$0xf] %v3245
        %3247 = vst [vmem:[%s3178 + $0x70] sm:$0xf] %v3026
        %v3248 = vld [vmem:[%s3178 + $0x74] sm:$0x1]
        %v3249 = vsel %vm2649, %v3027, %v3248
        %3250 = vst [vmem:[%s3178 + $0x74] sm:$0x1] %v3249
        %v3251 = vld [vmem:[%s3178 + $0x78] sm:$0xf]
        %v3252 = vsel %vm3180, %v3034, %v3251
        %3253 = vst [vmem:[%s3178 + $0x78] sm:$0xf] %v3252
        %3254 = vst [vmem:[%s3178 + $0x7c] sm:$0xf] %v3043
        %v3255 = vld [vmem:[%s3178 + $0x80] sm:$0x1]
        %v3256 = vsel %vm2649, %v3044, %v3255
        %3257 = vst [vmem:[%s3178 + $0x80] sm:$0x1] %v3256
        %v3258 = vld [vmem:[%s3178 + $0x84] sm:$0xf]
        %v3259 = vsel %vm3180, %v3051, %v3258
        %3260 = vst [vmem:[%s3178 + $0x84] sm:$0xf] %v3259
        %3261 = vst [vmem:[%s3178 + $0x88] sm:$0xf] %v3060
        %v3262 = vld [vmem:[%s3178 + $0x8c] sm:$0x1]
        %v3263 = vsel %vm2649, %v3061, %v3262
        %3264 = vst [vmem:[%s3178 + $0x8c] sm:$0x1] %v3263
        %v3265 = vld [vmem:[%s3178 + $0x90] sm:$0xf]
        %v3266 = vsel %vm3180, %v3068, %v3265
        %3267 = vst [vmem:[%s3178 + $0x90] sm:$0xf] %v3266
        %3268 = vst [vmem:[%s3178 + $0x94] sm:$0xf] %v3077
        %v3269 = vld [vmem:[%s3178 + $0x98] sm:$0x1]
        %v3270 = vsel %vm2649, %v3078, %v3269
        %3271 = vst [vmem:[%s3178 + $0x98] sm:$0x1] %v3270
        %v3272 = vld [vmem:[%s3178 + $0x9c] sm:$0xf]
        %v3273 = vsel %vm3180, %v3085, %v3272
        %3274 = vst [vmem:[%s3178 + $0x9c] sm:$0xf] %v3273
        %3275 = vst [vmem:[%s3178 + $0xa0] sm:$0xf] %v3094
        %v3276 = vld [vmem:[%s3178 + $0xa4] sm:$0x1]
        %v3277 = vsel %vm2649, %v3095, %v3276
        %3278 = vst [vmem:[%s3178 + $0xa4] sm:$0x1] %v3277
        %v3279 = vld [vmem:[%s3178 + $0xa8] sm:$0xf]
        %v3280 = vsel %vm3180, %v3102, %v3279
        %3281 = vst [vmem:[%s3178 + $0xa8] sm:$0xf] %v3280
        %3282 = vst [vmem:[%s3178 + $0xac] sm:$0xf] %v3111
        %v3283 = vld [vmem:[%s3178 + $0xb0] sm:$0x1]
        %v3284 = vsel %vm2649, %v3112, %v3283
        %3285 = vst [vmem:[%s3178 + $0xb0] sm:$0x1] %v3284
        %v3286 = vld [vmem:[%s3178 + $0xb4] sm:$0xf]
        %v3287 = vsel %vm3180, %v3119, %v3286
        %3288 = vst [vmem:[%s3178 + $0xb4] sm:$0xf] %v3287
        %3289 = vst [vmem:[%s3178 + $0xb8] sm:$0xf] %v3128
        %v3290 = vld [vmem:[%s3178 + $0xbc] sm:$0x1]
        %v3291 = vsel %vm2649, %v3129, %v3290
        %3292 = vst [vmem:[%s3178 + $0xbc] sm:$0x1] %v3291
        %s3293 = sand.u32 %s102, 1
        %s3294 = scalar_lea.sflag [#allocation4], %s3293
        %s3295 = sand.u32 %s102, 1
        %s3296 = smul.addr %s3295, 216
        %s3297 = scalar_lea.vmem [#allocation8], %s3296
        %s3298 = sand.u32 %s128, 1
        %s3299 = scalar_lea.sflag [#allocation10], %s3298
        %s3300 = sand.u32 %s128, 1
        %s3301 = smul.addr %s3300, 2
        %s3302 = scalar_lea.vmem [#allocation9], %s3301
        // Predicated region
        $region45: #{encoder_block_pallas.3} parent=31 // pred_check
          %p3303 = pneg %p112
        $region46: #{encoder_block_pallas.3} parent=31 // pred_check_branch
          %3305 = sbr.rel (%p3303) target = $region48
        $region47: #{encoder_block_pallas.3} parent=31 // pred_region
          %s3307 = ssub.s32 3456, 3456
          %3308 = vsyncadd %s3294, %s3307
          %s3309 = smul.addr %s26, 54
          %s3310 = smul.addr %s3309, 64
          %s3311 = scalar_lea.hbm %s3, %s3310
          %s3312 = sshll.u32 %s3297, 4
          %s3313 = int_to_ptr.vmem [resolvable:$true] %s3312
          %3318 = dma.vmem_to_hbm [thread:$0]  %s3313, 3456, %s3311, %s3294, 64, 64, 4
        $region48: #{encoder_block_pallas.3} parent=31 // pred_fallthru
          _
        // Predicated region
        $region49: #{encoder_block_pallas.3} parent=31 // pred_check
          %p3319 = pneg %p138
        $region50: #{encoder_block_pallas.3} parent=31 // pred_check_branch
          %3321 = sbr.rel (%p3319) target = $region52
        $region51: #{encoder_block_pallas.3} parent=31 // pred_region
          %s3323 = ssub.s32 32, 32
          %3324 = vsyncadd %s3299, %s3323
          %s3325 = smul.addr %s26, 32
          %s3326 = scalar_lea.hbm %s4, %s3325
          %s3328 = sshll.u32 %s3302, 4
          %s3329 = int_to_ptr.vmem [resolvable:$true] %s3328
          %3331 = dma.vmem_to_hbm [thread:$0]  %s3329, 32, %s3326, %s3299
        $region52: #{encoder_block_pallas.3} parent=31 // pred_fallthru
          _
      $region32: #{encoder_block_pallas.3} parent=5 // pred_fallthru
        _
      %p3332 = scmp.le.s32.totalorder 2, %s21
      // Predicated region
      $region53: #{encoder_block_pallas.3} parent=5 // pred_check
        %p3333 = pneg %p3332
      $region54: #{encoder_block_pallas.3} parent=5 // pred_check_branch
        %3335 = sbr.rel (%p3333) target = $region56
      $region55: #{encoder_block_pallas.3} parent=5 // pred_region
        %s3336 = ssub.s32 %s21, 2
        // Predicated region
        $region57: #{encoder_block_pallas.3} parent=55 // pred_check
          %p3337 = pneg %p118
        $region58: #{encoder_block_pallas.3} parent=55 // pred_check_branch
          %3339 = sbr.rel (%p3337) target = $region60
        $region59: #{encoder_block_pallas.3} parent=55 // pred_region
          %s3340 = sand.u32 %s103, 1
          %s3341 = scalar_lea.sflag [#allocation4], %s3340
          %s3342 = sand.u32 %s103, 1
          %s3343 = smul.addr %s3342, 216
          %s3344 = scalar_lea.vmem [#allocation8], %s3343
          %3345 = dma.done %s3341, 3456
        $region60: #{encoder_block_pallas.3} parent=55 // pred_fallthru
          _
        // Predicated region
        $region61: #{encoder_block_pallas.3} parent=55 // pred_check
          %p3346 = pneg %p144
        $region62: #{encoder_block_pallas.3} parent=55 // pred_check_branch
          %3348 = sbr.rel (%p3346) target = $region64
        $region63: #{encoder_block_pallas.3} parent=55 // pred_region
          %s3349 = sand.u32 %s129, 1
          %s3350 = scalar_lea.sflag [#allocation10], %s3349
          %s3351 = sand.u32 %s129, 1
          %s3352 = smul.addr %s3351, 2
          %s3353 = scalar_lea.vmem [#allocation9], %s3352
          %3354 = dma.done %s3350, 32
        $region64: #{encoder_block_pallas.3} parent=55 // pred_fallthru
          _
      $region56: #{encoder_block_pallas.3} parent=5 // pred_fallthru
        _
    $region6: #{encoder_block_pallas.3} parent=1 // loop_footer
      %s25 = sadd.s32 1, %s21
    $region7: #{encoder_block_pallas.3} parent=1 // loop_footer_branch
      %20 = sbr.rel target = $region3
    $region8: #{encoder_block_pallas.3} parent=1 // loop_exit
      _
    %3355 = vsyncpa [#allocation3], 1
    %s3356 = scalar_lea.sflag [#allocation3], 1
    %3357 = vsyncpa %s3356, 1
    %3358 = vsyncpa [#allocation6], 1
    %3359 = vsyncpa [#allocation4], 1
    %s3360 = scalar_lea.sflag [#allocation4], 1
    %3361 = vsyncpa %s3360, 1
    %3362 = vsyncpa [#allocation10], 1
    %s3363 = scalar_lea.sflag [#allocation10], 1
    %3364 = vsyncpa %s3363, 1

</llo_original>
